<compile_context>
chip_gen: v7x
topology: tpu7x:2x2x1
jax: 0.10.0
libtpu: 0.0.40
codegen_flags: <defaults>
</compile_context>

<pallas_src>
import functools
import math

import jax
import jax.numpy as jnp
from jax import lax
from jax.experimental import pallas as pl
from jax.experimental.pallas import tpu as pltpu


# ------------------------------ configuration --------------------------------

@functools.lru_cache(maxsize=None)
def _vmem_limit_bytes():
    """Per-generation VMEM budget (v5e/v6e: 128 MiB, v7x: 64 MiB per TC)."""
    try:
        cap = pltpu.get_tpu_info().vmem_capacity_bytes
    except Exception:  # pragma: no cover - interpret mode / older runtimes
        cap = 128 * 1024 * 1024
    return int(min(cap * 3 // 4, 100 * 1024 * 1024))


def _compiler_params(dimension_semantics):
    return pltpu.CompilerParams(dimension_semantics=dimension_semantics,
                                vmem_limit_bytes=_vmem_limit_bytes())


def _const_spec(shape):
    """BlockSpec for a grid-invariant parameter block: fetched once and
    single-buffered (default double-buffering duplicates weights that never
    change across grid steps)."""
    zeros = (0,) * len(shape)
    index_map = lambda *_: zeros
    try:
        return pl.BlockSpec(shape, index_map, pipeline_mode=pl.Buffered(1))
    except Exception:  # very old Pallas without pipeline_mode
        return pl.BlockSpec(shape, index_map)


def _seq_tile(T, target=256):
    """Largest seq tile <= target dividing T (256 fills the v6e/v7x MXU rows),
    preferring >= 2 tiles so both v7x TensorCores get work."""
    for cand in (target, 256, 128, 64, 32, 16, 8):
        if cand <= T and T % cand == 0 and T // cand >= 2:
            return cand
    return T


def _row_tile(R, target=512):
    for cand in (target, 512, 256, 128, 64, 32, 16, 8):
        if cand <= R and R % cand == 0:
            return cand
    return R


def _vocab_tile(Vp, target=512):
    for cand in (target, 512, 256, 128):
        if cand <= Vp and Vp % cand == 0 and Vp // cand >= 2:
            return cand
    return Vp


# ------------------------------ in-kernel math --------------------------------

def _layernorm(x, gamma, beta, eps=1e-5):
    mean = jnp.mean(x, axis=-1, keepdims=True)
    var = jnp.mean((x - mean) ** 2, axis=-1, keepdims=True)
    return (x - mean) * lax.rsqrt(var + eps) * gamma + beta


def _gelu_tanh(x):
    # matches torch.nn.GELU(approximate='tanh')
    c = 0.7978845608028654  # sqrt(2/pi)
    return 0.5 * x * (1.0 + jnp.tanh(c * (x + 0.044715 * x * x * x)))


# ----------------------- kernel 1: ln1 + qkv projection -----------------------

def _ln_qkv_kernel(x_ref, g_ref, b_ref, w_ref, bias_ref, o_ref):
    x = x_ref[0]                                            # (tT, C) f32
    h = _layernorm(x, g_ref[...], b_ref[...]).astype(jnp.bfloat16)
    qkv = jnp.dot(h, w_ref[...], preferred_element_type=jnp.float32)
    o_ref[0] = (qkv + bias_ref[...]).astype(o_ref.dtype)


def _ln_qkv(x, g, b, w_qkv, b_qkv, *, tile_t):
    B, T, C = x.shape
    C3 = w_qkv.shape[1]
    cost = pl.CostEstimate(
        flops=2 * B * T * C * C3,
        transcendentals=0,
        bytes_accessed=int(x.size * 4 + w_qkv.size * 2 + B * T * C3 * 2))
    return pl.pallas_call(
        _ln_qkv_kernel,
        out_shape=jax.ShapeDtypeStruct((B, T, C3), jnp.bfloat16),
        grid=(B, T // tile_t),
        in_specs=[
            pl.BlockSpec((1, tile_t, C), lambda bi, ti: (bi, ti, 0)),
            _const_spec((1, C)),
            _const_spec((1, C)),
            _const_spec((C, C3)),
            _const_spec((1, C3)),
        ],
        out_specs=pl.BlockSpec((1, tile_t, C3), lambda bi, ti: (bi, ti, 0)),
        compiler_params=_compiler_params(("parallel", "parallel")),
        cost_estimate=cost,
    )(x, g, b, w_qkv, b_qkv)


# --------------------- kernel 2: flash causal attention -----------------------

def _flash_attn_kernel(q_ref, k_ref, v_ref, o_ref, m_sc, l_sc, acc_sc, *, scale):
    qi = pl.program_id(1)
    ki = pl.program_id(2)
    tq = q_ref.shape[2]
    tkv = k_ref.shape[2]

    @pl.when(ki == 0)
    def _():
        m_sc[...] = jnp.full_like(m_sc, -jnp.inf)
        l_sc[...] = jnp.zeros_like(l_sc)
        acc_sc[...] = jnp.zeros_like(acc_sc)

    @pl.when(ki <= qi)  # causal: tiles strictly above the diagonal do no work
    def _():
        q = q_ref[0] * scale                                # fold scale into q
        k = k_ref[0]
        v = v_ref[0]
        s = jnp.einsum("hqd,hkd->hqk", q, k,
                       preferred_element_type=jnp.float32)  # (H, tq, tkv) f32
        # element mask only "bites" on the diagonal tile; below it it is all-True
        row = lax.broadcasted_iota(jnp.int32, (tq, tkv), 0) + qi * tq
        col = lax.broadcasted_iota(jnp.int32, (tq, tkv), 1) + ki * tkv
        s = jnp.where((col <= row)[None, :, :], s, -1e30)   # finite causal mask
        m_prev = m_sc[...]
        m_new = jnp.maximum(m_prev, jnp.max(s, axis=-1, keepdims=True))
        alpha = jnp.exp(m_prev - m_new)
        p = jnp.exp(s - m_new)
        l_sc[...] = alpha * l_sc[...] + jnp.sum(p, axis=-1, keepdims=True)
        acc_sc[...] = alpha * acc_sc[...] + jnp.einsum(
            "hqk,hkd->hqd", p.astype(v.dtype), v,
            preferred_element_type=jnp.float32)
        m_sc[...] = m_new

    @pl.when(ki == qi)  # last contributing kv tile for this q tile
    def _():
        inv = pl.reciprocal(l_sc[...], approx=True)         # EUP, not VPU divide
        o_ref[0] = (acc_sc[...] * inv).astype(o_ref.dtype)


def _flash_attention(q, k, v):
    B, H, T, hd = q.shape
    scale = 1.0 / math.sqrt(hd)
    tq = _seq_tile(T)
    tkv = tq                     # equal tiles keep the causal skip condition simple
    nq, nkv = T // tq, T // tkv
    cost = pl.CostEstimate(
        flops=2 * B * H * T * T * hd,          # two matmuls, ~halved by causality
        transcendentals=B * H * T * T // 2,
        bytes_accessed=int(4 * B * H * T * hd * 2))
    kernel = functools.partial(_flash_attn_kernel, scale=scale)
    return pl.pallas_call(
        kernel,
        out_shape=jax.ShapeDtypeStruct((B, H, T, hd), jnp.bfloat16),
        grid=(B, nq, nkv),
        in_specs=[
            pl.BlockSpec((1, H, tq, hd), lambda b, qi, ki: (b, 0, qi, 0)),
            # min(ki, qi): skipped above-diagonal steps map to the previous block
            # index, so Pallas issues no k/v DMA for steps that do no work.
            pl.BlockSpec((1, H, tkv, hd),
                         lambda b, qi, ki: (b, 0, jnp.minimum(ki, qi), 0)),
            pl.BlockSpec((1, H, tkv, hd),
                         lambda b, qi, ki: (b, 0, jnp.minimum(ki, qi), 0)),
        ],
        out_specs=pl.BlockSpec((1, H, tq, hd), lambda b, qi, ki: (b, 0, qi, 0)),
        scratch_shapes=[pltpu.VMEM((H, tq, 1), jnp.float32),
                        pltpu.VMEM((H, tq, 1), jnp.float32),
                        pltpu.VMEM((H, tq, hd), jnp.float32)],
        compiler_params=_compiler_params(("parallel", "parallel", "arbitrary")),
        cost_estimate=cost,
    )(q, k, v)


# -------------- kernel 3: out-proj + residual + ln2 + MLP + residual ----------

def _proj_mlp_kernel(x_ref, y_ref, wp_ref, bp_ref, g_ref, b_ref,
                     wfc_ref, bfc_ref, wp2_ref, bp2_ref, o_ref):
    x = x_ref[0]                                            # (tT, C) f32 residual
    y = y_ref[0]                                            # (tT, C) bf16 attn out
    x = x + jnp.dot(y, wp_ref[...],
                    preferred_element_type=jnp.float32) + bp_ref[...]
    h = _layernorm(x, g_ref[...], b_ref[...]).astype(jnp.bfloat16)
    fc = jnp.dot(h, wfc_ref[...],
                 preferred_element_type=jnp.float32) + bfc_ref[...]
    fc = _gelu_tanh(fc).astype(jnp.bfloat16)
    o_ref[0] = x + jnp.dot(fc, wp2_ref[...],
                           preferred_element_type=jnp.float32) + bp2_ref[...]


def _proj_mlp(x, y, p, *, tile_t):
    B, T, C = x.shape
    F = p["w_fc"].shape[1]
    cost = pl.CostEstimate(
        flops=2 * B * T * (C * C + 2 * C * F),
        transcendentals=B * T * F,
        bytes_accessed=int(2 * x.size * 4 + y.size * 2
                           + (p["w_proj"].size + p["w_fc"].size
                              + p["w_proj2"].size) * 2))
    weights = (p["w_proj"], p["b_proj"], p["ln2_g"], p["ln2_b"],
               p["w_fc"], p["b_fc"], p["w_proj2"], p["b_proj2"])
    in_specs = [
        pl.BlockSpec((1, tile_t, C), lambda bi, ti: (bi, ti, 0)),   # residual x
        pl.BlockSpec((1, tile_t, C), lambda bi, ti: (bi, ti, 0)),   # attn out y
    ] + [_const_spec(w.shape) for w in weights]
    return pl.pallas_call(
        _proj_mlp_kernel,
        out_shape=jax.ShapeDtypeStruct((B, T, C), jnp.float32),
        grid=(B, T // tile_t),
        in_specs=in_specs,
        out_specs=pl.BlockSpec((1, tile_t, C), lambda bi, ti: (bi, ti, 0)),
        compiler_params=_compiler_params(("parallel", "parallel")),
        input_output_aliases={0: 0},          # residual stream updated in place
        cost_estimate=cost,
    )(x, y, *weights)


# ------------------------------ transformer block -----------------------------

def transformer_block(x, p, n_head):
    B, T, C = x.shape
    hd = C // n_head
    tile_t = _seq_tile(T)

    qkv = _ln_qkv(x, p["ln1_g"], p["ln1_b"], p["w_qkv"], p["b_qkv"],
                  tile_t=tile_t)                            # (B, T, 3C) bf16
    # TODO(synk): head split/merge kept as XLA glue (see module TODO).
    qkv = qkv.reshape(B, T, 3, n_head, hd)
    q = jnp.transpose(qkv[:, :, 0], (0, 2, 1, 3))           # (B, H, T, hd)
    k = jnp.transpose(qkv[:, :, 1], (0, 2, 1, 3))
    v = jnp.transpose(qkv[:, :, 2], (0, 2, 1, 3))

    y = _flash_attention(q, k, v)                           # (B, H, T, hd) bf16
    y = jnp.transpose(y, (0, 2, 1, 3)).reshape(B, T, C)     # (B, T, C) bf16

    return _proj_mlp(x, y, p, tile_t=tile_t)                # (B, T, C) f32


# ------------------------- final layernorm + lm head --------------------------

def _lm_head_kernel(x_ref, g_ref, b_ref, w_ref, o_ref, xn_sc):
    @pl.when(pl.program_id(1) == 0)
    def _():
        # LN + bf16 cast computed once per row tile, reused for all vocab tiles
        xn_sc[...] = _layernorm(x_ref[...], g_ref[...],
                                b_ref[...]).astype(jnp.bfloat16)
    o_ref[...] = jnp.dot(xn_sc[...], w_ref[...],
                         preferred_element_type=jnp.float32)


def lm_head(x, g, b, w_lm):
    B, T, C = x.shape
    Vp = w_lm.shape[1]          # already padded to a multiple of the vocab tile
    R = B * T
    xr = x.reshape(R, C)        # contiguous reshape, no copy
    tile_r = _row_tile(R)
    tile_v = _vocab_tile(Vp)
    cost = pl.CostEstimate(
        flops=2 * R * C * Vp,
        transcendentals=0,
        bytes_accessed=int(R * C * 4 + C * Vp * 2 * (R // tile_r) + R * Vp * 4))
    logits = pl.pallas_call(
        _lm_head_kernel,
        out_shape=jax.ShapeDtypeStruct((R, Vp), jnp.float32),
        grid=(R // tile_r, Vp // tile_v),     # rows outer so x stays resident
        in_specs=[
            pl.BlockSpec((tile_r, C), lambda ri, vi: (ri, 0)),
            _const_spec((1, C)),
            _const_spec((1, C)),
            pl.BlockSpec((C, tile_v), lambda ri, vi: (0, vi)),   # streamed weight
        ],
        out_specs=pl.BlockSpec((tile_r, tile_v), lambda ri, vi: (ri, vi)),
        scratch_shapes=[pltpu.VMEM((tile_r, C), jnp.bfloat16)],
        compiler_params=_compiler_params(("parallel", "arbitrary")),
        cost_estimate=cost,
    )(xr, g, b, w_lm)
    return logits.reshape(B, T, Vp)


# --------------------------------- full forward --------------------------------

def gpt_forward(idx, params, n_head):
    """idx: (B, T) int32 token ids -> logits (B, T, padded_vocab).

    Pad columns of the lm head weight are exact zeros; the consumer
    (loss/sampler) should fuse the [..., :vocab] restriction rather than
    materializing a sliced copy of the largest tensor in the model."""
    B, T = idx.shape
    # Embedding gather is glue (not the compute hot path) -> plain JAX.
    tok_emb = jnp.take(params["wte"], idx, axis=0)            # (B, T, C)
    pos_emb = jnp.take(params["wpe"], jnp.arange(T), axis=0)  # (T, C)
    x = (tok_emb + pos_emb[None, :, :]).astype(jnp.float32)
    for blk in params["blocks"]:
        x = transformer_block(x, blk, n_head)
    return lm_head(x, params["lnf_g"], params["lnf_b"], params["w_lm"])


# ------------------------------ pure-JAX reference -----------------------------

def _ref_forward(idx, params, n_head):
    B, T = idx.shape
    C = params["wte"].shape[1]
    hd = C // n_head
    bf = jnp.bfloat16
    x = jnp.take(params["wte"], idx, axis=0) + \
        jnp.take(params["wpe"], jnp.arange(T), axis=0)[None]
    x = x.astype(jnp.float32)

    def ln(v, g, b):
        m = jnp.mean(v, -1, keepdims=True)
        s = jnp.mean((v - m) ** 2, -1, keepdims=True)
        return (v - m) * lax.rsqrt(s + 1e-5) * g + b

    for p in params["blocks"]:
        h = ln(x, p["ln1_g"], p["ln1_b"]).astype(bf)
        qkv = (jnp.dot(h, p["w_qkv"], preferred_element_type=jnp.float32)
               + p["b_qkv"]).astype(bf)
        q, k, v = jnp.split(qkv, 3, axis=-1)
        q = q.reshape(B, T, n_head, hd).transpose(0, 2, 1, 3)
        k = k.reshape(B, T, n_head, hd).transpose(0, 2, 1, 3)
        v = v.reshape(B, T, n_head, hd).transpose(0, 2, 1, 3)
        att = jnp.einsum("bhqd,bhkd->bhqk", q, k,
                         preferred_element_type=jnp.float32) / math.sqrt(hd)
        mask = jnp.tril(jnp.ones((T, T), bool))
        att = jnp.where(mask, att, -1e30)
        att = jax.nn.softmax(att, axis=-1)
        y = jnp.einsum("bhqk,bhkd->bhqd", att.astype(bf), v,
                       preferred_element_type=jnp.float32)
        y = y.transpose(0, 2, 1, 3).reshape(B, T, C).astype(bf)
        x = x + jnp.dot(y, p["w_proj"],
                        preferred_element_type=jnp.float32) + p["b_proj"]
        h2 = ln(x, p["ln2_g"], p["ln2_b"]).astype(bf)
        fc = jnp.dot(h2, p["w_fc"],
                     preferred_element_type=jnp.float32) + p["b_fc"]
        fc = _gelu_tanh(fc).astype(bf)
        x = x + jnp.dot(fc, p["w_proj2"],
                        preferred_element_type=jnp.float32) + p["b_proj2"]
    xl = ln(x, params["lnf_g"], params["lnf_b"]).astype(bf)
    return jnp.dot(xl, params["w_lm"], preferred_element_type=jnp.float32)


# ------------------------------------ init -------------------------------------

def init_params(key, *, vocab, block_size, n_layer, n_embd, lm_pad_to=512):
    C = n_embd
    keys = iter(jax.random.split(key, 8 + 8 * n_layer))
    bf = jnp.bfloat16

    def nrm(k, shape, s=0.02, dtype=jnp.float32):
        return (s * jax.random.normal(k, shape)).astype(dtype)

    # pad the lm head once at build time (pad columns are exact zeros)
    Vp = ((vocab + lm_pad_to - 1) // lm_pad_to) * lm_pad_to
    w_lm = nrm(next(keys), (C, vocab), dtype=bf)
    if Vp != vocab:
        w_lm = jnp.pad(w_lm, ((0, 0), (0, Vp - vocab)))

    params = {
        "wte": nrm(next(keys), (vocab, C)),
        "wpe": nrm(next(keys), (block_size, C)),
        "lnf_g": jnp.ones((1, C), jnp.float32),
        "lnf_b": jnp.zeros((1, C), jnp.float32),
        "w_lm": w_lm,
        "blocks": [],
    }
    for _ in range(n_layer):
        params["blocks"].append({
            "ln1_g": jnp.ones((1, C), jnp.float32),
            "ln1_b": jnp.zeros((1, C), jnp.float32),
            "w_qkv": nrm(next(keys), (C, 3 * C), dtype=bf),
            "b_qkv": nrm(next(keys), (1, 3 * C)),
            "w_proj": nrm(next(keys), (C, C), dtype=bf),
            "b_proj": nrm(next(keys), (1, C)),
            "ln2_g": jnp.ones((1, C), jnp.float32),
            "ln2_b": jnp.zeros((1, C), jnp.float32),
            "w_fc": nrm(next(keys), (C, 4 * C), dtype=bf),
            "b_fc": nrm(next(keys), (1, 4 * C)),
            "w_proj2": nrm(next(keys), (4 * C, C), dtype=bf),
            "b_proj2": nrm(next(keys), (1, C)),
        })
    return params


# ------------------------------------ main --------------------------------------

if __name__ == "__main__":
    # small GPTConfig-like settings: hd = 64 (like GPT-2), T with >=2 q/kv tiles
    # to exercise the flash/causal-skip path, vocab not a multiple of the tile to
    # exercise the padded lm_head path.
    vocab, block_size, n_layer, n_head, n_embd = 500, 128, 2, 4, 256
    B, T = 2, 64

    key = jax.random.PRNGKey(0)
    kp, ki = jax.random.split(key)
    params = init_params(kp, vocab=vocab, block_size=block_size,
                         n_layer=n_layer, n_embd=n_embd)
    idx = jax.random.randint(ki, (B, T), 0, vocab, dtype=jnp.int32)

    fwd = jax.jit(gpt_forward, static_argnames=("n_head",))
    logits = jax.block_until_ready(fwd(idx, params, n_head=n_head))

    # sanity: compare against a pure-JAX reference of the same (bf16) math;
    # both use the padded lm head so no logits slice is materialized anywhere.
    ref = jax.block_until_ready(_ref_forward(idx, params, n_head))
    Vp = params["w_lm"].shape[1]
    assert Vp >= vocab and logits.shape == (B, T, Vp), logits.shape
    assert bool(jnp.all(jnp.isfinite(logits)))
    max_err = float(jnp.max(jnp.abs(logits - ref)))
    assert bool(jnp.allclose(logits, ref, rtol=2e-2, atol=2e-2)), max_err

    print("KERNEL_OK")
</pallas_src>

<mosaic_0001>
module attributes {stable_mosaic.version = 11 : i64} {
  func.func @_ln_qkv_kernel(%arg0: i32, %arg1: i32, %arg2: memref<1x32x256xf32, #tpu.memory_space<vmem>>, %arg3: memref<1x256xf32, #tpu.memory_space<vmem>>, %arg4: memref<1x256xf32, #tpu.memory_space<vmem>>, %arg5: memref<256x768xbf16, #tpu.memory_space<vmem>>, %arg6: memref<1x768xf32, #tpu.memory_space<vmem>>, %arg7: memref<1x32x768xbf16, #tpu.memory_space<vmem>>) attributes {dimension_semantics = [#tpu.dimension_semantics<parallel>, #tpu.dimension_semantics<parallel>], iteration_bounds = array<i64: 2, 2>, scalar_prefetch = 0 : i64, scratch_operands = 0 : i64, tpu.core_type = #tpu.core_type<tc>, window_params = [{transform_indices = @transform_0, window_bounds = array<i64: 1, 32, 256>}, {pipeline_mode = #tpu.pipeline_mode<synchronous>, transform_indices = @transform_1, window_bounds = array<i64: 1, 256>}, {pipeline_mode = #tpu.pipeline_mode<synchronous>, transform_indices = @transform_2, window_bounds = array<i64: 1, 256>}, {pipeline_mode = #tpu.pipeline_mode<synchronous>, transform_indices = @transform_3, window_bounds = array<i64: 256, 768>}, {pipeline_mode = #tpu.pipeline_mode<synchronous>, transform_indices = @transform_4, window_bounds = array<i64: 1, 768>}, {transform_indices = @transform_5, window_bounds = array<i64: 1, 32, 768>}]} {
    %c0 = arith.constant 0 : index
    %c0_0 = arith.constant 0 : index
    %c0_1 = arith.constant 0 : index
    %0 = vector.load %arg2[%c0, %c0_0, %c0_1] : memref<1x32x256xf32, #tpu.memory_space<vmem>>, vector<1x32x256xf32>
    %1 = vector.shape_cast %0 : vector<1x32x256xf32> to vector<32x256xf32>
    %c0_2 = arith.constant 0 : index
    %c0_3 = arith.constant 0 : index
    %2 = vector.load %arg3[%c0_2, %c0_3] : memref<1x256xf32, #tpu.memory_space<vmem>>, vector<1x256xf32>
    %c0_4 = arith.constant 0 : index
    %c0_5 = arith.constant 0 : index
    %3 = vector.load %arg4[%c0_4, %c0_5] : memref<1x256xf32, #tpu.memory_space<vmem>>, vector<1x256xf32>
    %cst = arith.constant dense<0.000000e+00> : vector<32xf32>
    %4 = vector.multi_reduction <add>, %1, %cst [1] : vector<32x256xf32> to vector<32xf32>
    %5 = vector.shape_cast %4 : vector<32xf32> to vector<32x1xf32>
    %cst_6 = arith.constant 2.560000e+02 : f32
    %6 = vector.broadcast %cst_6 : f32 to vector<32x1xf32>
    %7 = arith.divf %5, %6 : vector<32x1xf32>
    %8 = vector.broadcast %7 : vector<32x1xf32> to vector<32x256xf32>
    %9 = arith.subf %1, %8 : vector<32x256xf32>
    %10 = arith.mulf %9, %9 : vector<32x256xf32>
    %cst_7 = arith.constant dense<0.000000e+00> : vector<32xf32>
    %11 = vector.multi_reduction <add>, %10, %cst_7 [1] : vector<32x256xf32> to vector<32xf32>
    %12 = vector.shape_cast %11 : vector<32xf32> to vector<32x1xf32>
    %cst_8 = arith.constant 2.560000e+02 : f32
    %13 = vector.broadcast %cst_8 : f32 to vector<32x1xf32>
    %14 = arith.divf %12, %13 : vector<32x1xf32>
    %15 = vector.broadcast %7 : vector<32x1xf32> to vector<32x256xf32>
    %16 = arith.subf %1, %15 : vector<32x256xf32>
    %cst_9 = arith.constant 9.99999974E-6 : f32
    %17 = vector.broadcast %cst_9 : f32 to vector<32x1xf32>
    %18 = arith.addf %14, %17 : vector<32x1xf32>
    %19 = math.rsqrt %18 : vector<32x1xf32>
    %20 = vector.broadcast %19 : vector<32x1xf32> to vector<32x256xf32>
    %21 = arith.mulf %16, %20 : vector<32x256xf32>
    %22 = vector.broadcast %2 : vector<1x256xf32> to vector<32x256xf32>
    %23 = arith.mulf %21, %22 : vector<32x256xf32>
    %24 = vector.broadcast %3 : vector<1x256xf32> to vector<32x256xf32>
    %25 = arith.addf %23, %24 : vector<32x256xf32>
    %26 = arith.truncf %25 : vector<32x256xf32> to vector<32x256xbf16>
    %c0_10 = arith.constant 0 : index
    %c0_11 = arith.constant 0 : index
    %27 = vector.load %arg5[%c0_10, %c0_11] : memref<256x768xbf16, #tpu.memory_space<vmem>>, vector<256x768xbf16>
    %cst_12 = arith.constant dense<0.000000e+00> : vector<32x768xf32>
    %28 = tpu.matmul %26, %27, %cst_12 {dimension_numbers = #tpu.dot_dimension_numbers<[1], [0], [0], [1], [0, 0, 1, 1], [], []>} : vector<32x256xbf16>, vector<256x768xbf16>, vector<32x768xf32> -> vector<32x768xf32>
    %c0_13 = arith.constant 0 : index
    %c0_14 = arith.constant 0 : index
    %29 = vector.load %arg6[%c0_13, %c0_14] : memref<1x768xf32, #tpu.memory_space<vmem>>, vector<1x768xf32>
    %30 = vector.broadcast %29 : vector<1x768xf32> to vector<32x768xf32>
    %31 = arith.addf %28, %30 : vector<32x768xf32>
    %32 = arith.truncf %31 : vector<32x768xf32> to vector<32x768xbf16>
    %c0_15 = arith.constant 0 : index
    %c0_16 = arith.constant 0 : index
    %c0_17 = arith.constant 0 : index
    %33 = vector.load %arg7[%c0_15, %c0_16, %c0_17] : memref<1x32x768xbf16, #tpu.memory_space<vmem>>, vector<1x32x768xbf16>
    %34 = vector.shape_cast %33 : vector<1x32x768xbf16> to vector<32x768xbf16>
    %35 = vector.shape_cast %32 : vector<32x768xbf16> to vector<1x32x768xbf16>
    tpu.vector_store %arg7[%c0_15, %c0_16, %c0_17], %35 {strides = array<i32>} : memref<1x32x768xbf16, #tpu.memory_space<vmem>>, vector<1x32x768xbf16>,
    return
  }
  func.func @transform_0(%arg0: i32, %arg1: i32) -> (i32, i32, i32) {
    %c0_i32 = arith.constant 0 : i32
    %c0_i32_0 = arith.constant 0 : i32
    return %arg0, %arg1, %c0_i32 : i32, i32, i32
  }
  func.func @transform_1(%arg0: i32, %arg1: i32) -> (i32, i32) {
    %c0_i32 = arith.constant 0 : i32
    %c0_i32_0 = arith.constant 0 : i32
    %c0_i32_1 = arith.constant 0 : i32
    return %c0_i32, %c0_i32_0 : i32, i32
  }
  func.func @transform_2(%arg0: i32, %arg1: i32) -> (i32, i32) {
    %c0_i32 = arith.constant 0 : i32
    %c0_i32_0 = arith.constant 0 : i32
    %c0_i32_1 = arith.constant 0 : i32
    return %c0_i32, %c0_i32_0 : i32, i32
  }
  func.func @transform_3(%arg0: i32, %arg1: i32) -> (i32, i32) {
    %c0_i32 = arith.constant 0 : i32
    %c0_i32_0 = arith.constant 0 : i32
    %c0_i32_1 = arith.constant 0 : i32
    return %c0_i32, %c0_i32_0 : i32, i32
  }
  func.func @transform_4(%arg0: i32, %arg1: i32) -> (i32, i32) {
    %c0_i32 = arith.constant 0 : i32
    %c0_i32_0 = arith.constant 0 : i32
    %c0_i32_1 = arith.constant 0 : i32
    return %c0_i32, %c0_i32_0 : i32, i32
  }
  func.func @transform_5(%arg0: i32, %arg1: i32) -> (i32, i32, i32) {
    %c0_i32 = arith.constant 0 : i32
    %c0_i32_0 = arith.constant 0 : i32
    return %arg0, %arg1, %c0_i32 : i32, i32, i32
  }
}

module attributes {stable_mosaic.version = 11 : i64} {
  func.func @_flash_attn_kernel(%arg0: i32, %arg1: i32, %arg2: i32, %arg3: memref<1x4x32x64xbf16, #tpu.memory_space<vmem>>, %arg4: memref<1x4x32x64xbf16, #tpu.memory_space<vmem>>, %arg5: memref<1x4x32x64xbf16, #tpu.memory_space<vmem>>, %arg6: memref<1x4x32x64xbf16, #tpu.memory_space<vmem>>, %arg7: memref<4x32x1xf32, #tpu.memory_space<vmem>>, %arg8: memref<4x32x1xf32, #tpu.memory_space<vmem>>, %arg9: memref<4x32x64xf32, #tpu.memory_space<vmem>>) attributes {dimension_semantics = [#tpu.dimension_semantics<parallel>, #tpu.dimension_semantics<parallel>, #tpu.dimension_semantics<arbitrary>], iteration_bounds = array<i64: 2, 2, 2>, scalar_prefetch = 0 : i64, scratch_operands = 3 : i64, tpu.core_type = #tpu.core_type<tc>, window_params = [{transform_indices = @transform_0, window_bounds = array<i64: 1, 4, 32, 64>}, {transform_indices = @transform_1, window_bounds = array<i64: 1, 4, 32, 64>}, {transform_indices = @transform_2, window_bounds = array<i64: 1, 4, 32, 64>}, {transform_indices = @transform_3, window_bounds = array<i64: 1, 4, 32, 64>}]} {
    %c0_i32 = arith.constant 0 : i32
    %0 = arith.cmpi eq, %arg2, %c0_i32 : i32
    %1 = arith.extui %0 : i1 to i32
    %c0_i32_0 = arith.constant 0 : i32
    %2 = arith.cmpi ne, %1, %c0_i32_0 : i32
    scf.if %2 {
      %cst = arith.constant 0xFF800000 : f32
      %9 = vector.broadcast %cst : f32 to vector<4x32x1xf32>
      %c0 = arith.constant 0 : index
      %c0_3 = arith.constant 0 : index
      %c0_4 = arith.constant 0 : index
      %10 = vector.load %arg7[%c0, %c0_3, %c0_4] : memref<4x32x1xf32, #tpu.memory_space<vmem>>, vector<4x32x1xf32>
      tpu.vector_store %arg7[%c0, %c0_3, %c0_4], %9 {strides = array<i32>} : memref<4x32x1xf32, #tpu.memory_space<vmem>>, vector<4x32x1xf32>,
      %cst_5 = arith.constant 0.000000e+00 : f32
      %11 = vector.broadcast %cst_5 : f32 to vector<4x32x1xf32>
      %c0_6 = arith.constant 0 : index
      %c0_7 = arith.constant 0 : index
      %c0_8 = arith.constant 0 : index
      %12 = vector.load %arg8[%c0_6, %c0_7, %c0_8] : memref<4x32x1xf32, #tpu.memory_space<vmem>>, vector<4x32x1xf32>
      tpu.vector_store %arg8[%c0_6, %c0_7, %c0_8], %11 {strides = array<i32>} : memref<4x32x1xf32, #tpu.memory_space<vmem>>, vector<4x32x1xf32>,
      %cst_9 = arith.constant 0.000000e+00 : f32
      %13 = vector.broadcast %cst_9 : f32 to vector<4x32x64xf32>
      %c0_10 = arith.constant 0 : index
      %c0_11 = arith.constant 0 : index
      %c0_12 = arith.constant 0 : index
      %14 = vector.load %arg9[%c0_10, %c0_11, %c0_12] : memref<4x32x64xf32, #tpu.memory_space<vmem>>, vector<4x32x64xf32>
      tpu.vector_store %arg9[%c0_10, %c0_11, %c0_12], %13 {strides = array<i32>} : memref<4x32x64xf32, #tpu.memory_space<vmem>>, vector<4x32x64xf32>,
    } else {
    }
    %3 = arith.cmpi sle, %arg2, %arg1 : i32
    %4 = arith.extui %3 : i1 to i32
    %c0_i32_1 = arith.constant 0 : i32
    %5 = arith.cmpi ne, %4, %c0_i32_1 : i32
    scf.if %5 {
      %c0 = arith.constant 0 : index
      %c0_3 = arith.constant 0 : index
      %c0_4 = arith.constant 0 : index
      %c0_5 = arith.constant 0 : index
      %9 = vector.load %arg3[%c0, %c0_3, %c0_4, %c0_5] : memref<1x4x32x64xbf16, #tpu.memory_space<vmem>>, vector<1x4x32x64xbf16>
      %10 = vector.shape_cast %9 : vector<1x4x32x64xbf16> to vector<4x32x64xbf16>
      %cst = arith.constant 1.250000e-01 : bf16
      %11 = vector.broadcast %cst : bf16 to vector<4x32x64xbf16>
      %12 = arith.mulf %10, %11 : vector<4x32x64xbf16>
      %c0_6 = arith.constant 0 : index
      %c0_7 = arith.constant 0 : index
      %c0_8 = arith.constant 0 : index
      %c0_9 = arith.constant 0 : index
      %13 = vector.load %arg4[%c0_6, %c0_7, %c0_8, %c0_9] : memref<1x4x32x64xbf16, #tpu.memory_space<vmem>>, vector<1x4x32x64xbf16>
      %14 = vector.shape_cast %13 : vector<1x4x32x64xbf16> to vector<4x32x64xbf16>
      %c0_10 = arith.constant 0 : index
      %c0_11 = arith.constant 0 : index
      %c0_12 = arith.constant 0 : index
      %c0_13 = arith.constant 0 : index
      %15 = vector.load %arg5[%c0_10, %c0_11, %c0_12, %c0_13] : memref<1x4x32x64xbf16, #tpu.memory_space<vmem>>, vector<1x4x32x64xbf16>
      %16 = vector.shape_cast %15 : vector<1x4x32x64xbf16> to vector<4x32x64xbf16>
      "tpu.trace_start"() <{level = 10 : i32, message = "hqd,hkd->hqk"}> : () -> ()
      %cst_14 = arith.constant dense<0.000000e+00> : vector<4x32x32xf32>
      %17 = tpu.matmul %12, %14, %cst_14 {dimension_numbers = #tpu.dot_dimension_numbers<[2], [2], [1], [1], [0, 0, 0, 1, 1, 1], [0], [0]>} : vector<4x32x64xbf16>, vector<4x32x64xbf16>, vector<4x32x32xf32> -> vector<4x32x32xf32>
      "tpu.trace_stop"() : () -> ()
      %18 = tpu.iota {dimensions = array<i32: 0>} : vector<32x32xi32>
      %c32_i32 = arith.constant 32 : i32
      %19 = arith.muli %arg1, %c32_i32 : i32
      %20 = vector.broadcast %19 : i32 to vector<32x32xi32>
      %21 = arith.addi %18, %20 : vector<32x32xi32>
      %22 = tpu.iota {dimensions = array<i32: 1>} : vector<32x32xi32>
      %c32_i32_15 = arith.constant 32 : i32
      %23 = arith.muli %arg2, %c32_i32_15 : i32
      %24 = vector.broadcast %23 : i32 to vector<32x32xi32>
      %25 = arith.addi %22, %24 : vector<32x32xi32>
      %26 = arith.cmpi sle, %25, %21 : vector<32x32xi32>
      %27 = vector.shape_cast %26 : vector<32x32xi1> to vector<1x32x32xi1>
      %cst_16 = arith.constant -1.000000e+30 : f32
      %28 = vector.shape_cast %27 : vector<1x32x32xi1> to vector<1x32x32xi1>
      %29 = vector.broadcast %28 : vector<1x32x32xi1> to vector<4x32x32xi1>
      %30 = vector.broadcast %cst_16 : f32 to vector<4x32x32xf32>
      %31 = arith.select %29, %17, %30 : vector<4x32x32xi1>, vector<4x32x32xf32>
      %c0_17 = arith.constant 0 : index
      %c0_18 = arith.constant 0 : index
      %c0_19 = arith.constant 0 : index
      %32 = vector.load %arg7[%c0_17, %c0_18, %c0_19] : memref<4x32x1xf32, #tpu.memory_space<vmem>>, vector<4x32x1xf32>
      %cst_20 = arith.constant dense<0xFF800000> : vector<4x32xf32>
      %33 = vector.multi_reduction <maximumf>, %31, %cst_20 [2] : vector<4x32x32xf32> to vector<4x32xf32>
      %34 = vector.shape_cast %33 : vector<4x32xf32> to vector<4x32x1xf32>
      %35 = arith.maximumf %32, %34 : vector<4x32x1xf32>
      %36 = arith.subf %32, %35 : vector<4x32x1xf32>
      %37 = math.exp %36 : vector<4x32x1xf32>
      %38 = vector.broadcast %35 : vector<4x32x1xf32> to vector<4x32x32xf32>
      %39 = arith.subf %31, %38 : vector<4x32x32xf32>
      %40 = math.exp %39 : vector<4x32x32xf32>
      %c0_21 = arith.constant 0 : index
      %c0_22 = arith.constant 0 : index
      %c0_23 = arith.constant 0 : index
      %41 = vector.load %arg8[%c0_21, %c0_22, %c0_23] : memref<4x32x1xf32, #tpu.memory_space<vmem>>, vector<4x32x1xf32>
      %42 = arith.mulf %37, %41 : vector<4x32x1xf32>
      %cst_24 = arith.constant dense<0.000000e+00> : vector<4x32xf32>
      %43 = vector.multi_reduction <add>, %40, %cst_24 [2] : vector<4x32x32xf32> to vector<4x32xf32>
      %44 = vector.shape_cast %43 : vector<4x32xf32> to vector<4x32x1xf32>
      %45 = arith.addf %42, %44 : vector<4x32x1xf32>
      %c0_25 = arith.constant 0 : index
      %c0_26 = arith.constant 0 : index
      %c0_27 = arith.constant 0 : index
      %46 = vector.load %arg8[%c0_25, %c0_26, %c0_27] : memref<4x32x1xf32, #tpu.memory_space<vmem>>, vector<4x32x1xf32>
      tpu.vector_store %arg8[%c0_25, %c0_26, %c0_27], %45 {strides = array<i32>} : memref<4x32x1xf32, #tpu.memory_space<vmem>>, vector<4x32x1xf32>,
      %c0_28 = arith.constant 0 : index
      %c0_29 = arith.constant 0 : index
      %c0_30 = arith.constant 0 : index
      %47 = vector.load %arg9[%c0_28, %c0_29, %c0_30] : memref<4x32x64xf32, #tpu.memory_space<vmem>>, vector<4x32x64xf32>
      %48 = vector.broadcast %37 : vector<4x32x1xf32> to vector<4x32x64xf32>
      %49 = arith.mulf %48, %47 : vector<4x32x64xf32>
      %50 = arith.truncf %40 : vector<4x32x32xf32> to vector<4x32x32xbf16>
      "tpu.trace_start"() <{level = 10 : i32, message = "hqk,hkd->hqd"}> : () -> ()
      %cst_31 = arith.constant dense<0.000000e+00> : vector<4x32x64xf32>
      %51 = tpu.matmul %50, %16, %cst_31 {dimension_numbers = #tpu.dot_dimension_numbers<[2], [1], [1], [2], [0, 0, 0, 1, 1, 2], [0], [0]>} : vector<4x32x32xbf16>, vector<4x32x64xbf16>, vector<4x32x64xf32> -> vector<4x32x64xf32>
      "tpu.trace_stop"() : () -> ()
      %52 = arith.addf %49, %51 : vector<4x32x64xf32>
      %c0_32 = arith.constant 0 : index
      %c0_33 = arith.constant 0 : index
      %c0_34 = arith.constant 0 : index
      %53 = vector.load %arg9[%c0_32, %c0_33, %c0_34] : memref<4x32x64xf32, #tpu.memory_space<vmem>>, vector<4x32x64xf32>
      tpu.vector_store %arg9[%c0_32, %c0_33, %c0_34], %52 {strides = array<i32>} : memref<4x32x64xf32, #tpu.memory_space<vmem>>, vector<4x32x64xf32>,
      %c0_35 = arith.constant 0 : index
      %c0_36 = arith.constant 0 : index
      %c0_37 = arith.constant 0 : index
      %54 = vector.load %arg7[%c0_35, %c0_36, %c0_37] : memref<4x32x1xf32, #tpu.memory_space<vmem>>, vector<4x32x1xf32>
      tpu.vector_store %arg7[%c0_35, %c0_36, %c0_37], %35 {strides = array<i32>} : memref<4x32x1xf32, #tpu.memory_space<vmem>>, vector<4x32x1xf32>,
    } else {
    }
    %6 = arith.cmpi eq, %arg2, %arg1 : i32
    %7 = arith.extui %6 : i1 to i32
    %c0_i32_2 = arith.constant 0 : i32
    %8 = arith.cmpi ne, %7, %c0_i32_2 : i32
    scf.if %8 {
      %c0 = arith.constant 0 : index
      %c0_3 = arith.constant 0 : index
      %c0_4 = arith.constant 0 : index
      %9 = vector.load %arg8[%c0, %c0_3, %c0_4] : memref<4x32x1xf32, #tpu.memory_space<vmem>>, vector<4x32x1xf32>
      %10 = tpu.reciprocal %9 {approx = true} : vector<4x32x1xf32> -> vector<4x32x1xf32>
      %c0_5 = arith.constant 0 : index
      %c0_6 = arith.constant 0 : index
      %c0_7 = arith.constant 0 : index
      %11 = vector.load %arg9[%c0_5, %c0_6, %c0_7] : memref<4x32x64xf32, #tpu.memory_space<vmem>>, vector<4x32x64xf32>
      %12 = vector.broadcast %10 : vector<4x32x1xf32> to vector<4x32x64xf32>
      %13 = arith.mulf %11, %12 : vector<4x32x64xf32>
      %14 = arith.truncf %13 : vector<4x32x64xf32> to vector<4x32x64xbf16>
      %c0_8 = arith.constant 0 : index
      %c0_9 = arith.constant 0 : index
      %c0_10 = arith.constant 0 : index
      %c0_11 = arith.constant 0 : index
      %15 = vector.load %arg6[%c0_8, %c0_9, %c0_10, %c0_11] : memref<1x4x32x64xbf16, #tpu.memory_space<vmem>>, vector<1x4x32x64xbf16>
      %16 = vector.shape_cast %15 : vector<1x4x32x64xbf16> to vector<4x32x64xbf16>
      %17 = vector.shape_cast %14 : vector<4x32x64xbf16> to vector<1x4x32x64xbf16>
      tpu.vector_store %arg6[%c0_8, %c0_9, %c0_10, %c0_11], %17 {strides = array<i32>} : memref<1x4x32x64xbf16, #tpu.memory_space<vmem>>, vector<1x4x32x64xbf16>,
    } else {
    }
    return
  }
  func.func @transform_0(%arg0: i32, %arg1: i32, %arg2: i32) -> (i32, i32, i32, i32) {
    %c0_i32 = arith.constant 0 : i32
    %c0_i32_0 = arith.constant 0 : i32
    %c0_i32_1 = arith.constant 0 : i32
    return %arg0, %c0_i32, %arg1, %c0_i32_0 : i32, i32, i32, i32
  }
  func.func @transform_1(%arg0: i32, %arg1: i32, %arg2: i32) -> (i32, i32, i32, i32) {
    %0 = arith.minsi %arg2, %arg1 : i32
    %c0_i32 = arith.constant 0 : i32
    %c0_i32_0 = arith.constant 0 : i32
    %c0_i32_1 = arith.constant 0 : i32
    return %arg0, %c0_i32, %0, %c0_i32_0 : i32, i32, i32, i32
  }
  func.func @transform_2(%arg0: i32, %arg1: i32, %arg2: i32) -> (i32, i32, i32, i32) {
    %0 = arith.minsi %arg2, %arg1 : i32
    %c0_i32 = arith.constant 0 : i32
    %c0_i32_0 = arith.constant 0 : i32
    %c0_i32_1 = arith.constant 0 : i32
    return %arg0, %c0_i32, %0, %c0_i32_0 : i32, i32, i32, i32
  }
  func.func @transform_3(%arg0: i32, %arg1: i32, %arg2: i32) -> (i32, i32, i32, i32) {
    %c0_i32 = arith.constant 0 : i32
    %c0_i32_0 = arith.constant 0 : i32
    %c0_i32_1 = arith.constant 0 : i32
    return %arg0, %c0_i32, %arg1, %c0_i32_0 : i32, i32, i32, i32
  }
}

module attributes {stable_mosaic.version = 11 : i64} {
  func.func @_lm_head_kernel(%arg0: i32, %arg1: i32, %arg2: memref<128x256xf32, #tpu.memory_space<vmem>>, %arg3: memref<1x256xf32, #tpu.memory_space<vmem>>, %arg4: memref<1x256xf32, #tpu.memory_space<vmem>>, %arg5: memref<256x256xbf16, #tpu.memory_space<vmem>>, %arg6: memref<128x256xf32, #tpu.memory_space<vmem>>, %arg7: memref<128x256xbf16, #tpu.memory_space<vmem>>) attributes {dimension_semantics = [#tpu.dimension_semantics<parallel>, #tpu.dimension_semantics<arbitrary>], iteration_bounds = array<i64: 1, 2>, scalar_prefetch = 0 : i64, scratch_operands = 1 : i64, tpu.core_type = #tpu.core_type<tc>, window_params = [{transform_indices = @transform_0, window_bounds = array<i64: 128, 256>}, {pipeline_mode = #tpu.pipeline_mode<synchronous>, transform_indices = @transform_1, window_bounds = array<i64: 1, 256>}, {pipeline_mode = #tpu.pipeline_mode<synchronous>, transform_indices = @transform_2, window_bounds = array<i64: 1, 256>}, {transform_indices = @transform_3, window_bounds = array<i64: 256, 256>}, {transform_indices = @transform_4, window_bounds = array<i64: 128, 256>}]} {
    %c0_i32 = arith.constant 0 : i32
    %0 = arith.cmpi eq, %arg1, %c0_i32 : i32
    %1 = arith.extui %0 : i1 to i32
    %c0_i32_0 = arith.constant 0 : i32
    %2 = arith.cmpi ne, %1, %c0_i32_0 : i32
    scf.if %2 {
      %c0_6 = arith.constant 0 : index
      %c0_7 = arith.constant 0 : index
      %7 = vector.load %arg2[%c0_6, %c0_7] : memref<128x256xf32, #tpu.memory_space<vmem>>, vector<128x256xf32>
      %c0_8 = arith.constant 0 : index
      %c0_9 = arith.constant 0 : index
      %8 = vector.load %arg3[%c0_8, %c0_9] : memref<1x256xf32, #tpu.memory_space<vmem>>, vector<1x256xf32>
      %c0_10 = arith.constant 0 : index
      %c0_11 = arith.constant 0 : index
      %9 = vector.load %arg4[%c0_10, %c0_11] : memref<1x256xf32, #tpu.memory_space<vmem>>, vector<1x256xf32>
      %cst_12 = arith.constant dense<0.000000e+00> : vector<128xf32>
      %10 = vector.multi_reduction <add>, %7, %cst_12 [1] : vector<128x256xf32> to vector<128xf32>
      %11 = vector.shape_cast %10 : vector<128xf32> to vector<128x1xf32>
      %cst_13 = arith.constant 2.560000e+02 : f32
      %12 = vector.broadcast %cst_13 : f32 to vector<128x1xf32>
      %13 = arith.divf %11, %12 : vector<128x1xf32>
      %14 = vector.broadcast %13 : vector<128x1xf32> to vector<128x256xf32>
      %15 = arith.subf %7, %14 : vector<128x256xf32>
      %16 = arith.mulf %15, %15 : vector<128x256xf32>
      %cst_14 = arith.constant dense<0.000000e+00> : vector<128xf32>
      %17 = vector.multi_reduction <add>, %16, %cst_14 [1] : vector<128x256xf32> to vector<128xf32>
      %18 = vector.shape_cast %17 : vector<128xf32> to vector<128x1xf32>
      %cst_15 = arith.constant 2.560000e+02 : f32
      %19 = vector.broadcast %cst_15 : f32 to vector<128x1xf32>
      %20 = arith.divf %18, %19 : vector<128x1xf32>
      %21 = vector.broadcast %13 : vector<128x1xf32> to vector<128x256xf32>
      %22 = arith.subf %7, %21 : vector<128x256xf32>
      %cst_16 = arith.constant 9.99999974E-6 : f32
      %23 = vector.broadcast %cst_16 : f32 to vector<128x1xf32>
      %24 = arith.addf %20, %23 : vector<128x1xf32>
      %25 = math.rsqrt %24 : vector<128x1xf32>
      %26 = vector.broadcast %25 : vector<128x1xf32> to vector<128x256xf32>
      %27 = arith.mulf %22, %26 : vector<128x256xf32>
      %28 = vector.broadcast %8 : vector<1x256xf32> to vector<128x256xf32>
      %29 = arith.mulf %27, %28 : vector<128x256xf32>
      %30 = vector.broadcast %9 : vector<1x256xf32> to vector<128x256xf32>
      %31 = arith.addf %29, %30 : vector<128x256xf32>
      %32 = arith.truncf %31 : vector<128x256xf32> to vector<128x256xbf16>
      %c0_17 = arith.constant 0 : index
      %c0_18 = arith.constant 0 : index
      %33 = vector.load %arg7[%c0_17, %c0_18] : memref<128x256xbf16, #tpu.memory_space<vmem>>, vector<128x256xbf16>
      tpu.vector_store %arg7[%c0_17, %c0_18], %32 {strides = array<i32>} : memref<128x256xbf16, #tpu.memory_space<vmem>>, vector<128x256xbf16>,
    } else {
    }
    %c0 = arith.constant 0 : index
    %c0_1 = arith.constant 0 : index
    %3 = vector.load %arg7[%c0, %c0_1] : memref<128x256xbf16, #tpu.memory_space<vmem>>, vector<128x256xbf16>
    %c0_2 = arith.constant 0 : index
    %c0_3 = arith.constant 0 : index
    %4 = vector.load %arg5[%c0_2, %c0_3] : memref<256x256xbf16, #tpu.memory_space<vmem>>, vector<256x256xbf16>
    %cst = arith.constant dense<0.000000e+00> : vector<128x256xf32>
    %5 = tpu.matmul %3, %4, %cst {dimension_numbers = #tpu.dot_dimension_numbers<[1], [0], [0], [1], [0, 0, 1, 1], [], []>} : vector<128x256xbf16>, vector<256x256xbf16>, vector<128x256xf32> -> vector<128x256xf32>
    %c0_4 = arith.constant 0 : index
    %c0_5 = arith.constant 0 : index
    %6 = vector.load %arg6[%c0_4, %c0_5] : memref<128x256xf32, #tpu.memory_space<vmem>>, vector<128x256xf32>
    tpu.vector_store %arg6[%c0_4, %c0_5], %5 {strides = array<i32>} : memref<128x256xf32, #tpu.memory_space<vmem>>, vector<128x256xf32>,
    return
  }
  func.func @transform_0(%arg0: i32, %arg1: i32) -> (i32, i32) {
    %c0_i32 = arith.constant 0 : i32
    %c0_i32_0 = arith.constant 0 : i32
    return %arg0, %c0_i32 : i32, i32
  }
  func.func @transform_1(%arg0: i32, %arg1: i32) -> (i32, i32) {
    %c0_i32 = arith.constant 0 : i32
    %c0_i32_0 = arith.constant 0 : i32
    %c0_i32_1 = arith.constant 0 : i32
    return %c0_i32, %c0_i32_0 : i32, i32
  }
  func.func @transform_2(%arg0: i32, %arg1: i32) -> (i32, i32) {
    %c0_i32 = arith.constant 0 : i32
    %c0_i32_0 = arith.constant 0 : i32
    %c0_i32_1 = arith.constant 0 : i32
    return %c0_i32, %c0_i32_0 : i32, i32
  }
  func.func @transform_3(%arg0: i32, %arg1: i32) -> (i32, i32) {
    %c0_i32 = arith.constant 0 : i32
    %c0_i32_0 = arith.constant 0 : i32
    return %c0_i32, %arg1 : i32, i32
  }
  func.func @transform_4(%arg0: i32, %arg1: i32) -> (i32, i32) {
    %c0_i32 = arith.constant 0 : i32
    return %arg0, %arg1 : i32, i32
  }
}

module attributes {stable_mosaic.version = 11 : i64} {
  func.func @_proj_mlp_kernel(%arg0: i32, %arg1: i32, %arg2: memref<1x32x256xf32, #tpu.memory_space<vmem>>, %arg3: memref<1x32x256xbf16, #tpu.memory_space<vmem>>, %arg4: memref<256x256xbf16, #tpu.memory_space<vmem>>, %arg5: memref<1x256xf32, #tpu.memory_space<vmem>>, %arg6: memref<1x256xf32, #tpu.memory_space<vmem>>, %arg7: memref<1x256xf32, #tpu.memory_space<vmem>>, %arg8: memref<256x1024xbf16, #tpu.memory_space<vmem>>, %arg9: memref<1x1024xf32, #tpu.memory_space<vmem>>, %arg10: memref<1024x256xbf16, #tpu.memory_space<vmem>>, %arg11: memref<1x256xf32, #tpu.memory_space<vmem>>, %arg12: memref<1x32x256xf32, #tpu.memory_space<vmem>>) attributes {dimension_semantics = [#tpu.dimension_semantics<parallel>, #tpu.dimension_semantics<parallel>], iteration_bounds = array<i64: 2, 2>, scalar_prefetch = 0 : i64, scratch_operands = 0 : i64, tpu.core_type = #tpu.core_type<tc>, window_params = [{transform_indices = @transform_0, window_bounds = array<i64: 1, 32, 256>}, {transform_indices = @transform_1, window_bounds = array<i64: 1, 32, 256>}, {pipeline_mode = #tpu.pipeline_mode<synchronous>, transform_indices = @transform_2, window_bounds = array<i64: 256, 256>}, {pipeline_mode = #tpu.pipeline_mode<synchronous>, transform_indices = @transform_3, window_bounds = array<i64: 1, 256>}, {pipeline_mode = #tpu.pipeline_mode<synchronous>, transform_indices = @transform_4, window_bounds = array<i64: 1, 256>}, {pipeline_mode = #tpu.pipeline_mode<synchronous>, transform_indices = @transform_5, window_bounds = array<i64: 1, 256>}, {pipeline_mode = #tpu.pipeline_mode<synchronous>, transform_indices = @transform_6, window_bounds = array<i64: 256, 1024>}, {pipeline_mode = #tpu.pipeline_mode<synchronous>, transform_indices = @transform_7, window_bounds = array<i64: 1, 1024>}, {pipeline_mode = #tpu.pipeline_mode<synchronous>, transform_indices = @transform_8, window_bounds = array<i64: 1024, 256>}, {pipeline_mode = #tpu.pipeline_mode<synchronous>, transform_indices = @transform_9, window_bounds = array<i64: 1, 256>}, {transform_indices = @transform_10, window_bounds = array<i64: 1, 32, 256>}]} {
    %c0 = arith.constant 0 : index
    %c0_0 = arith.constant 0 : index
    %c0_1 = arith.constant 0 : index
    %0 = vector.load %arg2[%c0, %c0_0, %c0_1] : memref<1x32x256xf32, #tpu.memory_space<vmem>>, vector<1x32x256xf32>
    %1 = vector.shape_cast %0 : vector<1x32x256xf32> to vector<32x256xf32>
    %c0_2 = arith.constant 0 : index
    %c0_3 = arith.constant 0 : index
    %c0_4 = arith.constant 0 : index
    %2 = vector.load %arg3[%c0_2, %c0_3, %c0_4] : memref<1x32x256xbf16, #tpu.memory_space<vmem>>, vector<1x32x256xbf16>
    %3 = vector.shape_cast %2 : vector<1x32x256xbf16> to vector<32x256xbf16>
    %c0_5 = arith.constant 0 : index
    %c0_6 = arith.constant 0 : index
    %4 = vector.load %arg4[%c0_5, %c0_6] : memref<256x256xbf16, #tpu.memory_space<vmem>>, vector<256x256xbf16>
    %cst = arith.constant dense<0.000000e+00> : vector<32x256xf32>
    %5 = tpu.matmul %3, %4, %cst {dimension_numbers = #tpu.dot_dimension_numbers<[1], [0], [0], [1], [0, 0, 1, 1], [], []>} : vector<32x256xbf16>, vector<256x256xbf16>, vector<32x256xf32> -> vector<32x256xf32>
    %6 = arith.addf %1, %5 : vector<32x256xf32>
    %c0_7 = arith.constant 0 : index
    %c0_8 = arith.constant 0 : index
    %7 = vector.load %arg5[%c0_7, %c0_8] : memref<1x256xf32, #tpu.memory_space<vmem>>, vector<1x256xf32>
    %8 = vector.broadcast %7 : vector<1x256xf32> to vector<32x256xf32>
    %9 = arith.addf %6, %8 : vector<32x256xf32>
    %c0_9 = arith.constant 0 : index
    %c0_10 = arith.constant 0 : index
    %10 = vector.load %arg6[%c0_9, %c0_10] : memref<1x256xf32, #tpu.memory_space<vmem>>, vector<1x256xf32>
    %c0_11 = arith.constant 0 : index
    %c0_12 = arith.constant 0 : index
    %11 = vector.load %arg7[%c0_11, %c0_12] : memref<1x256xf32, #tpu.memory_space<vmem>>, vector<1x256xf32>
    %cst_13 = arith.constant dense<0.000000e+00> : vector<32xf32>
    %12 = vector.multi_reduction <add>, %9, %cst_13 [1] : vector<32x256xf32> to vector<32xf32>
    %13 = vector.shape_cast %12 : vector<32xf32> to vector<32x1xf32>
    %cst_14 = arith.constant 2.560000e+02 : f32
    %14 = vector.broadcast %cst_14 : f32 to vector<32x1xf32>
    %15 = arith.divf %13, %14 : vector<32x1xf32>
    %16 = vector.broadcast %15 : vector<32x1xf32> to vector<32x256xf32>
    %17 = arith.subf %9, %16 : vector<32x256xf32>
    %18 = arith.mulf %17, %17 : vector<32x256xf32>
    %cst_15 = arith.constant dense<0.000000e+00> : vector<32xf32>
    %19 = vector.multi_reduction <add>, %18, %cst_15 [1] : vector<32x256xf32> to vector<32xf32>
    %20 = vector.shape_cast %19 : vector<32xf32> to vector<32x1xf32>
    %cst_16 = arith.constant 2.560000e+02 : f32
    %21 = vector.broadcast %cst_16 : f32 to vector<32x1xf32>
    %22 = arith.divf %20, %21 : vector<32x1xf32>
    %23 = vector.broadcast %15 : vector<32x1xf32> to vector<32x256xf32>
    %24 = arith.subf %9, %23 : vector<32x256xf32>
    %cst_17 = arith.constant 9.99999974E-6 : f32
    %25 = vector.broadcast %cst_17 : f32 to vector<32x1xf32>
    %26 = arith.addf %22, %25 : vector<32x1xf32>
    %27 = math.rsqrt %26 : vector<32x1xf32>
    %28 = vector.broadcast %27 : vector<32x1xf32> to vector<32x256xf32>
    %29 = arith.mulf %24, %28 : vector<32x256xf32>
    %30 = vector.broadcast %10 : vector<1x256xf32> to vector<32x256xf32>
    %31 = arith.mulf %29, %30 : vector<32x256xf32>
    %32 = vector.broadcast %11 : vector<1x256xf32> to vector<32x256xf32>
    %33 = arith.addf %31, %32 : vector<32x256xf32>
    %34 = arith.truncf %33 : vector<32x256xf32> to vector<32x256xbf16>
    %c0_18 = arith.constant 0 : index
    %c0_19 = arith.constant 0 : index
    %35 = vector.load %arg8[%c0_18, %c0_19] : memref<256x1024xbf16, #tpu.memory_space<vmem>>, vector<256x1024xbf16>
    %cst_20 = arith.constant dense<0.000000e+00> : vector<32x1024xf32>
    %36 = tpu.matmul %34, %35, %cst_20 {dimension_numbers = #tpu.dot_dimension_numbers<[1], [0], [0], [1], [0, 0, 1, 1], [], []>} : vector<32x256xbf16>, vector<256x1024xbf16>, vector<32x1024xf32> -> vector<32x1024xf32>
    %c0_21 = arith.constant 0 : index
    %c0_22 = arith.constant 0 : index
    %37 = vector.load %arg9[%c0_21, %c0_22] : memref<1x1024xf32, #tpu.memory_space<vmem>>, vector<1x1024xf32>
    %38 = vector.broadcast %37 : vector<1x1024xf32> to vector<32x1024xf32>
    %39 = arith.addf %36, %38 : vector<32x1024xf32>
    %cst_23 = arith.constant 5.000000e-01 : f32
    %40 = vector.broadcast %cst_23 : f32 to vector<32x1024xf32>
    %41 = arith.mulf %40, %39 : vector<32x1024xf32>
    %cst_24 = arith.constant 4.471500e-02 : f32
    %42 = vector.broadcast %cst_24 : f32 to vector<32x1024xf32>
    %43 = arith.mulf %42, %39 : vector<32x1024xf32>
    %44 = arith.mulf %43, %39 : vector<32x1024xf32>
    %45 = arith.mulf %44, %39 : vector<32x1024xf32>
    %46 = arith.addf %39, %45 : vector<32x1024xf32>
    %cst_25 = arith.constant 0.797884583 : f32
    %47 = vector.broadcast %cst_25 : f32 to vector<32x1024xf32>
    %48 = arith.mulf %47, %46 : vector<32x1024xf32>
    %49 = math.tanh %48 : vector<32x1024xf32>
    %cst_26 = arith.constant 1.000000e+00 : f32
    %50 = vector.broadcast %cst_26 : f32 to vector<32x1024xf32>
    %51 = arith.addf %50, %49 : vector<32x1024xf32>
    %52 = arith.mulf %41, %51 : vector<32x1024xf32>
    %53 = arith.truncf %52 : vector<32x1024xf32> to vector<32x1024xbf16>
    %c0_27 = arith.constant 0 : index
    %c0_28 = arith.constant 0 : index
    %54 = vector.load %arg10[%c0_27, %c0_28] : memref<1024x256xbf16, #tpu.memory_space<vmem>>, vector<1024x256xbf16>
    %cst_29 = arith.constant dense<0.000000e+00> : vector<32x256xf32>
    %55 = tpu.matmul %53, %54, %cst_29 {dimension_numbers = #tpu.dot_dimension_numbers<[1], [0], [0], [1], [0, 0, 1, 1], [], []>} : vector<32x1024xbf16>, vector<1024x256xbf16>, vector<32x256xf32> -> vector<32x256xf32>
    %56 = arith.addf %9, %55 : vector<32x256xf32>
    %c0_30 = arith.constant 0 : index
    %c0_31 = arith.constant 0 : index
    %57 = vector.load %arg11[%c0_30, %c0_31] : memref<1x256xf32, #tpu.memory_space<vmem>>, vector<1x256xf32>
    %58 = vector.broadcast %57 : vector<1x256xf32> to vector<32x256xf32>
    %59 = arith.addf %56, %58 : vector<32x256xf32>
    %c0_32 = arith.constant 0 : index
    %c0_33 = arith.constant 0 : index
    %c0_34 = arith.constant 0 : index
    %60 = vector.load %arg12[%c0_32, %c0_33, %c0_34] : memref<1x32x256xf32, #tpu.memory_space<vmem>>, vector<1x32x256xf32>
    %61 = vector.shape_cast %60 : vector<1x32x256xf32> to vector<32x256xf32>
    %62 = vector.shape_cast %59 : vector<32x256xf32> to vector<1x32x256xf32>
    tpu.vector_store %arg12[%c0_32, %c0_33, %c0_34], %62 {strides = array<i32>} : memref<1x32x256xf32, #tpu.memory_space<vmem>>, vector<1x32x256xf32>,
    return
  }
  func.func @transform_0(%arg0: i32, %arg1: i32) -> (i32, i32, i32) {
    %c0_i32 = arith.constant 0 : i32
    %c0_i32_0 = arith.constant 0 : i32
    return %arg0, %arg1, %c0_i32 : i32, i32, i32
  }
  func.func @transform_1(%arg0: i32, %arg1: i32) -> (i32, i32, i32) {
    %c0_i32 = arith.constant 0 : i32
    %c0_i32_0 = arith.constant 0 : i32
    return %arg0, %arg1, %c0_i32 : i32, i32, i32
  }
  func.func @transform_2(%arg0: i32, %arg1: i32) -> (i32, i32) {
    %c0_i32 = arith.constant 0 : i32
    %c0_i32_0 = arith.constant 0 : i32
    %c0_i32_1 = arith.constant 0 : i32
    return %c0_i32, %c0_i32_0 : i32, i32
  }
  func.func @transform_3(%arg0: i32, %arg1: i32) -> (i32, i32) {
    %c0_i32 = arith.constant 0 : i32
    %c0_i32_0 = arith.constant 0 : i32
    %c0_i32_1 = arith.constant 0 : i32
    return %c0_i32, %c0_i32_0 : i32, i32
  }
  func.func @transform_4(%arg0: i32, %arg1: i32) -> (i32, i32) {
    %c0_i32 = arith.constant 0 : i32
    %c0_i32_0 = arith.constant 0 : i32
    %c0_i32_1 = arith.constant 0 : i32
    return %c0_i32, %c0_i32_0 : i32, i32
  }
  func.func @transform_5(%arg0: i32, %arg1: i32) -> (i32, i32) {
    %c0_i32 = arith.constant 0 : i32
    %c0_i32_0 = arith.constant 0 : i32
    %c0_i32_1 = arith.constant 0 : i32
    return %c0_i32, %c0_i32_0 : i32, i32
  }
  func.func @transform_6(%arg0: i32, %arg1: i32) -> (i32, i32) {
    %c0_i32 = arith.constant 0 : i32
    %c0_i32_0 = arith.constant 0 : i32
    %c0_i32_1 = arith.constant 0 : i32
    return %c0_i32, %c0_i32_0 : i32, i32
  }
  func.func @transform_7(%arg0: i32, %arg1: i32) -> (i32, i32) {
    %c0_i32 = arith.constant 0 : i32
    %c0_i32_0 = arith.constant 0 : i32
    %c0_i32_1 = arith.constant 0 : i32
    return %c0_i32, %c0_i32_0 : i32, i32
  }
  func.func @transform_8(%arg0: i32, %arg1: i32) -> (i32, i32) {
    %c0_i32 = arith.constant 0 : i32
    %c0_i32_0 = arith.constant 0 : i32
    %c0_i32_1 = arith.constant 0 : i32
    return %c0_i32, %c0_i32_0 : i32, i32
  }
  func.func @transform_9(%arg0: i32, %arg1: i32) -> (i32, i32) {
    %c0_i32 = arith.constant 0 : i32
    %c0_i32_0 = arith.constant 0 : i32
    %c0_i32_1 = arith.constant 0 : i32
    return %c0_i32, %c0_i32_0 : i32, i32
  }
  func.func @transform_10(%arg0: i32, %arg1: i32) -> (i32, i32, i32) {
    %c0_i32 = arith.constant 0 : i32
    %c0_i32_0 = arith.constant 0 : i32
    return %arg0, %arg1, %c0_i32 : i32, i32, i32
  }
}

</mosaic_0001>

<llo_original>
// kernel: gpt_forward.7
$region0: #{gpt_forward.7}
  #allocation0 [shape = 'u32[]', space=smem, size = 0x4, offset = 0x4, fixed_abs, tag = 'smem constant byte address 0x4 - core index']
  #allocation1 [shape = 'u32[144,128]{1,0:T(1,128)}', space=vmem, size = 0x12000, scoped, tag = 'internal scratch']
  %s0 = inlined_call_operand.hbm [shape: f32[2,64,256], index: 0, kind: input, shape index: {}]
  %s1 = inlined_call_operand.hbm [shape: f32[1,256], index: 1, kind: input, shape index: {}]
  %s2 = inlined_call_operand.hbm [shape: f32[1,256], index: 2, kind: input, shape index: {}]
  %s3 = inlined_call_operand.hbm [shape: bf16[256,768], index: 3, kind: input, shape index: {}]
  %s4 = inlined_call_operand.hbm [shape: f32[1,768], index: 4, kind: input, shape index: {}]
  %s5 = inlined_call_operand.hbm [shape: bf16[2,64,768], index: 5, kind: output, shape index: {}]
  %s6 = sld [smem:[#allocation0]]
  $region73: #{gpt_forward.7} parent=0
    _
  %s8 = ssub.s32 1, %s6
  %s9 = scalar_select 0, %s8, %s6
  $region1: #{gpt_forward.7} parent=0
    #allocation2 [shape = 'u8[65536]{0}', space=vmem, size = 0x10000, scoped, tag = 'input window, operand 0']
    #allocation3 [shape = 's32[2]{0}', space=sflag, size = 0x8, scoped, tag = 'scoped memory for gpt_forward.7']
    #allocation4 [shape = 's32[2]{0}', space=sflag, size = 0x8, scoped, tag = 'scoped memory for gpt_forward.7']
    #allocation5 [shape = 'u8[1024]{0}', space=vmem, size = 0x400, scoped, tag = 'input window, operand 1, single buffered']
    #allocation6 [shape = 's32[1]{0}', space=sflag, size = 0x4, scoped, tag = 'scoped memory for gpt_forward.7']
    #allocation7 [shape = 'u8[1024]{0}', space=vmem, size = 0x400, scoped, tag = 'input window, operand 2, single buffered']
    #allocation8 [shape = 'u8[393216]{0}', space=vmem, size = 0x60000, scoped, tag = 'input window, operand 3, single buffered']
    #allocation9 [shape = 's32[1]{0}', space=sflag, size = 0x4, scoped, tag = 'scoped memory for gpt_forward.7']
    #allocation10 [shape = 'u8[3072]{0}', space=vmem, size = 0xc00, scoped, tag = 'input window, operand 4, single buffered']
    #allocation11 [shape = 'u8[98304]{0}', space=vmem, size = 0x18000, scoped, tag = 'output window, operand 0']
    %10 = vsyncpa [#allocation3], 0
    %s11 = scalar_lea.sflag [#allocation3], 1
    %12 = vsyncpa %s11, 0
    %13 = vsyncpa [#allocation6], 0
    %14 = vsyncpa [#allocation9], 0
    %15 = vsyncpa [#allocation4], 0
    %s16 = scalar_lea.sflag [#allocation4], 1
    %17 = vsyncpa %s16, 0
    loop: start=0, step=1, limit=6
    $region2: #{gpt_forward.7} parent=1 // loop_pre_header
      _
    $region3: #{gpt_forward.7} parent=1 // loop_header
      %s19 = sphi 0, %s23
      %p20 = scmp.ge.s32.totalorder %s19, 6
      %s26 = sphi 0, %s38
      %s27 = sphi 0, %s34
      %s28 = sphi 0, %s26
      %s29 = sphi 0, %s27
      %s30 = sphi 0, %s28
      %s31 = sphi 0, %s29
      %s43 = sphi 0, %s45
      %s46 = sphi 0, %s43
      %s47 = sphi 0, %s46
      %s63 = sphi 0, %s47
      %s67 = sphi 0, %s67
      %s69 = sphi 0, %s67
      %s70 = sphi 0, %s69
      %s84 = sphi 0, %s70
      %s88 = sphi 0, %s88
      %s90 = sphi 0, %s88
      %s91 = sphi 0, %s90
      %s105 = sphi 0, %s91
      %s109 = sphi 0, %s109
      %s111 = sphi 0, %s109
      %s112 = sphi 0, %s111
      %s126 = sphi 0, %s112
      %s130 = sphi 0, %s130
      %s132 = sphi 0, %s130
      %s133 = sphi 0, %s132
      %s147 = sphi 0, %s133
      %s155 = sphi 0, %s157
      %s158 = sphi 0, %s155
      %s159 = sphi 0, %s158
      %s175 = sphi 0, %s159
    $region4: #{gpt_forward.7} parent=1 // loop_header_branch
      %22 = sbr.rel (%p20) target = $region8
    $region5: #{gpt_forward.7} parent=1 // loop_body
      %s24 = ssub.s32 %s19, 1
      %s25 = ssub.s32 %s19, 2
      %s32 = sadd.s32 1, %s27
      %p33 = scmp.ge.s32.totalorder %s32, 2
      %s34 = scalar_select %p33, 0, %s32
      %s35 = sadd.s32 1, %s26
      %s36 = scalar_select %p33, %s35, %s26
      %p37 = scmp.ge.s32.totalorder %s36, 2
      %s38 = scalar_select %p37, 0, %s36
      %s39 = ssub.s32 %s26, %s38
      %s40 = ssub.s32 %s27, %s34
      %s41 = sor.u32 %s39, %s40
      %p42 = scmp.eq.s32.totalorder %s41, 0
      %s44 = sadd.s32 %s43, 1
      %s45 = scalar_select %p42, %s43, %s44
      %p48 = pneg %p42
      %p49 = scmp.eq.s32.totalorder %s19, 3
      %p50 = por %p48, %p49
      %p51 = scmp.ne.s32.totalorder %s43, %s46
      %p52 = scmp.eq.s32.totalorder %s19, 0
      %p53 = por %p51, %p52
      %p54 = scmp.ne.s32.totalorder %s43, %s46
      %p55 = scmp.eq.s32.totalorder %s24, 3
      %p56 = por %p54, %p55
      %p57 = scmp.ne.s32.totalorder %s46, %s47
      %p58 = scmp.eq.s32.totalorder %s24, 0
      %p59 = por %p57, %p58
      %p60 = scmp.ne.s32.totalorder %s46, %s47
      %p61 = scmp.eq.s32.totalorder %s25, 3
      %p62 = por %p60, %p61
      %p64 = scmp.ne.s32.totalorder %s47, %s63
      %p65 = scmp.eq.s32.totalorder %s25, 0
      %p66 = por %p64, %p65
      %s68 = sadd.s32 %s67, 1
      %p71 = scmp.eq.s32.totalorder %s19, 3
      %p72 = scmp.ne.s32.totalorder %s67, %s69
      %p73 = scmp.eq.s32.totalorder %s19, 0
      %p74 = por %p72, %p73
      %p75 = scmp.ne.s32.totalorder %s67, %s69
      %p76 = scmp.eq.s32.totalorder %s24, 3
      %p77 = por %p75, %p76
      %p78 = scmp.ne.s32.totalorder %s69, %s70
      %p79 = scmp.eq.s32.totalorder %s24, 0
      %p80 = por %p78, %p79
      %p81 = scmp.ne.s32.totalorder %s69, %s70
      %p82 = scmp.eq.s32.totalorder %s25, 3
      %p83 = por %p81, %p82
      %p85 = scmp.ne.s32.totalorder %s70, %s84
      %p86 = scmp.eq.s32.totalorder %s25, 0
      %p87 = por %p85, %p86
      %s89 = sadd.s32 %s88, 1
      %p92 = scmp.eq.s32.totalorder %s19, 3
      %p93 = scmp.ne.s32.totalorder %s88, %s90
      %p94 = scmp.eq.s32.totalorder %s19, 0
      %p95 = por %p93, %p94
      %p96 = scmp.ne.s32.totalorder %s88, %s90
      %p97 = scmp.eq.s32.totalorder %s24, 3
      %p98 = por %p96, %p97
      %p99 = scmp.ne.s32.totalorder %s90, %s91
      %p100 = scmp.eq.s32.totalorder %s24, 0
      %p101 = por %p99, %p100
      %p102 = scmp.ne.s32.totalorder %s90, %s91
      %p103 = scmp.eq.s32.totalorder %s25, 3
      %p104 = por %p102, %p103
      %p106 = scmp.ne.s32.totalorder %s91, %s105
      %p107 = scmp.eq.s32.totalorder %s25, 0
      %p108 = por %p106, %p107
      %s110 = sadd.s32 %s109, 1
      %p113 = scmp.eq.s32.totalorder %s19, 3
      %p114 = scmp.ne.s32.totalorder %s109, %s111
      %p115 = scmp.eq.s32.totalorder %s19, 0
      %p116 = por %p114, %p115
      %p117 = scmp.ne.s32.totalorder %s109, %s111
      %p118 = scmp.eq.s32.totalorder %s24, 3
      %p119 = por %p117, %p118
      %p120 = scmp.ne.s32.totalorder %s111, %s112
      %p121 = scmp.eq.s32.totalorder %s24, 0
      %p122 = por %p120, %p121
      %p123 = scmp.ne.s32.totalorder %s111, %s112
      %p124 = scmp.eq.s32.totalorder %s25, 3
      %p125 = por %p123, %p124
      %p127 = scmp.ne.s32.totalorder %s112, %s126
      %p128 = scmp.eq.s32.totalorder %s25, 0
      %p129 = por %p127, %p128
      %s131 = sadd.s32 %s130, 1
      %p134 = scmp.eq.s32.totalorder %s19, 3
      %p135 = scmp.ne.s32.totalorder %s130, %s132
      %p136 = scmp.eq.s32.totalorder %s19, 0
      %p137 = por %p135, %p136
      %p138 = scmp.ne.s32.totalorder %s130, %s132
      %p139 = scmp.eq.s32.totalorder %s24, 3
      %p140 = por %p138, %p139
      %p141 = scmp.ne.s32.totalorder %s132, %s133
      %p142 = scmp.eq.s32.totalorder %s24, 0
      %p143 = por %p141, %p142
      %p144 = scmp.ne.s32.totalorder %s132, %s133
      %p145 = scmp.eq.s32.totalorder %s25, 3
      %p146 = por %p144, %p145
      %p148 = scmp.ne.s32.totalorder %s133, %s147
      %p149 = scmp.eq.s32.totalorder %s25, 0
      %p150 = por %p148, %p149
      %s151 = ssub.s32 %s26, %s38
      %s152 = ssub.s32 %s27, %s34
      %s153 = sor.u32 %s151, %s152
      %p154 = scmp.eq.s32.totalorder %s153, 0
      %s156 = sadd.s32 %s155, 1
      %s157 = scalar_select %p154, %s155, %s156
      %p160 = pneg %p154
      %p161 = scmp.eq.s32.totalorder %s19, 3
      %p162 = por %p160, %p161
      %p163 = scmp.ne.s32.totalorder %s155, %s158
      %p164 = scmp.eq.s32.totalorder %s19, 0
      %p165 = por %p163, %p164
      %p166 = scmp.ne.s32.totalorder %s155, %s158
      %p167 = scmp.eq.s32.totalorder %s24, 3
      %p168 = por %p166, %p167
      %p169 = scmp.ne.s32.totalorder %s158, %s159
      %p170 = scmp.eq.s32.totalorder %s24, 0
      %p171 = por %p169, %p170
      %p172 = scmp.ne.s32.totalorder %s158, %s159
      %p173 = scmp.eq.s32.totalorder %s25, 3
      %p174 = por %p172, %p173
      %p176 = scmp.ne.s32.totalorder %s159, %s175
      %p177 = scmp.eq.s32.totalorder %s25, 0
      %p178 = por %p176, %p177
      %p179 = scmp.le.s32.totalorder 1, %s19
      %p180 = scmp.lt.s32.totalorder %s19, 5
      %p181 = pnand %p179, %p180
      %p182 = pneg %p181
      // Predicated region
      $region9: #{gpt_forward.7} parent=5 // pred_check
        _
      $region10: #{gpt_forward.7} parent=5 // pred_check_branch
        %184 = sbr.rel (%p181) target = $region12
      $region11: #{gpt_forward.7} parent=5 // pred_region
        %s185 = ssub.s32 %s19, 1
        // Predicated region
        $region13: #{gpt_forward.7} parent=11 // pred_check
          %p186 = pneg %p80
        $region14: #{gpt_forward.7} parent=11 // pred_check_branch
          %188 = sbr.rel (%p186) target = $region16
        $region15: #{gpt_forward.7} parent=11 // pred_region
          %s190 = ssub.s32 32, 32
          %191 = vsyncadd [#allocation6], %s190
          %s193 = sshll.u32 [#allocation5], 4
          %s194 = int_to_ptr.vmem [resolvable:$true] %s193
          %196 = dma.hbm_to_vmem [thread:$0]  %s1, 32, %s194, [#allocation6]
        $region16: #{gpt_forward.7} parent=11 // pred_fallthru
          _
        // Predicated region
        $region17: #{gpt_forward.7} parent=11 // pred_check
          %p197 = pneg %p101
        $region18: #{gpt_forward.7} parent=11 // pred_check_branch
          %199 = sbr.rel (%p197) target = $region20
        $region19: #{gpt_forward.7} parent=11 // pred_region
          %s201 = ssub.s32 32, 32
          %202 = vsyncadd [#allocation6], %s201
          %s204 = sshll.u32 [#allocation7], 4
          %s205 = int_to_ptr.vmem [resolvable:$true] %s204
          %207 = dma.hbm_to_vmem [thread:$0]  %s2, 32, %s205, [#allocation6]
        $region20: #{gpt_forward.7} parent=11 // pred_fallthru
          _
        // Predicated region
        $region21: #{gpt_forward.7} parent=11 // pred_check
          %p208 = pneg %p122
        $region22: #{gpt_forward.7} parent=11 // pred_check_branch
          %210 = sbr.rel (%p208) target = $region24
        $region23: #{gpt_forward.7} parent=11 // pred_region
          %s212 = ssub.s32 12288, 12288
          %213 = vsyncadd [#allocation9], %s212
          %s214 = sshll.u32 [#allocation8], 4
          %s215 = int_to_ptr.vmem [resolvable:$true] %s214
          %220 = dma.hbm_to_vmem [thread:$0]  %s3, 12288, %s215, [#allocation9], 384, 384, 24
        $region24: #{gpt_forward.7} parent=11 // pred_fallthru
          _
        // Predicated region
        $region25: #{gpt_forward.7} parent=11 // pred_check
          %p221 = pneg %p143
        $region26: #{gpt_forward.7} parent=11 // pred_check_branch
          %223 = sbr.rel (%p221) target = $region28
        $region27: #{gpt_forward.7} parent=11 // pred_region
          %s225 = ssub.s32 96, 96
          %226 = vsyncadd [#allocation9], %s225
          %s228 = sshll.u32 [#allocation10], 4
          %s229 = int_to_ptr.vmem [resolvable:$true] %s228
          %231 = dma.hbm_to_vmem [thread:$0]  %s4, 96, %s229, [#allocation9]
        $region28: #{gpt_forward.7} parent=11 // pred_fallthru
          _
      $region12: #{gpt_forward.7} parent=5 // pred_fallthru
        _
      %p232 = scmp.lt.s32.totalorder %s19, 4
      // Predicated region
      $region29: #{gpt_forward.7} parent=5 // pred_check
        %p233 = pneg %p232
      $region30: #{gpt_forward.7} parent=5 // pred_check_branch
        %235 = sbr.rel (%p233) target = $region32
      $region31: #{gpt_forward.7} parent=5 // pred_region
        // Predicated region
        $region33: #{gpt_forward.7} parent=31 // pred_check
          %p236 = pneg %p53
        $region34: #{gpt_forward.7} parent=31 // pred_check_branch
          %238 = sbr.rel (%p236) target = $region36
        $region35: #{gpt_forward.7} parent=31 // pred_region
          %s239 = sand.u32 %s43, 1
          %s240 = scalar_lea.sflag [#allocation3], %s239
          %s241 = sand.u32 %s43, 1
          %s242 = smul.addr %s241, 64
          %s243 = scalar_lea.vmem [#allocation2], %s242
          %s244 = smul.u32 4, %s27
          %s246 = ssub.s32 1024, 1024
          %247 = vsyncadd %s240, %s246
          %s248 = smul.addr %s244, 2
          %s249 = smul.addr %s26, 16
          %s250 = sadd.s32 %s248, %s249
          %s251 = smul.addr %s250, 128
          %s252 = scalar_lea.hbm %s0, %s251
          %s253 = sshll.u32 %s243, 4
          %s254 = int_to_ptr.vmem [resolvable:$true] %s253
          %259 = dma.hbm_to_vmem [thread:$0]  %s252, 1024, %s254, %s240, 256, 256, 16
        $region36: #{gpt_forward.7} parent=31 // pred_fallthru
          _
      $region32: #{gpt_forward.7} parent=5 // pred_fallthru
        _
      %p260 = scmp.le.s32.totalorder 1, %s19
      %p261 = scmp.lt.s32.totalorder %s19, 5
      %p262 = pnand %p260, %p261
      %p263 = pneg %p262
      // Predicated region
      $region37: #{gpt_forward.7} parent=5 // pred_check
        _
      $region38: #{gpt_forward.7} parent=5 // pred_check_branch
        %265 = sbr.rel (%p262) target = $region40
      $region39: #{gpt_forward.7} parent=5 // pred_region
        %s266 = ssub.s32 %s19, 1
        %s267 = sand.u32 %s46, 1
        %s268 = scalar_lea.sflag [#allocation3], %s267
        %s269 = sand.u32 %s46, 1
        %s270 = smul.addr %s269, 64
        %s271 = scalar_lea.vmem [#allocation2], %s270
        // Predicated region
        $region41: #{gpt_forward.7} parent=39 // pred_check
          %p272 = pneg %p59
        $region42: #{gpt_forward.7} parent=39 // pred_check_branch
          %274 = sbr.rel (%p272) target = $region44
        $region43: #{gpt_forward.7} parent=39 // pred_region
          %275 = dma.done %s268, 1024
        $region44: #{gpt_forward.7} parent=39 // pred_fallthru
          _
        // Predicated region
        $region45: #{gpt_forward.7} parent=39 // pred_check
          %p276 = pneg %p80
        $region46: #{gpt_forward.7} parent=39 // pred_check_branch
          %278 = sbr.rel (%p276) target = $region48
        $region47: #{gpt_forward.7} parent=39 // pred_region
          %279 = dma.done [#allocation6], 32
        $region48: #{gpt_forward.7} parent=39 // pred_fallthru
          _
        // Predicated region
        $region49: #{gpt_forward.7} parent=39 // pred_check
          %p280 = pneg %p101
        $region50: #{gpt_forward.7} parent=39 // pred_check_branch
          %282 = sbr.rel (%p280) target = $region52
        $region51: #{gpt_forward.7} parent=39 // pred_region
          %283 = dma.done [#allocation6], 32
        $region52: #{gpt_forward.7} parent=39 // pred_fallthru
          _
        // Predicated region
        $region53: #{gpt_forward.7} parent=39 // pred_check
          %p284 = pneg %p122
        $region54: #{gpt_forward.7} parent=39 // pred_check_branch
          %286 = sbr.rel (%p284) target = $region56
        $region55: #{gpt_forward.7} parent=39 // pred_region
          %287 = dma.done [#allocation9], 12288
        $region56: #{gpt_forward.7} parent=39 // pred_fallthru
          _
        // Predicated region
        $region57: #{gpt_forward.7} parent=39 // pred_check
          %p288 = pneg %p143
        $region58: #{gpt_forward.7} parent=39 // pred_check_branch
          %290 = sbr.rel (%p288) target = $region60
        $region59: #{gpt_forward.7} parent=39 // pred_region
          %291 = dma.done [#allocation9], 96
        $region60: #{gpt_forward.7} parent=39 // pred_fallthru
          _
        %s292 = sand.u32 %s46, 1
        %s293 = scalar_lea.sflag [#allocation3], %s292
        %s294 = sand.u32 %s46, 1
        %s295 = smul.addr %s294, 64
        %s296 = scalar_lea.vmem [#allocation2], %s295
        %p297 = pneg %p59
        %p298 = pneg %p56
        %p299 = pneg %p80
        %p300 = pneg %p77
        %p301 = pneg %p101
        %p302 = pneg %p98
        %p303 = pneg %p122
        %p304 = pneg %p119
        %p305 = pneg %p143
        %p306 = pneg %p140
        %p307 = pneg %p171
        %p308 = pneg %p168
        %s309 = sand.u32 %s158, 1
        %s310 = scalar_lea.sflag [#allocation4], %s309
        %s311 = sand.u32 %s158, 1
        %s312 = smul.addr %s311, 96
        %s313 = scalar_lea.vmem [#allocation11], %s312
        %s314 = smul.u32 4, %s29
        %s315 = smul.u32 4, %s29
        %v316 = vld [vmem:[%s271] sm:$0xff]
        %v317 = vld [vmem:[%s271 + $0x8] sm:$0xff]
        %v318 = vld [vmem:[%s271 + $0x10] sm:$0xff]
        %v319 = vld [vmem:[%s271 + $0x18] sm:$0xff]
        %v320 = vld [vmem:[%s271 + $0x20] sm:$0xff]
        %v321 = vld [vmem:[%s271 + $0x28] sm:$0xff]
        %v322 = vld [vmem:[%s271 + $0x30] sm:$0xff]
        %v323 = vld [vmem:[%s271 + $0x38] sm:$0xff]
        %v324 = vld [vmem:[#allocation5] sm:$0x3]
        %v325 = vld [vmem:[#allocation7] sm:$0x3]
        %v326 = vadd.f32 %v316, %v317
        %327 = vadd.xlane.f32.xlu0 %v326
        %v328 = vpop.xlane.xlu0 %327
        %v329 = vadd.f32 %v318, %v319
        %330 = vadd.xlane.f32.xlu0 %v329
        %v331 = vpop.xlane.xlu0 %330
        %v332 = vadd.f32 %v320, %v321
        %333 = vadd.xlane.f32.xlu0 %v332
        %v334 = vpop.xlane.xlu0 %333
        %v335 = vadd.f32 %v322, %v323
        %336 = vadd.xlane.f32.xlu0 %v335
        %v337 = vpop.xlane.xlu0 %336
        %v338 = vrcp.pop 256.0
        %v339 = vmul.f32 %v328, %v338
        %v340 = vmul.f32 %v331, %v338
        %v341 = vmul.f32 %v334, %v338
        %v342 = vmul.f32 %v337, %v338
        %v343 = vsub.f32 %v316, %v339
        %v344 = vsub.f32 %v317, %v339
        %v345 = vsub.f32 %v318, %v340
        %v346 = vsub.f32 %v319, %v340
        %v347 = vsub.f32 %v320, %v341
        %v348 = vsub.f32 %v321, %v341
        %v349 = vsub.f32 %v322, %v342
        %v350 = vsub.f32 %v323, %v342
        %v351 = vmul.f32 %v343, %v343
        %v352 = vmul.f32 %v344, %v344
        %v353 = vmul.f32 %v345, %v345
        %v354 = vmul.f32 %v346, %v346
        %v355 = vmul.f32 %v347, %v347
        %v356 = vmul.f32 %v348, %v348
        %v357 = vmul.f32 %v349, %v349
        %v358 = vmul.f32 %v350, %v350
        %v359 = vadd.f32 %v351, %v352
        %360 = vadd.xlane.f32.xlu0 %v359
        %v361 = vpop.xlane.xlu0 %360
        %v362 = vadd.f32 %v353, %v354
        %363 = vadd.xlane.f32.xlu0 %v362
        %v364 = vpop.xlane.xlu0 %363
        %v365 = vadd.f32 %v355, %v356
        %366 = vadd.xlane.f32.xlu0 %v365
        %v367 = vpop.xlane.xlu0 %366
        %v368 = vadd.f32 %v357, %v358
        %369 = vadd.xlane.f32.xlu0 %v368
        %v370 = vpop.xlane.xlu0 %369
        %v371 = vmul.f32 %v361, %v338
        %v372 = vmul.f32 %v364, %v338
        %v373 = vmul.f32 %v367, %v338
        %v374 = vmul.f32 %v370, %v338
        %v375 = vadd.f32 %v371, 1e-05
        %v376 = vadd.f32 %v372, 1e-05
        %v377 = vadd.f32 %v373, 1e-05
        %v378 = vadd.f32 %v374, 1e-05
        %v379 = vrsqrt.pop %v375
        %v380 = vrsqrt.pop %v376
        %v381 = vrsqrt.pop %v377
        %v382 = vrsqrt.pop %v378
        %v383 = vmul.f32 %v343, %v379
        %v384 = vmul.f32 %v344, %v379
        %v385 = vmul.f32 %v345, %v380
        %v386 = vmul.f32 %v346, %v380
        %v387 = vmul.f32 %v347, %v381
        %v388 = vmul.f32 %v348, %v381
        %v389 = vmul.f32 %v349, %v382
        %v390 = vmul.f32 %v350, %v382
        %v392 = vlaneseq
        %v393 = vshrl.u32 %v392, 7
        %v394 = vsub.s32 0, %v393
        %v395 = vrot.slane %v324, %v394
        %v396 = vlaneseq
        %v397 = vshrl.u32 %v396, 7
        %v398 = vsub.s32 1, %v397
        %v399 = vrot.slane %v324, %v398
        %v402 = vmul.f32 %v383, %v395
        %v403 = vmul.f32 %v384, %v399
        %v404 = vmul.f32 %v385, %v395
        %v405 = vmul.f32 %v386, %v399
        %v406 = vmul.f32 %v387, %v395
        %v407 = vmul.f32 %v388, %v399
        %v408 = vmul.f32 %v389, %v395
        %v409 = vmul.f32 %v390, %v399
        %v411 = vlaneseq
        %v412 = vshrl.u32 %v411, 7
        %v413 = vsub.s32 0, %v412
        %v414 = vrot.slane %v325, %v413
        %v415 = vlaneseq
        %v416 = vshrl.u32 %v415, 7
        %v417 = vsub.s32 1, %v416
        %v418 = vrot.slane %v325, %v417
        %v421 = vadd.f32 %v402, %v414
        %v422 = vadd.f32 %v403, %v418
        %v423 = vadd.f32 %v404, %v414
        %v424 = vadd.f32 %v405, %v418
        %v425 = vadd.f32 %v406, %v414
        %v426 = vadd.f32 %v407, %v418
        %v427 = vadd.f32 %v408, %v414
        %v428 = vadd.f32 %v409, %v418
        %v429 = vpack.c.bf16 %v423, %v421
        %v430 = vpack.c.bf16 %v424, %v422
        %v431 = vpack.c.bf16 %v427, %v425
        %v432 = vpack.c.bf16 %v428, %v426
        %v433 = vld [vmem:[#allocation8] sm:$0xff]
        %v434 = vld [vmem:[#allocation8 + $0x8] sm:$0xff]
        %v435 = vld [vmem:[#allocation8 + $0x10] sm:$0xff]
        %v436 = vld [vmem:[#allocation8 + $0x18] sm:$0xff]
        %v437 = vld [vmem:[#allocation8 + $0x20] sm:$0xff]
        %v438 = vld [vmem:[#allocation8 + $0x28] sm:$0xff]
        %v439 = vld [vmem:[#allocation8 + $0x30] sm:$0xff]
        %v440 = vld [vmem:[#allocation8 + $0x38] sm:$0xff]
        %v441 = vld [vmem:[#allocation8 + $0x40] sm:$0xff]
        %v442 = vld [vmem:[#allocation8 + $0x48] sm:$0xff]
        %v443 = vld [vmem:[#allocation8 + $0x50] sm:$0xff]
        %v444 = vld [vmem:[#allocation8 + $0x58] sm:$0xff]
        %v445 = vld [vmem:[#allocation8 + $0x60] sm:$0xff]
        %v446 = vld [vmem:[#allocation8 + $0x68] sm:$0xff]
        %v447 = vld [vmem:[#allocation8 + $0x70] sm:$0xff]
        %v448 = vld [vmem:[#allocation8 + $0x78] sm:$0xff]
        %v449 = vld [vmem:[#allocation8 + $0x80] sm:$0xff]
        %v450 = vld [vmem:[#allocation8 + $0x88] sm:$0xff]
        %v451 = vld [vmem:[#allocation8 + $0x90] sm:$0xff]
        %v452 = vld [vmem:[#allocation8 + $0x98] sm:$0xff]
        %v453 = vld [vmem:[#allocation8 + $0xa0] sm:$0xff]
        %v454 = vld [vmem:[#allocation8 + $0xa8] sm:$0xff]
        %v455 = vld [vmem:[#allocation8 + $0xb0] sm:$0xff]
        %v456 = vld [vmem:[#allocation8 + $0xb8] sm:$0xff]
        %v457 = vld [vmem:[#allocation8 + $0xc0] sm:$0xff]
        %v458 = vld [vmem:[#allocation8 + $0xc8] sm:$0xff]
        %v459 = vld [vmem:[#allocation8 + $0xd0] sm:$0xff]
        %v460 = vld [vmem:[#allocation8 + $0xd8] sm:$0xff]
        %v461 = vld [vmem:[#allocation8 + $0xe0] sm:$0xff]
        %v462 = vld [vmem:[#allocation8 + $0xe8] sm:$0xff]
        %v463 = vld [vmem:[#allocation8 + $0xf0] sm:$0xff]
        %v464 = vld [vmem:[#allocation8 + $0xf8] sm:$0xff]
        %v465 = vld [vmem:[#allocation8 + $0x100] sm:$0xff]
        %v466 = vld [vmem:[#allocation8 + $0x108] sm:$0xff]
        %v467 = vld [vmem:[#allocation8 + $0x110] sm:$0xff]
        %v468 = vld [vmem:[#allocation8 + $0x118] sm:$0xff]
        %v469 = vld [vmem:[#allocation8 + $0x120] sm:$0xff]
        %v470 = vld [vmem:[#allocation8 + $0x128] sm:$0xff]
        %v471 = vld [vmem:[#allocation8 + $0x130] sm:$0xff]
        %v472 = vld [vmem:[#allocation8 + $0x138] sm:$0xff]
        %v473 = vld [vmem:[#allocation8 + $0x140] sm:$0xff]
        %v474 = vld [vmem:[#allocation8 + $0x148] sm:$0xff]
        %v475 = vld [vmem:[#allocation8 + $0x150] sm:$0xff]
        %v476 = vld [vmem:[#allocation8 + $0x158] sm:$0xff]
        %v477 = vld [vmem:[#allocation8 + $0x160] sm:$0xff]
        %v478 = vld [vmem:[#allocation8 + $0x168] sm:$0xff]
        %v479 = vld [vmem:[#allocation8 + $0x170] sm:$0xff]
        %v480 = vld [vmem:[#allocation8 + $0x178] sm:$0xff]
        %v481 = vld [vmem:[#allocation8 + $0x180] sm:$0xff]
        %v482 = vld [vmem:[#allocation8 + $0x188] sm:$0xff]
        %v483 = vld [vmem:[#allocation8 + $0x190] sm:$0xff]
        %v484 = vld [vmem:[#allocation8 + $0x198] sm:$0xff]
        %v485 = vld [vmem:[#allocation8 + $0x1a0] sm:$0xff]
        %v486 = vld [vmem:[#allocation8 + $0x1a8] sm:$0xff]
        %v487 = vld [vmem:[#allocation8 + $0x1b0] sm:$0xff]
        %v488 = vld [vmem:[#allocation8 + $0x1b8] sm:$0xff]
        %v489 = vld [vmem:[#allocation8 + $0x1c0] sm:$0xff]
        %v490 = vld [vmem:[#allocation8 + $0x1c8] sm:$0xff]
        %v491 = vld [vmem:[#allocation8 + $0x1d0] sm:$0xff]
        %v492 = vld [vmem:[#allocation8 + $0x1d8] sm:$0xff]
        %v493 = vld [vmem:[#allocation8 + $0x1e0] sm:$0xff]
        %v494 = vld [vmem:[#allocation8 + $0x1e8] sm:$0xff]
        %v495 = vld [vmem:[#allocation8 + $0x1f0] sm:$0xff]
        %v496 = vld [vmem:[#allocation8 + $0x1f8] sm:$0xff]
        %v497 = vld [vmem:[#allocation8 + $0x200] sm:$0xff]
        %v498 = vld [vmem:[#allocation8 + $0x208] sm:$0xff]
        %v499 = vld [vmem:[#allocation8 + $0x210] sm:$0xff]
        %v500 = vld [vmem:[#allocation8 + $0x218] sm:$0xff]
        %v501 = vld [vmem:[#allocation8 + $0x220] sm:$0xff]
        %v502 = vld [vmem:[#allocation8 + $0x228] sm:$0xff]
        %v503 = vld [vmem:[#allocation8 + $0x230] sm:$0xff]
        %v504 = vld [vmem:[#allocation8 + $0x238] sm:$0xff]
        %v505 = vld [vmem:[#allocation8 + $0x240] sm:$0xff]
        %v506 = vld [vmem:[#allocation8 + $0x248] sm:$0xff]
        %v507 = vld [vmem:[#allocation8 + $0x250] sm:$0xff]
        %v508 = vld [vmem:[#allocation8 + $0x258] sm:$0xff]
        %v509 = vld [vmem:[#allocation8 + $0x260] sm:$0xff]
        %v510 = vld [vmem:[#allocation8 + $0x268] sm:$0xff]
        %v511 = vld [vmem:[#allocation8 + $0x270] sm:$0xff]
        %v512 = vld [vmem:[#allocation8 + $0x278] sm:$0xff]
        %v513 = vld [vmem:[#allocation8 + $0x280] sm:$0xff]
        %v514 = vld [vmem:[#allocation8 + $0x288] sm:$0xff]
        %v515 = vld [vmem:[#allocation8 + $0x290] sm:$0xff]
        %v516 = vld [vmem:[#allocation8 + $0x298] sm:$0xff]
        %v517 = vld [vmem:[#allocation8 + $0x2a0] sm:$0xff]
        %v518 = vld [vmem:[#allocation8 + $0x2a8] sm:$0xff]
        %v519 = vld [vmem:[#allocation8 + $0x2b0] sm:$0xff]
        %v520 = vld [vmem:[#allocation8 + $0x2b8] sm:$0xff]
        %v521 = vld [vmem:[#allocation8 + $0x2c0] sm:$0xff]
        %v522 = vld [vmem:[#allocation8 + $0x2c8] sm:$0xff]
        %v523 = vld [vmem:[#allocation8 + $0x2d0] sm:$0xff]
        %v524 = vld [vmem:[#allocation8 + $0x2d8] sm:$0xff]
        %v525 = vld [vmem:[#allocation8 + $0x2e0] sm:$0xff]
        %v526 = vld [vmem:[#allocation8 + $0x2e8] sm:$0xff]
        %v527 = vld [vmem:[#allocation8 + $0x2f0] sm:$0xff]
        %v528 = vld [vmem:[#allocation8 + $0x2f8] sm:$0xff]
        %v529 = vld [vmem:[#allocation10] sm:$0x3f]
        %v531 = vlaneseq
        %v532 = vshrl.u32 %v531, 7
        %v533 = vsub.s32 0, %v532
        %v534 = vrot.slane %v529, %v533
        %v535 = vlaneseq
        %v536 = vshrl.u32 %v535, 7
        %v537 = vsub.s32 1, %v536
        %v538 = vrot.slane %v529, %v537
        %v539 = vlaneseq
        %v540 = vshrl.u32 %v539, 7
        %v541 = vsub.s32 2, %v540
        %v542 = vrot.slane %v529, %v541
        %v543 = vlaneseq
        %v544 = vshrl.u32 %v543, 7
        %v545 = vsub.s32 3, %v544
        %v546 = vrot.slane %v529, %v545
        %v547 = vlaneseq
        %v548 = vshrl.u32 %v547, 7
        %v549 = vsub.s32 4, %v548
        %v550 = vrot.slane %v529, %v549
        %v551 = vlaneseq
        %v552 = vshrl.u32 %v551, 7
        %v553 = vsub.s32 5, %v552
        %v554 = vrot.slane %v529, %v553
        %v657 = vunpack.c.l.b16 %v433
        %v658 = vunpack.c.h.b16 %v433
        %v659 = vunpack.c.l.b16 %v434
        %v660 = vunpack.c.h.b16 %v434
        %v661 = vunpack.c.l.b16 %v435
        %v662 = vunpack.c.h.b16 %v435
        %v663 = vunpack.c.l.b16 %v436
        %v664 = vunpack.c.h.b16 %v436
        %v665 = vunpack.c.l.b16 %v437
        %v666 = vunpack.c.h.b16 %v437
        %v667 = vunpack.c.l.b16 %v438
        %v668 = vunpack.c.h.b16 %v438
        %v669 = vunpack.c.l.b16 %v439
        %v670 = vunpack.c.h.b16 %v439
        %v671 = vunpack.c.l.b16 %v440
        %v672 = vunpack.c.h.b16 %v440
        %v673 = vunpack.c.l.b16 %v441
        %v674 = vunpack.c.h.b16 %v441
        %v675 = vunpack.c.l.b16 %v442
        %v676 = vunpack.c.h.b16 %v442
        %v677 = vunpack.c.l.b16 %v443
        %v678 = vunpack.c.h.b16 %v443
        %v679 = vunpack.c.l.b16 %v444
        %v680 = vunpack.c.h.b16 %v444
        %v681 = vunpack.c.l.b16 %v445
        %v682 = vunpack.c.h.b16 %v445
        %v683 = vunpack.c.l.b16 %v446
        %v684 = vunpack.c.h.b16 %v446
        %v685 = vunpack.c.l.b16 %v447
        %v686 = vunpack.c.h.b16 %v447
        %v687 = vunpack.c.l.b16 %v448
        %v688 = vunpack.c.h.b16 %v448
        %v689 = vunpack.c.l.b16 %v449
        %v690 = vunpack.c.h.b16 %v449
        %v691 = vunpack.c.l.b16 %v450
        %v692 = vunpack.c.h.b16 %v450
        %v693 = vunpack.c.l.b16 %v451
        %v694 = vunpack.c.h.b16 %v451
        %v695 = vunpack.c.l.b16 %v452
        %v696 = vunpack.c.h.b16 %v452
        %v697 = vunpack.c.l.b16 %v453
        %v698 = vunpack.c.h.b16 %v453
        %v699 = vunpack.c.l.b16 %v454
        %v700 = vunpack.c.h.b16 %v454
        %v701 = vunpack.c.l.b16 %v455
        %v702 = vunpack.c.h.b16 %v455
        %v703 = vunpack.c.l.b16 %v456
        %v704 = vunpack.c.h.b16 %v456
        %v705 = vunpack.c.l.b16 %v457
        %v706 = vunpack.c.h.b16 %v457
        %v707 = vunpack.c.l.b16 %v458
        %v708 = vunpack.c.h.b16 %v458
        %v709 = vunpack.c.l.b16 %v459
        %v710 = vunpack.c.h.b16 %v459
        %v711 = vunpack.c.l.b16 %v460
        %v712 = vunpack.c.h.b16 %v460
        %v713 = vunpack.c.l.b16 %v461
        %v714 = vunpack.c.h.b16 %v461
        %v715 = vunpack.c.l.b16 %v462
        %v716 = vunpack.c.h.b16 %v462
        %v717 = vunpack.c.l.b16 %v463
        %v718 = vunpack.c.h.b16 %v463
        %v719 = vunpack.c.l.b16 %v464
        %v720 = vunpack.c.h.b16 %v464
        %v721 = vunpack.c.l.b16 %v465
        %v722 = vunpack.c.h.b16 %v465
        %v723 = vunpack.c.l.b16 %v466
        %v724 = vunpack.c.h.b16 %v466
        %v725 = vunpack.c.l.b16 %v467
        %v726 = vunpack.c.h.b16 %v467
        %v727 = vunpack.c.l.b16 %v468
        %v728 = vunpack.c.h.b16 %v468
        %v729 = vunpack.c.l.b16 %v469
        %v730 = vunpack.c.h.b16 %v469
        %v731 = vunpack.c.l.b16 %v470
        %v732 = vunpack.c.h.b16 %v470
        %v733 = vunpack.c.l.b16 %v471
        %v734 = vunpack.c.h.b16 %v471
        %v735 = vunpack.c.l.b16 %v472
        %v736 = vunpack.c.h.b16 %v472
        %v737 = vunpack.c.l.b16 %v473
        %v738 = vunpack.c.h.b16 %v473
        %v739 = vunpack.c.l.b16 %v474
        %v740 = vunpack.c.h.b16 %v474
        %v741 = vunpack.c.l.b16 %v475
        %v742 = vunpack.c.h.b16 %v475
        %v743 = vunpack.c.l.b16 %v476
        %v744 = vunpack.c.h.b16 %v476
        %v745 = vunpack.c.l.b16 %v477
        %v746 = vunpack.c.h.b16 %v477
        %v747 = vunpack.c.l.b16 %v478
        %v748 = vunpack.c.h.b16 %v478
        %v749 = vunpack.c.l.b16 %v479
        %v750 = vunpack.c.h.b16 %v479
        %v751 = vunpack.c.l.b16 %v480
        %v752 = vunpack.c.h.b16 %v480
        %v753 = vunpack.c.l.b16 %v481
        %v754 = vunpack.c.h.b16 %v481
        %v755 = vunpack.c.l.b16 %v482
        %v756 = vunpack.c.h.b16 %v482
        %v757 = vunpack.c.l.b16 %v483
        %v758 = vunpack.c.h.b16 %v483
        %v759 = vunpack.c.l.b16 %v484
        %v760 = vunpack.c.h.b16 %v484
        %v761 = vunpack.c.l.b16 %v485
        %v762 = vunpack.c.h.b16 %v485
        %v763 = vunpack.c.l.b16 %v486
        %v764 = vunpack.c.h.b16 %v486
        %v765 = vunpack.c.l.b16 %v487
        %v766 = vunpack.c.h.b16 %v487
        %v767 = vunpack.c.l.b16 %v488
        %v768 = vunpack.c.h.b16 %v488
        %v769 = vunpack.c.l.b16 %v489
        %v770 = vunpack.c.h.b16 %v489
        %v771 = vunpack.c.l.b16 %v490
        %v772 = vunpack.c.h.b16 %v490
        %v773 = vunpack.c.l.b16 %v491
        %v774 = vunpack.c.h.b16 %v491
        %v775 = vunpack.c.l.b16 %v492
        %v776 = vunpack.c.h.b16 %v492
        %v777 = vunpack.c.l.b16 %v493
        %v778 = vunpack.c.h.b16 %v493
        %v779 = vunpack.c.l.b16 %v494
        %v780 = vunpack.c.h.b16 %v494
        %v781 = vunpack.c.l.b16 %v495
        %v782 = vunpack.c.h.b16 %v495
        %v783 = vunpack.c.l.b16 %v496
        %v784 = vunpack.c.h.b16 %v496
        %v785 = vunpack.c.l.b16 %v497
        %v786 = vunpack.c.h.b16 %v497
        %v787 = vunpack.c.l.b16 %v498
        %v788 = vunpack.c.h.b16 %v498
        %v789 = vunpack.c.l.b16 %v499
        %v790 = vunpack.c.h.b16 %v499
        %v791 = vunpack.c.l.b16 %v500
        %v792 = vunpack.c.h.b16 %v500
        %v793 = vunpack.c.l.b16 %v501
        %v794 = vunpack.c.h.b16 %v501
        %v795 = vunpack.c.l.b16 %v502
        %v796 = vunpack.c.h.b16 %v502
        %v797 = vunpack.c.l.b16 %v503
        %v798 = vunpack.c.h.b16 %v503
        %v799 = vunpack.c.l.b16 %v504
        %v800 = vunpack.c.h.b16 %v504
        %v801 = vunpack.c.l.b16 %v505
        %v802 = vunpack.c.h.b16 %v505
        %v803 = vunpack.c.l.b16 %v506
        %v804 = vunpack.c.h.b16 %v506
        %v805 = vunpack.c.l.b16 %v507
        %v806 = vunpack.c.h.b16 %v507
        %v807 = vunpack.c.l.b16 %v508
        %v808 = vunpack.c.h.b16 %v508
        %v809 = vunpack.c.l.b16 %v509
        %v810 = vunpack.c.h.b16 %v509
        %v811 = vunpack.c.l.b16 %v510
        %v812 = vunpack.c.h.b16 %v510
        %v813 = vunpack.c.l.b16 %v511
        %v814 = vunpack.c.h.b16 %v511
        %v815 = vunpack.c.l.b16 %v512
        %v816 = vunpack.c.h.b16 %v512
        %v817 = vunpack.c.l.b16 %v513
        %v818 = vunpack.c.h.b16 %v513
        %v819 = vunpack.c.l.b16 %v514
        %v820 = vunpack.c.h.b16 %v514
        %v821 = vunpack.c.l.b16 %v515
        %v822 = vunpack.c.h.b16 %v515
        %v823 = vunpack.c.l.b16 %v516
        %v824 = vunpack.c.h.b16 %v516
        %v825 = vunpack.c.l.b16 %v517
        %v826 = vunpack.c.h.b16 %v517
        %v827 = vunpack.c.l.b16 %v518
        %v828 = vunpack.c.h.b16 %v518
        %v829 = vunpack.c.l.b16 %v519
        %v830 = vunpack.c.h.b16 %v519
        %v831 = vunpack.c.l.b16 %v520
        %v832 = vunpack.c.h.b16 %v520
        %v833 = vunpack.c.l.b16 %v521
        %v834 = vunpack.c.h.b16 %v521
        %v835 = vunpack.c.l.b16 %v522
        %v836 = vunpack.c.h.b16 %v522
        %v837 = vunpack.c.l.b16 %v523
        %v838 = vunpack.c.h.b16 %v523
        %v839 = vunpack.c.l.b16 %v524
        %v840 = vunpack.c.h.b16 %v524
        %v841 = vunpack.c.l.b16 %v525
        %v842 = vunpack.c.h.b16 %v525
        %v843 = vunpack.c.l.b16 %v526
        %v844 = vunpack.c.h.b16 %v526
        %v845 = vunpack.c.l.b16 %v527
        %v846 = vunpack.c.h.b16 %v527
        %v847 = vunpack.c.l.b16 %v528
        %v848 = vunpack.c.h.b16 %v528
        %v849 = vpack.c.b16 %v663, %v657
        %v850 = vpack.c.b16 %v664, %v658
        %v851 = vpack.c.b16 %v665, %v659
        %v852 = vpack.c.b16 %v666, %v660
        %v853 = vpack.c.b16 %v667, %v661
        %v854 = vpack.c.b16 %v668, %v662
        %v855 = vpack.c.b16 %v675, %v669
        %v856 = vpack.c.b16 %v676, %v670
        %v857 = vpack.c.b16 %v677, %v671
        %v858 = vpack.c.b16 %v678, %v672
        %v859 = vpack.c.b16 %v679, %v673
        %v860 = vpack.c.b16 %v680, %v674
        %v861 = vpack.c.b16 %v687, %v681
        %v862 = vpack.c.b16 %v688, %v682
        %v863 = vpack.c.b16 %v689, %v683
        %v864 = vpack.c.b16 %v690, %v684
        %v865 = vpack.c.b16 %v691, %v685
        %v866 = vpack.c.b16 %v692, %v686
        %v867 = vpack.c.b16 %v699, %v693
        %v868 = vpack.c.b16 %v700, %v694
        %v869 = vpack.c.b16 %v701, %v695
        %v870 = vpack.c.b16 %v702, %v696
        %v871 = vpack.c.b16 %v703, %v697
        %v872 = vpack.c.b16 %v704, %v698
        %v873 = vpack.c.b16 %v711, %v705
        %v874 = vpack.c.b16 %v712, %v706
        %v875 = vpack.c.b16 %v713, %v707
        %v876 = vpack.c.b16 %v714, %v708
        %v877 = vpack.c.b16 %v715, %v709
        %v878 = vpack.c.b16 %v716, %v710
        %v879 = vpack.c.b16 %v723, %v717
        %v880 = vpack.c.b16 %v724, %v718
        %v881 = vpack.c.b16 %v725, %v719
        %v882 = vpack.c.b16 %v726, %v720
        %v883 = vpack.c.b16 %v727, %v721
        %v884 = vpack.c.b16 %v728, %v722
        %v885 = vpack.c.b16 %v735, %v729
        %v886 = vpack.c.b16 %v736, %v730
        %v887 = vpack.c.b16 %v737, %v731
        %v888 = vpack.c.b16 %v738, %v732
        %v889 = vpack.c.b16 %v739, %v733
        %v890 = vpack.c.b16 %v740, %v734
        %v891 = vpack.c.b16 %v747, %v741
        %v892 = vpack.c.b16 %v748, %v742
        %v893 = vpack.c.b16 %v749, %v743
        %v894 = vpack.c.b16 %v750, %v744
        %v895 = vpack.c.b16 %v751, %v745
        %v896 = vpack.c.b16 %v752, %v746
        %v897 = vpack.c.b16 %v759, %v753
        %v898 = vpack.c.b16 %v760, %v754
        %v899 = vpack.c.b16 %v761, %v755
        %v900 = vpack.c.b16 %v762, %v756
        %v901 = vpack.c.b16 %v763, %v757
        %v902 = vpack.c.b16 %v764, %v758
        %v903 = vpack.c.b16 %v771, %v765
        %v904 = vpack.c.b16 %v772, %v766
        %v905 = vpack.c.b16 %v773, %v767
        %v906 = vpack.c.b16 %v774, %v768
        %v907 = vpack.c.b16 %v775, %v769
        %v908 = vpack.c.b16 %v776, %v770
        %v909 = vpack.c.b16 %v783, %v777
        %v910 = vpack.c.b16 %v784, %v778
        %v911 = vpack.c.b16 %v785, %v779
        %v912 = vpack.c.b16 %v786, %v780
        %v913 = vpack.c.b16 %v787, %v781
        %v914 = vpack.c.b16 %v788, %v782
        %v915 = vpack.c.b16 %v795, %v789
        %v916 = vpack.c.b16 %v796, %v790
        %v917 = vpack.c.b16 %v797, %v791
        %v918 = vpack.c.b16 %v798, %v792
        %v919 = vpack.c.b16 %v799, %v793
        %v920 = vpack.c.b16 %v800, %v794
        %v921 = vpack.c.b16 %v807, %v801
        %v922 = vpack.c.b16 %v808, %v802
        %v923 = vpack.c.b16 %v809, %v803
        %v924 = vpack.c.b16 %v810, %v804
        %v925 = vpack.c.b16 %v811, %v805
        %v926 = vpack.c.b16 %v812, %v806
        %v927 = vpack.c.b16 %v819, %v813
        %v928 = vpack.c.b16 %v820, %v814
        %v929 = vpack.c.b16 %v821, %v815
        %v930 = vpack.c.b16 %v822, %v816
        %v931 = vpack.c.b16 %v823, %v817
        %v932 = vpack.c.b16 %v824, %v818
        %v933 = vpack.c.b16 %v831, %v825
        %v934 = vpack.c.b16 %v832, %v826
        %v935 = vpack.c.b16 %v833, %v827
        %v936 = vpack.c.b16 %v834, %v828
        %v937 = vpack.c.b16 %v835, %v829
        %v938 = vpack.c.b16 %v836, %v830
        %v939 = vpack.c.b16 %v843, %v837
        %v940 = vpack.c.b16 %v844, %v838
        %v941 = vpack.c.b16 %v845, %v839
        %v942 = vpack.c.b16 %v846, %v840
        %v943 = vpack.c.b16 %v847, %v841
        %v944 = vpack.c.b16 %v848, %v842
        %1041 = vmatprep.subr.bf16.mxu0 %v850
        %1042 = vmatpush1.bf16.msra.mxu0 %v849
        %1043 = vmatprep.subr.bf16.mxu0 %v856
        %1044 = vmatpush1.bf16.msra.mxu0 %v855
        %1045 = vmatprep.subr.bf16.mxu0 %v862
        %1046 = vmatpush1.bf16.msra.mxu0 %v861
        %1047 = vmatprep.subr.bf16.mxu0 %v868
        %1048 = vmatpush1.bf16.msra.mxu0 %v867
        %1049 = vmatprep.subr.bf16.mxu0 %v874
        %1050 = vmatpush1.bf16.msra.mxu0 %v873
        %1051 = vmatprep.subr.bf16.mxu0 %v880
        %1052 = vmatpush1.bf16.msra.mxu0 %v879
        %1053 = vmatprep.subr.bf16.mxu0 %v886
        %1054 = vmatpush1.bf16.msra.mxu0 %v885
        %1055 = vmatprep.subr.bf16.mxu0 %v892
        %1056 = vmatpush1.bf16.msra.mxu0 %v891
        %1057 = vmatprep.subr.bf16.mxu0 %v898
        %1058 = vmatpush1.bf16.msra.mxu0 %v897
        %1059 = vmatprep.subr.bf16.mxu0 %v904
        %1060 = vmatpush1.bf16.msra.mxu0 %v903
        %1061 = vmatprep.subr.bf16.mxu0 %v910
        %1062 = vmatpush1.bf16.msra.mxu0 %v909
        %1063 = vmatprep.subr.bf16.mxu0 %v916
        %1064 = vmatpush1.bf16.msra.mxu0 %v915
        %1065 = vmatprep.subr.bf16.mxu0 %v922
        %1066 = vmatpush1.bf16.msra.mxu0 %v921
        %1067 = vmatprep.subr.bf16.mxu0 %v928
        %1068 = vmatpush1.bf16.msra.mxu0 %v927
        %1069 = vmatprep.subr.bf16.mxu0 %v934
        %1070 = vmatpush1.bf16.msra.mxu0 %v933
        %1071 = vmatprep.subr.bf16.mxu0 %v940
        %1072 = vmatpush1.bf16.msra.mxu0 %v939
        %1073 = vmatprep.mubr.bf16.mxu0 %v430
        %1074 = vmatmul.mubr.bf16.gmra.mrb[0].mxu0 %v429
        %v1075 = vpop.f32.mrb[0].mxu0
        %v1076 = vadd.f32 %v534, %v1075
        %v1077 = vpop.f32.mrb[0].mxu0
        %v1078 = vadd.f32 %v538, %v1077
        %v1079 = vpop.f32.mrb[0].mxu0
        %v1080 = vadd.f32 %v534, %v1079
        %v1081 = vpop.f32.mrb[0].mxu0
        %v1082 = vadd.f32 %v538, %v1081
        %1083 = vmatprep.mubr.bf16.mxu0 %v432
        %1084 = vmatmul.mubr.bf16.gmra.mrb[0].mxu0 %v431
        %v1085 = vpop.f32.mrb[0].mxu0
        %v1086 = vadd.f32 %v534, %v1085
        %v1087 = vpop.f32.mrb[0].mxu0
        %v1088 = vadd.f32 %v538, %v1087
        %v1089 = vpop.f32.mrb[0].mxu0
        %v1090 = vadd.f32 %v534, %v1089
        %v1091 = vpop.f32.mrb[0].mxu0
        %v1092 = vadd.f32 %v538, %v1091
        %1093 = vdwg.mxu0
        %1094 = vmatprep.subr.bf16.mxu0 %v852
        %1095 = vmatpush1.bf16.msra.mxu0 %v851
        %1096 = vmatprep.subr.bf16.mxu0 %v858
        %1097 = vmatpush1.bf16.msra.mxu0 %v857
        %1098 = vmatprep.subr.bf16.mxu0 %v864
        %1099 = vmatpush1.bf16.msra.mxu0 %v863
        %1100 = vmatprep.subr.bf16.mxu0 %v870
        %1101 = vmatpush1.bf16.msra.mxu0 %v869
        %1102 = vmatprep.subr.bf16.mxu0 %v876
        %1103 = vmatpush1.bf16.msra.mxu0 %v875
        %1104 = vmatprep.subr.bf16.mxu0 %v882
        %1105 = vmatpush1.bf16.msra.mxu0 %v881
        %1106 = vmatprep.subr.bf16.mxu0 %v888
        %1107 = vmatpush1.bf16.msra.mxu0 %v887
        %1108 = vmatprep.subr.bf16.mxu0 %v894
        %1109 = vmatpush1.bf16.msra.mxu0 %v893
        %1110 = vmatprep.subr.bf16.mxu0 %v900
        %1111 = vmatpush1.bf16.msra.mxu0 %v899
        %1112 = vmatprep.subr.bf16.mxu0 %v906
        %1113 = vmatpush1.bf16.msra.mxu0 %v905
        %1114 = vmatprep.subr.bf16.mxu0 %v912
        %1115 = vmatpush1.bf16.msra.mxu0 %v911
        %1116 = vmatprep.subr.bf16.mxu0 %v918
        %1117 = vmatpush1.bf16.msra.mxu0 %v917
        %1118 = vmatprep.subr.bf16.mxu0 %v924
        %1119 = vmatpush1.bf16.msra.mxu0 %v923
        %1120 = vmatprep.subr.bf16.mxu0 %v930
        %1121 = vmatpush1.bf16.msra.mxu0 %v929
        %1122 = vmatprep.subr.bf16.mxu0 %v936
        %1123 = vmatpush1.bf16.msra.mxu0 %v935
        %1124 = vmatprep.subr.bf16.mxu0 %v942
        %1125 = vmatpush1.bf16.msra.mxu0 %v941
        %1126 = vmatprep.mubr.bf16.mxu0 %v430
        %1127 = vmatmul.mubr.bf16.gmra.mrb[0].mxu0 %v429
        %v1128 = vpop.f32.mrb[0].mxu0
        %v1129 = vadd.f32 %v542, %v1128
        %v1130 = vpop.f32.mrb[0].mxu0
        %v1131 = vadd.f32 %v546, %v1130
        %v1132 = vpop.f32.mrb[0].mxu0
        %v1133 = vadd.f32 %v542, %v1132
        %v1134 = vpop.f32.mrb[0].mxu0
        %v1135 = vadd.f32 %v546, %v1134
        %1136 = vmatprep.mubr.bf16.mxu0 %v432
        %1137 = vmatmul.mubr.bf16.gmra.mrb[0].mxu0 %v431
        %v1138 = vpop.f32.mrb[0].mxu0
        %v1139 = vadd.f32 %v542, %v1138
        %v1140 = vpop.f32.mrb[0].mxu0
        %v1141 = vadd.f32 %v546, %v1140
        %v1142 = vpop.f32.mrb[0].mxu0
        %v1143 = vadd.f32 %v542, %v1142
        %v1144 = vpop.f32.mrb[0].mxu0
        %v1145 = vadd.f32 %v546, %v1144
        %1146 = vdwg.mxu0
        %1147 = vmatprep.subr.bf16.mxu0 %v854
        %1148 = vmatpush1.bf16.msra.mxu0 %v853
        %1149 = vmatprep.subr.bf16.mxu0 %v860
        %1150 = vmatpush1.bf16.msra.mxu0 %v859
        %1151 = vmatprep.subr.bf16.mxu0 %v866
        %1152 = vmatpush1.bf16.msra.mxu0 %v865
        %1153 = vmatprep.subr.bf16.mxu0 %v872
        %1154 = vmatpush1.bf16.msra.mxu0 %v871
        %1155 = vmatprep.subr.bf16.mxu0 %v878
        %1156 = vmatpush1.bf16.msra.mxu0 %v877
        %1157 = vmatprep.subr.bf16.mxu0 %v884
        %1158 = vmatpush1.bf16.msra.mxu0 %v883
        %1159 = vmatprep.subr.bf16.mxu0 %v890
        %1160 = vmatpush1.bf16.msra.mxu0 %v889
        %1161 = vmatprep.subr.bf16.mxu0 %v896
        %1162 = vmatpush1.bf16.msra.mxu0 %v895
        %1163 = vmatprep.subr.bf16.mxu0 %v902
        %1164 = vmatpush1.bf16.msra.mxu0 %v901
        %1165 = vmatprep.subr.bf16.mxu0 %v908
        %1166 = vmatpush1.bf16.msra.mxu0 %v907
        %1167 = vmatprep.subr.bf16.mxu0 %v914
        %1168 = vmatpush1.bf16.msra.mxu0 %v913
        %1169 = vmatprep.subr.bf16.mxu0 %v920
        %1170 = vmatpush1.bf16.msra.mxu0 %v919
        %1171 = vmatprep.subr.bf16.mxu0 %v926
        %1172 = vmatpush1.bf16.msra.mxu0 %v925
        %1173 = vmatprep.subr.bf16.mxu0 %v932
        %1174 = vmatpush1.bf16.msra.mxu0 %v931
        %1175 = vmatprep.subr.bf16.mxu0 %v938
        %1176 = vmatpush1.bf16.msra.mxu0 %v937
        %1177 = vmatprep.subr.bf16.mxu0 %v944
        %1178 = vmatpush1.bf16.msra.mxu0 %v943
        %1179 = vmatprep.mubr.bf16.mxu0 %v430
        %1180 = vmatmul.mubr.bf16.gmra.mrb[0].mxu0 %v429
        %v1181 = vpop.f32.mrb[0].mxu0
        %v1182 = vadd.f32 %v550, %v1181
        %v1183 = vpop.f32.mrb[0].mxu0
        %v1184 = vadd.f32 %v554, %v1183
        %v1185 = vpop.f32.mrb[0].mxu0
        %v1186 = vadd.f32 %v550, %v1185
        %v1187 = vpop.f32.mrb[0].mxu0
        %v1188 = vadd.f32 %v554, %v1187
        %1189 = vmatprep.mubr.bf16.mxu0 %v432
        %1190 = vmatmul.mubr.bf16.gmra.mrb[0].mxu0 %v431
        %v1191 = vpop.f32.mrb[0].mxu0
        %v1192 = vadd.f32 %v550, %v1191
        %v1193 = vpop.f32.mrb[0].mxu0
        %v1194 = vadd.f32 %v554, %v1193
        %v1195 = vpop.f32.mrb[0].mxu0
        %v1196 = vadd.f32 %v550, %v1195
        %v1197 = vpop.f32.mrb[0].mxu0
        %v1198 = vadd.f32 %v554, %v1197
        %1199 = vdwg.mxu0
        %v1200 = vpack.c.bf16 %v1080, %v1076
        %v1201 = vpack.c.bf16 %v1082, %v1078
        %v1202 = vpack.c.bf16 %v1133, %v1129
        %v1203 = vpack.c.bf16 %v1135, %v1131
        %v1204 = vpack.c.bf16 %v1186, %v1182
        %v1205 = vpack.c.bf16 %v1188, %v1184
        %v1206 = vpack.c.bf16 %v1090, %v1086
        %v1207 = vpack.c.bf16 %v1092, %v1088
        %v1208 = vpack.c.bf16 %v1143, %v1139
        %v1209 = vpack.c.bf16 %v1145, %v1141
        %v1210 = vpack.c.bf16 %v1196, %v1192
        %v1211 = vpack.c.bf16 %v1198, %v1194
        %v1224 = vunpack.c.l.b16 %v1200
        %v1225 = vunpack.c.l.b16 %v1201
        %v1226 = vunpack.c.l.b16 %v1202
        %v1227 = vunpack.c.l.b16 %v1203
        %v1228 = vunpack.c.l.b16 %v1204
        %v1229 = vunpack.c.l.b16 %v1205
        %v1230 = vunpack.c.h.b16 %v1200
        %v1231 = vunpack.c.h.b16 %v1201
        %v1232 = vunpack.c.h.b16 %v1202
        %v1233 = vunpack.c.h.b16 %v1203
        %v1234 = vunpack.c.h.b16 %v1204
        %v1235 = vunpack.c.h.b16 %v1205
        %v1236 = vunpack.c.l.b16 %v1206
        %v1237 = vunpack.c.l.b16 %v1207
        %v1238 = vunpack.c.l.b16 %v1208
        %v1239 = vunpack.c.l.b16 %v1209
        %v1240 = vunpack.c.l.b16 %v1210
        %v1241 = vunpack.c.l.b16 %v1211
        %v1242 = vunpack.c.h.b16 %v1206
        %v1243 = vunpack.c.h.b16 %v1207
        %v1244 = vunpack.c.h.b16 %v1208
        %v1245 = vunpack.c.h.b16 %v1209
        %v1246 = vunpack.c.h.b16 %v1210
        %v1247 = vunpack.c.h.b16 %v1211
        %v1248 = vpack.c.b16 %v1225, %v1224
        %v1249 = vpack.c.b16 %v1227, %v1226
        %v1250 = vpack.c.b16 %v1229, %v1228
        %v1251 = vpack.c.b16 %v1231, %v1230
        %v1252 = vpack.c.b16 %v1233, %v1232
        %v1253 = vpack.c.b16 %v1235, %v1234
        %v1254 = vpack.c.b16 %v1237, %v1236
        %v1255 = vpack.c.b16 %v1239, %v1238
        %v1256 = vpack.c.b16 %v1241, %v1240
        %v1257 = vpack.c.b16 %v1243, %v1242
        %v1258 = vpack.c.b16 %v1245, %v1244
        %v1259 = vpack.c.b16 %v1247, %v1246
        %1272 = vst [vmem:[%s313] sm:$0xff] %v1248
        %1273 = vst [vmem:[%s313 + $0x8] sm:$0xff] %v1249
        %1274 = vst [vmem:[%s313 + $0x10] sm:$0xff] %v1250
        %1275 = vst [vmem:[%s313 + $0x18] sm:$0xff] %v1251
        %1276 = vst [vmem:[%s313 + $0x20] sm:$0xff] %v1252
        %1277 = vst [vmem:[%s313 + $0x28] sm:$0xff] %v1253
        %1278 = vst [vmem:[%s313 + $0x30] sm:$0xff] %v1254
        %1279 = vst [vmem:[%s313 + $0x38] sm:$0xff] %v1255
        %1280 = vst [vmem:[%s313 + $0x40] sm:$0xff] %v1256
        %1281 = vst [vmem:[%s313 + $0x48] sm:$0xff] %v1257
        %1282 = vst [vmem:[%s313 + $0x50] sm:$0xff] %v1258
        %1283 = vst [vmem:[%s313 + $0x58] sm:$0xff] %v1259
        %s1284 = sand.u32 %s158, 1
        %s1285 = scalar_lea.sflag [#allocation4], %s1284
        %s1286 = sand.u32 %s158, 1
        %s1287 = smul.addr %s1286, 96
        %s1288 = scalar_lea.vmem [#allocation11], %s1287
        // Predicated region
        $region61: #{gpt_forward.7} parent=39 // pred_check
          %p1289 = pneg %p168
        $region62: #{gpt_forward.7} parent=39 // pred_check_branch
          %1291 = sbr.rel (%p1289) target = $region64
        $region63: #{gpt_forward.7} parent=39 // pred_region
          %s1292 = smul.u32 4, %s29
          %s1294 = ssub.s32 1536, 1536
          %1295 = vsyncadd %s1285, %s1294
          %s1296 = smul.addr %s1292, 6
          %s1297 = smul.addr %s28, 48
          %s1298 = sadd.s32 %s1296, %s1297
          %s1299 = smul.addr %s1298, 64
          %s1300 = scalar_lea.hbm %s5, %s1299
          %s1301 = sshll.u32 %s1288, 4
          %s1302 = int_to_ptr.vmem [resolvable:$true] %s1301
          %1307 = dma.vmem_to_hbm [thread:$0]  %s1302, 1536, %s1300, %s1285, 384, 384, 24
        $region64: #{gpt_forward.7} parent=39 // pred_fallthru
          _
      $region40: #{gpt_forward.7} parent=5 // pred_fallthru
        _
      %p1308 = scmp.le.s32.totalorder 2, %s19
      // Predicated region
      $region65: #{gpt_forward.7} parent=5 // pred_check
        %p1309 = pneg %p1308
      $region66: #{gpt_forward.7} parent=5 // pred_check_branch
        %1311 = sbr.rel (%p1309) target = $region68
      $region67: #{gpt_forward.7} parent=5 // pred_region
        %s1312 = ssub.s32 %s19, 2
        // Predicated region
        $region69: #{gpt_forward.7} parent=67 // pred_check
          %p1313 = pneg %p174
        $region70: #{gpt_forward.7} parent=67 // pred_check_branch
          %1315 = sbr.rel (%p1313) target = $region72
        $region71: #{gpt_forward.7} parent=67 // pred_region
          %s1316 = sand.u32 %s159, 1
          %s1317 = scalar_lea.sflag [#allocation4], %s1316
          %s1318 = sand.u32 %s159, 1
          %s1319 = smul.addr %s1318, 96
          %s1320 = scalar_lea.vmem [#allocation11], %s1319
          %1321 = dma.done %s1317, 1536
        $region72: #{gpt_forward.7} parent=67 // pred_fallthru
          _
      $region68: #{gpt_forward.7} parent=5 // pred_fallthru
        _
    $region6: #{gpt_forward.7} parent=1 // loop_footer
      %s23 = sadd.s32 1, %s19
    $region7: #{gpt_forward.7} parent=1 // loop_footer_branch
      %18 = sbr.rel target = $region3
    $region8: #{gpt_forward.7} parent=1 // loop_exit
      _
    %1322 = vsyncpa [#allocation3], 1
    %s1323 = scalar_lea.sflag [#allocation3], 1
    %1324 = vsyncpa %s1323, 1
    %1325 = vsyncpa [#allocation6], 1
    %1326 = vsyncpa [#allocation9], 1
    %1327 = vsyncpa [#allocation4], 1
    %s1328 = scalar_lea.sflag [#allocation4], 1
    %1329 = vsyncpa %s1328, 1

// kernel: gpt_forward.8
$region0: #{gpt_forward.8}
  #allocation0 [shape = 'u32[]', space=smem, size = 0x4, offset = 0x4, fixed_abs, tag = 'smem constant byte address 0x4 - core index']
  #allocation1 [shape = 'u32[144,128]{1,0:T(1,128)}', space=vmem, size = 0x12000, scoped, tag = 'internal scratch']
  #allocation2 [shape = 'f32[4,32,1]{2,1,0:T(8,128)}', space=vmem, size = 0x10000, scoped, tag = 'scratch operand']
  #allocation3 [shape = 'f32[4,32,1]{2,1,0:T(8,128)}', space=vmem, size = 0x10000, scoped, tag = 'scratch operand']
  #allocation4 [shape = 'f32[4,32,64]{2,1,0:T(8,128)}', space=vmem, size = 0x10000, scoped, tag = 'scratch operand']
  #allocation12 [shape = 's32[]', space=sflag, size = 0x4, offset = 0, fixed_abs, tag = 'sflag constant byte address 0x0 - dummy sync flag']
  #allocation14 [shape = 's32[]', space=sflag, size = 0x4, offset = 0, fixed_abs, tag = 'sflag constant byte address 0x0 - dummy sync flag']
  #allocation16 [shape = 's32[]', space=sflag, size = 0x4, offset = 0, fixed_abs, tag = 'sflag constant byte address 0x0 - dummy sync flag']
  #allocation18 [shape = 's32[]', space=sflag, size = 0x4, offset = 0, fixed_abs, tag = 'sflag constant byte address 0x0 - dummy sync flag']
  %s0 = inlined_call_operand.hbm [shape: bf16[2,4,64,64], index: 0, kind: input, shape index: {}]
  %s1 = inlined_call_operand.hbm [shape: bf16[2,4,64,64], index: 1, kind: input, shape index: {}]
  %s2 = inlined_call_operand.hbm [shape: bf16[2,4,64,64], index: 2, kind: input, shape index: {}]
  %s3 = inlined_call_operand.hbm [shape: bf16[2,4,64,64], index: 3, kind: output, shape index: {}]
  %s4 = sld [smem:[#allocation0]]
  $region69: #{gpt_forward.8} parent=0
    _
  %s6 = ssub.s32 1, %s4
  %s7 = scalar_select 0, %s6, %s4
  $region1: #{gpt_forward.8} parent=0
    #allocation5 [shape = 'u8[65536]{0}', space=vmem, size = 0x10000, scoped, tag = 'input window, operand 0']
    #allocation6 [shape = 's32[2]{0}', space=sflag, size = 0x8, scoped, tag = 'scoped memory for gpt_forward.8']
    #allocation7 [shape = 's32[2]{0}', space=sflag, size = 0x8, scoped, tag = 'scoped memory for gpt_forward.8']
    #allocation8 [shape = 'u8[65536]{0}', space=vmem, size = 0x10000, scoped, tag = 'input window, operand 1']
    #allocation9 [shape = 's32[2]{0}', space=sflag, size = 0x8, scoped, tag = 'scoped memory for gpt_forward.8']
    #allocation10 [shape = 'u8[65536]{0}', space=vmem, size = 0x10000, scoped, tag = 'input window, operand 2']
    #allocation11 [shape = 'u8[65536]{0}', space=vmem, size = 0x10000, scoped, tag = 'output window, operand 0']
    %8 = vsyncpa [#allocation6], 0
    %s9 = scalar_lea.sflag [#allocation6], 1
    %10 = vsyncpa %s9, 0
    %11 = vsyncpa [#allocation9], 0
    %s12 = scalar_lea.sflag [#allocation9], 1
    %13 = vsyncpa %s12, 0
    %14 = vsyncpa [#allocation7], 0
    %s15 = scalar_lea.sflag [#allocation7], 1
    %16 = vsyncpa %s15, 0
    loop: start=0, step=1, limit=10
    $region2: #{gpt_forward.8} parent=1 // loop_pre_header
      _
    $region3: #{gpt_forward.8} parent=1 // loop_header
      %s18 = sphi 0, %s22
      %p19 = scmp.ge.s32.totalorder %s18, 10
      %s25 = sphi 0, %s44
      %s26 = sphi 0, %s40
      %s27 = sphi 0, %s36
      %s28 = sphi 0, %s25
      %s29 = sphi 0, %s26
      %s30 = sphi 0, %s27
      %s31 = sphi 0, %s28
      %s32 = sphi 0, %s29
      %s33 = sphi 0, %s30
      %s49 = sphi 0, %s51
      %s52 = sphi 0, %s49
      %s53 = sphi 0, %s52
      %s69 = sphi 0, %s53
      %s81 = sphi 0, %s83
      %s84 = sphi 0, %s81
      %s85 = sphi 0, %s84
      %s101 = sphi 0, %s85
      %s113 = sphi 0, %s115
      %s116 = sphi 0, %s113
      %s117 = sphi 0, %s116
      %s133 = sphi 0, %s117
      %s141 = sphi 0, %s143
      %s144 = sphi 0, %s141
      %s145 = sphi 0, %s144
      %s161 = sphi 0, %s145
    $region4: #{gpt_forward.8} parent=1 // loop_header_branch
      %21 = sbr.rel (%p19) target = $region8
    $region5: #{gpt_forward.8} parent=1 // loop_body
      %s23 = ssub.s32 %s18, 1
      %s24 = ssub.s32 %s18, 2
      %s34 = sadd.s32 1, %s27
      %p35 = scmp.ge.s32.totalorder %s34, 2
      %s36 = scalar_select %p35, 0, %s34
      %s37 = sadd.s32 1, %s26
      %s38 = scalar_select %p35, %s37, %s26
      %p39 = scmp.ge.s32.totalorder %s38, 2
      %s40 = scalar_select %p39, 0, %s38
      %s41 = sadd.s32 1, %s25
      %s42 = scalar_select %p39, %s41, %s25
      %p43 = scmp.ge.s32.totalorder %s42, 2
      %s44 = scalar_select %p43, 0, %s42
      %s45 = ssub.s32 %s25, %s44
      %s46 = ssub.s32 %s26, %s40
      %s47 = sor.u32 %s45, %s46
      %p48 = scmp.eq.s32.totalorder %s47, 0
      %s50 = sadd.s32 %s49, 1
      %s51 = scalar_select %p48, %s49, %s50
      %p54 = pneg %p48
      %p55 = scmp.eq.s32.totalorder %s18, 7
      %p56 = por %p54, %p55
      %p57 = scmp.ne.s32.totalorder %s49, %s52
      %p58 = scmp.eq.s32.totalorder %s18, 0
      %p59 = por %p57, %p58
      %p60 = scmp.ne.s32.totalorder %s49, %s52
      %p61 = scmp.eq.s32.totalorder %s23, 7
      %p62 = por %p60, %p61
      %p63 = scmp.ne.s32.totalorder %s52, %s53
      %p64 = scmp.eq.s32.totalorder %s23, 0
      %p65 = por %p63, %p64
      %p66 = scmp.ne.s32.totalorder %s52, %s53
      %p67 = scmp.eq.s32.totalorder %s24, 7
      %p68 = por %p66, %p67
      %p70 = scmp.ne.s32.totalorder %s53, %s69
      %p71 = scmp.eq.s32.totalorder %s24, 0
      %p72 = por %p70, %p71
      %p73 = scmp.lt.s32.totalorder %s27, %s26
      %s74 = scalar_select %p73, %s27, %s26
      %p75 = scmp.lt.s32.totalorder %s36, %s40
      %s76 = scalar_select %p75, %s36, %s40
      %s77 = ssub.s32 %s25, %s44
      %s78 = ssub.s32 %s74, %s76
      %s79 = sor.u32 %s77, %s78
      %p80 = scmp.eq.s32.totalorder %s79, 0
      %s82 = sadd.s32 %s81, 1
      %s83 = scalar_select %p80, %s81, %s82
      %p86 = pneg %p80
      %p87 = scmp.eq.s32.totalorder %s18, 7
      %p88 = por %p86, %p87
      %p89 = scmp.ne.s32.totalorder %s81, %s84
      %p90 = scmp.eq.s32.totalorder %s18, 0
      %p91 = por %p89, %p90
      %p92 = scmp.ne.s32.totalorder %s81, %s84
      %p93 = scmp.eq.s32.totalorder %s23, 7
      %p94 = por %p92, %p93
      %p95 = scmp.ne.s32.totalorder %s84, %s85
      %p96 = scmp.eq.s32.totalorder %s23, 0
      %p97 = por %p95, %p96
      %p98 = scmp.ne.s32.totalorder %s84, %s85
      %p99 = scmp.eq.s32.totalorder %s24, 7
      %p100 = por %p98, %p99
      %p102 = scmp.ne.s32.totalorder %s85, %s101
      %p103 = scmp.eq.s32.totalorder %s24, 0
      %p104 = por %p102, %p103
      %p105 = scmp.lt.s32.totalorder %s27, %s26
      %s106 = scalar_select %p105, %s27, %s26
      %p107 = scmp.lt.s32.totalorder %s36, %s40
      %s108 = scalar_select %p107, %s36, %s40
      %s109 = ssub.s32 %s25, %s44
      %s110 = ssub.s32 %s106, %s108
      %s111 = sor.u32 %s109, %s110
      %p112 = scmp.eq.s32.totalorder %s111, 0
      %s114 = sadd.s32 %s113, 1
      %s115 = scalar_select %p112, %s113, %s114
      %p118 = pneg %p112
      %p119 = scmp.eq.s32.totalorder %s18, 7
      %p120 = por %p118, %p119
      %p121 = scmp.ne.s32.totalorder %s113, %s116
      %p122 = scmp.eq.s32.totalorder %s18, 0
      %p123 = por %p121, %p122
      %p124 = scmp.ne.s32.totalorder %s113, %s116
      %p125 = scmp.eq.s32.totalorder %s23, 7
      %p126 = por %p124, %p125
      %p127 = scmp.ne.s32.totalorder %s116, %s117
      %p128 = scmp.eq.s32.totalorder %s23, 0
      %p129 = por %p127, %p128
      %p130 = scmp.ne.s32.totalorder %s116, %s117
      %p131 = scmp.eq.s32.totalorder %s24, 7
      %p132 = por %p130, %p131
      %p134 = scmp.ne.s32.totalorder %s117, %s133
      %p135 = scmp.eq.s32.totalorder %s24, 0
      %p136 = por %p134, %p135
      %s137 = ssub.s32 %s25, %s44
      %s138 = ssub.s32 %s26, %s40
      %s139 = sor.u32 %s137, %s138
      %p140 = scmp.eq.s32.totalorder %s139, 0
      %s142 = sadd.s32 %s141, 1
      %s143 = scalar_select %p140, %s141, %s142
      %p146 = pneg %p140
      %p147 = scmp.eq.s32.totalorder %s18, 7
      %p148 = por %p146, %p147
      %p149 = scmp.ne.s32.totalorder %s141, %s144
      %p150 = scmp.eq.s32.totalorder %s18, 0
      %p151 = por %p149, %p150
      %p152 = scmp.ne.s32.totalorder %s141, %s144
      %p153 = scmp.eq.s32.totalorder %s23, 7
      %p154 = por %p152, %p153
      %p155 = scmp.ne.s32.totalorder %s144, %s145
      %p156 = scmp.eq.s32.totalorder %s23, 0
      %p157 = por %p155, %p156
      %p158 = scmp.ne.s32.totalorder %s144, %s145
      %p159 = scmp.eq.s32.totalorder %s24, 7
      %p160 = por %p158, %p159
      %p162 = scmp.ne.s32.totalorder %s145, %s161
      %p163 = scmp.eq.s32.totalorder %s24, 0
      %p164 = por %p162, %p163
      %p165 = scmp.le.s32.totalorder 1, %s18
      %p166 = scmp.lt.s32.totalorder %s18, 9
      %p167 = pnand %p165, %p166
      %p168 = pneg %p167
      // Predicated region
      $region9: #{gpt_forward.8} parent=5 // pred_check
        _
      $region10: #{gpt_forward.8} parent=5 // pred_check_branch
        %170 = sbr.rel (%p167) target = $region12
      $region11: #{gpt_forward.8} parent=5 // pred_region
        %s171 = ssub.s32 %s18, 1
      $region12: #{gpt_forward.8} parent=5 // pred_fallthru
        _
      %p172 = scmp.lt.s32.totalorder %s18, 8
      // Predicated region
      $region13: #{gpt_forward.8} parent=5 // pred_check
        %p173 = pneg %p172
      $region14: #{gpt_forward.8} parent=5 // pred_check_branch
        %175 = sbr.rel (%p173) target = $region16
      $region15: #{gpt_forward.8} parent=5 // pred_region
        // Predicated region
        $region17: #{gpt_forward.8} parent=15 // pred_check
          %p176 = pneg %p59
        $region18: #{gpt_forward.8} parent=15 // pred_check_branch
          %178 = sbr.rel (%p176) target = $region20
        $region19: #{gpt_forward.8} parent=15 // pred_region
          #allocation13 [shape = 'u32[6]{0}', space=smem, size = 0x18, scoped, tag = 'DMA stride descriptor']
          %s179 = sand.u32 %s49, 1
          %s180 = scalar_lea.sflag [#allocation6], %s179
          %s181 = sand.u32 %s49, 1
          %s182 = smul.addr %s181, 64
          %s183 = scalar_lea.vmem [#allocation5], %s182
          %s184 = smul.u32 4, %s26
          %s186 = ssub.s32 1024, 1024
          %187 = vsyncadd %s180, %s186
          %s188 = smul.addr %s25, 32
          %s189 = sadd.s32 %s184, %s188
          %s190 = smul.addr %s189, 64
          %s191 = scalar_lea.hbm %s0, %s190
          %s193 = sshll.u32 1, 14
          %s194 = sxor.u32 4294967295, %s193
          %s196 = sld [smem:[#allocation0]]
          %s197 = sadd.s32 2, %s196
          %s199 = sshll.u32 7, 26
          %s200 = sxor.u32 4294967295, %s199
          %s201 = sand.u32 0, %s200
          %s202 = sshll.u32 %s197, 26
          %s203 = sor.u32 %s201, %s202
          %s204 = sshll.u32 %s183, 4
          %s205 = int_to_ptr.vmem [resolvable:$true] %s204
          %211 = sst [smem:[#allocation13]] 512
          %s212 = scalar_lea.smem [#allocation13], 1
          %213 = sst [smem:[%s212]] 256
          %s214 = scalar_lea.smem [#allocation13], 2
          %215 = sst [smem:[%s214]] 4
          %s216 = scalar_lea.smem [#allocation13], 3
          %217 = sst [smem:[%s216]] 64
          %s218 = scalar_lea.smem [#allocation13], 4
          %219 = sst [smem:[%s218]] 64
          %s220 = scalar_lea.smem [#allocation13], 5
          %221 = sst [smem:[%s220]] 4
          %223 = dma.general %s191, 1024, %s205, %s180, [#allocation12], [#allocation13], %s203, 0
        $region20: #{gpt_forward.8} parent=15 // pred_fallthru
          _
        // Predicated region
        $region21: #{gpt_forward.8} parent=15 // pred_check
          %p224 = pneg %p91
        $region22: #{gpt_forward.8} parent=15 // pred_check_branch
          %226 = sbr.rel (%p224) target = $region24
        $region23: #{gpt_forward.8} parent=15 // pred_region
          #allocation15 [shape = 'u32[6]{0}', space=smem, size = 0x18, scoped, tag = 'DMA stride descriptor']
          %s227 = sand.u32 %s18, 1
          %s228 = scalar_lea.sflag [#allocation9], %s227
          %s229 = sand.u32 %s81, 1
          %s230 = smul.addr %s229, 64
          %s231 = scalar_lea.vmem [#allocation8], %s230
          %p232 = scmp.lt.s32.totalorder %s27, %s26
          %s233 = scalar_select %p232, %s27, %s26
          %s234 = smul.u32 4, %s233
          %s236 = ssub.s32 1024, 1024
          %237 = vsyncadd %s228, %s236
          %s238 = smul.addr %s25, 32
          %s239 = sadd.s32 %s234, %s238
          %s240 = smul.addr %s239, 64
          %s241 = scalar_lea.hbm %s1, %s240
          %s243 = sshll.u32 1, 14
          %s244 = sxor.u32 4294967295, %s243
          %s246 = sld [smem:[#allocation0]]
          %s247 = sadd.s32 2, %s246
          %s249 = sshll.u32 7, 26
          %s250 = sxor.u32 4294967295, %s249
          %s251 = sand.u32 0, %s250
          %s252 = sshll.u32 %s247, 26
          %s253 = sor.u32 %s251, %s252
          %s254 = sshll.u32 %s231, 4
          %s255 = int_to_ptr.vmem [resolvable:$true] %s254
          %261 = sst [smem:[#allocation15]] 512
          %s262 = scalar_lea.smem [#allocation15], 1
          %263 = sst [smem:[%s262]] 256
          %s264 = scalar_lea.smem [#allocation15], 2
          %265 = sst [smem:[%s264]] 4
          %s266 = scalar_lea.smem [#allocation15], 3
          %267 = sst [smem:[%s266]] 64
          %s268 = scalar_lea.smem [#allocation15], 4
          %269 = sst [smem:[%s268]] 64
          %s270 = scalar_lea.smem [#allocation15], 5
          %271 = sst [smem:[%s270]] 4
          %273 = dma.general %s241, 1024, %s255, %s228, [#allocation14], [#allocation15], %s253, 0
        $region24: #{gpt_forward.8} parent=15 // pred_fallthru
          _
        // Predicated region
        $region25: #{gpt_forward.8} parent=15 // pred_check
          %p274 = pneg %p123
        $region26: #{gpt_forward.8} parent=15 // pred_check_branch
          %276 = sbr.rel (%p274) target = $region28
        $region27: #{gpt_forward.8} parent=15 // pred_region
          #allocation17 [shape = 'u32[6]{0}', space=smem, size = 0x18, scoped, tag = 'DMA stride descriptor']
          %s277 = sand.u32 %s18, 1
          %s278 = scalar_lea.sflag [#allocation9], %s277
          %s279 = sand.u32 %s113, 1
          %s280 = smul.addr %s279, 64
          %s281 = scalar_lea.vmem [#allocation10], %s280
          %p282 = scmp.lt.s32.totalorder %s27, %s26
          %s283 = scalar_select %p282, %s27, %s26
          %s284 = smul.u32 4, %s283
          %s286 = ssub.s32 1024, 1024
          %287 = vsyncadd %s278, %s286
          %s288 = smul.addr %s25, 32
          %s289 = sadd.s32 %s284, %s288
          %s290 = smul.addr %s289, 64
          %s291 = scalar_lea.hbm %s2, %s290
          %s293 = sshll.u32 1, 14
          %s294 = sxor.u32 4294967295, %s293
          %s296 = sld [smem:[#allocation0]]
          %s297 = sadd.s32 2, %s296
          %s299 = sshll.u32 7, 26
          %s300 = sxor.u32 4294967295, %s299
          %s301 = sand.u32 0, %s300
          %s302 = sshll.u32 %s297, 26
          %s303 = sor.u32 %s301, %s302
          %s304 = sshll.u32 %s281, 4
          %s305 = int_to_ptr.vmem [resolvable:$true] %s304
          %311 = sst [smem:[#allocation17]] 512
          %s312 = scalar_lea.smem [#allocation17], 1
          %313 = sst [smem:[%s312]] 256
          %s314 = scalar_lea.smem [#allocation17], 2
          %315 = sst [smem:[%s314]] 4
          %s316 = scalar_lea.smem [#allocation17], 3
          %317 = sst [smem:[%s316]] 64
          %s318 = scalar_lea.smem [#allocation17], 4
          %319 = sst [smem:[%s318]] 64
          %s320 = scalar_lea.smem [#allocation17], 5
          %321 = sst [smem:[%s320]] 4
          %323 = dma.general %s291, 1024, %s305, %s278, [#allocation16], [#allocation17], %s303, 0
        $region28: #{gpt_forward.8} parent=15 // pred_fallthru
          _
      $region16: #{gpt_forward.8} parent=5 // pred_fallthru
        _
      %p324 = scmp.le.s32.totalorder 1, %s18
      %p325 = scmp.lt.s32.totalorder %s18, 9
      %p326 = pnand %p324, %p325
      %p327 = pneg %p326
      // Predicated region
      $region29: #{gpt_forward.8} parent=5 // pred_check
        _
      $region30: #{gpt_forward.8} parent=5 // pred_check_branch
        %329 = sbr.rel (%p326) target = $region32
      $region31: #{gpt_forward.8} parent=5 // pred_region
        %s330 = ssub.s32 %s18, 1
        %s331 = sand.u32 %s52, 1
        %s332 = scalar_lea.sflag [#allocation6], %s331
        %s333 = sand.u32 %s52, 1
        %s334 = smul.addr %s333, 64
        %s335 = scalar_lea.vmem [#allocation5], %s334
        // Predicated region
        $region33: #{gpt_forward.8} parent=31 // pred_check
          %p336 = pneg %p65
        $region34: #{gpt_forward.8} parent=31 // pred_check_branch
          %338 = sbr.rel (%p336) target = $region36
        $region35: #{gpt_forward.8} parent=31 // pred_region
          %339 = dma.done %s332, 1024
        $region36: #{gpt_forward.8} parent=31 // pred_fallthru
          _
        %s340 = sand.u32 %s23, 1
        %s341 = scalar_lea.sflag [#allocation9], %s340
        %s342 = sand.u32 %s84, 1
        %s343 = smul.addr %s342, 64
        %s344 = scalar_lea.vmem [#allocation8], %s343
        // Predicated region
        $region37: #{gpt_forward.8} parent=31 // pred_check
          %p345 = pneg %p97
        $region38: #{gpt_forward.8} parent=31 // pred_check_branch
          %347 = sbr.rel (%p345) target = $region40
        $region39: #{gpt_forward.8} parent=31 // pred_region
          %348 = dma.done %s341, 1024
        $region40: #{gpt_forward.8} parent=31 // pred_fallthru
          _
        %s349 = sand.u32 %s23, 1
        %s350 = scalar_lea.sflag [#allocation9], %s349
        %s351 = sand.u32 %s116, 1
        %s352 = smul.addr %s351, 64
        %s353 = scalar_lea.vmem [#allocation10], %s352
        // Predicated region
        $region41: #{gpt_forward.8} parent=31 // pred_check
          %p354 = pneg %p129
        $region42: #{gpt_forward.8} parent=31 // pred_check_branch
          %356 = sbr.rel (%p354) target = $region44
        $region43: #{gpt_forward.8} parent=31 // pred_region
          %357 = dma.done %s350, 1024
        $region44: #{gpt_forward.8} parent=31 // pred_fallthru
          _
        %s358 = sand.u32 %s52, 1
        %s359 = scalar_lea.sflag [#allocation6], %s358
        %s360 = sand.u32 %s52, 1
        %s361 = smul.addr %s360, 64
        %s362 = scalar_lea.vmem [#allocation5], %s361
        %p363 = pneg %p65
        %p364 = pneg %p62
        %s365 = sand.u32 %s23, 1
        %s366 = scalar_lea.sflag [#allocation9], %s365
        %s367 = sand.u32 %s84, 1
        %s368 = smul.addr %s367, 64
        %s369 = scalar_lea.vmem [#allocation8], %s368
        %p370 = pneg %p97
        %p371 = pneg %p94
        %s372 = sand.u32 %s23, 1
        %s373 = scalar_lea.sflag [#allocation9], %s372
        %s374 = sand.u32 %s116, 1
        %s375 = smul.addr %s374, 64
        %s376 = scalar_lea.vmem [#allocation10], %s375
        %p377 = pneg %p129
        %p378 = pneg %p126
        %p379 = pneg %p157
        %p380 = pneg %p154
        %s381 = sand.u32 %s144, 1
        %s382 = scalar_lea.sflag [#allocation7], %s381
        %s383 = sand.u32 %s144, 1
        %s384 = smul.addr %s383, 64
        %s385 = scalar_lea.vmem [#allocation11], %s384
        %s386 = smul.u32 4, %s29
        %p387 = scmp.lt.s32.totalorder %s30, %s29
        %s388 = scalar_select %p387, %s30, %s29
        %s389 = smul.u32 4, %s388
        %p390 = scmp.lt.s32.totalorder %s30, %s29
        %s391 = scalar_select %p390, %s30, %s29
        %s392 = smul.u32 4, %s391
        %s393 = smul.u32 4, %s29
        %p396 = scmp.eq.s32.totalorder %s30, 0
        // Predicated region
        $region45: #{gpt_forward.8} parent=31 // pred_check
          %p397 = pneg %p396
        $region46: #{gpt_forward.8} parent=31 // pred_check_branch
          %399 = sbr.rel (%p397) target = $region48
        $region47: #{gpt_forward.8} parent=31 // pred_region
          %vm400 = vcmask 7168
          %401 = vst.msk [vmem:[#allocation2] sm:$0xff] %vm400, -inf
          %402 = vst.msk [vmem:[#allocation2 + $0x8] sm:$0xff] %vm400, -inf
          %403 = vst.msk [vmem:[#allocation2 + $0x10] sm:$0xff] %vm400, -inf
          %404 = vst.msk [vmem:[#allocation2 + $0x18] sm:$0xff] %vm400, -inf
          %405 = vst.msk [vmem:[#allocation2 + $0x20] sm:$0xff] %vm400, -inf
          %406 = vst.msk [vmem:[#allocation2 + $0x28] sm:$0xff] %vm400, -inf
          %407 = vst.msk [vmem:[#allocation2 + $0x30] sm:$0xff] %vm400, -inf
          %408 = vst.msk [vmem:[#allocation2 + $0x38] sm:$0xff] %vm400, -inf
          %409 = vst.msk [vmem:[#allocation2 + $0x40] sm:$0xff] %vm400, -inf
          %410 = vst.msk [vmem:[#allocation2 + $0x48] sm:$0xff] %vm400, -inf
          %411 = vst.msk [vmem:[#allocation2 + $0x50] sm:$0xff] %vm400, -inf
          %412 = vst.msk [vmem:[#allocation2 + $0x58] sm:$0xff] %vm400, -inf
          %413 = vst.msk [vmem:[#allocation2 + $0x60] sm:$0xff] %vm400, -inf
          %414 = vst.msk [vmem:[#allocation2 + $0x68] sm:$0xff] %vm400, -inf
          %415 = vst.msk [vmem:[#allocation2 + $0x70] sm:$0xff] %vm400, -inf
          %416 = vst.msk [vmem:[#allocation2 + $0x78] sm:$0xff] %vm400, -inf
          %417 = vst.msk [vmem:[#allocation3] sm:$0xff] %vm400, 0.0
          %418 = vst.msk [vmem:[#allocation3 + $0x8] sm:$0xff] %vm400, 0.0
          %419 = vst.msk [vmem:[#allocation3 + $0x10] sm:$0xff] %vm400, 0.0
          %420 = vst.msk [vmem:[#allocation3 + $0x18] sm:$0xff] %vm400, 0.0
          %421 = vst.msk [vmem:[#allocation3 + $0x20] sm:$0xff] %vm400, 0.0
          %422 = vst.msk [vmem:[#allocation3 + $0x28] sm:$0xff] %vm400, 0.0
          %423 = vst.msk [vmem:[#allocation3 + $0x30] sm:$0xff] %vm400, 0.0
          %424 = vst.msk [vmem:[#allocation3 + $0x38] sm:$0xff] %vm400, 0.0
          %425 = vst.msk [vmem:[#allocation3 + $0x40] sm:$0xff] %vm400, 0.0
          %426 = vst.msk [vmem:[#allocation3 + $0x48] sm:$0xff] %vm400, 0.0
          %427 = vst.msk [vmem:[#allocation3 + $0x50] sm:$0xff] %vm400, 0.0
          %428 = vst.msk [vmem:[#allocation3 + $0x58] sm:$0xff] %vm400, 0.0
          %429 = vst.msk [vmem:[#allocation3 + $0x60] sm:$0xff] %vm400, 0.0
          %430 = vst.msk [vmem:[#allocation3 + $0x68] sm:$0xff] %vm400, 0.0
          %431 = vst.msk [vmem:[#allocation3 + $0x70] sm:$0xff] %vm400, 0.0
          %432 = vst.msk [vmem:[#allocation3 + $0x78] sm:$0xff] %vm400, 0.0
          %vm433 = vcmask 523264
          %434 = vst.msk [vmem:[#allocation4] sm:$0xff] %vm433, 0.0
          %435 = vst.msk [vmem:[#allocation4 + $0x8] sm:$0xff] %vm433, 0.0
          %436 = vst.msk [vmem:[#allocation4 + $0x10] sm:$0xff] %vm433, 0.0
          %437 = vst.msk [vmem:[#allocation4 + $0x18] sm:$0xff] %vm433, 0.0
          %438 = vst.msk [vmem:[#allocation4 + $0x20] sm:$0xff] %vm433, 0.0
          %439 = vst.msk [vmem:[#allocation4 + $0x28] sm:$0xff] %vm433, 0.0
          %440 = vst.msk [vmem:[#allocation4 + $0x30] sm:$0xff] %vm433, 0.0
          %441 = vst.msk [vmem:[#allocation4 + $0x38] sm:$0xff] %vm433, 0.0
          %442 = vst.msk [vmem:[#allocation4 + $0x40] sm:$0xff] %vm433, 0.0
          %443 = vst.msk [vmem:[#allocation4 + $0x48] sm:$0xff] %vm433, 0.0
          %444 = vst.msk [vmem:[#allocation4 + $0x50] sm:$0xff] %vm433, 0.0
          %445 = vst.msk [vmem:[#allocation4 + $0x58] sm:$0xff] %vm433, 0.0
          %446 = vst.msk [vmem:[#allocation4 + $0x60] sm:$0xff] %vm433, 0.0
          %447 = vst.msk [vmem:[#allocation4 + $0x68] sm:$0xff] %vm433, 0.0
          %448 = vst.msk [vmem:[#allocation4 + $0x70] sm:$0xff] %vm433, 0.0
          %449 = vst.msk [vmem:[#allocation4 + $0x78] sm:$0xff] %vm433, 0.0
        $region48: #{gpt_forward.8} parent=31 // pred_fallthru
          _
        %p450 = scmp.le.s32.totalorder %s30, %s29
        // Predicated region
        $region49: #{gpt_forward.8} parent=31 // pred_check
          %p451 = pneg %p450
        $region50: #{gpt_forward.8} parent=31 // pred_check_branch
          %453 = sbr.rel (%p451) target = $region52
        $region51: #{gpt_forward.8} parent=31 // pred_region
          %v454 = vld [vmem:[%s335] sm:$0xf]
          %v455 = vld [vmem:[%s335 + $0x4] sm:$0xf]
          %v456 = vld [vmem:[%s335 + $0x8] sm:$0xf]
          %v457 = vld [vmem:[%s335 + $0xc] sm:$0xf]
          %v458 = vld [vmem:[%s335 + $0x10] sm:$0xf]
          %v459 = vld [vmem:[%s335 + $0x14] sm:$0xf]
          %v460 = vld [vmem:[%s335 + $0x18] sm:$0xf]
          %v461 = vld [vmem:[%s335 + $0x1c] sm:$0xf]
          %v462 = vld [vmem:[%s335 + $0x20] sm:$0xf]
          %v463 = vld [vmem:[%s335 + $0x24] sm:$0xf]
          %v464 = vld [vmem:[%s335 + $0x28] sm:$0xf]
          %v465 = vld [vmem:[%s335 + $0x2c] sm:$0xf]
          %v466 = vld [vmem:[%s335 + $0x30] sm:$0xf]
          %v467 = vld [vmem:[%s335 + $0x34] sm:$0xf]
          %v468 = vld [vmem:[%s335 + $0x38] sm:$0xf]
          %v469 = vld [vmem:[%s335 + $0x3c] sm:$0xf]
          %v470 = vmul.bf16 %v454, 1040203264
          %v471 = vmul.bf16 %v455, 1040203264
          %v472 = vmul.bf16 %v456, 1040203264
          %v473 = vmul.bf16 %v457, 1040203264
          %v474 = vmul.bf16 %v458, 1040203264
          %v475 = vmul.bf16 %v459, 1040203264
          %v476 = vmul.bf16 %v460, 1040203264
          %v477 = vmul.bf16 %v461, 1040203264
          %v478 = vmul.bf16 %v462, 1040203264
          %v479 = vmul.bf16 %v463, 1040203264
          %v480 = vmul.bf16 %v464, 1040203264
          %v481 = vmul.bf16 %v465, 1040203264
          %v482 = vmul.bf16 %v466, 1040203264
          %v483 = vmul.bf16 %v467, 1040203264
          %v484 = vmul.bf16 %v468, 1040203264
          %v485 = vmul.bf16 %v469, 1040203264
          %v486 = vld [vmem:[%s344] sm:$0xf]
          %v487 = vld [vmem:[%s344 + $0x4] sm:$0xf]
          %v488 = vld [vmem:[%s344 + $0x8] sm:$0xf]
          %v489 = vld [vmem:[%s344 + $0xc] sm:$0xf]
          %v490 = vld [vmem:[%s344 + $0x10] sm:$0xf]
          %v491 = vld [vmem:[%s344 + $0x14] sm:$0xf]
          %v492 = vld [vmem:[%s344 + $0x18] sm:$0xf]
          %v493 = vld [vmem:[%s344 + $0x1c] sm:$0xf]
          %v494 = vld [vmem:[%s344 + $0x20] sm:$0xf]
          %v495 = vld [vmem:[%s344 + $0x24] sm:$0xf]
          %v496 = vld [vmem:[%s344 + $0x28] sm:$0xf]
          %v497 = vld [vmem:[%s344 + $0x2c] sm:$0xf]
          %v498 = vld [vmem:[%s344 + $0x30] sm:$0xf]
          %v499 = vld [vmem:[%s344 + $0x34] sm:$0xf]
          %v500 = vld [vmem:[%s344 + $0x38] sm:$0xf]
          %v501 = vld [vmem:[%s344 + $0x3c] sm:$0xf]
          %v502 = vld [vmem:[%s353] sm:$0xf]
          %v503 = vld [vmem:[%s353 + $0x4] sm:$0xf]
          %v504 = vld [vmem:[%s353 + $0x8] sm:$0xf]
          %v505 = vld [vmem:[%s353 + $0xc] sm:$0xf]
          %v506 = vld [vmem:[%s353 + $0x10] sm:$0xf]
          %v507 = vld [vmem:[%s353 + $0x14] sm:$0xf]
          %v508 = vld [vmem:[%s353 + $0x18] sm:$0xf]
          %v509 = vld [vmem:[%s353 + $0x1c] sm:$0xf]
          %v510 = vld [vmem:[%s353 + $0x20] sm:$0xf]
          %v511 = vld [vmem:[%s353 + $0x24] sm:$0xf]
          %v512 = vld [vmem:[%s353 + $0x28] sm:$0xf]
          %v513 = vld [vmem:[%s353 + $0x2c] sm:$0xf]
          %v514 = vld [vmem:[%s353 + $0x30] sm:$0xf]
          %v515 = vld [vmem:[%s353 + $0x34] sm:$0xf]
          %v516 = vld [vmem:[%s353 + $0x38] sm:$0xf]
          %v517 = vld [vmem:[%s353 + $0x3c] sm:$0xf]
          %v522 = vunpack.c.l.b16 %v470
          %v523 = vunpack.c.l.b16 %v471
          %v524 = vunpack.c.l.b16 %v472
          %v525 = vunpack.c.l.b16 %v473
          %v526 = vpack.c.b16 %v523, %v522
          %v527 = vpack.c.b16 %v525, %v524
          %v532 = vunpack.c.l.b16 %v486
          %v533 = vunpack.c.l.b16 %v487
          %v534 = vunpack.c.l.b16 %v488
          %v535 = vunpack.c.l.b16 %v489
          %v536 = vpack.c.b16 %v533, %v532
          %v537 = vpack.c.b16 %v535, %v534
          %vm538 = vcmask 523264
          %v540 = vsel %vm538, %v526, 0
          %v543 = vsel %vm538, %v527, 0
          %v546 = vsel %vm538, %v536, 0
          %v549 = vsel %vm538, %v537, 0
          %551 = vmatprep.subr.bf16.mxu0 0
          %552 = vmatpush1.bf16.xpose.msra.mxu0 %v546
          %553 = vmatprep.subr.bf16.mxu0 0
          %554 = vmatpush1.bf16.xpose.msra.mxu0 %v549
          %555 = vmatprep.subr.bf16.mxu0 0
          %556 = vmatpush1.bf16.xpose.msra.mxu0 0
          %557 = vmatprep.subr.bf16.mxu0 0
          %558 = vmatpush1.bf16.xpose.msra.mxu0 0
          %559 = vmatprep.subr.bf16.mxu0 0
          %560 = vmatpush1.bf16.xpose.msra.mxu0 0
          %561 = vmatprep.subr.bf16.mxu0 0
          %562 = vmatpush1.bf16.xpose.msra.mxu0 0
          %563 = vmatprep.subr.bf16.mxu0 0
          %564 = vmatpush1.bf16.xpose.msra.mxu0 0
          %565 = vmatprep.subr.bf16.mxu0 0
          %566 = vmatpush1.bf16.xpose.msra.mxu0 0
          %567 = vmatprep.subr.bf16.mxu0 0
          %568 = vmatpush1.bf16.xpose.msra.mxu0 0
          %569 = vmatprep.subr.bf16.mxu0 0
          %570 = vmatpush1.bf16.xpose.msra.mxu0 0
          %571 = vmatprep.subr.bf16.mxu0 0
          %572 = vmatpush1.bf16.xpose.msra.mxu0 0
          %573 = vmatprep.subr.bf16.mxu0 0
          %574 = vmatpush1.bf16.xpose.msra.mxu0 0
          %575 = vmatprep.subr.bf16.mxu0 0
          %576 = vmatpush1.bf16.xpose.msra.mxu0 0
          %577 = vmatprep.subr.bf16.mxu0 0
          %578 = vmatpush1.bf16.xpose.msra.mxu0 0
          %579 = vmatprep.subr.bf16.mxu0 0
          %580 = vmatpush1.bf16.xpose.msra.mxu0 0
          %581 = vmatprep.subr.bf16.mxu0 0
          %582 = vmatpush1.bf16.xpose.msra.mxu0 0
          %583 = vmatprep.mubr.bf16.mxu0 0
          %584 = vmatmul.mubr.bf16.gmra.mrb[0].mxu0 %v540
          %v585 = vpop.f32.mrb[0].mxu0
          %v586 = vadd.f32 0.0, %v585
          %v587 = vpop.f32.mrb[0].mxu0
          %v588 = vpop.f32.mrb[0].mxu0
          %v589 = vadd.f32 0.0, %v588
          %v590 = vpop.f32.mrb[0].mxu0
          %591 = vmatprep.mubr.bf16.mxu0 0
          %592 = vmatmul.mubr.bf16.gmra.mrb[0].mxu0 %v543
          %v593 = vpop.f32.mrb[0].mxu0
          %v594 = vadd.f32 0.0, %v593
          %v595 = vpop.f32.mrb[0].mxu0
          %v596 = vpop.f32.mrb[0].mxu0
          %v597 = vadd.f32 0.0, %v596
          %v598 = vpop.f32.mrb[0].mxu0
          %599 = vdwg.mxu0
          %v604 = vunpack.c.l.b16 %v474
          %v605 = vunpack.c.l.b16 %v475
          %v606 = vunpack.c.l.b16 %v476
          %v607 = vunpack.c.l.b16 %v477
          %v608 = vpack.c.b16 %v605, %v604
          %v609 = vpack.c.b16 %v607, %v606
          %v614 = vunpack.c.l.b16 %v490
          %v615 = vunpack.c.l.b16 %v491
          %v616 = vunpack.c.l.b16 %v492
          %v617 = vunpack.c.l.b16 %v493
          %v618 = vpack.c.b16 %v615, %v614
          %v619 = vpack.c.b16 %v617, %v616
          %v621 = vsel %vm538, %v608, 0
          %v624 = vsel %vm538, %v609, 0
          %v627 = vsel %vm538, %v618, 0
          %v630 = vsel %vm538, %v619, 0
          %632 = vmatprep.subr.bf16.mxu0 0
          %633 = vmatpush1.bf16.xpose.msra.mxu0 %v627
          %634 = vmatprep.subr.bf16.mxu0 0
          %635 = vmatpush1.bf16.xpose.msra.mxu0 %v630
          %636 = vmatprep.subr.bf16.mxu0 0
          %637 = vmatpush1.bf16.xpose.msra.mxu0 0
          %638 = vmatprep.subr.bf16.mxu0 0
          %639 = vmatpush1.bf16.xpose.msra.mxu0 0
          %640 = vmatprep.subr.bf16.mxu0 0
          %641 = vmatpush1.bf16.xpose.msra.mxu0 0
          %642 = vmatprep.subr.bf16.mxu0 0
          %643 = vmatpush1.bf16.xpose.msra.mxu0 0
          %644 = vmatprep.subr.bf16.mxu0 0
          %645 = vmatpush1.bf16.xpose.msra.mxu0 0
          %646 = vmatprep.subr.bf16.mxu0 0
          %647 = vmatpush1.bf16.xpose.msra.mxu0 0
          %648 = vmatprep.subr.bf16.mxu0 0
          %649 = vmatpush1.bf16.xpose.msra.mxu0 0
          %650 = vmatprep.subr.bf16.mxu0 0
          %651 = vmatpush1.bf16.xpose.msra.mxu0 0
          %652 = vmatprep.subr.bf16.mxu0 0
          %653 = vmatpush1.bf16.xpose.msra.mxu0 0
          %654 = vmatprep.subr.bf16.mxu0 0
          %655 = vmatpush1.bf16.xpose.msra.mxu0 0
          %656 = vmatprep.subr.bf16.mxu0 0
          %657 = vmatpush1.bf16.xpose.msra.mxu0 0
          %658 = vmatprep.subr.bf16.mxu0 0
          %659 = vmatpush1.bf16.xpose.msra.mxu0 0
          %660 = vmatprep.subr.bf16.mxu0 0
          %661 = vmatpush1.bf16.xpose.msra.mxu0 0
          %662 = vmatprep.subr.bf16.mxu0 0
          %663 = vmatpush1.bf16.xpose.msra.mxu0 0
          %664 = vmatprep.mubr.bf16.mxu0 0
          %665 = vmatmul.mubr.bf16.gmra.mrb[0].mxu0 %v621
          %v666 = vpop.f32.mrb[0].mxu0
          %v667 = vadd.f32 0.0, %v666
          %v668 = vpop.f32.mrb[0].mxu0
          %v669 = vpop.f32.mrb[0].mxu0
          %v670 = vadd.f32 0.0, %v669
          %v671 = vpop.f32.mrb[0].mxu0
          %672 = vmatprep.mubr.bf16.mxu0 0
          %673 = vmatmul.mubr.bf16.gmra.mrb[0].mxu0 %v624
          %v674 = vpop.f32.mrb[0].mxu0
          %v675 = vadd.f32 0.0, %v674
          %v676 = vpop.f32.mrb[0].mxu0
          %v677 = vpop.f32.mrb[0].mxu0
          %v678 = vadd.f32 0.0, %v677
          %v679 = vpop.f32.mrb[0].mxu0
          %680 = vdwg.mxu0
          %v685 = vunpack.c.l.b16 %v478
          %v686 = vunpack.c.l.b16 %v479
          %v687 = vunpack.c.l.b16 %v480
          %v688 = vunpack.c.l.b16 %v481
          %v689 = vpack.c.b16 %v686, %v685
          %v690 = vpack.c.b16 %v688, %v687
          %v695 = vunpack.c.l.b16 %v494
          %v696 = vunpack.c.l.b16 %v495
          %v697 = vunpack.c.l.b16 %v496
          %v698 = vunpack.c.l.b16 %v497
          %v699 = vpack.c.b16 %v696, %v695
          %v700 = vpack.c.b16 %v698, %v697
          %v702 = vsel %vm538, %v689, 0
          %v705 = vsel %vm538, %v690, 0
          %v708 = vsel %vm538, %v699, 0
          %v711 = vsel %vm538, %v700, 0
          %713 = vmatprep.subr.bf16.mxu0 0
          %714 = vmatpush1.bf16.xpose.msra.mxu0 %v708
          %715 = vmatprep.subr.bf16.mxu0 0
          %716 = vmatpush1.bf16.xpose.msra.mxu0 %v711
          %717 = vmatprep.subr.bf16.mxu0 0
          %718 = vmatpush1.bf16.xpose.msra.mxu0 0
          %719 = vmatprep.subr.bf16.mxu0 0
          %720 = vmatpush1.bf16.xpose.msra.mxu0 0
          %721 = vmatprep.subr.bf16.mxu0 0
          %722 = vmatpush1.bf16.xpose.msra.mxu0 0
          %723 = vmatprep.subr.bf16.mxu0 0
          %724 = vmatpush1.bf16.xpose.msra.mxu0 0
          %725 = vmatprep.subr.bf16.mxu0 0
          %726 = vmatpush1.bf16.xpose.msra.mxu0 0
          %727 = vmatprep.subr.bf16.mxu0 0
          %728 = vmatpush1.bf16.xpose.msra.mxu0 0
          %729 = vmatprep.subr.bf16.mxu0 0
          %730 = vmatpush1.bf16.xpose.msra.mxu0 0
          %731 = vmatprep.subr.bf16.mxu0 0
          %732 = vmatpush1.bf16.xpose.msra.mxu0 0
          %733 = vmatprep.subr.bf16.mxu0 0
          %734 = vmatpush1.bf16.xpose.msra.mxu0 0
          %735 = vmatprep.subr.bf16.mxu0 0
          %736 = vmatpush1.bf16.xpose.msra.mxu0 0
          %737 = vmatprep.subr.bf16.mxu0 0
          %738 = vmatpush1.bf16.xpose.msra.mxu0 0
          %739 = vmatprep.subr.bf16.mxu0 0
          %740 = vmatpush1.bf16.xpose.msra.mxu0 0
          %741 = vmatprep.subr.bf16.mxu0 0
          %742 = vmatpush1.bf16.xpose.msra.mxu0 0
          %743 = vmatprep.subr.bf16.mxu0 0
          %744 = vmatpush1.bf16.xpose.msra.mxu0 0
          %745 = vmatprep.mubr.bf16.mxu0 0
          %746 = vmatmul.mubr.bf16.gmra.mrb[0].mxu0 %v702
          %v747 = vpop.f32.mrb[0].mxu0
          %v748 = vadd.f32 0.0, %v747
          %v749 = vpop.f32.mrb[0].mxu0
          %v750 = vpop.f32.mrb[0].mxu0
          %v751 = vadd.f32 0.0, %v750
          %v752 = vpop.f32.mrb[0].mxu0
          %753 = vmatprep.mubr.bf16.mxu0 0
          %754 = vmatmul.mubr.bf16.gmra.mrb[0].mxu0 %v705
          %v755 = vpop.f32.mrb[0].mxu0
          %v756 = vadd.f32 0.0, %v755
          %v757 = vpop.f32.mrb[0].mxu0
          %v758 = vpop.f32.mrb[0].mxu0
          %v759 = vadd.f32 0.0, %v758
          %v760 = vpop.f32.mrb[0].mxu0
          %761 = vdwg.mxu0
          %v766 = vunpack.c.l.b16 %v482
          %v767 = vunpack.c.l.b16 %v483
          %v768 = vunpack.c.l.b16 %v484
          %v769 = vunpack.c.l.b16 %v485
          %v770 = vpack.c.b16 %v767, %v766
          %v771 = vpack.c.b16 %v769, %v768
          %v776 = vunpack.c.l.b16 %v498
          %v777 = vunpack.c.l.b16 %v499
          %v778 = vunpack.c.l.b16 %v500
          %v779 = vunpack.c.l.b16 %v501
          %v780 = vpack.c.b16 %v777, %v776
          %v781 = vpack.c.b16 %v779, %v778
          %v783 = vsel %vm538, %v770, 0
          %v786 = vsel %vm538, %v771, 0
          %v789 = vsel %vm538, %v780, 0
          %v792 = vsel %vm538, %v781, 0
          %794 = vmatprep.subr.bf16.mxu0 0
          %795 = vmatpush1.bf16.xpose.msra.mxu0 %v789
          %796 = vmatprep.subr.bf16.mxu0 0
          %797 = vmatpush1.bf16.xpose.msra.mxu0 %v792
          %798 = vmatprep.subr.bf16.mxu0 0
          %799 = vmatpush1.bf16.xpose.msra.mxu0 0
          %800 = vmatprep.subr.bf16.mxu0 0
          %801 = vmatpush1.bf16.xpose.msra.mxu0 0
          %802 = vmatprep.subr.bf16.mxu0 0
          %803 = vmatpush1.bf16.xpose.msra.mxu0 0
          %804 = vmatprep.subr.bf16.mxu0 0
          %805 = vmatpush1.bf16.xpose.msra.mxu0 0
          %806 = vmatprep.subr.bf16.mxu0 0
          %807 = vmatpush1.bf16.xpose.msra.mxu0 0
          %808 = vmatprep.subr.bf16.mxu0 0
          %809 = vmatpush1.bf16.xpose.msra.mxu0 0
          %810 = vmatprep.subr.bf16.mxu0 0
          %811 = vmatpush1.bf16.xpose.msra.mxu0 0
          %812 = vmatprep.subr.bf16.mxu0 0
          %813 = vmatpush1.bf16.xpose.msra.mxu0 0
          %814 = vmatprep.subr.bf16.mxu0 0
          %815 = vmatpush1.bf16.xpose.msra.mxu0 0
          %816 = vmatprep.subr.bf16.mxu0 0
          %817 = vmatpush1.bf16.xpose.msra.mxu0 0
          %818 = vmatprep.subr.bf16.mxu0 0
          %819 = vmatpush1.bf16.xpose.msra.mxu0 0
          %820 = vmatprep.subr.bf16.mxu0 0
          %821 = vmatpush1.bf16.xpose.msra.mxu0 0
          %822 = vmatprep.subr.bf16.mxu0 0
          %823 = vmatpush1.bf16.xpose.msra.mxu0 0
          %824 = vmatprep.subr.bf16.mxu0 0
          %825 = vmatpush1.bf16.xpose.msra.mxu0 0
          %826 = vmatprep.mubr.bf16.mxu0 0
          %827 = vmatmul.mubr.bf16.gmra.mrb[0].mxu0 %v783
          %v828 = vpop.f32.mrb[0].mxu0
          %v829 = vadd.f32 0.0, %v828
          %v830 = vpop.f32.mrb[0].mxu0
          %v831 = vpop.f32.mrb[0].mxu0
          %v832 = vadd.f32 0.0, %v831
          %v833 = vpop.f32.mrb[0].mxu0
          %834 = vmatprep.mubr.bf16.mxu0 0
          %835 = vmatmul.mubr.bf16.gmra.mrb[0].mxu0 %v786
          %v836 = vpop.f32.mrb[0].mxu0
          %v837 = vadd.f32 0.0, %v836
          %v838 = vpop.f32.mrb[0].mxu0
          %v839 = vpop.f32.mrb[0].mxu0
          %v840 = vadd.f32 0.0, %v839
          %v841 = vpop.f32.mrb[0].mxu0
          %842 = vdwg.mxu0
          %v843 = vlaneseq
          %v844 = vshrl.u32 %v843, 7
          %v845 = vadd.s32 %v844, 8
          %v846 = vadd.s32 %v844, 16
          %v847 = vadd.s32 %v844, 24
          %s848 = smul.u32 %s29, 32
          %v849 = vstv %s848
          %v850 = vadd.s32 %v844, %v849
          %v851 = vadd.s32 %v845, %v849
          %v852 = vadd.s32 %v846, %v849
          %v853 = vadd.s32 %v847, %v849
          %v854 = vlaneseq
          %v855 = vand.u32 %v854, 127
          %s856 = smul.u32 %s30, 32
          %v857 = vstv %s856
          %v858 = vadd.s32 %v855, %v857
          %vm859 = vcmp.le.s32.totalorder %v858, %v850
          %vm860 = vcmp.le.s32.totalorder %v858, %v851
          %vm861 = vcmp.le.s32.totalorder %v858, %v852
          %vm862 = vcmp.le.s32.totalorder %v858, %v853
          %v863 = vsel %vm859, 1, 0
          %v864 = vsel %vm860, 1, 0
          %v865 = vsel %vm861, 1, 0
          %v866 = vsel %vm862, 1, 0
          %vm867 = vcmp.eq.s32.totalorder %v863, 1
          %vm868 = vcmp.eq.s32.totalorder %v864, 1
          %vm869 = vcmp.eq.s32.totalorder %v865, 1
          %vm870 = vcmp.eq.s32.totalorder %v866, 1
          %v871 = vsel %vm867, %v586, -1e+30
          %v872 = vsel %vm868, %v589, -1e+30
          %v873 = vsel %vm869, %v594, -1e+30
          %v874 = vsel %vm870, %v597, -1e+30
          %v875 = vsel %vm867, %v667, -1e+30
          %v876 = vsel %vm868, %v670, -1e+30
          %v877 = vsel %vm869, %v675, -1e+30
          %v878 = vsel %vm870, %v678, -1e+30
          %v879 = vsel %vm867, %v748, -1e+30
          %v880 = vsel %vm868, %v751, -1e+30
          %v881 = vsel %vm869, %v756, -1e+30
          %v882 = vsel %vm870, %v759, -1e+30
          %v883 = vsel %vm867, %v829, -1e+30
          %v884 = vsel %vm868, %v832, -1e+30
          %v885 = vsel %vm869, %v837, -1e+30
          %v886 = vsel %vm870, %v840, -1e+30
          %v887 = vld [vmem:[#allocation2] sm:$0xff]
          %v888 = vld [vmem:[#allocation2 + $0x8] sm:$0xff]
          %v889 = vld [vmem:[#allocation2 + $0x10] sm:$0xff]
          %v890 = vld [vmem:[#allocation2 + $0x18] sm:$0xff]
          %v891 = vld [vmem:[#allocation2 + $0x20] sm:$0xff]
          %v892 = vld [vmem:[#allocation2 + $0x28] sm:$0xff]
          %v893 = vld [vmem:[#allocation2 + $0x30] sm:$0xff]
          %v894 = vld [vmem:[#allocation2 + $0x38] sm:$0xff]
          %v895 = vld [vmem:[#allocation2 + $0x40] sm:$0xff]
          %v896 = vld [vmem:[#allocation2 + $0x48] sm:$0xff]
          %v897 = vld [vmem:[#allocation2 + $0x50] sm:$0xff]
          %v898 = vld [vmem:[#allocation2 + $0x58] sm:$0xff]
          %v899 = vld [vmem:[#allocation2 + $0x60] sm:$0xff]
          %v900 = vld [vmem:[#allocation2 + $0x68] sm:$0xff]
          %v901 = vld [vmem:[#allocation2 + $0x70] sm:$0xff]
          %v902 = vld [vmem:[#allocation2 + $0x78] sm:$0xff]
          %vm903 = vcmask 261120
          %v904 = vsel %vm903, %v871, -inf
          %905 = vmax.xlane.f32.xlu0 %v904
          %v906 = vpop.xlane.xlu0 %905
          %v907 = vsel %vm903, %v872, -inf
          %908 = vmax.xlane.f32.xlu0 %v907
          %v909 = vpop.xlane.xlu0 %908
          %v910 = vsel %vm903, %v873, -inf
          %911 = vmax.xlane.f32.xlu0 %v910
          %v912 = vpop.xlane.xlu0 %911
          %v913 = vsel %vm903, %v874, -inf
          %914 = vmax.xlane.f32.xlu0 %v913
          %v915 = vpop.xlane.xlu0 %914
          %v916 = vsel %vm903, %v875, -inf
          %917 = vmax.xlane.f32.xlu0 %v916
          %v918 = vpop.xlane.xlu0 %917
          %v919 = vsel %vm903, %v876, -inf
          %920 = vmax.xlane.f32.xlu0 %v919
          %v921 = vpop.xlane.xlu0 %920
          %v922 = vsel %vm903, %v877, -inf
          %923 = vmax.xlane.f32.xlu0 %v922
          %v924 = vpop.xlane.xlu0 %923
          %v925 = vsel %vm903, %v878, -inf
          %926 = vmax.xlane.f32.xlu0 %v925
          %v927 = vpop.xlane.xlu0 %926
          %v928 = vsel %vm903, %v879, -inf
          %929 = vmax.xlane.f32.xlu0 %v928
          %v930 = vpop.xlane.xlu0 %929
          %v931 = vsel %vm903, %v880, -inf
          %932 = vmax.xlane.f32.xlu0 %v931
          %v933 = vpop.xlane.xlu0 %932
          %v934 = vsel %vm903, %v881, -inf
          %935 = vmax.xlane.f32.xlu0 %v934
          %v936 = vpop.xlane.xlu0 %935
          %v937 = vsel %vm903, %v882, -inf
          %938 = vmax.xlane.f32.xlu0 %v937
          %v939 = vpop.xlane.xlu0 %938
          %v940 = vsel %vm903, %v883, -inf
          %941 = vmax.xlane.f32.xlu0 %v940
          %v942 = vpop.xlane.xlu0 %941
          %v943 = vsel %vm903, %v884, -inf
          %944 = vmax.xlane.f32.xlu0 %v943
          %v945 = vpop.xlane.xlu0 %944
          %v946 = vsel %vm903, %v885, -inf
          %947 = vmax.xlane.f32.xlu0 %v946
          %v948 = vpop.xlane.xlu0 %947
          %v949 = vsel %vm903, %v886, -inf
          %950 = vmax.xlane.f32.xlu0 %v949
          %v951 = vpop.xlane.xlu0 %950
          %v952 = vmax.f32 %v887, %v906
          %v953 = vmax.f32 %v888, %v909
          %v954 = vmax.f32 %v889, %v912
          %v955 = vmax.f32 %v890, %v915
          %v956 = vmax.f32 %v891, %v918
          %v957 = vmax.f32 %v892, %v921
          %v958 = vmax.f32 %v893, %v924
          %v959 = vmax.f32 %v894, %v927
          %v960 = vmax.f32 %v895, %v930
          %v961 = vmax.f32 %v896, %v933
          %v962 = vmax.f32 %v897, %v936
          %v963 = vmax.f32 %v898, %v939
          %v964 = vmax.f32 %v899, %v942
          %v965 = vmax.f32 %v900, %v945
          %v966 = vmax.f32 %v901, %v948
          %v967 = vmax.f32 %v902, %v951
          %v968 = vsub.f32 %v887, %v952
          %v969 = vsub.f32 %v888, %v953
          %v970 = vsub.f32 %v889, %v954
          %v971 = vsub.f32 %v890, %v955
          %v972 = vsub.f32 %v891, %v956
          %v973 = vsub.f32 %v892, %v957
          %v974 = vsub.f32 %v893, %v958
          %v975 = vsub.f32 %v894, %v959
          %v976 = vsub.f32 %v895, %v960
          %v977 = vsub.f32 %v896, %v961
          %v978 = vsub.f32 %v897, %v962
          %v979 = vsub.f32 %v898, %v963
          %v980 = vsub.f32 %v899, %v964
          %v981 = vsub.f32 %v900, %v965
          %v982 = vsub.f32 %v901, %v966
          %v983 = vsub.f32 %v902, %v967
          %v984 = vmul.f32 %v968, 1.442695
          %v985 = vpow.pop %v984
          %v986 = vmul.f32 %v969, 1.442695
          %v987 = vpow.pop %v986
          %v988 = vmul.f32 %v970, 1.442695
          %v989 = vpow.pop %v988
          %v990 = vmul.f32 %v971, 1.442695
          %v991 = vpow.pop %v990
          %v992 = vmul.f32 %v972, 1.442695
          %v993 = vpow.pop %v992
          %v994 = vmul.f32 %v973, 1.442695
          %v995 = vpow.pop %v994
          %v996 = vmul.f32 %v974, 1.442695
          %v997 = vpow.pop %v996
          %v998 = vmul.f32 %v975, 1.442695
          %v999 = vpow.pop %v998
          %v1000 = vmul.f32 %v976, 1.442695
          %v1001 = vpow.pop %v1000
          %v1002 = vmul.f32 %v977, 1.442695
          %v1003 = vpow.pop %v1002
          %v1004 = vmul.f32 %v978, 1.442695
          %v1005 = vpow.pop %v1004
          %v1006 = vmul.f32 %v979, 1.442695
          %v1007 = vpow.pop %v1006
          %v1008 = vmul.f32 %v980, 1.442695
          %v1009 = vpow.pop %v1008
          %v1010 = vmul.f32 %v981, 1.442695
          %v1011 = vpow.pop %v1010
          %v1012 = vmul.f32 %v982, 1.442695
          %v1013 = vpow.pop %v1012
          %v1014 = vmul.f32 %v983, 1.442695
          %v1015 = vpow.pop %v1014
          %1017 = vset.pattern.permute.xlu0 0
          %1018 = vperm.xlu0 %1017, %v952
          %v1019 = vpop.permute.xlu0 %1018
          %1022 = vset.pattern.permute.xlu0 0
          %1023 = vperm.xlu0 %1022, %v953
          %v1024 = vpop.permute.xlu0 %1023
          %1027 = vset.pattern.permute.xlu0 0
          %1028 = vperm.xlu0 %1027, %v954
          %v1029 = vpop.permute.xlu0 %1028
          %1032 = vset.pattern.permute.xlu0 0
          %1033 = vperm.xlu0 %1032, %v955
          %v1034 = vpop.permute.xlu0 %1033
          %1037 = vset.pattern.permute.xlu0 0
          %1038 = vperm.xlu0 %1037, %v956
          %v1039 = vpop.permute.xlu0 %1038
          %1042 = vset.pattern.permute.xlu0 0
          %1043 = vperm.xlu0 %1042, %v957
          %v1044 = vpop.permute.xlu0 %1043
          %1047 = vset.pattern.permute.xlu0 0
          %1048 = vperm.xlu0 %1047, %v958
          %v1049 = vpop.permute.xlu0 %1048
          %1052 = vset.pattern.permute.xlu0 0
          %1053 = vperm.xlu0 %1052, %v959
          %v1054 = vpop.permute.xlu0 %1053
          %1057 = vset.pattern.permute.xlu0 0
          %1058 = vperm.xlu0 %1057, %v960
          %v1059 = vpop.permute.xlu0 %1058
          %1062 = vset.pattern.permute.xlu0 0
          %1063 = vperm.xlu0 %1062, %v961
          %v1064 = vpop.permute.xlu0 %1063
          %1067 = vset.pattern.permute.xlu0 0
          %1068 = vperm.xlu0 %1067, %v962
          %v1069 = vpop.permute.xlu0 %1068
          %1072 = vset.pattern.permute.xlu0 0
          %1073 = vperm.xlu0 %1072, %v963
          %v1074 = vpop.permute.xlu0 %1073
          %1077 = vset.pattern.permute.xlu0 0
          %1078 = vperm.xlu0 %1077, %v964
          %v1079 = vpop.permute.xlu0 %1078
          %1082 = vset.pattern.permute.xlu0 0
          %1083 = vperm.xlu0 %1082, %v965
          %v1084 = vpop.permute.xlu0 %1083
          %1087 = vset.pattern.permute.xlu0 0
          %1088 = vperm.xlu0 %1087, %v966
          %v1089 = vpop.permute.xlu0 %1088
          %1092 = vset.pattern.permute.xlu0 0
          %1093 = vperm.xlu0 %1092, %v967
          %v1094 = vpop.permute.xlu0 %1093
          %v1096 = vsub.f32 %v871, %v1019
          %v1097 = vsub.f32 %v872, %v1024
          %v1098 = vsub.f32 %v873, %v1029
          %v1099 = vsub.f32 %v874, %v1034
          %v1100 = vsub.f32 %v875, %v1039
          %v1101 = vsub.f32 %v876, %v1044
          %v1102 = vsub.f32 %v877, %v1049
          %v1103 = vsub.f32 %v878, %v1054
          %v1104 = vsub.f32 %v879, %v1059
          %v1105 = vsub.f32 %v880, %v1064
          %v1106 = vsub.f32 %v881, %v1069
          %v1107 = vsub.f32 %v882, %v1074
          %v1108 = vsub.f32 %v883, %v1079
          %v1109 = vsub.f32 %v884, %v1084
          %v1110 = vsub.f32 %v885, %v1089
          %v1111 = vsub.f32 %v886, %v1094
          %v1112 = vmul.f32 %v1096, 1.442695
          %v1113 = vpow.pop %v1112
          %v1114 = vmul.f32 %v1097, 1.442695
          %v1115 = vpow.pop %v1114
          %v1116 = vmul.f32 %v1098, 1.442695
          %v1117 = vpow.pop %v1116
          %v1118 = vmul.f32 %v1099, 1.442695
          %v1119 = vpow.pop %v1118
          %v1120 = vmul.f32 %v1100, 1.442695
          %v1121 = vpow.pop %v1120
          %v1122 = vmul.f32 %v1101, 1.442695
          %v1123 = vpow.pop %v1122
          %v1124 = vmul.f32 %v1102, 1.442695
          %v1125 = vpow.pop %v1124
          %v1126 = vmul.f32 %v1103, 1.442695
          %v1127 = vpow.pop %v1126
          %v1128 = vmul.f32 %v1104, 1.442695
          %v1129 = vpow.pop %v1128
          %v1130 = vmul.f32 %v1105, 1.442695
          %v1131 = vpow.pop %v1130
          %v1132 = vmul.f32 %v1106, 1.442695
          %v1133 = vpow.pop %v1132
          %v1134 = vmul.f32 %v1107, 1.442695
          %v1135 = vpow.pop %v1134
          %v1136 = vmul.f32 %v1108, 1.442695
          %v1137 = vpow.pop %v1136
          %v1138 = vmul.f32 %v1109, 1.442695
          %v1139 = vpow.pop %v1138
          %v1140 = vmul.f32 %v1110, 1.442695
          %v1141 = vpow.pop %v1140
          %v1142 = vmul.f32 %v1111, 1.442695
          %v1143 = vpow.pop %v1142
          %v1144 = vld [vmem:[#allocation3] sm:$0xff]
          %v1145 = vld [vmem:[#allocation3 + $0x8] sm:$0xff]
          %v1146 = vld [vmem:[#allocation3 + $0x10] sm:$0xff]
          %v1147 = vld [vmem:[#allocation3 + $0x18] sm:$0xff]
          %v1148 = vld [vmem:[#allocation3 + $0x20] sm:$0xff]
          %v1149 = vld [vmem:[#allocation3 + $0x28] sm:$0xff]
          %v1150 = vld [vmem:[#allocation3 + $0x30] sm:$0xff]
          %v1151 = vld [vmem:[#allocation3 + $0x38] sm:$0xff]
          %v1152 = vld [vmem:[#allocation3 + $0x40] sm:$0xff]
          %v1153 = vld [vmem:[#allocation3 + $0x48] sm:$0xff]
          %v1154 = vld [vmem:[#allocation3 + $0x50] sm:$0xff]
          %v1155 = vld [vmem:[#allocation3 + $0x58] sm:$0xff]
          %v1156 = vld [vmem:[#allocation3 + $0x60] sm:$0xff]
          %v1157 = vld [vmem:[#allocation3 + $0x68] sm:$0xff]
          %v1158 = vld [vmem:[#allocation3 + $0x70] sm:$0xff]
          %v1159 = vld [vmem:[#allocation3 + $0x78] sm:$0xff]
          %v1160 = vmul.f32 %v985, %v1144
          %v1161 = vmul.f32 %v987, %v1145
          %v1162 = vmul.f32 %v989, %v1146
          %v1163 = vmul.f32 %v991, %v1147
          %v1164 = vmul.f32 %v993, %v1148
          %v1165 = vmul.f32 %v995, %v1149
          %v1166 = vmul.f32 %v997, %v1150
          %v1167 = vmul.f32 %v999, %v1151
          %v1168 = vmul.f32 %v1001, %v1152
          %v1169 = vmul.f32 %v1003, %v1153
          %v1170 = vmul.f32 %v1005, %v1154
          %v1171 = vmul.f32 %v1007, %v1155
          %v1172 = vmul.f32 %v1009, %v1156
          %v1173 = vmul.f32 %v1011, %v1157
          %v1174 = vmul.f32 %v1013, %v1158
          %v1175 = vmul.f32 %v1015, %v1159
          %v1176 = vsel %vm903, %v1113, 0.0
          %1177 = vadd.xlane.f32.xlu0 %v1176
          %v1178 = vpop.xlane.xlu0 %1177
          %v1179 = vsel %vm903, %v1115, 0.0
          %1180 = vadd.xlane.f32.xlu0 %v1179
          %v1181 = vpop.xlane.xlu0 %1180
          %v1182 = vsel %vm903, %v1117, 0.0
          %1183 = vadd.xlane.f32.xlu0 %v1182
          %v1184 = vpop.xlane.xlu0 %1183
          %v1185 = vsel %vm903, %v1119, 0.0
          %1186 = vadd.xlane.f32.xlu0 %v1185
          %v1187 = vpop.xlane.xlu0 %1186
          %v1188 = vsel %vm903, %v1121, 0.0
          %1189 = vadd.xlane.f32.xlu0 %v1188
          %v1190 = vpop.xlane.xlu0 %1189
          %v1191 = vsel %vm903, %v1123, 0.0
          %1192 = vadd.xlane.f32.xlu0 %v1191
          %v1193 = vpop.xlane.xlu0 %1192
          %v1194 = vsel %vm903, %v1125, 0.0
          %1195 = vadd.xlane.f32.xlu0 %v1194
          %v1196 = vpop.xlane.xlu0 %1195
          %v1197 = vsel %vm903, %v1127, 0.0
          %1198 = vadd.xlane.f32.xlu0 %v1197
          %v1199 = vpop.xlane.xlu0 %1198
          %v1200 = vsel %vm903, %v1129, 0.0
          %1201 = vadd.xlane.f32.xlu0 %v1200
          %v1202 = vpop.xlane.xlu0 %1201
          %v1203 = vsel %vm903, %v1131, 0.0
          %1204 = vadd.xlane.f32.xlu0 %v1203
          %v1205 = vpop.xlane.xlu0 %1204
          %v1206 = vsel %vm903, %v1133, 0.0
          %1207 = vadd.xlane.f32.xlu0 %v1206
          %v1208 = vpop.xlane.xlu0 %1207
          %v1209 = vsel %vm903, %v1135, 0.0
          %1210 = vadd.xlane.f32.xlu0 %v1209
          %v1211 = vpop.xlane.xlu0 %1210
          %v1212 = vsel %vm903, %v1137, 0.0
          %1213 = vadd.xlane.f32.xlu0 %v1212
          %v1214 = vpop.xlane.xlu0 %1213
          %v1215 = vsel %vm903, %v1139, 0.0
          %1216 = vadd.xlane.f32.xlu0 %v1215
          %v1217 = vpop.xlane.xlu0 %1216
          %v1218 = vsel %vm903, %v1141, 0.0
          %1219 = vadd.xlane.f32.xlu0 %v1218
          %v1220 = vpop.xlane.xlu0 %1219
          %v1221 = vsel %vm903, %v1143, 0.0
          %1222 = vadd.xlane.f32.xlu0 %v1221
          %v1223 = vpop.xlane.xlu0 %1222
          %v1224 = vadd.f32 %v1160, %v1178
          %v1225 = vadd.f32 %v1161, %v1181
          %v1226 = vadd.f32 %v1162, %v1184
          %v1227 = vadd.f32 %v1163, %v1187
          %v1228 = vadd.f32 %v1164, %v1190
          %v1229 = vadd.f32 %v1165, %v1193
          %v1230 = vadd.f32 %v1166, %v1196
          %v1231 = vadd.f32 %v1167, %v1199
          %v1232 = vadd.f32 %v1168, %v1202
          %v1233 = vadd.f32 %v1169, %v1205
          %v1234 = vadd.f32 %v1170, %v1208
          %v1235 = vadd.f32 %v1171, %v1211
          %v1236 = vadd.f32 %v1172, %v1214
          %v1237 = vadd.f32 %v1173, %v1217
          %v1238 = vadd.f32 %v1174, %v1220
          %v1239 = vadd.f32 %v1175, %v1223
          %vm1240 = vcmask 7168
          %1241 = vst.msk [vmem:[#allocation3] sm:$0xff] %vm1240, %v1224
          %1242 = vst.msk [vmem:[#allocation3 + $0x8] sm:$0xff] %vm1240, %v1225
          %1243 = vst.msk [vmem:[#allocation3 + $0x10] sm:$0xff] %vm1240, %v1226
          %1244 = vst.msk [vmem:[#allocation3 + $0x18] sm:$0xff] %vm1240, %v1227
          %1245 = vst.msk [vmem:[#allocation3 + $0x20] sm:$0xff] %vm1240, %v1228
          %1246 = vst.msk [vmem:[#allocation3 + $0x28] sm:$0xff] %vm1240, %v1229
          %1247 = vst.msk [vmem:[#allocation3 + $0x30] sm:$0xff] %vm1240, %v1230
          %1248 = vst.msk [vmem:[#allocation3 + $0x38] sm:$0xff] %vm1240, %v1231
          %1249 = vst.msk [vmem:[#allocation3 + $0x40] sm:$0xff] %vm1240, %v1232
          %1250 = vst.msk [vmem:[#allocation3 + $0x48] sm:$0xff] %vm1240, %v1233
          %1251 = vst.msk [vmem:[#allocation3 + $0x50] sm:$0xff] %vm1240, %v1234
          %1252 = vst.msk [vmem:[#allocation3 + $0x58] sm:$0xff] %vm1240, %v1235
          %1253 = vst.msk [vmem:[#allocation3 + $0x60] sm:$0xff] %vm1240, %v1236
          %1254 = vst.msk [vmem:[#allocation3 + $0x68] sm:$0xff] %vm1240, %v1237
          %1255 = vst.msk [vmem:[#allocation3 + $0x70] sm:$0xff] %vm1240, %v1238
          %1256 = vst.msk [vmem:[#allocation3 + $0x78] sm:$0xff] %vm1240, %v1239
          %v1257 = vld [vmem:[#allocation4] sm:$0xff]
          %v1258 = vld [vmem:[#allocation4 + $0x8] sm:$0xff]
          %v1259 = vld [vmem:[#allocation4 + $0x10] sm:$0xff]
          %v1260 = vld [vmem:[#allocation4 + $0x18] sm:$0xff]
          %v1261 = vld [vmem:[#allocation4 + $0x20] sm:$0xff]
          %v1262 = vld [vmem:[#allocation4 + $0x28] sm:$0xff]
          %v1263 = vld [vmem:[#allocation4 + $0x30] sm:$0xff]
          %v1264 = vld [vmem:[#allocation4 + $0x38] sm:$0xff]
          %v1265 = vld [vmem:[#allocation4 + $0x40] sm:$0xff]
          %v1266 = vld [vmem:[#allocation4 + $0x48] sm:$0xff]
          %v1267 = vld [vmem:[#allocation4 + $0x50] sm:$0xff]
          %v1268 = vld [vmem:[#allocation4 + $0x58] sm:$0xff]
          %v1269 = vld [vmem:[#allocation4 + $0x60] sm:$0xff]
          %v1270 = vld [vmem:[#allocation4 + $0x68] sm:$0xff]
          %v1271 = vld [vmem:[#allocation4 + $0x70] sm:$0xff]
          %v1272 = vld [vmem:[#allocation4 + $0x78] sm:$0xff]
          %1274 = vset.pattern.permute.xlu0 0
          %1275 = vperm.xlu0 %1274, %v985
          %v1276 = vpop.permute.xlu0 %1275
          %1279 = vset.pattern.permute.xlu0 0
          %1280 = vperm.xlu0 %1279, %v987
          %v1281 = vpop.permute.xlu0 %1280
          %1284 = vset.pattern.permute.xlu0 0
          %1285 = vperm.xlu0 %1284, %v989
          %v1286 = vpop.permute.xlu0 %1285
          %1289 = vset.pattern.permute.xlu0 0
          %1290 = vperm.xlu0 %1289, %v991
          %v1291 = vpop.permute.xlu0 %1290
          %1294 = vset.pattern.permute.xlu0 0
          %1295 = vperm.xlu0 %1294, %v993
          %v1296 = vpop.permute.xlu0 %1295
          %1299 = vset.pattern.permute.xlu0 0
          %1300 = vperm.xlu0 %1299, %v995
          %v1301 = vpop.permute.xlu0 %1300
          %1304 = vset.pattern.permute.xlu0 0
          %1305 = vperm.xlu0 %1304, %v997
          %v1306 = vpop.permute.xlu0 %1305
          %1309 = vset.pattern.permute.xlu0 0
          %1310 = vperm.xlu0 %1309, %v999
          %v1311 = vpop.permute.xlu0 %1310
          %1314 = vset.pattern.permute.xlu0 0
          %1315 = vperm.xlu0 %1314, %v1001
          %v1316 = vpop.permute.xlu0 %1315
          %1319 = vset.pattern.permute.xlu0 0
          %1320 = vperm.xlu0 %1319, %v1003
          %v1321 = vpop.permute.xlu0 %1320
          %1324 = vset.pattern.permute.xlu0 0
          %1325 = vperm.xlu0 %1324, %v1005
          %v1326 = vpop.permute.xlu0 %1325
          %1329 = vset.pattern.permute.xlu0 0
          %1330 = vperm.xlu0 %1329, %v1007
          %v1331 = vpop.permute.xlu0 %1330
          %1334 = vset.pattern.permute.xlu0 0
          %1335 = vperm.xlu0 %1334, %v1009
          %v1336 = vpop.permute.xlu0 %1335
          %1339 = vset.pattern.permute.xlu0 0
          %1340 = vperm.xlu0 %1339, %v1011
          %v1341 = vpop.permute.xlu0 %1340
          %1344 = vset.pattern.permute.xlu0 0
          %1345 = vperm.xlu0 %1344, %v1013
          %v1346 = vpop.permute.xlu0 %1345
          %1349 = vset.pattern.permute.xlu0 0
          %1350 = vperm.xlu0 %1349, %v1015
          %v1351 = vpop.permute.xlu0 %1350
          %v1353 = vmul.f32 %v1276, %v1257
          %v1354 = vmul.f32 %v1281, %v1258
          %v1355 = vmul.f32 %v1286, %v1259
          %v1356 = vmul.f32 %v1291, %v1260
          %v1357 = vmul.f32 %v1296, %v1261
          %v1358 = vmul.f32 %v1301, %v1262
          %v1359 = vmul.f32 %v1306, %v1263
          %v1360 = vmul.f32 %v1311, %v1264
          %v1361 = vmul.f32 %v1316, %v1265
          %v1362 = vmul.f32 %v1321, %v1266
          %v1363 = vmul.f32 %v1326, %v1267
          %v1364 = vmul.f32 %v1331, %v1268
          %v1365 = vmul.f32 %v1336, %v1269
          %v1366 = vmul.f32 %v1341, %v1270
          %v1367 = vmul.f32 %v1346, %v1271
          %v1368 = vmul.f32 %v1351, %v1272
          %v1369 = vpack.c.bf16 %v1115, %v1113
          %v1370 = vpack.c.bf16 %v1119, %v1117
          %v1371 = vpack.c.bf16 %v1123, %v1121
          %v1372 = vpack.c.bf16 %v1127, %v1125
          %v1373 = vpack.c.bf16 %v1131, %v1129
          %v1374 = vpack.c.bf16 %v1135, %v1133
          %v1375 = vpack.c.bf16 %v1139, %v1137
          %v1376 = vpack.c.bf16 %v1143, %v1141
          %v1381 = vunpack.c.l.b16 %v502
          %v1382 = vunpack.c.l.b16 %v503
          %v1383 = vunpack.c.l.b16 %v504
          %v1384 = vunpack.c.l.b16 %v505
          %v1385 = vpack.c.b16 %v1382, %v1381
          %v1386 = vpack.c.b16 %v1384, %v1383
          %v1390 = vsel %vm903, %v1369, 0
          %v1393 = vsel %vm903, %v1370, 0
          %1395 = vmatprep.subr.bf16.mxu0 0
          %1396 = vmatpush1.bf16.msra.mxu0 %v1385
          %1397 = vmatprep.subr.bf16.mxu0 0
          %1398 = vmatpush1.bf16.msra.mxu0 %v1386
          %1399 = vmatprep.subr.bf16.mxu0 0
          %1400 = vmatpush1.bf16.msra.mxu0 0
          %1401 = vmatprep.subr.bf16.mxu0 0
          %1402 = vmatpush1.bf16.msra.mxu0 0
          %1403 = vmatprep.subr.bf16.mxu0 0
          %1404 = vmatpush1.bf16.msra.mxu0 0
          %1405 = vmatprep.subr.bf16.mxu0 0
          %1406 = vmatpush1.bf16.msra.mxu0 0
          %1407 = vmatprep.subr.bf16.mxu0 0
          %1408 = vmatpush1.bf16.msra.mxu0 0
          %1409 = vmatprep.subr.bf16.mxu0 0
          %1410 = vmatpush1.bf16.msra.mxu0 0
          %1411 = vmatprep.subr.bf16.mxu0 0
          %1412 = vmatpush1.bf16.msra.mxu0 0
          %1413 = vmatprep.subr.bf16.mxu0 0
          %1414 = vmatpush1.bf16.msra.mxu0 0
          %1415 = vmatprep.subr.bf16.mxu0 0
          %1416 = vmatpush1.bf16.msra.mxu0 0
          %1417 = vmatprep.subr.bf16.mxu0 0
          %1418 = vmatpush1.bf16.msra.mxu0 0
          %1419 = vmatprep.subr.bf16.mxu0 0
          %1420 = vmatpush1.bf16.msra.mxu0 0
          %1421 = vmatprep.subr.bf16.mxu0 0
          %1422 = vmatpush1.bf16.msra.mxu0 0
          %1423 = vmatprep.subr.bf16.mxu0 0
          %1424 = vmatpush1.bf16.msra.mxu0 0
          %1425 = vmatprep.subr.bf16.mxu0 0
          %1426 = vmatpush1.bf16.msra.mxu0 0
          %1427 = vmatprep.mubr.bf16.mxu0 0
          %1428 = vmatmul.mubr.bf16.gmra.mrb[0].mxu0 %v1390
          %v1429 = vpop.f32.mrb[0].mxu0
          %v1430 = vadd.f32 0.0, %v1429
          %v1431 = vpop.f32.mrb[0].mxu0
          %v1432 = vpop.f32.mrb[0].mxu0
          %v1433 = vadd.f32 0.0, %v1432
          %v1434 = vpop.f32.mrb[0].mxu0
          %1435 = vmatprep.mubr.bf16.mxu0 0
          %1436 = vmatmul.mubr.bf16.gmra.mrb[0].mxu0 %v1393
          %v1437 = vpop.f32.mrb[0].mxu0
          %v1438 = vadd.f32 0.0, %v1437
          %v1439 = vpop.f32.mrb[0].mxu0
          %v1440 = vpop.f32.mrb[0].mxu0
          %v1441 = vadd.f32 0.0, %v1440
          %v1442 = vpop.f32.mrb[0].mxu0
          %1443 = vdwg.mxu0
          %v1448 = vunpack.c.l.b16 %v506
          %v1449 = vunpack.c.l.b16 %v507
          %v1450 = vunpack.c.l.b16 %v508
          %v1451 = vunpack.c.l.b16 %v509
          %v1452 = vpack.c.b16 %v1449, %v1448
          %v1453 = vpack.c.b16 %v1451, %v1450
          %v1457 = vsel %vm903, %v1371, 0
          %v1460 = vsel %vm903, %v1372, 0
          %1462 = vmatprep.subr.bf16.mxu0 0
          %1463 = vmatpush1.bf16.msra.mxu0 %v1452
          %1464 = vmatprep.subr.bf16.mxu0 0
          %1465 = vmatpush1.bf16.msra.mxu0 %v1453
          %1466 = vmatprep.subr.bf16.mxu0 0
          %1467 = vmatpush1.bf16.msra.mxu0 0
          %1468 = vmatprep.subr.bf16.mxu0 0
          %1469 = vmatpush1.bf16.msra.mxu0 0
          %1470 = vmatprep.subr.bf16.mxu0 0
          %1471 = vmatpush1.bf16.msra.mxu0 0
          %1472 = vmatprep.subr.bf16.mxu0 0
          %1473 = vmatpush1.bf16.msra.mxu0 0
          %1474 = vmatprep.subr.bf16.mxu0 0
          %1475 = vmatpush1.bf16.msra.mxu0 0
          %1476 = vmatprep.subr.bf16.mxu0 0
          %1477 = vmatpush1.bf16.msra.mxu0 0
          %1478 = vmatprep.subr.bf16.mxu0 0
          %1479 = vmatpush1.bf16.msra.mxu0 0
          %1480 = vmatprep.subr.bf16.mxu0 0
          %1481 = vmatpush1.bf16.msra.mxu0 0
          %1482 = vmatprep.subr.bf16.mxu0 0
          %1483 = vmatpush1.bf16.msra.mxu0 0
          %1484 = vmatprep.subr.bf16.mxu0 0
          %1485 = vmatpush1.bf16.msra.mxu0 0
          %1486 = vmatprep.subr.bf16.mxu0 0
          %1487 = vmatpush1.bf16.msra.mxu0 0
          %1488 = vmatprep.subr.bf16.mxu0 0
          %1489 = vmatpush1.bf16.msra.mxu0 0
          %1490 = vmatprep.subr.bf16.mxu0 0
          %1491 = vmatpush1.bf16.msra.mxu0 0
          %1492 = vmatprep.subr.bf16.mxu0 0
          %1493 = vmatpush1.bf16.msra.mxu0 0
          %1494 = vmatprep.mubr.bf16.mxu0 0
          %1495 = vmatmul.mubr.bf16.gmra.mrb[0].mxu0 %v1457
          %v1496 = vpop.f32.mrb[0].mxu0
          %v1497 = vadd.f32 0.0, %v1496
          %v1498 = vpop.f32.mrb[0].mxu0
          %v1499 = vpop.f32.mrb[0].mxu0
          %v1500 = vadd.f32 0.0, %v1499
          %v1501 = vpop.f32.mrb[0].mxu0
          %1502 = vmatprep.mubr.bf16.mxu0 0
          %1503 = vmatmul.mubr.bf16.gmra.mrb[0].mxu0 %v1460
          %v1504 = vpop.f32.mrb[0].mxu0
          %v1505 = vadd.f32 0.0, %v1504
          %v1506 = vpop.f32.mrb[0].mxu0
          %v1507 = vpop.f32.mrb[0].mxu0
          %v1508 = vadd.f32 0.0, %v1507
          %v1509 = vpop.f32.mrb[0].mxu0
          %1510 = vdwg.mxu0
          %v1515 = vunpack.c.l.b16 %v510
          %v1516 = vunpack.c.l.b16 %v511
          %v1517 = vunpack.c.l.b16 %v512
          %v1518 = vunpack.c.l.b16 %v513
          %v1519 = vpack.c.b16 %v1516, %v1515
          %v1520 = vpack.c.b16 %v1518, %v1517
          %v1524 = vsel %vm903, %v1373, 0
          %v1527 = vsel %vm903, %v1374, 0
          %1529 = vmatprep.subr.bf16.mxu0 0
          %1530 = vmatpush1.bf16.msra.mxu0 %v1519
          %1531 = vmatprep.subr.bf16.mxu0 0
          %1532 = vmatpush1.bf16.msra.mxu0 %v1520
          %1533 = vmatprep.subr.bf16.mxu0 0
          %1534 = vmatpush1.bf16.msra.mxu0 0
          %1535 = vmatprep.subr.bf16.mxu0 0
          %1536 = vmatpush1.bf16.msra.mxu0 0
          %1537 = vmatprep.subr.bf16.mxu0 0
          %1538 = vmatpush1.bf16.msra.mxu0 0
          %1539 = vmatprep.subr.bf16.mxu0 0
          %1540 = vmatpush1.bf16.msra.mxu0 0
          %1541 = vmatprep.subr.bf16.mxu0 0
          %1542 = vmatpush1.bf16.msra.mxu0 0
          %1543 = vmatprep.subr.bf16.mxu0 0
          %1544 = vmatpush1.bf16.msra.mxu0 0
          %1545 = vmatprep.subr.bf16.mxu0 0
          %1546 = vmatpush1.bf16.msra.mxu0 0
          %1547 = vmatprep.subr.bf16.mxu0 0
          %1548 = vmatpush1.bf16.msra.mxu0 0
          %1549 = vmatprep.subr.bf16.mxu0 0
          %1550 = vmatpush1.bf16.msra.mxu0 0
          %1551 = vmatprep.subr.bf16.mxu0 0
          %1552 = vmatpush1.bf16.msra.mxu0 0
          %1553 = vmatprep.subr.bf16.mxu0 0
          %1554 = vmatpush1.bf16.msra.mxu0 0
          %1555 = vmatprep.subr.bf16.mxu0 0
          %1556 = vmatpush1.bf16.msra.mxu0 0
          %1557 = vmatprep.subr.bf16.mxu0 0
          %1558 = vmatpush1.bf16.msra.mxu0 0
          %1559 = vmatprep.subr.bf16.mxu0 0
          %1560 = vmatpush1.bf16.msra.mxu0 0
          %1561 = vmatprep.mubr.bf16.mxu0 0
          %1562 = vmatmul.mubr.bf16.gmra.mrb[0].mxu0 %v1524
          %v1563 = vpop.f32.mrb[0].mxu0
          %v1564 = vadd.f32 0.0, %v1563
          %v1565 = vpop.f32.mrb[0].mxu0
          %v1566 = vpop.f32.mrb[0].mxu0
          %v1567 = vadd.f32 0.0, %v1566
          %v1568 = vpop.f32.mrb[0].mxu0
          %1569 = vmatprep.mubr.bf16.mxu0 0
          %1570 = vmatmul.mubr.bf16.gmra.mrb[0].mxu0 %v1527
          %v1571 = vpop.f32.mrb[0].mxu0
          %v1572 = vadd.f32 0.0, %v1571
          %v1573 = vpop.f32.mrb[0].mxu0
          %v1574 = vpop.f32.mrb[0].mxu0
          %v1575 = vadd.f32 0.0, %v1574
          %v1576 = vpop.f32.mrb[0].mxu0
          %1577 = vdwg.mxu0
          %v1582 = vunpack.c.l.b16 %v514
          %v1583 = vunpack.c.l.b16 %v515
          %v1584 = vunpack.c.l.b16 %v516
          %v1585 = vunpack.c.l.b16 %v517
          %v1586 = vpack.c.b16 %v1583, %v1582
          %v1587 = vpack.c.b16 %v1585, %v1584
          %v1591 = vsel %vm903, %v1375, 0
          %v1594 = vsel %vm903, %v1376, 0
          %1596 = vmatprep.subr.bf16.mxu0 0
          %1597 = vmatpush1.bf16.msra.mxu0 %v1586
          %1598 = vmatprep.subr.bf16.mxu0 0
          %1599 = vmatpush1.bf16.msra.mxu0 %v1587
          %1600 = vmatprep.subr.bf16.mxu0 0
          %1601 = vmatpush1.bf16.msra.mxu0 0
          %1602 = vmatprep.subr.bf16.mxu0 0
          %1603 = vmatpush1.bf16.msra.mxu0 0
          %1604 = vmatprep.subr.bf16.mxu0 0
          %1605 = vmatpush1.bf16.msra.mxu0 0
          %1606 = vmatprep.subr.bf16.mxu0 0
          %1607 = vmatpush1.bf16.msra.mxu0 0
          %1608 = vmatprep.subr.bf16.mxu0 0
          %1609 = vmatpush1.bf16.msra.mxu0 0
          %1610 = vmatprep.subr.bf16.mxu0 0
          %1611 = vmatpush1.bf16.msra.mxu0 0
          %1612 = vmatprep.subr.bf16.mxu0 0
          %1613 = vmatpush1.bf16.msra.mxu0 0
          %1614 = vmatprep.subr.bf16.mxu0 0
          %1615 = vmatpush1.bf16.msra.mxu0 0
          %1616 = vmatprep.subr.bf16.mxu0 0
          %1617 = vmatpush1.bf16.msra.mxu0 0
          %1618 = vmatprep.subr.bf16.mxu0 0
          %1619 = vmatpush1.bf16.msra.mxu0 0
          %1620 = vmatprep.subr.bf16.mxu0 0
          %1621 = vmatpush1.bf16.msra.mxu0 0
          %1622 = vmatprep.subr.bf16.mxu0 0
          %1623 = vmatpush1.bf16.msra.mxu0 0
          %1624 = vmatprep.subr.bf16.mxu0 0
          %1625 = vmatpush1.bf16.msra.mxu0 0
          %1626 = vmatprep.subr.bf16.mxu0 0
          %1627 = vmatpush1.bf16.msra.mxu0 0
          %1628 = vmatprep.mubr.bf16.mxu0 0
          %1629 = vmatmul.mubr.bf16.gmra.mrb[0].mxu0 %v1591
          %v1630 = vpop.f32.mrb[0].mxu0
          %v1631 = vadd.f32 0.0, %v1630
          %v1632 = vpop.f32.mrb[0].mxu0
          %v1633 = vpop.f32.mrb[0].mxu0
          %v1634 = vadd.f32 0.0, %v1633
          %v1635 = vpop.f32.mrb[0].mxu0
          %1636 = vmatprep.mubr.bf16.mxu0 0
          %1637 = vmatmul.mubr.bf16.gmra.mrb[0].mxu0 %v1594
          %v1638 = vpop.f32.mrb[0].mxu0
          %v1639 = vadd.f32 0.0, %v1638
          %v1640 = vpop.f32.mrb[0].mxu0
          %v1641 = vpop.f32.mrb[0].mxu0
          %v1642 = vadd.f32 0.0, %v1641
          %v1643 = vpop.f32.mrb[0].mxu0
          %1644 = vdwg.mxu0
          %v1645 = vadd.f32 %v1353, %v1430
          %v1646 = vadd.f32 %v1354, %v1433
          %v1647 = vadd.f32 %v1355, %v1438
          %v1648 = vadd.f32 %v1356, %v1441
          %v1649 = vadd.f32 %v1357, %v1497
          %v1650 = vadd.f32 %v1358, %v1500
          %v1651 = vadd.f32 %v1359, %v1505
          %v1652 = vadd.f32 %v1360, %v1508
          %v1653 = vadd.f32 %v1361, %v1564
          %v1654 = vadd.f32 %v1362, %v1567
          %v1655 = vadd.f32 %v1363, %v1572
          %v1656 = vadd.f32 %v1364, %v1575
          %v1657 = vadd.f32 %v1365, %v1631
          %v1658 = vadd.f32 %v1366, %v1634
          %v1659 = vadd.f32 %v1367, %v1639
          %v1660 = vadd.f32 %v1368, %v1642
          %1661 = vst.msk [vmem:[#allocation4] sm:$0xff] %vm538, %v1645
          %1662 = vst.msk [vmem:[#allocation4 + $0x8] sm:$0xff] %vm538, %v1646
          %1663 = vst.msk [vmem:[#allocation4 + $0x10] sm:$0xff] %vm538, %v1647
          %1664 = vst.msk [vmem:[#allocation4 + $0x18] sm:$0xff] %vm538, %v1648
          %1665 = vst.msk [vmem:[#allocation4 + $0x20] sm:$0xff] %vm538, %v1649
          %1666 = vst.msk [vmem:[#allocation4 + $0x28] sm:$0xff] %vm538, %v1650
          %1667 = vst.msk [vmem:[#allocation4 + $0x30] sm:$0xff] %vm538, %v1651
          %1668 = vst.msk [vmem:[#allocation4 + $0x38] sm:$0xff] %vm538, %v1652
          %1669 = vst.msk [vmem:[#allocation4 + $0x40] sm:$0xff] %vm538, %v1653
          %1670 = vst.msk [vmem:[#allocation4 + $0x48] sm:$0xff] %vm538, %v1654
          %1671 = vst.msk [vmem:[#allocation4 + $0x50] sm:$0xff] %vm538, %v1655
          %1672 = vst.msk [vmem:[#allocation4 + $0x58] sm:$0xff] %vm538, %v1656
          %1673 = vst.msk [vmem:[#allocation4 + $0x60] sm:$0xff] %vm538, %v1657
          %1674 = vst.msk [vmem:[#allocation4 + $0x68] sm:$0xff] %vm538, %v1658
          %1675 = vst.msk [vmem:[#allocation4 + $0x70] sm:$0xff] %vm538, %v1659
          %1676 = vst.msk [vmem:[#allocation4 + $0x78] sm:$0xff] %vm538, %v1660
          %1677 = vst.msk [vmem:[#allocation2] sm:$0xff] %vm1240, %v952
          %1678 = vst.msk [vmem:[#allocation2 + $0x8] sm:$0xff] %vm1240, %v953
          %1679 = vst.msk [vmem:[#allocation2 + $0x10] sm:$0xff] %vm1240, %v954
          %1680 = vst.msk [vmem:[#allocation2 + $0x18] sm:$0xff] %vm1240, %v955
          %1681 = vst.msk [vmem:[#allocation2 + $0x20] sm:$0xff] %vm1240, %v956
          %1682 = vst.msk [vmem:[#allocation2 + $0x28] sm:$0xff] %vm1240, %v957
          %1683 = vst.msk [vmem:[#allocation2 + $0x30] sm:$0xff] %vm1240, %v958
          %1684 = vst.msk [vmem:[#allocation2 + $0x38] sm:$0xff] %vm1240, %v959
          %1685 = vst.msk [vmem:[#allocation2 + $0x40] sm:$0xff] %vm1240, %v960
          %1686 = vst.msk [vmem:[#allocation2 + $0x48] sm:$0xff] %vm1240, %v961
          %1687 = vst.msk [vmem:[#allocation2 + $0x50] sm:$0xff] %vm1240, %v962
          %1688 = vst.msk [vmem:[#allocation2 + $0x58] sm:$0xff] %vm1240, %v963
          %1689 = vst.msk [vmem:[#allocation2 + $0x60] sm:$0xff] %vm1240, %v964
          %1690 = vst.msk [vmem:[#allocation2 + $0x68] sm:$0xff] %vm1240, %v965
          %1691 = vst.msk [vmem:[#allocation2 + $0x70] sm:$0xff] %vm1240, %v966
          %1692 = vst.msk [vmem:[#allocation2 + $0x78] sm:$0xff] %vm1240, %v967
        $region52: #{gpt_forward.8} parent=31 // pred_fallthru
          _
        %p1693 = scmp.eq.s32.totalorder %s30, %s29
        // Predicated region
        $region53: #{gpt_forward.8} parent=31 // pred_check
          %p1694 = pneg %p1693
        $region54: #{gpt_forward.8} parent=31 // pred_check_branch
          %1696 = sbr.rel (%p1694) target = $region56
        $region55: #{gpt_forward.8} parent=31 // pred_region
          %v1697 = vld [vmem:[#allocation3] sm:$0xff]
          %v1698 = vld [vmem:[#allocation3 + $0x8] sm:$0xff]
          %v1699 = vld [vmem:[#allocation3 + $0x10] sm:$0xff]
          %v1700 = vld [vmem:[#allocation3 + $0x18] sm:$0xff]
          %v1701 = vld [vmem:[#allocation3 + $0x20] sm:$0xff]
          %v1702 = vld [vmem:[#allocation3 + $0x28] sm:$0xff]
          %v1703 = vld [vmem:[#allocation3 + $0x30] sm:$0xff]
          %v1704 = vld [vmem:[#allocation3 + $0x38] sm:$0xff]
          %v1705 = vld [vmem:[#allocation3 + $0x40] sm:$0xff]
          %v1706 = vld [vmem:[#allocation3 + $0x48] sm:$0xff]
          %v1707 = vld [vmem:[#allocation3 + $0x50] sm:$0xff]
          %v1708 = vld [vmem:[#allocation3 + $0x58] sm:$0xff]
          %v1709 = vld [vmem:[#allocation3 + $0x60] sm:$0xff]
          %v1710 = vld [vmem:[#allocation3 + $0x68] sm:$0xff]
          %v1711 = vld [vmem:[#allocation3 + $0x70] sm:$0xff]
          %v1712 = vld [vmem:[#allocation3 + $0x78] sm:$0xff]
          %v1713 = vrcp.pop %v1697
          %v1714 = vrcp.pop %v1698
          %v1715 = vrcp.pop %v1699
          %v1716 = vrcp.pop %v1700
          %v1717 = vrcp.pop %v1701
          %v1718 = vrcp.pop %v1702
          %v1719 = vrcp.pop %v1703
          %v1720 = vrcp.pop %v1704
          %v1721 = vrcp.pop %v1705
          %v1722 = vrcp.pop %v1706
          %v1723 = vrcp.pop %v1707
          %v1724 = vrcp.pop %v1708
          %v1725 = vrcp.pop %v1709
          %v1726 = vrcp.pop %v1710
          %v1727 = vrcp.pop %v1711
          %v1728 = vrcp.pop %v1712
          %v1729 = vld [vmem:[#allocation4] sm:$0xff]
          %v1730 = vld [vmem:[#allocation4 + $0x8] sm:$0xff]
          %v1731 = vld [vmem:[#allocation4 + $0x10] sm:$0xff]
          %v1732 = vld [vmem:[#allocation4 + $0x18] sm:$0xff]
          %v1733 = vld [vmem:[#allocation4 + $0x20] sm:$0xff]
          %v1734 = vld [vmem:[#allocation4 + $0x28] sm:$0xff]
          %v1735 = vld [vmem:[#allocation4 + $0x30] sm:$0xff]
          %v1736 = vld [vmem:[#allocation4 + $0x38] sm:$0xff]
          %v1737 = vld [vmem:[#allocation4 + $0x40] sm:$0xff]
          %v1738 = vld [vmem:[#allocation4 + $0x48] sm:$0xff]
          %v1739 = vld [vmem:[#allocation4 + $0x50] sm:$0xff]
          %v1740 = vld [vmem:[#allocation4 + $0x58] sm:$0xff]
          %v1741 = vld [vmem:[#allocation4 + $0x60] sm:$0xff]
          %v1742 = vld [vmem:[#allocation4 + $0x68] sm:$0xff]
          %v1743 = vld [vmem:[#allocation4 + $0x70] sm:$0xff]
          %v1744 = vld [vmem:[#allocation4 + $0x78] sm:$0xff]
          %1746 = vset.pattern.permute.xlu0 0
          %1747 = vperm.xlu0 %1746, %v1713
          %v1748 = vpop.permute.xlu0 %1747
          %1751 = vset.pattern.permute.xlu0 0
          %1752 = vperm.xlu0 %1751, %v1714
          %v1753 = vpop.permute.xlu0 %1752
          %1756 = vset.pattern.permute.xlu0 0
          %1757 = vperm.xlu0 %1756, %v1715
          %v1758 = vpop.permute.xlu0 %1757
          %1761 = vset.pattern.permute.xlu0 0
          %1762 = vperm.xlu0 %1761, %v1716
          %v1763 = vpop.permute.xlu0 %1762
          %1766 = vset.pattern.permute.xlu0 0
          %1767 = vperm.xlu0 %1766, %v1717
          %v1768 = vpop.permute.xlu0 %1767
          %1771 = vset.pattern.permute.xlu0 0
          %1772 = vperm.xlu0 %1771, %v1718
          %v1773 = vpop.permute.xlu0 %1772
          %1776 = vset.pattern.permute.xlu0 0
          %1777 = vperm.xlu0 %1776, %v1719
          %v1778 = vpop.permute.xlu0 %1777
          %1781 = vset.pattern.permute.xlu0 0
          %1782 = vperm.xlu0 %1781, %v1720
          %v1783 = vpop.permute.xlu0 %1782
          %1786 = vset.pattern.permute.xlu0 0
          %1787 = vperm.xlu0 %1786, %v1721
          %v1788 = vpop.permute.xlu0 %1787
          %1791 = vset.pattern.permute.xlu0 0
          %1792 = vperm.xlu0 %1791, %v1722
          %v1793 = vpop.permute.xlu0 %1792
          %1796 = vset.pattern.permute.xlu0 0
          %1797 = vperm.xlu0 %1796, %v1723
          %v1798 = vpop.permute.xlu0 %1797
          %1801 = vset.pattern.permute.xlu0 0
          %1802 = vperm.xlu0 %1801, %v1724
          %v1803 = vpop.permute.xlu0 %1802
          %1806 = vset.pattern.permute.xlu0 0
          %1807 = vperm.xlu0 %1806, %v1725
          %v1808 = vpop.permute.xlu0 %1807
          %1811 = vset.pattern.permute.xlu0 0
          %1812 = vperm.xlu0 %1811, %v1726
          %v1813 = vpop.permute.xlu0 %1812
          %1816 = vset.pattern.permute.xlu0 0
          %1817 = vperm.xlu0 %1816, %v1727
          %v1818 = vpop.permute.xlu0 %1817
          %1821 = vset.pattern.permute.xlu0 0
          %1822 = vperm.xlu0 %1821, %v1728
          %v1823 = vpop.permute.xlu0 %1822
          %v1825 = vmul.f32 %v1729, %v1748
          %v1826 = vmul.f32 %v1730, %v1753
          %v1827 = vmul.f32 %v1731, %v1758
          %v1828 = vmul.f32 %v1732, %v1763
          %v1829 = vmul.f32 %v1733, %v1768
          %v1830 = vmul.f32 %v1734, %v1773
          %v1831 = vmul.f32 %v1735, %v1778
          %v1832 = vmul.f32 %v1736, %v1783
          %v1833 = vmul.f32 %v1737, %v1788
          %v1834 = vmul.f32 %v1738, %v1793
          %v1835 = vmul.f32 %v1739, %v1798
          %v1836 = vmul.f32 %v1740, %v1803
          %v1837 = vmul.f32 %v1741, %v1808
          %v1838 = vmul.f32 %v1742, %v1813
          %v1839 = vmul.f32 %v1743, %v1818
          %v1840 = vmul.f32 %v1744, %v1823
          %v1841 = vpack.c.bf16 %v1826, %v1825
          %v1842 = vpack.c.bf16 %v1828, %v1827
          %v1843 = vpack.c.bf16 %v1830, %v1829
          %v1844 = vpack.c.bf16 %v1832, %v1831
          %v1845 = vpack.c.bf16 %v1834, %v1833
          %v1846 = vpack.c.bf16 %v1836, %v1835
          %v1847 = vpack.c.bf16 %v1838, %v1837
          %v1848 = vpack.c.bf16 %v1840, %v1839
          %v1857 = vunpack.c.l.b16 %v1841
          %v1858 = vunpack.c.h.b16 %v1841
          %v1859 = vunpack.c.l.b16 %v1842
          %v1860 = vunpack.c.h.b16 %v1842
          %v1861 = vunpack.c.l.b16 %v1843
          %v1862 = vunpack.c.h.b16 %v1843
          %v1863 = vunpack.c.l.b16 %v1844
          %v1864 = vunpack.c.h.b16 %v1844
          %v1865 = vunpack.c.l.b16 %v1845
          %v1866 = vunpack.c.h.b16 %v1845
          %v1867 = vunpack.c.l.b16 %v1846
          %v1868 = vunpack.c.h.b16 %v1846
          %v1869 = vunpack.c.l.b16 %v1847
          %v1870 = vunpack.c.h.b16 %v1847
          %v1871 = vunpack.c.l.b16 %v1848
          %v1872 = vunpack.c.h.b16 %v1848
          %v1873 = vpack.c.b16 %v1857, %v1857
          %v1874 = vpack.c.b16 %v1858, %v1858
          %v1875 = vpack.c.b16 %v1859, %v1859
          %v1876 = vpack.c.b16 %v1860, %v1860
          %v1877 = vpack.c.b16 %v1861, %v1861
          %v1878 = vpack.c.b16 %v1862, %v1862
          %v1879 = vpack.c.b16 %v1863, %v1863
          %v1880 = vpack.c.b16 %v1864, %v1864
          %v1881 = vpack.c.b16 %v1865, %v1865
          %v1882 = vpack.c.b16 %v1866, %v1866
          %v1883 = vpack.c.b16 %v1867, %v1867
          %v1884 = vpack.c.b16 %v1868, %v1868
          %v1885 = vpack.c.b16 %v1869, %v1869
          %v1886 = vpack.c.b16 %v1870, %v1870
          %v1887 = vpack.c.b16 %v1871, %v1871
          %v1888 = vpack.c.b16 %v1872, %v1872
          %vm1905 = vcmask 519168
          %1906 = vst.msk [vmem:[%s385] sm:$0xf] %vm1905, %v1873
          %1907 = vst.msk [vmem:[%s385 + $0x4] sm:$0xf] %vm1905, %v1874
          %1908 = vst.msk [vmem:[%s385 + $0x8] sm:$0xf] %vm1905, %v1875
          %1909 = vst.msk [vmem:[%s385 + $0xc] sm:$0xf] %vm1905, %v1876
          %1910 = vst.msk [vmem:[%s385 + $0x10] sm:$0xf] %vm1905, %v1877
          %1911 = vst.msk [vmem:[%s385 + $0x14] sm:$0xf] %vm1905, %v1878
          %1912 = vst.msk [vmem:[%s385 + $0x18] sm:$0xf] %vm1905, %v1879
          %1913 = vst.msk [vmem:[%s385 + $0x1c] sm:$0xf] %vm1905, %v1880
          %1914 = vst.msk [vmem:[%s385 + $0x20] sm:$0xf] %vm1905, %v1881
          %1915 = vst.msk [vmem:[%s385 + $0x24] sm:$0xf] %vm1905, %v1882
          %1916 = vst.msk [vmem:[%s385 + $0x28] sm:$0xf] %vm1905, %v1883
          %1917 = vst.msk [vmem:[%s385 + $0x2c] sm:$0xf] %vm1905, %v1884
          %1918 = vst.msk [vmem:[%s385 + $0x30] sm:$0xf] %vm1905, %v1885
          %1919 = vst.msk [vmem:[%s385 + $0x34] sm:$0xf] %vm1905, %v1886
          %1920 = vst.msk [vmem:[%s385 + $0x38] sm:$0xf] %vm1905, %v1887
          %1921 = vst.msk [vmem:[%s385 + $0x3c] sm:$0xf] %vm1905, %v1888
        $region56: #{gpt_forward.8} parent=31 // pred_fallthru
          _
        %s1922 = sand.u32 %s144, 1
        %s1923 = scalar_lea.sflag [#allocation7], %s1922
        %s1924 = sand.u32 %s144, 1
        %s1925 = smul.addr %s1924, 64
        %s1926 = scalar_lea.vmem [#allocation11], %s1925
        // Predicated region
        $region57: #{gpt_forward.8} parent=31 // pred_check
          %p1927 = pneg %p154
        $region58: #{gpt_forward.8} parent=31 // pred_check_branch
          %1929 = sbr.rel (%p1927) target = $region60
        $region59: #{gpt_forward.8} parent=31 // pred_region
          #allocation19 [shape = 'u32[6]{0}', space=smem, size = 0x18, scoped, tag = 'DMA stride descriptor']
          %s1930 = smul.u32 4, %s29
          %s1932 = ssub.s32 1024, 1024
          %1933 = vsyncadd %s1923, %s1932
          %s1934 = smul.addr %s28, 32
          %s1935 = sadd.s32 %s1930, %s1934
          %s1936 = smul.addr %s1935, 64
          %s1937 = scalar_lea.hbm %s3, %s1936
          %s1939 = sshll.u32 1, 14
          %s1940 = sxor.u32 4294967295, %s1939
          %s1943 = sshll.u32 7, 18
          %s1944 = sxor.u32 4294967295, %s1943
          %s1945 = sand.u32 0, %s1944
          %s1947 = sor.u32 %s1945, 0
          %s1949 = sshll.u32 3, 24
          %s1950 = sxor.u32 4294967295, %s1949
          %s1951 = sand.u32 %s1947, %s1950
          %s1953 = sor.u32 %s1951, 0
          %s1954 = sshll.u32 %s1926, 4
          %s1955 = int_to_ptr.vmem [resolvable:$true] %s1954
          %1961 = sst [smem:[#allocation19]] 256
          %s1962 = scalar_lea.smem [#allocation19], 1
          %1963 = sst [smem:[%s1962]] 512
          %s1964 = scalar_lea.smem [#allocation19], 2
          %1965 = sst [smem:[%s1964]] 4
          %s1966 = scalar_lea.smem [#allocation19], 3
          %1967 = sst [smem:[%s1966]] 64
          %s1968 = scalar_lea.smem [#allocation19], 4
          %1969 = sst [smem:[%s1968]] 64
          %s1970 = scalar_lea.smem [#allocation19], 5
          %1971 = sst [smem:[%s1970]] 4
          %1973 = dma.general %s1955, 1024, %s1937, %s1923, [#allocation18], [#allocation19], %s1953, 0
        $region60: #{gpt_forward.8} parent=31 // pred_fallthru
          _
      $region32: #{gpt_forward.8} parent=5 // pred_fallthru
        _
      %p1974 = scmp.le.s32.totalorder 2, %s18
      // Predicated region
      $region61: #{gpt_forward.8} parent=5 // pred_check
        %p1975 = pneg %p1974
      $region62: #{gpt_forward.8} parent=5 // pred_check_branch
        %1977 = sbr.rel (%p1975) target = $region64
      $region63: #{gpt_forward.8} parent=5 // pred_region
        %s1978 = ssub.s32 %s18, 2
        // Predicated region
        $region65: #{gpt_forward.8} parent=63 // pred_check
          %p1979 = pneg %p160
        $region66: #{gpt_forward.8} parent=63 // pred_check_branch
          %1981 = sbr.rel (%p1979) target = $region68
        $region67: #{gpt_forward.8} parent=63 // pred_region
          %s1982 = sand.u32 %s145, 1
          %s1983 = scalar_lea.sflag [#allocation7], %s1982
          %s1984 = sand.u32 %s145, 1
          %s1985 = smul.addr %s1984, 64
          %s1986 = scalar_lea.vmem [#allocation11], %s1985
          %1987 = dma.done %s1983, 1024
        $region68: #{gpt_forward.8} parent=63 // pred_fallthru
          _
      $region64: #{gpt_forward.8} parent=5 // pred_fallthru
        _
    $region6: #{gpt_forward.8} parent=1 // loop_footer
      %s22 = sadd.s32 1, %s18
    $region7: #{gpt_forward.8} parent=1 // loop_footer_branch
      %17 = sbr.rel target = $region3
    $region8: #{gpt_forward.8} parent=1 // loop_exit
      _
    %1988 = vsyncpa [#allocation6], 1
    %s1989 = scalar_lea.sflag [#allocation6], 1
    %1990 = vsyncpa %s1989, 1
    %1991 = vsyncpa [#allocation9], 1
    %s1992 = scalar_lea.sflag [#allocation9], 1
    %1993 = vsyncpa %s1992, 1
    %1994 = vsyncpa [#allocation7], 1
    %s1995 = scalar_lea.sflag [#allocation7], 1
    %1996 = vsyncpa %s1995, 1

// kernel: gpt_forward.13
$region0: #{gpt_forward.13}
  #allocation0 [shape = 'u32[]', space=smem, size = 0x4, offset = 0x4, fixed_abs, tag = 'smem constant byte address 0x4 - core index']
  #allocation1 [shape = 'u32[144,128]{1,0:T(1,128)}', space=vmem, size = 0x12000, scoped, tag = 'internal scratch']
  #allocation2 [shape = 'bf16[128,256]{1,0:T(16,128)(2,1)}', space=vmem, size = 0x10000, scoped, tag = 'scratch operand']
  %s0 = inlined_call_operand.hbm [shape: f32[128,256], index: 0, kind: input, shape index: {}]
  %s1 = inlined_call_operand.hbm [shape: f32[1,256], index: 1, kind: input, shape index: {}]
  %s2 = inlined_call_operand.hbm [shape: f32[1,256], index: 2, kind: input, shape index: {}]
  %s3 = inlined_call_operand.hbm [shape: bf16[256,512], index: 3, kind: input, shape index: {}]
  %s4 = inlined_call_operand.hbm [shape: f32[128,512], index: 4, kind: output, shape index: {}]
  %s5 = sld [smem:[#allocation0]]
  $region69: #{gpt_forward.13} parent=0
    _
  %s7 = ssub.s32 1, %s5
  %s8 = scalar_select 0, %s7, %s5
  $region1: #{gpt_forward.13} parent=0
    #allocation3 [shape = 'u8[131072]{0}', space=vmem, size = 0x20000, scoped, tag = 'input window, operand 0, single buffered']
    #allocation4 [shape = 's32[2]{0}', space=sflag, size = 0x8, scoped, tag = 'scoped memory for gpt_forward.13']
    #allocation5 [shape = 's32[2]{0}', space=sflag, size = 0x8, scoped, tag = 'scoped memory for gpt_forward.13']
    #allocation6 [shape = 'u8[1024]{0}', space=vmem, size = 0x400, scoped, tag = 'input window, operand 1, single buffered']
    #allocation7 [shape = 's32[1]{0}', space=sflag, size = 0x4, scoped, tag = 'scoped memory for gpt_forward.13']
    #allocation8 [shape = 'u8[1024]{0}', space=vmem, size = 0x400, scoped, tag = 'input window, operand 2, single buffered']
    #allocation9 [shape = 'u8[262144]{0}', space=vmem, size = 0x40000, scoped, tag = 'input window, operand 3']
    #allocation10 [shape = 's32[2]{0}', space=sflag, size = 0x8, scoped, tag = 'scoped memory for gpt_forward.13']
    #allocation11 [shape = 'u8[262144]{0}', space=vmem, size = 0x40000, scoped, tag = 'output window, operand 0']
    %9 = vsyncpa [#allocation4], 0
    %10 = vsyncpa [#allocation7], 0
    %11 = vsyncpa [#allocation10], 0
    %s12 = scalar_lea.sflag [#allocation10], 1
    %13 = vsyncpa %s12, 0
    %14 = vsyncpa [#allocation5], 0
    %s15 = scalar_lea.sflag [#allocation5], 1
    %16 = vsyncpa %s15, 0
    loop: start=0, step=1, limit=4
    $region2: #{gpt_forward.13} parent=1 // loop_pre_header
      _
    $region3: #{gpt_forward.13} parent=1 // loop_header
      %s18 = sphi 0, %s22
      %p19 = scmp.ge.s32.totalorder %s18, 4
      %s25 = sphi 0, %s37
      %s26 = sphi 0, %s33
      %s27 = sphi 0, %s25
      %s28 = sphi 0, %s26
      %s29 = sphi 0, %s27
      %s30 = sphi 0, %s28
      %s40 = sphi 0, %s42
      %s43 = sphi 0, %s40
      %s44 = sphi 0, %s43
      %s60 = sphi 0, %s44
      %s64 = sphi 0, %s64
      %s66 = sphi 0, %s64
      %s67 = sphi 0, %s66
      %s81 = sphi 0, %s67
      %s85 = sphi 0, %s85
      %s87 = sphi 0, %s85
      %s88 = sphi 0, %s87
      %s102 = sphi 0, %s88
      %s108 = sphi 0, %s110
      %s111 = sphi 0, %s108
      %s112 = sphi 0, %s111
      %s128 = sphi 0, %s112
      %s136 = sphi 0, %s138
      %s139 = sphi 0, %s136
      %s140 = sphi 0, %s139
      %s156 = sphi 0, %s140
    $region4: #{gpt_forward.13} parent=1 // loop_header_branch
      %21 = sbr.rel (%p19) target = $region8
    $region5: #{gpt_forward.13} parent=1 // loop_body
      %s23 = ssub.s32 %s18, 1
      %s24 = ssub.s32 %s18, 2
      %s31 = sadd.s32 1, %s26
      %p32 = scmp.ge.s32.totalorder %s31, 2
      %s33 = scalar_select %p32, 0, %s31
      %s34 = sadd.s32 1, %s25
      %s35 = scalar_select %p32, %s34, %s25
      %p36 = scmp.ge.s32.totalorder %s35, 1
      %s37 = scalar_select %p36, 0, %s35
      %s38 = ssub.s32 %s25, %s37
      %p39 = scmp.eq.s32.totalorder %s38, 0
      %s41 = sadd.s32 %s40, 1
      %s42 = scalar_select %p39, %s40, %s41
      %p45 = pneg %p39
      %p46 = scmp.eq.s32.totalorder %s18, 1
      %p47 = por %p45, %p46
      %p48 = scmp.ne.s32.totalorder %s40, %s43
      %p49 = scmp.eq.s32.totalorder %s18, 0
      %p50 = por %p48, %p49
      %p51 = scmp.ne.s32.totalorder %s40, %s43
      %p52 = scmp.eq.s32.totalorder %s23, 1
      %p53 = por %p51, %p52
      %p54 = scmp.ne.s32.totalorder %s43, %s44
      %p55 = scmp.eq.s32.totalorder %s23, 0
      %p56 = por %p54, %p55
      %p57 = scmp.ne.s32.totalorder %s43, %s44
      %p58 = scmp.eq.s32.totalorder %s24, 1
      %p59 = por %p57, %p58
      %p61 = scmp.ne.s32.totalorder %s44, %s60
      %p62 = scmp.eq.s32.totalorder %s24, 0
      %p63 = por %p61, %p62
      %s65 = sadd.s32 %s64, 1
      %p68 = scmp.eq.s32.totalorder %s18, 1
      %p69 = scmp.ne.s32.totalorder %s64, %s66
      %p70 = scmp.eq.s32.totalorder %s18, 0
      %p71 = por %p69, %p70
      %p72 = scmp.ne.s32.totalorder %s64, %s66
      %p73 = scmp.eq.s32.totalorder %s23, 1
      %p74 = por %p72, %p73
      %p75 = scmp.ne.s32.totalorder %s66, %s67
      %p76 = scmp.eq.s32.totalorder %s23, 0
      %p77 = por %p75, %p76
      %p78 = scmp.ne.s32.totalorder %s66, %s67
      %p79 = scmp.eq.s32.totalorder %s24, 1
      %p80 = por %p78, %p79
      %p82 = scmp.ne.s32.totalorder %s67, %s81
      %p83 = scmp.eq.s32.totalorder %s24, 0
      %p84 = por %p82, %p83
      %s86 = sadd.s32 %s85, 1
      %p89 = scmp.eq.s32.totalorder %s18, 1
      %p90 = scmp.ne.s32.totalorder %s85, %s87
      %p91 = scmp.eq.s32.totalorder %s18, 0
      %p92 = por %p90, %p91
      %p93 = scmp.ne.s32.totalorder %s85, %s87
      %p94 = scmp.eq.s32.totalorder %s23, 1
      %p95 = por %p93, %p94
      %p96 = scmp.ne.s32.totalorder %s87, %s88
      %p97 = scmp.eq.s32.totalorder %s23, 0
      %p98 = por %p96, %p97
      %p99 = scmp.ne.s32.totalorder %s87, %s88
      %p100 = scmp.eq.s32.totalorder %s24, 1
      %p101 = por %p99, %p100
      %p103 = scmp.ne.s32.totalorder %s88, %s102
      %p104 = scmp.eq.s32.totalorder %s24, 0
      %p105 = por %p103, %p104
      %s106 = ssub.s32 %s26, %s33
      %p107 = scmp.eq.s32.totalorder %s106, 0
      %s109 = sadd.s32 %s108, 1
      %s110 = scalar_select %p107, %s108, %s109
      %p113 = pneg %p107
      %p114 = scmp.eq.s32.totalorder %s18, 1
      %p115 = por %p113, %p114
      %p116 = scmp.ne.s32.totalorder %s108, %s111
      %p117 = scmp.eq.s32.totalorder %s18, 0
      %p118 = por %p116, %p117
      %p119 = scmp.ne.s32.totalorder %s108, %s111
      %p120 = scmp.eq.s32.totalorder %s23, 1
      %p121 = por %p119, %p120
      %p122 = scmp.ne.s32.totalorder %s111, %s112
      %p123 = scmp.eq.s32.totalorder %s23, 0
      %p124 = por %p122, %p123
      %p125 = scmp.ne.s32.totalorder %s111, %s112
      %p126 = scmp.eq.s32.totalorder %s24, 1
      %p127 = por %p125, %p126
      %p129 = scmp.ne.s32.totalorder %s112, %s128
      %p130 = scmp.eq.s32.totalorder %s24, 0
      %p131 = por %p129, %p130
      %s132 = ssub.s32 %s25, %s37
      %s133 = ssub.s32 %s26, %s33
      %s134 = sor.u32 %s132, %s133
      %p135 = scmp.eq.s32.totalorder %s134, 0
      %s137 = sadd.s32 %s136, 1
      %s138 = scalar_select %p135, %s136, %s137
      %p141 = pneg %p135
      %p142 = scmp.eq.s32.totalorder %s18, 1
      %p143 = por %p141, %p142
      %p144 = scmp.ne.s32.totalorder %s136, %s139
      %p145 = scmp.eq.s32.totalorder %s18, 0
      %p146 = por %p144, %p145
      %p147 = scmp.ne.s32.totalorder %s136, %s139
      %p148 = scmp.eq.s32.totalorder %s23, 1
      %p149 = por %p147, %p148
      %p150 = scmp.ne.s32.totalorder %s139, %s140
      %p151 = scmp.eq.s32.totalorder %s23, 0
      %p152 = por %p150, %p151
      %p153 = scmp.ne.s32.totalorder %s139, %s140
      %p154 = scmp.eq.s32.totalorder %s24, 1
      %p155 = por %p153, %p154
      %p157 = scmp.ne.s32.totalorder %s140, %s156
      %p158 = scmp.eq.s32.totalorder %s24, 0
      %p159 = por %p157, %p158
      %p160 = scmp.le.s32.totalorder 1, %s18
      %p161 = scmp.lt.s32.totalorder %s18, 3
      %p162 = pnand %p160, %p161
      %p163 = pneg %p162
      // Predicated region
      $region9: #{gpt_forward.13} parent=5 // pred_check
        _
      $region10: #{gpt_forward.13} parent=5 // pred_check_branch
        %165 = sbr.rel (%p162) target = $region12
      $region11: #{gpt_forward.13} parent=5 // pred_region
        %s166 = ssub.s32 %s18, 1
        // Predicated region
        $region13: #{gpt_forward.13} parent=11 // pred_check
          %p167 = pneg %p56
        $region14: #{gpt_forward.13} parent=11 // pred_check_branch
          %169 = sbr.rel (%p167) target = $region16
        $region15: #{gpt_forward.13} parent=11 // pred_region
          %s170 = smul.u32 16, %s27
          %s172 = ssub.s32 4096, 4096
          %173 = vsyncadd [#allocation4], %s172
          %s174 = smul.addr %s170, 2
          %s175 = smul.addr %s174, 128
          %s176 = scalar_lea.hbm %s0, %s175
          %s177 = sshll.u32 [#allocation3], 4
          %s178 = int_to_ptr.vmem [resolvable:$true] %s177
          %183 = dma.hbm_to_vmem [thread:$0]  %s176, 4096, %s178, [#allocation4], 256, 256, 16
        $region16: #{gpt_forward.13} parent=11 // pred_fallthru
          _
        // Predicated region
        $region17: #{gpt_forward.13} parent=11 // pred_check
          %p184 = pneg %p77
        $region18: #{gpt_forward.13} parent=11 // pred_check_branch
          %186 = sbr.rel (%p184) target = $region20
        $region19: #{gpt_forward.13} parent=11 // pred_region
          %s188 = ssub.s32 32, 32
          %189 = vsyncadd [#allocation7], %s188
          %s191 = sshll.u32 [#allocation6], 4
          %s192 = int_to_ptr.vmem [resolvable:$true] %s191
          %194 = dma.hbm_to_vmem [thread:$0]  %s1, 32, %s192, [#allocation7]
        $region20: #{gpt_forward.13} parent=11 // pred_fallthru
          _
        // Predicated region
        $region21: #{gpt_forward.13} parent=11 // pred_check
          %p195 = pneg %p98
        $region22: #{gpt_forward.13} parent=11 // pred_check_branch
          %197 = sbr.rel (%p195) target = $region24
        $region23: #{gpt_forward.13} parent=11 // pred_region
          %s199 = ssub.s32 32, 32
          %200 = vsyncadd [#allocation7], %s199
          %s202 = sshll.u32 [#allocation8], 4
          %s203 = int_to_ptr.vmem [resolvable:$true] %s202
          %205 = dma.hbm_to_vmem [thread:$0]  %s2, 32, %s203, [#allocation7]
        $region24: #{gpt_forward.13} parent=11 // pred_fallthru
          _
      $region12: #{gpt_forward.13} parent=5 // pred_fallthru
        _
      %p206 = scmp.lt.s32.totalorder %s18, 2
      // Predicated region
      $region25: #{gpt_forward.13} parent=5 // pred_check
        %p207 = pneg %p206
      $region26: #{gpt_forward.13} parent=5 // pred_check_branch
        %209 = sbr.rel (%p207) target = $region28
      $region27: #{gpt_forward.13} parent=5 // pred_region
        // Predicated region
        $region29: #{gpt_forward.13} parent=27 // pred_check
          %p210 = pneg %p118
        $region30: #{gpt_forward.13} parent=27 // pred_check_branch
          %212 = sbr.rel (%p210) target = $region32
        $region31: #{gpt_forward.13} parent=27 // pred_region
          %s213 = sand.u32 %s108, 1
          %s214 = scalar_lea.sflag [#allocation10], %s213
          %s215 = sand.u32 %s108, 1
          %s216 = smul.addr %s215, 256
          %s217 = scalar_lea.vmem [#allocation9], %s216
          %s218 = smul.u32 2, %s26
          %s220 = ssub.s32 4096, 4096
          %221 = vsyncadd %s214, %s220
          %s222 = smul.addr %s218, 64
          %s223 = scalar_lea.hbm %s3, %s222
          %s224 = sshll.u32 %s217, 4
          %s225 = int_to_ptr.vmem [resolvable:$true] %s224
          %230 = dma.hbm_to_vmem [thread:$0]  %s223, 4096, %s225, %s214, 256, 128, 8
        $region32: #{gpt_forward.13} parent=27 // pred_fallthru
          _
      $region28: #{gpt_forward.13} parent=5 // pred_fallthru
        _
      %p231 = scmp.le.s32.totalorder 1, %s18
      %p232 = scmp.lt.s32.totalorder %s18, 3
      %p233 = pnand %p231, %p232
      %p234 = pneg %p233
      // Predicated region
      $region33: #{gpt_forward.13} parent=5 // pred_check
        _
      $region34: #{gpt_forward.13} parent=5 // pred_check_branch
        %236 = sbr.rel (%p233) target = $region36
      $region35: #{gpt_forward.13} parent=5 // pred_region
        %s237 = ssub.s32 %s18, 1
        // Predicated region
        $region37: #{gpt_forward.13} parent=35 // pred_check
          %p238 = pneg %p56
        $region38: #{gpt_forward.13} parent=35 // pred_check_branch
          %240 = sbr.rel (%p238) target = $region40
        $region39: #{gpt_forward.13} parent=35 // pred_region
          %241 = dma.done [#allocation4], 4096
        $region40: #{gpt_forward.13} parent=35 // pred_fallthru
          _
        // Predicated region
        $region41: #{gpt_forward.13} parent=35 // pred_check
          %p242 = pneg %p77
        $region42: #{gpt_forward.13} parent=35 // pred_check_branch
          %244 = sbr.rel (%p242) target = $region44
        $region43: #{gpt_forward.13} parent=35 // pred_region
          %245 = dma.done [#allocation7], 32
        $region44: #{gpt_forward.13} parent=35 // pred_fallthru
          _
        // Predicated region
        $region45: #{gpt_forward.13} parent=35 // pred_check
          %p246 = pneg %p98
        $region46: #{gpt_forward.13} parent=35 // pred_check_branch
          %248 = sbr.rel (%p246) target = $region48
        $region47: #{gpt_forward.13} parent=35 // pred_region
          %249 = dma.done [#allocation7], 32
        $region48: #{gpt_forward.13} parent=35 // pred_fallthru
          _
        %s250 = sand.u32 %s111, 1
        %s251 = scalar_lea.sflag [#allocation10], %s250
        %s252 = sand.u32 %s111, 1
        %s253 = smul.addr %s252, 256
        %s254 = scalar_lea.vmem [#allocation9], %s253
        // Predicated region
        $region49: #{gpt_forward.13} parent=35 // pred_check
          %p255 = pneg %p124
        $region50: #{gpt_forward.13} parent=35 // pred_check_branch
          %257 = sbr.rel (%p255) target = $region52
        $region51: #{gpt_forward.13} parent=35 // pred_region
          %258 = dma.done %s251, 4096
        $region52: #{gpt_forward.13} parent=35 // pred_fallthru
          _
        %p259 = pneg %p56
        %p260 = pneg %p53
        %p261 = pneg %p77
        %p262 = pneg %p74
        %p263 = pneg %p98
        %p264 = pneg %p95
        %s265 = sand.u32 %s111, 1
        %s266 = scalar_lea.sflag [#allocation10], %s265
        %s267 = sand.u32 %s111, 1
        %s268 = smul.addr %s267, 256
        %s269 = scalar_lea.vmem [#allocation9], %s268
        %p270 = pneg %p124
        %p271 = pneg %p121
        %p272 = pneg %p152
        %p273 = pneg %p149
        %s274 = sand.u32 %s139, 1
        %s275 = scalar_lea.sflag [#allocation5], %s274
        %s276 = sand.u32 %s139, 1
        %s277 = smul.addr %s276, 256
        %s278 = scalar_lea.vmem [#allocation11], %s277
        %s279 = smul.u32 16, %s27
        %s280 = smul.u32 2, %s28
        %s281 = smul.u32 16, %s27
        %s282 = smul.u32 2, %s28
        %p283 = scmp.eq.s32.totalorder %s28, 0
        // Predicated region
        $region53: #{gpt_forward.13} parent=35 // pred_check
          %p284 = pneg %p283
        $region54: #{gpt_forward.13} parent=35 // pred_check_branch
          %286 = sbr.rel (%p284) target = $region56
        $region55: #{gpt_forward.13} parent=35 // pred_region
          %v287 = vld [vmem:[#allocation3] sm:$0xff]
          %v288 = vld [vmem:[#allocation3 + $0x8] sm:$0xff]
          %v289 = vld [vmem:[#allocation3 + $0x10] sm:$0xff]
          %v290 = vld [vmem:[#allocation3 + $0x18] sm:$0xff]
          %v291 = vld [vmem:[#allocation3 + $0x20] sm:$0xff]
          %v292 = vld [vmem:[#allocation3 + $0x28] sm:$0xff]
          %v293 = vld [vmem:[#allocation3 + $0x30] sm:$0xff]
          %v294 = vld [vmem:[#allocation3 + $0x38] sm:$0xff]
          %v295 = vld [vmem:[#allocation3 + $0x40] sm:$0xff]
          %v296 = vld [vmem:[#allocation3 + $0x48] sm:$0xff]
          %v297 = vld [vmem:[#allocation3 + $0x50] sm:$0xff]
          %v298 = vld [vmem:[#allocation3 + $0x58] sm:$0xff]
          %v299 = vld [vmem:[#allocation3 + $0x60] sm:$0xff]
          %v300 = vld [vmem:[#allocation3 + $0x68] sm:$0xff]
          %v301 = vld [vmem:[#allocation3 + $0x70] sm:$0xff]
          %v302 = vld [vmem:[#allocation3 + $0x78] sm:$0xff]
          %v303 = vld [vmem:[#allocation3 + $0x80] sm:$0xff]
          %v304 = vld [vmem:[#allocation3 + $0x88] sm:$0xff]
          %v305 = vld [vmem:[#allocation3 + $0x90] sm:$0xff]
          %v306 = vld [vmem:[#allocation3 + $0x98] sm:$0xff]
          %v307 = vld [vmem:[#allocation3 + $0xa0] sm:$0xff]
          %v308 = vld [vmem:[#allocation3 + $0xa8] sm:$0xff]
          %v309 = vld [vmem:[#allocation3 + $0xb0] sm:$0xff]
          %v310 = vld [vmem:[#allocation3 + $0xb8] sm:$0xff]
          %v311 = vld [vmem:[#allocation3 + $0xc0] sm:$0xff]
          %v312 = vld [vmem:[#allocation3 + $0xc8] sm:$0xff]
          %v313 = vld [vmem:[#allocation3 + $0xd0] sm:$0xff]
          %v314 = vld [vmem:[#allocation3 + $0xd8] sm:$0xff]
          %v315 = vld [vmem:[#allocation3 + $0xe0] sm:$0xff]
          %v316 = vld [vmem:[#allocation3 + $0xe8] sm:$0xff]
          %v317 = vld [vmem:[#allocation3 + $0xf0] sm:$0xff]
          %v318 = vld [vmem:[#allocation3 + $0xf8] sm:$0xff]
          %v319 = vld [vmem:[#allocation6] sm:$0x3]
          %v320 = vld [vmem:[#allocation8] sm:$0x3]
          %v321 = vadd.f32 %v287, %v288
          %322 = vadd.xlane.f32.xlu0 %v321
          %v323 = vpop.xlane.xlu0 %322
          %v324 = vadd.f32 %v289, %v290
          %325 = vadd.xlane.f32.xlu0 %v324
          %v326 = vpop.xlane.xlu0 %325
          %v327 = vadd.f32 %v291, %v292
          %328 = vadd.xlane.f32.xlu0 %v327
          %v329 = vpop.xlane.xlu0 %328
          %v330 = vadd.f32 %v293, %v294
          %331 = vadd.xlane.f32.xlu0 %v330
          %v332 = vpop.xlane.xlu0 %331
          %v333 = vadd.f32 %v295, %v296
          %334 = vadd.xlane.f32.xlu0 %v333
          %v335 = vpop.xlane.xlu0 %334
          %v336 = vadd.f32 %v297, %v298
          %337 = vadd.xlane.f32.xlu0 %v336
          %v338 = vpop.xlane.xlu0 %337
          %v339 = vadd.f32 %v299, %v300
          %340 = vadd.xlane.f32.xlu0 %v339
          %v341 = vpop.xlane.xlu0 %340
          %v342 = vadd.f32 %v301, %v302
          %343 = vadd.xlane.f32.xlu0 %v342
          %v344 = vpop.xlane.xlu0 %343
          %v345 = vadd.f32 %v303, %v304
          %346 = vadd.xlane.f32.xlu0 %v345
          %v347 = vpop.xlane.xlu0 %346
          %v348 = vadd.f32 %v305, %v306
          %349 = vadd.xlane.f32.xlu0 %v348
          %v350 = vpop.xlane.xlu0 %349
          %v351 = vadd.f32 %v307, %v308
          %352 = vadd.xlane.f32.xlu0 %v351
          %v353 = vpop.xlane.xlu0 %352
          %v354 = vadd.f32 %v309, %v310
          %355 = vadd.xlane.f32.xlu0 %v354
          %v356 = vpop.xlane.xlu0 %355
          %v357 = vadd.f32 %v311, %v312
          %358 = vadd.xlane.f32.xlu0 %v357
          %v359 = vpop.xlane.xlu0 %358
          %v360 = vadd.f32 %v313, %v314
          %361 = vadd.xlane.f32.xlu0 %v360
          %v362 = vpop.xlane.xlu0 %361
          %v363 = vadd.f32 %v315, %v316
          %364 = vadd.xlane.f32.xlu0 %v363
          %v365 = vpop.xlane.xlu0 %364
          %v366 = vadd.f32 %v317, %v318
          %367 = vadd.xlane.f32.xlu0 %v366
          %v368 = vpop.xlane.xlu0 %367
          %v369 = vrcp.pop 256.0
          %v370 = vmul.f32 %v323, %v369
          %v371 = vmul.f32 %v326, %v369
          %v372 = vmul.f32 %v329, %v369
          %v373 = vmul.f32 %v332, %v369
          %v374 = vmul.f32 %v335, %v369
          %v375 = vmul.f32 %v338, %v369
          %v376 = vmul.f32 %v341, %v369
          %v377 = vmul.f32 %v344, %v369
          %v378 = vmul.f32 %v347, %v369
          %v379 = vmul.f32 %v350, %v369
          %v380 = vmul.f32 %v353, %v369
          %v381 = vmul.f32 %v356, %v369
          %v382 = vmul.f32 %v359, %v369
          %v383 = vmul.f32 %v362, %v369
          %v384 = vmul.f32 %v365, %v369
          %v385 = vmul.f32 %v368, %v369
          %v386 = vsub.f32 %v287, %v370
          %v387 = vsub.f32 %v288, %v370
          %v388 = vsub.f32 %v289, %v371
          %v389 = vsub.f32 %v290, %v371
          %v390 = vsub.f32 %v291, %v372
          %v391 = vsub.f32 %v292, %v372
          %v392 = vsub.f32 %v293, %v373
          %v393 = vsub.f32 %v294, %v373
          %v394 = vsub.f32 %v295, %v374
          %v395 = vsub.f32 %v296, %v374
          %v396 = vsub.f32 %v297, %v375
          %v397 = vsub.f32 %v298, %v375
          %v398 = vsub.f32 %v299, %v376
          %v399 = vsub.f32 %v300, %v376
          %v400 = vsub.f32 %v301, %v377
          %v401 = vsub.f32 %v302, %v377
          %v402 = vsub.f32 %v303, %v378
          %v403 = vsub.f32 %v304, %v378
          %v404 = vsub.f32 %v305, %v379
          %v405 = vsub.f32 %v306, %v379
          %v406 = vsub.f32 %v307, %v380
          %v407 = vsub.f32 %v308, %v380
          %v408 = vsub.f32 %v309, %v381
          %v409 = vsub.f32 %v310, %v381
          %v410 = vsub.f32 %v311, %v382
          %v411 = vsub.f32 %v312, %v382
          %v412 = vsub.f32 %v313, %v383
          %v413 = vsub.f32 %v314, %v383
          %v414 = vsub.f32 %v315, %v384
          %v415 = vsub.f32 %v316, %v384
          %v416 = vsub.f32 %v317, %v385
          %v417 = vsub.f32 %v318, %v385
          %v418 = vmul.f32 %v386, %v386
          %v419 = vmul.f32 %v387, %v387
          %v420 = vmul.f32 %v388, %v388
          %v421 = vmul.f32 %v389, %v389
          %v422 = vmul.f32 %v390, %v390
          %v423 = vmul.f32 %v391, %v391
          %v424 = vmul.f32 %v392, %v392
          %v425 = vmul.f32 %v393, %v393
          %v426 = vmul.f32 %v394, %v394
          %v427 = vmul.f32 %v395, %v395
          %v428 = vmul.f32 %v396, %v396
          %v429 = vmul.f32 %v397, %v397
          %v430 = vmul.f32 %v398, %v398
          %v431 = vmul.f32 %v399, %v399
          %v432 = vmul.f32 %v400, %v400
          %v433 = vmul.f32 %v401, %v401
          %v434 = vmul.f32 %v402, %v402
          %v435 = vmul.f32 %v403, %v403
          %v436 = vmul.f32 %v404, %v404
          %v437 = vmul.f32 %v405, %v405
          %v438 = vmul.f32 %v406, %v406
          %v439 = vmul.f32 %v407, %v407
          %v440 = vmul.f32 %v408, %v408
          %v441 = vmul.f32 %v409, %v409
          %v442 = vmul.f32 %v410, %v410
          %v443 = vmul.f32 %v411, %v411
          %v444 = vmul.f32 %v412, %v412
          %v445 = vmul.f32 %v413, %v413
          %v446 = vmul.f32 %v414, %v414
          %v447 = vmul.f32 %v415, %v415
          %v448 = vmul.f32 %v416, %v416
          %v449 = vmul.f32 %v417, %v417
          %v450 = vadd.f32 %v418, %v419
          %451 = vadd.xlane.f32.xlu0 %v450
          %v452 = vpop.xlane.xlu0 %451
          %v453 = vadd.f32 %v420, %v421
          %454 = vadd.xlane.f32.xlu0 %v453
          %v455 = vpop.xlane.xlu0 %454
          %v456 = vadd.f32 %v422, %v423
          %457 = vadd.xlane.f32.xlu0 %v456
          %v458 = vpop.xlane.xlu0 %457
          %v459 = vadd.f32 %v424, %v425
          %460 = vadd.xlane.f32.xlu0 %v459
          %v461 = vpop.xlane.xlu0 %460
          %v462 = vadd.f32 %v426, %v427
          %463 = vadd.xlane.f32.xlu0 %v462
          %v464 = vpop.xlane.xlu0 %463
          %v465 = vadd.f32 %v428, %v429
          %466 = vadd.xlane.f32.xlu0 %v465
          %v467 = vpop.xlane.xlu0 %466
          %v468 = vadd.f32 %v430, %v431
          %469 = vadd.xlane.f32.xlu0 %v468
          %v470 = vpop.xlane.xlu0 %469
          %v471 = vadd.f32 %v432, %v433
          %472 = vadd.xlane.f32.xlu0 %v471
          %v473 = vpop.xlane.xlu0 %472
          %v474 = vadd.f32 %v434, %v435
          %475 = vadd.xlane.f32.xlu0 %v474
          %v476 = vpop.xlane.xlu0 %475
          %v477 = vadd.f32 %v436, %v437
          %478 = vadd.xlane.f32.xlu0 %v477
          %v479 = vpop.xlane.xlu0 %478
          %v480 = vadd.f32 %v438, %v439
          %481 = vadd.xlane.f32.xlu0 %v480
          %v482 = vpop.xlane.xlu0 %481
          %v483 = vadd.f32 %v440, %v441
          %484 = vadd.xlane.f32.xlu0 %v483
          %v485 = vpop.xlane.xlu0 %484
          %v486 = vadd.f32 %v442, %v443
          %487 = vadd.xlane.f32.xlu0 %v486
          %v488 = vpop.xlane.xlu0 %487
          %v489 = vadd.f32 %v444, %v445
          %490 = vadd.xlane.f32.xlu0 %v489
          %v491 = vpop.xlane.xlu0 %490
          %v492 = vadd.f32 %v446, %v447
          %493 = vadd.xlane.f32.xlu0 %v492
          %v494 = vpop.xlane.xlu0 %493
          %v495 = vadd.f32 %v448, %v449
          %496 = vadd.xlane.f32.xlu0 %v495
          %v497 = vpop.xlane.xlu0 %496
          %v498 = vmul.f32 %v452, %v369
          %v499 = vmul.f32 %v455, %v369
          %v500 = vmul.f32 %v458, %v369
          %v501 = vmul.f32 %v461, %v369
          %v502 = vmul.f32 %v464, %v369
          %v503 = vmul.f32 %v467, %v369
          %v504 = vmul.f32 %v470, %v369
          %v505 = vmul.f32 %v473, %v369
          %v506 = vmul.f32 %v476, %v369
          %v507 = vmul.f32 %v479, %v369
          %v508 = vmul.f32 %v482, %v369
          %v509 = vmul.f32 %v485, %v369
          %v510 = vmul.f32 %v488, %v369
          %v511 = vmul.f32 %v491, %v369
          %v512 = vmul.f32 %v494, %v369
          %v513 = vmul.f32 %v497, %v369
          %v514 = vadd.f32 %v498, 1e-05
          %v515 = vadd.f32 %v499, 1e-05
          %v516 = vadd.f32 %v500, 1e-05
          %v517 = vadd.f32 %v501, 1e-05
          %v518 = vadd.f32 %v502, 1e-05
          %v519 = vadd.f32 %v503, 1e-05
          %v520 = vadd.f32 %v504, 1e-05
          %v521 = vadd.f32 %v505, 1e-05
          %v522 = vadd.f32 %v506, 1e-05
          %v523 = vadd.f32 %v507, 1e-05
          %v524 = vadd.f32 %v508, 1e-05
          %v525 = vadd.f32 %v509, 1e-05
          %v526 = vadd.f32 %v510, 1e-05
          %v527 = vadd.f32 %v511, 1e-05
          %v528 = vadd.f32 %v512, 1e-05
          %v529 = vadd.f32 %v513, 1e-05
          %v530 = vrsqrt.pop %v514
          %v531 = vrsqrt.pop %v515
          %v532 = vrsqrt.pop %v516
          %v533 = vrsqrt.pop %v517
          %v534 = vrsqrt.pop %v518
          %v535 = vrsqrt.pop %v519
          %v536 = vrsqrt.pop %v520
          %v537 = vrsqrt.pop %v521
          %v538 = vrsqrt.pop %v522
          %v539 = vrsqrt.pop %v523
          %v540 = vrsqrt.pop %v524
          %v541 = vrsqrt.pop %v525
          %v542 = vrsqrt.pop %v526
          %v543 = vrsqrt.pop %v527
          %v544 = vrsqrt.pop %v528
          %v545 = vrsqrt.pop %v529
          %v546 = vmul.f32 %v386, %v530
          %v547 = vmul.f32 %v387, %v530
          %v548 = vmul.f32 %v388, %v531
          %v549 = vmul.f32 %v389, %v531
          %v550 = vmul.f32 %v390, %v532
          %v551 = vmul.f32 %v391, %v532
          %v552 = vmul.f32 %v392, %v533
          %v553 = vmul.f32 %v393, %v533
          %v554 = vmul.f32 %v394, %v534
          %v555 = vmul.f32 %v395, %v534
          %v556 = vmul.f32 %v396, %v535
          %v557 = vmul.f32 %v397, %v535
          %v558 = vmul.f32 %v398, %v536
          %v559 = vmul.f32 %v399, %v536
          %v560 = vmul.f32 %v400, %v537
          %v561 = vmul.f32 %v401, %v537
          %v562 = vmul.f32 %v402, %v538
          %v563 = vmul.f32 %v403, %v538
          %v564 = vmul.f32 %v404, %v539
          %v565 = vmul.f32 %v405, %v539
          %v566 = vmul.f32 %v406, %v540
          %v567 = vmul.f32 %v407, %v540
          %v568 = vmul.f32 %v408, %v541
          %v569 = vmul.f32 %v409, %v541
          %v570 = vmul.f32 %v410, %v542
          %v571 = vmul.f32 %v411, %v542
          %v572 = vmul.f32 %v412, %v543
          %v573 = vmul.f32 %v413, %v543
          %v574 = vmul.f32 %v414, %v544
          %v575 = vmul.f32 %v415, %v544
          %v576 = vmul.f32 %v416, %v545
          %v577 = vmul.f32 %v417, %v545
          %v579 = vlaneseq
          %v580 = vshrl.u32 %v579, 7
          %v581 = vsub.s32 0, %v580
          %v582 = vrot.slane %v319, %v581
          %v583 = vlaneseq
          %v584 = vshrl.u32 %v583, 7
          %v585 = vsub.s32 1, %v584
          %v586 = vrot.slane %v319, %v585
          %v589 = vmul.f32 %v546, %v582
          %v590 = vmul.f32 %v547, %v586
          %v591 = vmul.f32 %v548, %v582
          %v592 = vmul.f32 %v549, %v586
          %v593 = vmul.f32 %v550, %v582
          %v594 = vmul.f32 %v551, %v586
          %v595 = vmul.f32 %v552, %v582
          %v596 = vmul.f32 %v553, %v586
          %v597 = vmul.f32 %v554, %v582
          %v598 = vmul.f32 %v555, %v586
          %v599 = vmul.f32 %v556, %v582
          %v600 = vmul.f32 %v557, %v586
          %v601 = vmul.f32 %v558, %v582
          %v602 = vmul.f32 %v559, %v586
          %v603 = vmul.f32 %v560, %v582
          %v604 = vmul.f32 %v561, %v586
          %v605 = vmul.f32 %v562, %v582
          %v606 = vmul.f32 %v563, %v586
          %v607 = vmul.f32 %v564, %v582
          %v608 = vmul.f32 %v565, %v586
          %v609 = vmul.f32 %v566, %v582
          %v610 = vmul.f32 %v567, %v586
          %v611 = vmul.f32 %v568, %v582
          %v612 = vmul.f32 %v569, %v586
          %v613 = vmul.f32 %v570, %v582
          %v614 = vmul.f32 %v571, %v586
          %v615 = vmul.f32 %v572, %v582
          %v616 = vmul.f32 %v573, %v586
          %v617 = vmul.f32 %v574, %v582
          %v618 = vmul.f32 %v575, %v586
          %v619 = vmul.f32 %v576, %v582
          %v620 = vmul.f32 %v577, %v586
          %v622 = vlaneseq
          %v623 = vshrl.u32 %v622, 7
          %v624 = vsub.s32 0, %v623
          %v625 = vrot.slane %v320, %v624
          %v626 = vlaneseq
          %v627 = vshrl.u32 %v626, 7
          %v628 = vsub.s32 1, %v627
          %v629 = vrot.slane %v320, %v628
          %v632 = vadd.f32 %v589, %v625
          %v633 = vadd.f32 %v590, %v629
          %v634 = vadd.f32 %v591, %v625
          %v635 = vadd.f32 %v592, %v629
          %v636 = vadd.f32 %v593, %v625
          %v637 = vadd.f32 %v594, %v629
          %v638 = vadd.f32 %v595, %v625
          %v639 = vadd.f32 %v596, %v629
          %v640 = vadd.f32 %v597, %v625
          %v641 = vadd.f32 %v598, %v629
          %v642 = vadd.f32 %v599, %v625
          %v643 = vadd.f32 %v600, %v629
          %v644 = vadd.f32 %v601, %v625
          %v645 = vadd.f32 %v602, %v629
          %v646 = vadd.f32 %v603, %v625
          %v647 = vadd.f32 %v604, %v629
          %v648 = vadd.f32 %v605, %v625
          %v649 = vadd.f32 %v606, %v629
          %v650 = vadd.f32 %v607, %v625
          %v651 = vadd.f32 %v608, %v629
          %v652 = vadd.f32 %v609, %v625
          %v653 = vadd.f32 %v610, %v629
          %v654 = vadd.f32 %v611, %v625
          %v655 = vadd.f32 %v612, %v629
          %v656 = vadd.f32 %v613, %v625
          %v657 = vadd.f32 %v614, %v629
          %v658 = vadd.f32 %v615, %v625
          %v659 = vadd.f32 %v616, %v629
          %v660 = vadd.f32 %v617, %v625
          %v661 = vadd.f32 %v618, %v629
          %v662 = vadd.f32 %v619, %v625
          %v663 = vadd.f32 %v620, %v629
          %v664 = vpack.c.bf16 %v634, %v632
          %v665 = vpack.c.bf16 %v635, %v633
          %v666 = vpack.c.bf16 %v638, %v636
          %v667 = vpack.c.bf16 %v639, %v637
          %v668 = vpack.c.bf16 %v642, %v640
          %v669 = vpack.c.bf16 %v643, %v641
          %v670 = vpack.c.bf16 %v646, %v644
          %v671 = vpack.c.bf16 %v647, %v645
          %v672 = vpack.c.bf16 %v650, %v648
          %v673 = vpack.c.bf16 %v651, %v649
          %v674 = vpack.c.bf16 %v654, %v652
          %v675 = vpack.c.bf16 %v655, %v653
          %v676 = vpack.c.bf16 %v658, %v656
          %v677 = vpack.c.bf16 %v659, %v657
          %v678 = vpack.c.bf16 %v662, %v660
          %v679 = vpack.c.bf16 %v663, %v661
          %680 = vst [vmem:[#allocation2] sm:$0xff] %v664
          %681 = vst [vmem:[#allocation2 + $0x8] sm:$0xff] %v665
          %682 = vst [vmem:[#allocation2 + $0x10] sm:$0xff] %v666
          %683 = vst [vmem:[#allocation2 + $0x18] sm:$0xff] %v667
          %684 = vst [vmem:[#allocation2 + $0x20] sm:$0xff] %v668
          %685 = vst [vmem:[#allocation2 + $0x28] sm:$0xff] %v669
          %686 = vst [vmem:[#allocation2 + $0x30] sm:$0xff] %v670
          %687 = vst [vmem:[#allocation2 + $0x38] sm:$0xff] %v671
          %688 = vst [vmem:[#allocation2 + $0x40] sm:$0xff] %v672
          %689 = vst [vmem:[#allocation2 + $0x48] sm:$0xff] %v673
          %690 = vst [vmem:[#allocation2 + $0x50] sm:$0xff] %v674
          %691 = vst [vmem:[#allocation2 + $0x58] sm:$0xff] %v675
          %692 = vst [vmem:[#allocation2 + $0x60] sm:$0xff] %v676
          %693 = vst [vmem:[#allocation2 + $0x68] sm:$0xff] %v677
          %694 = vst [vmem:[#allocation2 + $0x70] sm:$0xff] %v678
          %695 = vst [vmem:[#allocation2 + $0x78] sm:$0xff] %v679
        $region56: #{gpt_forward.13} parent=35 // pred_fallthru
          _
        %v696 = vld [vmem:[#allocation2] sm:$0xff]
        %v697 = vld [vmem:[#allocation2 + $0x8] sm:$0xff]
        %v698 = vld [vmem:[#allocation2 + $0x10] sm:$0xff]
        %v699 = vld [vmem:[#allocation2 + $0x18] sm:$0xff]
        %v700 = vld [vmem:[#allocation2 + $0x20] sm:$0xff]
        %v701 = vld [vmem:[#allocation2 + $0x28] sm:$0xff]
        %v702 = vld [vmem:[#allocation2 + $0x30] sm:$0xff]
        %v703 = vld [vmem:[#allocation2 + $0x38] sm:$0xff]
        %v704 = vld [vmem:[#allocation2 + $0x40] sm:$0xff]
        %v705 = vld [vmem:[#allocation2 + $0x48] sm:$0xff]
        %v706 = vld [vmem:[#allocation2 + $0x50] sm:$0xff]
        %v707 = vld [vmem:[#allocation2 + $0x58] sm:$0xff]
        %v708 = vld [vmem:[#allocation2 + $0x60] sm:$0xff]
        %v709 = vld [vmem:[#allocation2 + $0x68] sm:$0xff]
        %v710 = vld [vmem:[#allocation2 + $0x70] sm:$0xff]
        %v711 = vld [vmem:[#allocation2 + $0x78] sm:$0xff]
        %v712 = vld [vmem:[%s254] sm:$0xff]
        %v713 = vld [vmem:[%s254 + $0x8] sm:$0xff]
        %v714 = vld [vmem:[%s254 + $0x10] sm:$0xff]
        %v715 = vld [vmem:[%s254 + $0x18] sm:$0xff]
        %v716 = vld [vmem:[%s254 + $0x20] sm:$0xff]
        %v717 = vld [vmem:[%s254 + $0x28] sm:$0xff]
        %v718 = vld [vmem:[%s254 + $0x30] sm:$0xff]
        %v719 = vld [vmem:[%s254 + $0x38] sm:$0xff]
        %v720 = vld [vmem:[%s254 + $0x40] sm:$0xff]
        %v721 = vld [vmem:[%s254 + $0x48] sm:$0xff]
        %v722 = vld [vmem:[%s254 + $0x50] sm:$0xff]
        %v723 = vld [vmem:[%s254 + $0x58] sm:$0xff]
        %v724 = vld [vmem:[%s254 + $0x60] sm:$0xff]
        %v725 = vld [vmem:[%s254 + $0x68] sm:$0xff]
        %v726 = vld [vmem:[%s254 + $0x70] sm:$0xff]
        %v727 = vld [vmem:[%s254 + $0x78] sm:$0xff]
        %v728 = vld [vmem:[%s254 + $0x80] sm:$0xff]
        %v729 = vld [vmem:[%s254 + $0x88] sm:$0xff]
        %v730 = vld [vmem:[%s254 + $0x90] sm:$0xff]
        %v731 = vld [vmem:[%s254 + $0x98] sm:$0xff]
        %v732 = vld [vmem:[%s254 + $0xa0] sm:$0xff]
        %v733 = vld [vmem:[%s254 + $0xa8] sm:$0xff]
        %v734 = vld [vmem:[%s254 + $0xb0] sm:$0xff]
        %v735 = vld [vmem:[%s254 + $0xb8] sm:$0xff]
        %v736 = vld [vmem:[%s254 + $0xc0] sm:$0xff]
        %v737 = vld [vmem:[%s254 + $0xc8] sm:$0xff]
        %v738 = vld [vmem:[%s254 + $0xd0] sm:$0xff]
        %v739 = vld [vmem:[%s254 + $0xd8] sm:$0xff]
        %v740 = vld [vmem:[%s254 + $0xe0] sm:$0xff]
        %v741 = vld [vmem:[%s254 + $0xe8] sm:$0xff]
        %v742 = vld [vmem:[%s254 + $0xf0] sm:$0xff]
        %v743 = vld [vmem:[%s254 + $0xf8] sm:$0xff]
        %v776 = vunpack.c.l.b16 %v712
        %v777 = vunpack.c.h.b16 %v712
        %v778 = vunpack.c.l.b16 %v713
        %v779 = vunpack.c.h.b16 %v713
        %v780 = vunpack.c.l.b16 %v714
        %v781 = vunpack.c.h.b16 %v714
        %v782 = vunpack.c.l.b16 %v715
        %v783 = vunpack.c.h.b16 %v715
        %v784 = vunpack.c.l.b16 %v716
        %v785 = vunpack.c.h.b16 %v716
        %v786 = vunpack.c.l.b16 %v717
        %v787 = vunpack.c.h.b16 %v717
        %v788 = vunpack.c.l.b16 %v718
        %v789 = vunpack.c.h.b16 %v718
        %v790 = vunpack.c.l.b16 %v719
        %v791 = vunpack.c.h.b16 %v719
        %v792 = vunpack.c.l.b16 %v720
        %v793 = vunpack.c.h.b16 %v720
        %v794 = vunpack.c.l.b16 %v721
        %v795 = vunpack.c.h.b16 %v721
        %v796 = vunpack.c.l.b16 %v722
        %v797 = vunpack.c.h.b16 %v722
        %v798 = vunpack.c.l.b16 %v723
        %v799 = vunpack.c.h.b16 %v723
        %v800 = vunpack.c.l.b16 %v724
        %v801 = vunpack.c.h.b16 %v724
        %v802 = vunpack.c.l.b16 %v725
        %v803 = vunpack.c.h.b16 %v725
        %v804 = vunpack.c.l.b16 %v726
        %v805 = vunpack.c.h.b16 %v726
        %v806 = vunpack.c.l.b16 %v727
        %v807 = vunpack.c.h.b16 %v727
        %v808 = vunpack.c.l.b16 %v728
        %v809 = vunpack.c.h.b16 %v728
        %v810 = vunpack.c.l.b16 %v729
        %v811 = vunpack.c.h.b16 %v729
        %v812 = vunpack.c.l.b16 %v730
        %v813 = vunpack.c.h.b16 %v730
        %v814 = vunpack.c.l.b16 %v731
        %v815 = vunpack.c.h.b16 %v731
        %v816 = vunpack.c.l.b16 %v732
        %v817 = vunpack.c.h.b16 %v732
        %v818 = vunpack.c.l.b16 %v733
        %v819 = vunpack.c.h.b16 %v733
        %v820 = vunpack.c.l.b16 %v734
        %v821 = vunpack.c.h.b16 %v734
        %v822 = vunpack.c.l.b16 %v735
        %v823 = vunpack.c.h.b16 %v735
        %v824 = vunpack.c.l.b16 %v736
        %v825 = vunpack.c.h.b16 %v736
        %v826 = vunpack.c.l.b16 %v737
        %v827 = vunpack.c.h.b16 %v737
        %v828 = vunpack.c.l.b16 %v738
        %v829 = vunpack.c.h.b16 %v738
        %v830 = vunpack.c.l.b16 %v739
        %v831 = vunpack.c.h.b16 %v739
        %v832 = vunpack.c.l.b16 %v740
        %v833 = vunpack.c.h.b16 %v740
        %v834 = vunpack.c.l.b16 %v741
        %v835 = vunpack.c.h.b16 %v741
        %v836 = vunpack.c.l.b16 %v742
        %v837 = vunpack.c.h.b16 %v742
        %v838 = vunpack.c.l.b16 %v743
        %v839 = vunpack.c.h.b16 %v743
        %v840 = vpack.c.b16 %v778, %v776
        %v841 = vpack.c.b16 %v779, %v777
        %v842 = vpack.c.b16 %v782, %v780
        %v843 = vpack.c.b16 %v783, %v781
        %v844 = vpack.c.b16 %v786, %v784
        %v845 = vpack.c.b16 %v787, %v785
        %v846 = vpack.c.b16 %v790, %v788
        %v847 = vpack.c.b16 %v791, %v789
        %v848 = vpack.c.b16 %v794, %v792
        %v849 = vpack.c.b16 %v795, %v793
        %v850 = vpack.c.b16 %v798, %v796
        %v851 = vpack.c.b16 %v799, %v797
        %v852 = vpack.c.b16 %v802, %v800
        %v853 = vpack.c.b16 %v803, %v801
        %v854 = vpack.c.b16 %v806, %v804
        %v855 = vpack.c.b16 %v807, %v805
        %v856 = vpack.c.b16 %v810, %v808
        %v857 = vpack.c.b16 %v811, %v809
        %v858 = vpack.c.b16 %v814, %v812
        %v859 = vpack.c.b16 %v815, %v813
        %v860 = vpack.c.b16 %v818, %v816
        %v861 = vpack.c.b16 %v819, %v817
        %v862 = vpack.c.b16 %v822, %v820
        %v863 = vpack.c.b16 %v823, %v821
        %v864 = vpack.c.b16 %v826, %v824
        %v865 = vpack.c.b16 %v827, %v825
        %v866 = vpack.c.b16 %v830, %v828
        %v867 = vpack.c.b16 %v831, %v829
        %v868 = vpack.c.b16 %v834, %v832
        %v869 = vpack.c.b16 %v835, %v833
        %v870 = vpack.c.b16 %v838, %v836
        %v871 = vpack.c.b16 %v839, %v837
        %904 = vmatprep.subr.bf16.mxu0 %v841
        %905 = vmatpush1.bf16.msra.mxu0 %v840
        %906 = vmatprep.subr.bf16.mxu0 %v843
        %907 = vmatpush1.bf16.msra.mxu0 %v842
        %908 = vmatprep.subr.bf16.mxu0 %v845
        %909 = vmatpush1.bf16.msra.mxu0 %v844
        %910 = vmatprep.subr.bf16.mxu0 %v847
        %911 = vmatpush1.bf16.msra.mxu0 %v846
        %912 = vmatprep.subr.bf16.mxu0 %v849
        %913 = vmatpush1.bf16.msra.mxu0 %v848
        %914 = vmatprep.subr.bf16.mxu0 %v851
        %915 = vmatpush1.bf16.msra.mxu0 %v850
        %916 = vmatprep.subr.bf16.mxu0 %v853
        %917 = vmatpush1.bf16.msra.mxu0 %v852
        %918 = vmatprep.subr.bf16.mxu0 %v855
        %919 = vmatpush1.bf16.msra.mxu0 %v854
        %920 = vmatprep.subr.bf16.mxu0 %v857
        %921 = vmatpush1.bf16.msra.mxu0 %v856
        %922 = vmatprep.subr.bf16.mxu0 %v859
        %923 = vmatpush1.bf16.msra.mxu0 %v858
        %924 = vmatprep.subr.bf16.mxu0 %v861
        %925 = vmatpush1.bf16.msra.mxu0 %v860
        %926 = vmatprep.subr.bf16.mxu0 %v863
        %927 = vmatpush1.bf16.msra.mxu0 %v862
        %928 = vmatprep.subr.bf16.mxu0 %v865
        %929 = vmatpush1.bf16.msra.mxu0 %v864
        %930 = vmatprep.subr.bf16.mxu0 %v867
        %931 = vmatpush1.bf16.msra.mxu0 %v866
        %932 = vmatprep.subr.bf16.mxu0 %v869
        %933 = vmatpush1.bf16.msra.mxu0 %v868
        %934 = vmatprep.subr.bf16.mxu0 %v871
        %935 = vmatpush1.bf16.msra.mxu0 %v870
        %936 = vmatprep.mubr.bf16.mxu0 %v697
        %937 = vmatmul.mubr.bf16.gmra.mrb[0].mxu0 %v696
        %v938 = vpop.f32.mrb[0].mxu0
        %v939 = vadd.f32 0.0, %v938
        %v940 = vpop.f32.mrb[0].mxu0
        %v941 = vadd.f32 0.0, %v940
        %v942 = vpop.f32.mrb[0].mxu0
        %v943 = vadd.f32 0.0, %v942
        %v944 = vpop.f32.mrb[0].mxu0
        %v945 = vadd.f32 0.0, %v944
        %946 = vmatprep.mubr.bf16.mxu0 %v699
        %947 = vmatmul.mubr.bf16.gmra.mrb[0].mxu0 %v698
        %v948 = vpop.f32.mrb[0].mxu0
        %v949 = vadd.f32 0.0, %v948
        %v950 = vpop.f32.mrb[0].mxu0
        %v951 = vadd.f32 0.0, %v950
        %v952 = vpop.f32.mrb[0].mxu0
        %v953 = vadd.f32 0.0, %v952
        %v954 = vpop.f32.mrb[0].mxu0
        %v955 = vadd.f32 0.0, %v954
        %956 = vmatprep.mubr.bf16.mxu0 %v701
        %957 = vmatmul.mubr.bf16.gmra.mrb[0].mxu0 %v700
        %v958 = vpop.f32.mrb[0].mxu0
        %v959 = vadd.f32 0.0, %v958
        %v960 = vpop.f32.mrb[0].mxu0
        %v961 = vadd.f32 0.0, %v960
        %v962 = vpop.f32.mrb[0].mxu0
        %v963 = vadd.f32 0.0, %v962
        %v964 = vpop.f32.mrb[0].mxu0
        %v965 = vadd.f32 0.0, %v964
        %966 = vmatprep.mubr.bf16.mxu0 %v703
        %967 = vmatmul.mubr.bf16.gmra.mrb[0].mxu0 %v702
        %v968 = vpop.f32.mrb[0].mxu0
        %v969 = vadd.f32 0.0, %v968
        %v970 = vpop.f32.mrb[0].mxu0
        %v971 = vadd.f32 0.0, %v970
        %v972 = vpop.f32.mrb[0].mxu0
        %v973 = vadd.f32 0.0, %v972
        %v974 = vpop.f32.mrb[0].mxu0
        %v975 = vadd.f32 0.0, %v974
        %976 = vmatprep.mubr.bf16.mxu0 %v705
        %977 = vmatmul.mubr.bf16.gmra.mrb[0].mxu0 %v704
        %v978 = vpop.f32.mrb[0].mxu0
        %v979 = vadd.f32 0.0, %v978
        %v980 = vpop.f32.mrb[0].mxu0
        %v981 = vadd.f32 0.0, %v980
        %v982 = vpop.f32.mrb[0].mxu0
        %v983 = vadd.f32 0.0, %v982
        %v984 = vpop.f32.mrb[0].mxu0
        %v985 = vadd.f32 0.0, %v984
        %986 = vmatprep.mubr.bf16.mxu0 %v707
        %987 = vmatmul.mubr.bf16.gmra.mrb[0].mxu0 %v706
        %v988 = vpop.f32.mrb[0].mxu0
        %v989 = vadd.f32 0.0, %v988
        %v990 = vpop.f32.mrb[0].mxu0
        %v991 = vadd.f32 0.0, %v990
        %v992 = vpop.f32.mrb[0].mxu0
        %v993 = vadd.f32 0.0, %v992
        %v994 = vpop.f32.mrb[0].mxu0
        %v995 = vadd.f32 0.0, %v994
        %996 = vmatprep.mubr.bf16.mxu0 %v709
        %997 = vmatmul.mubr.bf16.gmra.mrb[0].mxu0 %v708
        %v998 = vpop.f32.mrb[0].mxu0
        %v999 = vadd.f32 0.0, %v998
        %v1000 = vpop.f32.mrb[0].mxu0
        %v1001 = vadd.f32 0.0, %v1000
        %v1002 = vpop.f32.mrb[0].mxu0
        %v1003 = vadd.f32 0.0, %v1002
        %v1004 = vpop.f32.mrb[0].mxu0
        %v1005 = vadd.f32 0.0, %v1004
        %1006 = vmatprep.mubr.bf16.mxu0 %v711
        %1007 = vmatmul.mubr.bf16.gmra.mrb[0].mxu0 %v710
        %v1008 = vpop.f32.mrb[0].mxu0
        %v1009 = vadd.f32 0.0, %v1008
        %v1010 = vpop.f32.mrb[0].mxu0
        %v1011 = vadd.f32 0.0, %v1010
        %v1012 = vpop.f32.mrb[0].mxu0
        %v1013 = vadd.f32 0.0, %v1012
        %v1014 = vpop.f32.mrb[0].mxu0
        %v1015 = vadd.f32 0.0, %v1014
        %1016 = vdwg.mxu0
        %1017 = vst [vmem:[%s278] sm:$0xff] %v939
        %1018 = vst [vmem:[%s278 + $0x8] sm:$0xff] %v941
        %1019 = vst [vmem:[%s278 + $0x10] sm:$0xff] %v943
        %1020 = vst [vmem:[%s278 + $0x18] sm:$0xff] %v945
        %1021 = vst [vmem:[%s278 + $0x20] sm:$0xff] %v949
        %1022 = vst [vmem:[%s278 + $0x28] sm:$0xff] %v951
        %1023 = vst [vmem:[%s278 + $0x30] sm:$0xff] %v953
        %1024 = vst [vmem:[%s278 + $0x38] sm:$0xff] %v955
        %1025 = vst [vmem:[%s278 + $0x40] sm:$0xff] %v959
        %1026 = vst [vmem:[%s278 + $0x48] sm:$0xff] %v961
        %1027 = vst [vmem:[%s278 + $0x50] sm:$0xff] %v963
        %1028 = vst [vmem:[%s278 + $0x58] sm:$0xff] %v965
        %1029 = vst [vmem:[%s278 + $0x60] sm:$0xff] %v969
        %1030 = vst [vmem:[%s278 + $0x68] sm:$0xff] %v971
        %1031 = vst [vmem:[%s278 + $0x70] sm:$0xff] %v973
        %1032 = vst [vmem:[%s278 + $0x78] sm:$0xff] %v975
        %1033 = vst [vmem:[%s278 + $0x80] sm:$0xff] %v979
        %1034 = vst [vmem:[%s278 + $0x88] sm:$0xff] %v981
        %1035 = vst [vmem:[%s278 + $0x90] sm:$0xff] %v983
        %1036 = vst [vmem:[%s278 + $0x98] sm:$0xff] %v985
        %1037 = vst [vmem:[%s278 + $0xa0] sm:$0xff] %v989
        %1038 = vst [vmem:[%s278 + $0xa8] sm:$0xff] %v991
        %1039 = vst [vmem:[%s278 + $0xb0] sm:$0xff] %v993
        %1040 = vst [vmem:[%s278 + $0xb8] sm:$0xff] %v995
        %1041 = vst [vmem:[%s278 + $0xc0] sm:$0xff] %v999
        %1042 = vst [vmem:[%s278 + $0xc8] sm:$0xff] %v1001
        %1043 = vst [vmem:[%s278 + $0xd0] sm:$0xff] %v1003
        %1044 = vst [vmem:[%s278 + $0xd8] sm:$0xff] %v1005
        %1045 = vst [vmem:[%s278 + $0xe0] sm:$0xff] %v1009
        %1046 = vst [vmem:[%s278 + $0xe8] sm:$0xff] %v1011
        %1047 = vst [vmem:[%s278 + $0xf0] sm:$0xff] %v1013
        %1048 = vst [vmem:[%s278 + $0xf8] sm:$0xff] %v1015
        %s1049 = sand.u32 %s139, 1
        %s1050 = scalar_lea.sflag [#allocation5], %s1049
        %s1051 = sand.u32 %s139, 1
        %s1052 = smul.addr %s1051, 256
        %s1053 = scalar_lea.vmem [#allocation11], %s1052
        // Predicated region
        $region57: #{gpt_forward.13} parent=35 // pred_check
          %p1054 = pneg %p149
        $region58: #{gpt_forward.13} parent=35 // pred_check_branch
          %1056 = sbr.rel (%p1054) target = $region60
        $region59: #{gpt_forward.13} parent=35 // pred_region
          %s1057 = smul.u32 16, %s27
          %s1058 = smul.u32 2, %s28
          %s1060 = ssub.s32 4096, 4096
          %1061 = vsyncadd %s1050, %s1060
          %s1062 = smul.addr %s1057, 4
          %s1063 = sadd.s32 %s1058, %s1062
          %s1064 = smul.addr %s1063, 128
          %s1065 = scalar_lea.hbm %s4, %s1064
          %s1066 = sshll.u32 %s1053, 4
          %s1067 = int_to_ptr.vmem [resolvable:$true] %s1066
          %1072 = dma.vmem_to_hbm [thread:$0]  %s1067, 4096, %s1065, %s1050, 256, 512, 16
        $region60: #{gpt_forward.13} parent=35 // pred_fallthru
          _
      $region36: #{gpt_forward.13} parent=5 // pred_fallthru
        _
      %p1073 = scmp.le.s32.totalorder 2, %s18
      // Predicated region
      $region61: #{gpt_forward.13} parent=5 // pred_check
        %p1074 = pneg %p1073
      $region62: #{gpt_forward.13} parent=5 // pred_check_branch
        %1076 = sbr.rel (%p1074) target = $region64
      $region63: #{gpt_forward.13} parent=5 // pred_region
        %s1077 = ssub.s32 %s18, 2
        // Predicated region
        $region65: #{gpt_forward.13} parent=63 // pred_check
          %p1078 = pneg %p155
        $region66: #{gpt_forward.13} parent=63 // pred_check_branch
          %1080 = sbr.rel (%p1078) target = $region68
        $region67: #{gpt_forward.13} parent=63 // pred_region
          %s1081 = sand.u32 %s140, 1
          %s1082 = scalar_lea.sflag [#allocation5], %s1081
          %s1083 = sand.u32 %s140, 1
          %s1084 = smul.addr %s1083, 256
          %s1085 = scalar_lea.vmem [#allocation11], %s1084
          %1086 = dma.done %s1082, 4096
        $region68: #{gpt_forward.13} parent=63 // pred_fallthru
          _
      $region64: #{gpt_forward.13} parent=5 // pred_fallthru
        _
    $region6: #{gpt_forward.13} parent=1 // loop_footer
      %s22 = sadd.s32 1, %s18
    $region7: #{gpt_forward.13} parent=1 // loop_footer_branch
      %17 = sbr.rel target = $region3
    $region8: #{gpt_forward.13} parent=1 // loop_exit
      _
    %1087 = vsyncpa [#allocation4], 1
    %s1088 = scalar_lea.sflag [#allocation4], 1
    %1089 = vsyncpa %s1088, 1
    %1090 = vsyncpa [#allocation7], 1
    %1091 = vsyncpa [#allocation10], 1
    %s1092 = scalar_lea.sflag [#allocation10], 1
    %1093 = vsyncpa %s1092, 1
    %1094 = vsyncpa [#allocation5], 1
    %s1095 = scalar_lea.sflag [#allocation5], 1
    %1096 = vsyncpa %s1095, 1

// kernel: gpt_forward.9
$region0: #{gpt_forward.9}
  #allocation0 [shape = 'u32[]', space=smem, size = 0x4, offset = 0x4, fixed_abs, tag = 'smem constant byte address 0x4 - core index']
  #allocation1 [shape = 'u32[144,128]{1,0:T(1,128)}', space=vmem, size = 0x12000, scoped, tag = 'internal scratch']
  %s0 = inlined_call_operand.hbm [shape: f32[2,64,256], index: 0, kind: input, shape index: {}, may-alias: {0,10}]
  %s1 = inlined_call_operand.hbm [shape: bf16[2,64,256], index: 1, kind: input, shape index: {}]
  %s2 = inlined_call_operand.hbm [shape: bf16[256,256], index: 2, kind: input, shape index: {}]
  %s3 = inlined_call_operand.hbm [shape: f32[1,256], index: 3, kind: input, shape index: {}]
  %s4 = inlined_call_operand.hbm [shape: f32[1,256], index: 4, kind: input, shape index: {}]
  %s5 = inlined_call_operand.hbm [shape: f32[1,256], index: 5, kind: input, shape index: {}]
  %s6 = inlined_call_operand.hbm [shape: bf16[256,1024], index: 6, kind: input, shape index: {}]
  %s7 = inlined_call_operand.hbm [shape: f32[1,1024], index: 7, kind: input, shape index: {}]
  %s8 = inlined_call_operand.hbm [shape: bf16[1024,256], index: 8, kind: input, shape index: {}]
  %s9 = inlined_call_operand.hbm [shape: f32[1,256], index: 9, kind: input, shape index: {}]
  %s10 = inlined_call_operand.hbm [shape: f32[2,64,256], index: 10, kind: output, shape index: {}, may-alias: {0,10}]
  %s11 = sld [smem:[#allocation0]]
  $region113: #{gpt_forward.9} parent=0
    _
  %s13 = ssub.s32 1, %s11
  %s14 = scalar_select 0, %s13, %s11
  $region1: #{gpt_forward.9} parent=0
    #allocation2 [shape = 'u8[65536]{0}', space=vmem, size = 0x10000, scoped, tag = 'input window, operand 0']
    #allocation3 [shape = 's32[2]{0}', space=sflag, size = 0x8, scoped, tag = 'scoped memory for gpt_forward.9']
    #allocation4 [shape = 's32[2]{0}', space=sflag, size = 0x8, scoped, tag = 'scoped memory for gpt_forward.9']
    #allocation5 [shape = 'u8[32768]{0}', space=vmem, size = 0x8000, scoped, tag = 'input window, operand 1']
    #allocation6 [shape = 's32[2]{0}', space=sflag, size = 0x8, scoped, tag = 'scoped memory for gpt_forward.9']
    #allocation7 [shape = 'u8[131072]{0}', space=vmem, size = 0x20000, scoped, tag = 'input window, operand 2, single buffered']
    #allocation8 [shape = 'u8[1024]{0}', space=vmem, size = 0x400, scoped, tag = 'input window, operand 3, single buffered']
    #allocation9 [shape = 's32[1]{0}', space=sflag, size = 0x4, scoped, tag = 'scoped memory for gpt_forward.9']
    #allocation10 [shape = 'u8[1024]{0}', space=vmem, size = 0x400, scoped, tag = 'input window, operand 4, single buffered']
    #allocation11 [shape = 'u8[1024]{0}', space=vmem, size = 0x400, scoped, tag = 'input window, operand 5, single buffered']
    #allocation12 [shape = 's32[1]{0}', space=sflag, size = 0x4, scoped, tag = 'scoped memory for gpt_forward.9']
    #allocation13 [shape = 'u8[524288]{0}', space=vmem, size = 0x80000, scoped, tag = 'input window, operand 6, single buffered']
    #allocation14 [shape = 'u8[4096]{0}', space=vmem, size = 0x1000, scoped, tag = 'input window, operand 7, single buffered']
    #allocation15 [shape = 's32[1]{0}', space=sflag, size = 0x4, scoped, tag = 'scoped memory for gpt_forward.9']
    #allocation16 [shape = 'u8[524288]{0}', space=vmem, size = 0x80000, scoped, tag = 'input window, operand 8, single buffered']
    #allocation17 [shape = 'u8[1024]{0}', space=vmem, size = 0x400, scoped, tag = 'input window, operand 9, single buffered']
    #allocation18 [shape = 's32[1]{0}', space=sflag, size = 0x4, scoped, tag = 'scoped memory for gpt_forward.9']
    #allocation19 [shape = 'u8[65536]{0}', space=vmem, size = 0x10000, scoped, tag = 'output window, operand 0']
    %15 = vsyncpa [#allocation3], 0
    %s16 = scalar_lea.sflag [#allocation3], 1
    %17 = vsyncpa %s16, 0
    %18 = vsyncpa [#allocation6], 0
    %s19 = scalar_lea.sflag [#allocation6], 1
    %20 = vsyncpa %s19, 0
    %21 = vsyncpa [#allocation9], 0
    %22 = vsyncpa [#allocation12], 0
    %23 = vsyncpa [#allocation15], 0
    %24 = vsyncpa [#allocation18], 0
    %25 = vsyncpa [#allocation4], 0
    %s26 = scalar_lea.sflag [#allocation4], 1
    %27 = vsyncpa %s26, 0
    loop: start=0, step=1, limit=6
    $region2: #{gpt_forward.9} parent=1 // loop_pre_header
      _
    $region3: #{gpt_forward.9} parent=1 // loop_header
      %s29 = sphi 0, %s33
      %p30 = scmp.ge.s32.totalorder %s29, 6
      %s36 = sphi 0, %s48
      %s37 = sphi 0, %s44
      %s38 = sphi 0, %s36
      %s39 = sphi 0, %s37
      %s40 = sphi 0, %s38
      %s41 = sphi 0, %s39
      %s53 = sphi 0, %s55
      %s56 = sphi 0, %s53
      %s57 = sphi 0, %s56
      %s73 = sphi 0, %s57
      %s81 = sphi 0, %s83
      %s84 = sphi 0, %s81
      %s85 = sphi 0, %s84
      %s101 = sphi 0, %s85
      %s105 = sphi 0, %s105
      %s107 = sphi 0, %s105
      %s108 = sphi 0, %s107
      %s122 = sphi 0, %s108
      %s126 = sphi 0, %s126
      %s128 = sphi 0, %s126
      %s129 = sphi 0, %s128
      %s143 = sphi 0, %s129
      %s147 = sphi 0, %s147
      %s149 = sphi 0, %s147
      %s150 = sphi 0, %s149
      %s164 = sphi 0, %s150
      %s168 = sphi 0, %s168
      %s170 = sphi 0, %s168
      %s171 = sphi 0, %s170
      %s185 = sphi 0, %s171
      %s189 = sphi 0, %s189
      %s191 = sphi 0, %s189
      %s192 = sphi 0, %s191
      %s206 = sphi 0, %s192
      %s210 = sphi 0, %s210
      %s212 = sphi 0, %s210
      %s213 = sphi 0, %s212
      %s227 = sphi 0, %s213
      %s231 = sphi 0, %s231
      %s233 = sphi 0, %s231
      %s234 = sphi 0, %s233
      %s248 = sphi 0, %s234
      %s252 = sphi 0, %s252
      %s254 = sphi 0, %s252
      %s255 = sphi 0, %s254
      %s269 = sphi 0, %s255
      %s277 = sphi 0, %s279
      %s280 = sphi 0, %s277
      %s281 = sphi 0, %s280
      %s297 = sphi 0, %s281
    $region4: #{gpt_forward.9} parent=1 // loop_header_branch
      %32 = sbr.rel (%p30) target = $region8
    $region5: #{gpt_forward.9} parent=1 // loop_body
      %s34 = ssub.s32 %s29, 1
      %s35 = ssub.s32 %s29, 2
      %s42 = sadd.s32 1, %s37
      %p43 = scmp.ge.s32.totalorder %s42, 2
      %s44 = scalar_select %p43, 0, %s42
      %s45 = sadd.s32 1, %s36
      %s46 = scalar_select %p43, %s45, %s36
      %p47 = scmp.ge.s32.totalorder %s46, 2
      %s48 = scalar_select %p47, 0, %s46
      %s49 = ssub.s32 %s36, %s48
      %s50 = ssub.s32 %s37, %s44
      %s51 = sor.u32 %s49, %s50
      %p52 = scmp.eq.s32.totalorder %s51, 0
      %s54 = sadd.s32 %s53, 1
      %s55 = scalar_select %p52, %s53, %s54
      %p58 = pneg %p52
      %p59 = scmp.eq.s32.totalorder %s29, 3
      %p60 = por %p58, %p59
      %p61 = scmp.ne.s32.totalorder %s53, %s56
      %p62 = scmp.eq.s32.totalorder %s29, 0
      %p63 = por %p61, %p62
      %p64 = scmp.ne.s32.totalorder %s53, %s56
      %p65 = scmp.eq.s32.totalorder %s34, 3
      %p66 = por %p64, %p65
      %p67 = scmp.ne.s32.totalorder %s56, %s57
      %p68 = scmp.eq.s32.totalorder %s34, 0
      %p69 = por %p67, %p68
      %p70 = scmp.ne.s32.totalorder %s56, %s57
      %p71 = scmp.eq.s32.totalorder %s35, 3
      %p72 = por %p70, %p71
      %p74 = scmp.ne.s32.totalorder %s57, %s73
      %p75 = scmp.eq.s32.totalorder %s35, 0
      %p76 = por %p74, %p75
      %s77 = ssub.s32 %s36, %s48
      %s78 = ssub.s32 %s37, %s44
      %s79 = sor.u32 %s77, %s78
      %p80 = scmp.eq.s32.totalorder %s79, 0
      %s82 = sadd.s32 %s81, 1
      %s83 = scalar_select %p80, %s81, %s82
      %p86 = pneg %p80
      %p87 = scmp.eq.s32.totalorder %s29, 3
      %p88 = por %p86, %p87
      %p89 = scmp.ne.s32.totalorder %s81, %s84
      %p90 = scmp.eq.s32.totalorder %s29, 0
      %p91 = por %p89, %p90
      %p92 = scmp.ne.s32.totalorder %s81, %s84
      %p93 = scmp.eq.s32.totalorder %s34, 3
      %p94 = por %p92, %p93
      %p95 = scmp.ne.s32.totalorder %s84, %s85
      %p96 = scmp.eq.s32.totalorder %s34, 0
      %p97 = por %p95, %p96
      %p98 = scmp.ne.s32.totalorder %s84, %s85
      %p99 = scmp.eq.s32.totalorder %s35, 3
      %p100 = por %p98, %p99
      %p102 = scmp.ne.s32.totalorder %s85, %s101
      %p103 = scmp.eq.s32.totalorder %s35, 0
      %p104 = por %p102, %p103
      %s106 = sadd.s32 %s105, 1
      %p109 = scmp.eq.s32.totalorder %s29, 3
      %p110 = scmp.ne.s32.totalorder %s105, %s107
      %p111 = scmp.eq.s32.totalorder %s29, 0
      %p112 = por %p110, %p111
      %p113 = scmp.ne.s32.totalorder %s105, %s107
      %p114 = scmp.eq.s32.totalorder %s34, 3
      %p115 = por %p113, %p114
      %p116 = scmp.ne.s32.totalorder %s107, %s108
      %p117 = scmp.eq.s32.totalorder %s34, 0
      %p118 = por %p116, %p117
      %p119 = scmp.ne.s32.totalorder %s107, %s108
      %p120 = scmp.eq.s32.totalorder %s35, 3
      %p121 = por %p119, %p120
      %p123 = scmp.ne.s32.totalorder %s108, %s122
      %p124 = scmp.eq.s32.totalorder %s35, 0
      %p125 = por %p123, %p124
      %s127 = sadd.s32 %s126, 1
      %p130 = scmp.eq.s32.totalorder %s29, 3
      %p131 = scmp.ne.s32.totalorder %s126, %s128
      %p132 = scmp.eq.s32.totalorder %s29, 0
      %p133 = por %p131, %p132
      %p134 = scmp.ne.s32.totalorder %s126, %s128
      %p135 = scmp.eq.s32.totalorder %s34, 3
      %p136 = por %p134, %p135
      %p137 = scmp.ne.s32.totalorder %s128, %s129
      %p138 = scmp.eq.s32.totalorder %s34, 0
      %p139 = por %p137, %p138
      %p140 = scmp.ne.s32.totalorder %s128, %s129
      %p141 = scmp.eq.s32.totalorder %s35, 3
      %p142 = por %p140, %p141
      %p144 = scmp.ne.s32.totalorder %s129, %s143
      %p145 = scmp.eq.s32.totalorder %s35, 0
      %p146 = por %p144, %p145
      %s148 = sadd.s32 %s147, 1
      %p151 = scmp.eq.s32.totalorder %s29, 3
      %p152 = scmp.ne.s32.totalorder %s147, %s149
      %p153 = scmp.eq.s32.totalorder %s29, 0
      %p154 = por %p152, %p153
      %p155 = scmp.ne.s32.totalorder %s147, %s149
      %p156 = scmp.eq.s32.totalorder %s34, 3
      %p157 = por %p155, %p156
      %p158 = scmp.ne.s32.totalorder %s149, %s150
      %p159 = scmp.eq.s32.totalorder %s34, 0
      %p160 = por %p158, %p159
      %p161 = scmp.ne.s32.totalorder %s149, %s150
      %p162 = scmp.eq.s32.totalorder %s35, 3
      %p163 = por %p161, %p162
      %p165 = scmp.ne.s32.totalorder %s150, %s164
      %p166 = scmp.eq.s32.totalorder %s35, 0
      %p167 = por %p165, %p166
      %s169 = sadd.s32 %s168, 1
      %p172 = scmp.eq.s32.totalorder %s29, 3
      %p173 = scmp.ne.s32.totalorder %s168, %s170
      %p174 = scmp.eq.s32.totalorder %s29, 0
      %p175 = por %p173, %p174
      %p176 = scmp.ne.s32.totalorder %s168, %s170
      %p177 = scmp.eq.s32.totalorder %s34, 3
      %p178 = por %p176, %p177
      %p179 = scmp.ne.s32.totalorder %s170, %s171
      %p180 = scmp.eq.s32.totalorder %s34, 0
      %p181 = por %p179, %p180
      %p182 = scmp.ne.s32.totalorder %s170, %s171
      %p183 = scmp.eq.s32.totalorder %s35, 3
      %p184 = por %p182, %p183
      %p186 = scmp.ne.s32.totalorder %s171, %s185
      %p187 = scmp.eq.s32.totalorder %s35, 0
      %p188 = por %p186, %p187
      %s190 = sadd.s32 %s189, 1
      %p193 = scmp.eq.s32.totalorder %s29, 3
      %p194 = scmp.ne.s32.totalorder %s189, %s191
      %p195 = scmp.eq.s32.totalorder %s29, 0
      %p196 = por %p194, %p195
      %p197 = scmp.ne.s32.totalorder %s189, %s191
      %p198 = scmp.eq.s32.totalorder %s34, 3
      %p199 = por %p197, %p198
      %p200 = scmp.ne.s32.totalorder %s191, %s192
      %p201 = scmp.eq.s32.totalorder %s34, 0
      %p202 = por %p200, %p201
      %p203 = scmp.ne.s32.totalorder %s191, %s192
      %p204 = scmp.eq.s32.totalorder %s35, 3
      %p205 = por %p203, %p204
      %p207 = scmp.ne.s32.totalorder %s192, %s206
      %p208 = scmp.eq.s32.totalorder %s35, 0
      %p209 = por %p207, %p208
      %s211 = sadd.s32 %s210, 1
      %p214 = scmp.eq.s32.totalorder %s29, 3
      %p215 = scmp.ne.s32.totalorder %s210, %s212
      %p216 = scmp.eq.s32.totalorder %s29, 0
      %p217 = por %p215, %p216
      %p218 = scmp.ne.s32.totalorder %s210, %s212
      %p219 = scmp.eq.s32.totalorder %s34, 3
      %p220 = por %p218, %p219
      %p221 = scmp.ne.s32.totalorder %s212, %s213
      %p222 = scmp.eq.s32.totalorder %s34, 0
      %p223 = por %p221, %p222
      %p224 = scmp.ne.s32.totalorder %s212, %s213
      %p225 = scmp.eq.s32.totalorder %s35, 3
      %p226 = por %p224, %p225
      %p228 = scmp.ne.s32.totalorder %s213, %s227
      %p229 = scmp.eq.s32.totalorder %s35, 0
      %p230 = por %p228, %p229
      %s232 = sadd.s32 %s231, 1
      %p235 = scmp.eq.s32.totalorder %s29, 3
      %p236 = scmp.ne.s32.totalorder %s231, %s233
      %p237 = scmp.eq.s32.totalorder %s29, 0
      %p238 = por %p236, %p237
      %p239 = scmp.ne.s32.totalorder %s231, %s233
      %p240 = scmp.eq.s32.totalorder %s34, 3
      %p241 = por %p239, %p240
      %p242 = scmp.ne.s32.totalorder %s233, %s234
      %p243 = scmp.eq.s32.totalorder %s34, 0
      %p244 = por %p242, %p243
      %p245 = scmp.ne.s32.totalorder %s233, %s234
      %p246 = scmp.eq.s32.totalorder %s35, 3
      %p247 = por %p245, %p246
      %p249 = scmp.ne.s32.totalorder %s234, %s248
      %p250 = scmp.eq.s32.totalorder %s35, 0
      %p251 = por %p249, %p250
      %s253 = sadd.s32 %s252, 1
      %p256 = scmp.eq.s32.totalorder %s29, 3
      %p257 = scmp.ne.s32.totalorder %s252, %s254
      %p258 = scmp.eq.s32.totalorder %s29, 0
      %p259 = por %p257, %p258
      %p260 = scmp.ne.s32.totalorder %s252, %s254
      %p261 = scmp.eq.s32.totalorder %s34, 3
      %p262 = por %p260, %p261
      %p263 = scmp.ne.s32.totalorder %s254, %s255
      %p264 = scmp.eq.s32.totalorder %s34, 0
      %p265 = por %p263, %p264
      %p266 = scmp.ne.s32.totalorder %s254, %s255
      %p267 = scmp.eq.s32.totalorder %s35, 3
      %p268 = por %p266, %p267
      %p270 = scmp.ne.s32.totalorder %s255, %s269
      %p271 = scmp.eq.s32.totalorder %s35, 0
      %p272 = por %p270, %p271
      %s273 = ssub.s32 %s36, %s48
      %s274 = ssub.s32 %s37, %s44
      %s275 = sor.u32 %s273, %s274
      %p276 = scmp.eq.s32.totalorder %s275, 0
      %s278 = sadd.s32 %s277, 1
      %s279 = scalar_select %p276, %s277, %s278
      %p282 = pneg %p276
      %p283 = scmp.eq.s32.totalorder %s29, 3
      %p284 = por %p282, %p283
      %p285 = scmp.ne.s32.totalorder %s277, %s280
      %p286 = scmp.eq.s32.totalorder %s29, 0
      %p287 = por %p285, %p286
      %p288 = scmp.ne.s32.totalorder %s277, %s280
      %p289 = scmp.eq.s32.totalorder %s34, 3
      %p290 = por %p288, %p289
      %p291 = scmp.ne.s32.totalorder %s280, %s281
      %p292 = scmp.eq.s32.totalorder %s34, 0
      %p293 = por %p291, %p292
      %p294 = scmp.ne.s32.totalorder %s280, %s281
      %p295 = scmp.eq.s32.totalorder %s35, 3
      %p296 = por %p294, %p295
      %p298 = scmp.ne.s32.totalorder %s281, %s297
      %p299 = scmp.eq.s32.totalorder %s35, 0
      %p300 = por %p298, %p299
      %p301 = scmp.le.s32.totalorder 1, %s29
      %p302 = scmp.lt.s32.totalorder %s29, 5
      %p303 = pnand %p301, %p302
      %p304 = pneg %p303
      // Predicated region
      $region9: #{gpt_forward.9} parent=5 // pred_check
        _
      $region10: #{gpt_forward.9} parent=5 // pred_check_branch
        %306 = sbr.rel (%p303) target = $region12
      $region11: #{gpt_forward.9} parent=5 // pred_region
        %s307 = ssub.s32 %s29, 1
        // Predicated region
        $region13: #{gpt_forward.9} parent=11 // pred_check
          %p308 = pneg %p118
        $region14: #{gpt_forward.9} parent=11 // pred_check_branch
          %310 = sbr.rel (%p308) target = $region16
        $region15: #{gpt_forward.9} parent=11 // pred_region
          %s312 = ssub.s32 4096, 4096
          %313 = vsyncadd [#allocation6], %s312
          %s314 = sshll.u32 [#allocation7], 4
          %s315 = int_to_ptr.vmem [resolvable:$true] %s314
          %320 = dma.hbm_to_vmem [thread:$0]  %s2, 4096, %s315, [#allocation6], 128, 128, 8
        $region16: #{gpt_forward.9} parent=11 // pred_fallthru
          _
        // Predicated region
        $region17: #{gpt_forward.9} parent=11 // pred_check
          %p321 = pneg %p139
        $region18: #{gpt_forward.9} parent=11 // pred_check_branch
          %323 = sbr.rel (%p321) target = $region20
        $region19: #{gpt_forward.9} parent=11 // pred_region
          %s325 = ssub.s32 32, 32
          %326 = vsyncadd [#allocation9], %s325
          %s328 = sshll.u32 [#allocation8], 4
          %s329 = int_to_ptr.vmem [resolvable:$true] %s328
          %331 = dma.hbm_to_vmem [thread:$0]  %s3, 32, %s329, [#allocation9]
        $region20: #{gpt_forward.9} parent=11 // pred_fallthru
          _
        // Predicated region
        $region21: #{gpt_forward.9} parent=11 // pred_check
          %p332 = pneg %p160
        $region22: #{gpt_forward.9} parent=11 // pred_check_branch
          %334 = sbr.rel (%p332) target = $region24
        $region23: #{gpt_forward.9} parent=11 // pred_region
          %s336 = ssub.s32 32, 32
          %337 = vsyncadd [#allocation9], %s336
          %s339 = sshll.u32 [#allocation10], 4
          %s340 = int_to_ptr.vmem [resolvable:$true] %s339
          %342 = dma.hbm_to_vmem [thread:$0]  %s4, 32, %s340, [#allocation9]
        $region24: #{gpt_forward.9} parent=11 // pred_fallthru
          _
        // Predicated region
        $region25: #{gpt_forward.9} parent=11 // pred_check
          %p343 = pneg %p181
        $region26: #{gpt_forward.9} parent=11 // pred_check_branch
          %345 = sbr.rel (%p343) target = $region28
        $region27: #{gpt_forward.9} parent=11 // pred_region
          %s347 = ssub.s32 32, 32
          %348 = vsyncadd [#allocation12], %s347
          %s350 = sshll.u32 [#allocation11], 4
          %s351 = int_to_ptr.vmem [resolvable:$true] %s350
          %353 = dma.hbm_to_vmem [thread:$0]  %s5, 32, %s351, [#allocation12]
        $region28: #{gpt_forward.9} parent=11 // pred_fallthru
          _
        // Predicated region
        $region29: #{gpt_forward.9} parent=11 // pred_check
          %p354 = pneg %p202
        $region30: #{gpt_forward.9} parent=11 // pred_check_branch
          %356 = sbr.rel (%p354) target = $region32
        $region31: #{gpt_forward.9} parent=11 // pred_region
          %s358 = ssub.s32 16384, 16384
          %359 = vsyncadd [#allocation12], %s358
          %s360 = sshll.u32 [#allocation13], 4
          %s361 = int_to_ptr.vmem [resolvable:$true] %s360
          %366 = dma.hbm_to_vmem [thread:$0]  %s6, 16384, %s361, [#allocation12], 512, 512, 32
        $region32: #{gpt_forward.9} parent=11 // pred_fallthru
          _
        // Predicated region
        $region33: #{gpt_forward.9} parent=11 // pred_check
          %p367 = pneg %p223
        $region34: #{gpt_forward.9} parent=11 // pred_check_branch
          %369 = sbr.rel (%p367) target = $region36
        $region35: #{gpt_forward.9} parent=11 // pred_region
          %s371 = ssub.s32 128, 128
          %372 = vsyncadd [#allocation15], %s371
          %s374 = sshll.u32 [#allocation14], 4
          %s375 = int_to_ptr.vmem [resolvable:$true] %s374
          %377 = dma.hbm_to_vmem [thread:$0]  %s7, 128, %s375, [#allocation15]
        $region36: #{gpt_forward.9} parent=11 // pred_fallthru
          _
        // Predicated region
        $region37: #{gpt_forward.9} parent=11 // pred_check
          %p378 = pneg %p244
        $region38: #{gpt_forward.9} parent=11 // pred_check_branch
          %380 = sbr.rel (%p378) target = $region40
        $region39: #{gpt_forward.9} parent=11 // pred_region
          %s382 = ssub.s32 16384, 16384
          %383 = vsyncadd [#allocation15], %s382
          %s384 = sshll.u32 [#allocation16], 4
          %s385 = int_to_ptr.vmem [resolvable:$true] %s384
          %390 = dma.hbm_to_vmem [thread:$0]  %s8, 16384, %s385, [#allocation15], 128, 128, 8
        $region40: #{gpt_forward.9} parent=11 // pred_fallthru
          _
        // Predicated region
        $region41: #{gpt_forward.9} parent=11 // pred_check
          %p391 = pneg %p265
        $region42: #{gpt_forward.9} parent=11 // pred_check_branch
          %393 = sbr.rel (%p391) target = $region44
        $region43: #{gpt_forward.9} parent=11 // pred_region
          %s395 = ssub.s32 32, 32
          %396 = vsyncadd [#allocation18], %s395
          %s398 = sshll.u32 [#allocation17], 4
          %s399 = int_to_ptr.vmem [resolvable:$true] %s398
          %401 = dma.hbm_to_vmem [thread:$0]  %s9, 32, %s399, [#allocation18]
        $region44: #{gpt_forward.9} parent=11 // pred_fallthru
          _
      $region12: #{gpt_forward.9} parent=5 // pred_fallthru
        _
      %p402 = scmp.lt.s32.totalorder %s29, 4
      // Predicated region
      $region45: #{gpt_forward.9} parent=5 // pred_check
        %p403 = pneg %p402
      $region46: #{gpt_forward.9} parent=5 // pred_check_branch
        %405 = sbr.rel (%p403) target = $region48
      $region47: #{gpt_forward.9} parent=5 // pred_region
        // Predicated region
        $region49: #{gpt_forward.9} parent=47 // pred_check
          %p406 = pneg %p63
        $region50: #{gpt_forward.9} parent=47 // pred_check_branch
          %408 = sbr.rel (%p406) target = $region52
        $region51: #{gpt_forward.9} parent=47 // pred_region
          %s409 = sand.u32 %s53, 1
          %s410 = scalar_lea.sflag [#allocation3], %s409
          %s411 = sand.u32 %s53, 1
          %s412 = smul.addr %s411, 64
          %s413 = scalar_lea.vmem [#allocation2], %s412
          %s414 = smul.u32 4, %s37
          %s416 = ssub.s32 1024, 1024
          %417 = vsyncadd %s410, %s416
          %s418 = smul.addr %s414, 2
          %s419 = smul.addr %s36, 16
          %s420 = sadd.s32 %s418, %s419
          %s421 = smul.addr %s420, 128
          %s422 = scalar_lea.hbm %s0, %s421
          %s423 = sshll.u32 %s413, 4
          %s424 = int_to_ptr.vmem [resolvable:$true] %s423
          %429 = dma.hbm_to_vmem [thread:$0]  %s422, 1024, %s424, %s410, 256, 256, 16
        $region52: #{gpt_forward.9} parent=47 // pred_fallthru
          _
        // Predicated region
        $region53: #{gpt_forward.9} parent=47 // pred_check
          %p430 = pneg %p91
        $region54: #{gpt_forward.9} parent=47 // pred_check_branch
          %432 = sbr.rel (%p430) target = $region56
        $region55: #{gpt_forward.9} parent=47 // pred_region
          %s433 = sand.u32 %s29, 1
          %s434 = scalar_lea.sflag [#allocation6], %s433
          %s435 = sand.u32 %s81, 1
          %s436 = smul.addr %s435, 32
          %s437 = scalar_lea.vmem [#allocation5], %s436
          %s438 = smul.u32 4, %s37
          %s440 = ssub.s32 512, 512
          %441 = vsyncadd %s434, %s440
          %s442 = smul.addr %s438, 2
          %s443 = smul.addr %s36, 16
          %s444 = sadd.s32 %s442, %s443
          %s445 = smul.addr %s444, 64
          %s446 = scalar_lea.hbm %s1, %s445
          %s447 = sshll.u32 %s437, 4
          %s448 = int_to_ptr.vmem [resolvable:$true] %s447
          %453 = dma.hbm_to_vmem [thread:$0]  %s446, 512, %s448, %s434, 128, 128, 8
        $region56: #{gpt_forward.9} parent=47 // pred_fallthru
          _
      $region48: #{gpt_forward.9} parent=5 // pred_fallthru
        _
      %p454 = scmp.le.s32.totalorder 1, %s29
      %p455 = scmp.lt.s32.totalorder %s29, 5
      %p456 = pnand %p454, %p455
      %p457 = pneg %p456
      // Predicated region
      $region57: #{gpt_forward.9} parent=5 // pred_check
        _
      $region58: #{gpt_forward.9} parent=5 // pred_check_branch
        %459 = sbr.rel (%p456) target = $region60
      $region59: #{gpt_forward.9} parent=5 // pred_region
        %s460 = ssub.s32 %s29, 1
        %s461 = sand.u32 %s56, 1
        %s462 = scalar_lea.sflag [#allocation3], %s461
        %s463 = sand.u32 %s56, 1
        %s464 = smul.addr %s463, 64
        %s465 = scalar_lea.vmem [#allocation2], %s464
        // Predicated region
        $region61: #{gpt_forward.9} parent=59 // pred_check
          %p466 = pneg %p69
        $region62: #{gpt_forward.9} parent=59 // pred_check_branch
          %468 = sbr.rel (%p466) target = $region64
        $region63: #{gpt_forward.9} parent=59 // pred_region
          %469 = dma.done %s462, 1024
        $region64: #{gpt_forward.9} parent=59 // pred_fallthru
          _
        %s470 = sand.u32 %s34, 1
        %s471 = scalar_lea.sflag [#allocation6], %s470
        %s472 = sand.u32 %s84, 1
        %s473 = smul.addr %s472, 32
        %s474 = scalar_lea.vmem [#allocation5], %s473
        // Predicated region
        $region65: #{gpt_forward.9} parent=59 // pred_check
          %p475 = pneg %p97
        $region66: #{gpt_forward.9} parent=59 // pred_check_branch
          %477 = sbr.rel (%p475) target = $region68
        $region67: #{gpt_forward.9} parent=59 // pred_region
          %478 = dma.done %s471, 512
        $region68: #{gpt_forward.9} parent=59 // pred_fallthru
          _
        // Predicated region
        $region69: #{gpt_forward.9} parent=59 // pred_check
          %p479 = pneg %p118
        $region70: #{gpt_forward.9} parent=59 // pred_check_branch
          %481 = sbr.rel (%p479) target = $region72
        $region71: #{gpt_forward.9} parent=59 // pred_region
          %482 = dma.done [#allocation6], 4096
        $region72: #{gpt_forward.9} parent=59 // pred_fallthru
          _
        // Predicated region
        $region73: #{gpt_forward.9} parent=59 // pred_check
          %p483 = pneg %p139
        $region74: #{gpt_forward.9} parent=59 // pred_check_branch
          %485 = sbr.rel (%p483) target = $region76
        $region75: #{gpt_forward.9} parent=59 // pred_region
          %486 = dma.done [#allocation9], 32
        $region76: #{gpt_forward.9} parent=59 // pred_fallthru
          _
        // Predicated region
        $region77: #{gpt_forward.9} parent=59 // pred_check
          %p487 = pneg %p160
        $region78: #{gpt_forward.9} parent=59 // pred_check_branch
          %489 = sbr.rel (%p487) target = $region80
        $region79: #{gpt_forward.9} parent=59 // pred_region
          %490 = dma.done [#allocation9], 32
        $region80: #{gpt_forward.9} parent=59 // pred_fallthru
          _
        // Predicated region
        $region81: #{gpt_forward.9} parent=59 // pred_check
          %p491 = pneg %p181
        $region82: #{gpt_forward.9} parent=59 // pred_check_branch
          %493 = sbr.rel (%p491) target = $region84
        $region83: #{gpt_forward.9} parent=59 // pred_region
          %494 = dma.done [#allocation12], 32
        $region84: #{gpt_forward.9} parent=59 // pred_fallthru
          _
        // Predicated region
        $region85: #{gpt_forward.9} parent=59 // pred_check
          %p495 = pneg %p202
        $region86: #{gpt_forward.9} parent=59 // pred_check_branch
          %497 = sbr.rel (%p495) target = $region88
        $region87: #{gpt_forward.9} parent=59 // pred_region
          %498 = dma.done [#allocation12], 16384
        $region88: #{gpt_forward.9} parent=59 // pred_fallthru
          _
        // Predicated region
        $region89: #{gpt_forward.9} parent=59 // pred_check
          %p499 = pneg %p223
        $region90: #{gpt_forward.9} parent=59 // pred_check_branch
          %501 = sbr.rel (%p499) target = $region92
        $region91: #{gpt_forward.9} parent=59 // pred_region
          %502 = dma.done [#allocation15], 128
        $region92: #{gpt_forward.9} parent=59 // pred_fallthru
          _
        // Predicated region
        $region93: #{gpt_forward.9} parent=59 // pred_check
          %p503 = pneg %p244
        $region94: #{gpt_forward.9} parent=59 // pred_check_branch
          %505 = sbr.rel (%p503) target = $region96
        $region95: #{gpt_forward.9} parent=59 // pred_region
          %506 = dma.done [#allocation15], 16384
        $region96: #{gpt_forward.9} parent=59 // pred_fallthru
          _
        // Predicated region
        $region97: #{gpt_forward.9} parent=59 // pred_check
          %p507 = pneg %p265
        $region98: #{gpt_forward.9} parent=59 // pred_check_branch
          %509 = sbr.rel (%p507) target = $region100
        $region99: #{gpt_forward.9} parent=59 // pred_region
          %510 = dma.done [#allocation18], 32
        $region100: #{gpt_forward.9} parent=59 // pred_fallthru
          _
        %s511 = sand.u32 %s56, 1
        %s512 = scalar_lea.sflag [#allocation3], %s511
        %s513 = sand.u32 %s56, 1
        %s514 = smul.addr %s513, 64
        %s515 = scalar_lea.vmem [#allocation2], %s514
        %p516 = pneg %p69
        %p517 = pneg %p66
        %s518 = sand.u32 %s34, 1
        %s519 = scalar_lea.sflag [#allocation6], %s518
        %s520 = sand.u32 %s84, 1
        %s521 = smul.addr %s520, 32
        %s522 = scalar_lea.vmem [#allocation5], %s521
        %p523 = pneg %p97
        %p524 = pneg %p94
        %p525 = pneg %p118
        %p526 = pneg %p115
        %p527 = pneg %p139
        %p528 = pneg %p136
        %p529 = pneg %p160
        %p530 = pneg %p157
        %p531 = pneg %p181
        %p532 = pneg %p178
        %p533 = pneg %p202
        %p534 = pneg %p199
        %p535 = pneg %p223
        %p536 = pneg %p220
        %p537 = pneg %p244
        %p538 = pneg %p241
        %p539 = pneg %p265
        %p540 = pneg %p262
        %p541 = pneg %p293
        %p542 = pneg %p290
        %s543 = sand.u32 %s280, 1
        %s544 = scalar_lea.sflag [#allocation4], %s543
        %s545 = sand.u32 %s280, 1
        %s546 = smul.addr %s545, 64
        %s547 = scalar_lea.vmem [#allocation19], %s546
        %s548 = smul.u32 4, %s39
        %s549 = smul.u32 4, %s39
        %s550 = smul.u32 4, %s39
        %v551 = vld [vmem:[%s465] sm:$0xff]
        %v552 = vld [vmem:[%s465 + $0x8] sm:$0xff]
        %v553 = vld [vmem:[%s465 + $0x10] sm:$0xff]
        %v554 = vld [vmem:[%s465 + $0x18] sm:$0xff]
        %v555 = vld [vmem:[%s465 + $0x20] sm:$0xff]
        %v556 = vld [vmem:[%s465 + $0x28] sm:$0xff]
        %v557 = vld [vmem:[%s465 + $0x30] sm:$0xff]
        %v558 = vld [vmem:[%s465 + $0x38] sm:$0xff]
        %v559 = vld [vmem:[%s474] sm:$0xff]
        %v560 = vld [vmem:[%s474 + $0x8] sm:$0xff]
        %v561 = vld [vmem:[%s474 + $0x10] sm:$0xff]
        %v562 = vld [vmem:[%s474 + $0x18] sm:$0xff]
        %v563 = vld [vmem:[#allocation7] sm:$0xff]
        %v564 = vld [vmem:[#allocation7 + $0x8] sm:$0xff]
        %v565 = vld [vmem:[#allocation7 + $0x10] sm:$0xff]
        %v566 = vld [vmem:[#allocation7 + $0x18] sm:$0xff]
        %v567 = vld [vmem:[#allocation7 + $0x20] sm:$0xff]
        %v568 = vld [vmem:[#allocation7 + $0x28] sm:$0xff]
        %v569 = vld [vmem:[#allocation7 + $0x30] sm:$0xff]
        %v570 = vld [vmem:[#allocation7 + $0x38] sm:$0xff]
        %v571 = vld [vmem:[#allocation7 + $0x40] sm:$0xff]
        %v572 = vld [vmem:[#allocation7 + $0x48] sm:$0xff]
        %v573 = vld [vmem:[#allocation7 + $0x50] sm:$0xff]
        %v574 = vld [vmem:[#allocation7 + $0x58] sm:$0xff]
        %v575 = vld [vmem:[#allocation7 + $0x60] sm:$0xff]
        %v576 = vld [vmem:[#allocation7 + $0x68] sm:$0xff]
        %v577 = vld [vmem:[#allocation7 + $0x70] sm:$0xff]
        %v578 = vld [vmem:[#allocation7 + $0x78] sm:$0xff]
        %v579 = vld [vmem:[#allocation7 + $0x80] sm:$0xff]
        %v580 = vld [vmem:[#allocation7 + $0x88] sm:$0xff]
        %v581 = vld [vmem:[#allocation7 + $0x90] sm:$0xff]
        %v582 = vld [vmem:[#allocation7 + $0x98] sm:$0xff]
        %v583 = vld [vmem:[#allocation7 + $0xa0] sm:$0xff]
        %v584 = vld [vmem:[#allocation7 + $0xa8] sm:$0xff]
        %v585 = vld [vmem:[#allocation7 + $0xb0] sm:$0xff]
        %v586 = vld [vmem:[#allocation7 + $0xb8] sm:$0xff]
        %v587 = vld [vmem:[#allocation7 + $0xc0] sm:$0xff]
        %v588 = vld [vmem:[#allocation7 + $0xc8] sm:$0xff]
        %v589 = vld [vmem:[#allocation7 + $0xd0] sm:$0xff]
        %v590 = vld [vmem:[#allocation7 + $0xd8] sm:$0xff]
        %v591 = vld [vmem:[#allocation7 + $0xe0] sm:$0xff]
        %v592 = vld [vmem:[#allocation7 + $0xe8] sm:$0xff]
        %v593 = vld [vmem:[#allocation7 + $0xf0] sm:$0xff]
        %v594 = vld [vmem:[#allocation7 + $0xf8] sm:$0xff]
        %v599 = vunpack.c.l.b16 %v559
        %v600 = vunpack.c.h.b16 %v559
        %v601 = vunpack.c.l.b16 %v560
        %v602 = vunpack.c.h.b16 %v560
        %v603 = vunpack.c.l.b16 %v561
        %v604 = vunpack.c.h.b16 %v561
        %v605 = vunpack.c.l.b16 %v562
        %v606 = vunpack.c.h.b16 %v562
        %v607 = vpack.c.b16 %v601, %v599
        %v608 = vpack.c.b16 %v602, %v600
        %v609 = vpack.c.b16 %v605, %v603
        %v610 = vpack.c.b16 %v606, %v604
        %v647 = vunpack.c.l.b16 %v563
        %v648 = vunpack.c.h.b16 %v563
        %v649 = vunpack.c.l.b16 %v564
        %v650 = vunpack.c.h.b16 %v564
        %v651 = vunpack.c.l.b16 %v565
        %v652 = vunpack.c.h.b16 %v565
        %v653 = vunpack.c.l.b16 %v566
        %v654 = vunpack.c.h.b16 %v566
        %v655 = vunpack.c.l.b16 %v567
        %v656 = vunpack.c.h.b16 %v567
        %v657 = vunpack.c.l.b16 %v568
        %v658 = vunpack.c.h.b16 %v568
        %v659 = vunpack.c.l.b16 %v569
        %v660 = vunpack.c.h.b16 %v569
        %v661 = vunpack.c.l.b16 %v570
        %v662 = vunpack.c.h.b16 %v570
        %v663 = vunpack.c.l.b16 %v571
        %v664 = vunpack.c.h.b16 %v571
        %v665 = vunpack.c.l.b16 %v572
        %v666 = vunpack.c.h.b16 %v572
        %v667 = vunpack.c.l.b16 %v573
        %v668 = vunpack.c.h.b16 %v573
        %v669 = vunpack.c.l.b16 %v574
        %v670 = vunpack.c.h.b16 %v574
        %v671 = vunpack.c.l.b16 %v575
        %v672 = vunpack.c.h.b16 %v575
        %v673 = vunpack.c.l.b16 %v576
        %v674 = vunpack.c.h.b16 %v576
        %v675 = vunpack.c.l.b16 %v577
        %v676 = vunpack.c.h.b16 %v577
        %v677 = vunpack.c.l.b16 %v578
        %v678 = vunpack.c.h.b16 %v578
        %v679 = vunpack.c.l.b16 %v579
        %v680 = vunpack.c.h.b16 %v579
        %v681 = vunpack.c.l.b16 %v580
        %v682 = vunpack.c.h.b16 %v580
        %v683 = vunpack.c.l.b16 %v581
        %v684 = vunpack.c.h.b16 %v581
        %v685 = vunpack.c.l.b16 %v582
        %v686 = vunpack.c.h.b16 %v582
        %v687 = vunpack.c.l.b16 %v583
        %v688 = vunpack.c.h.b16 %v583
        %v689 = vunpack.c.l.b16 %v584
        %v690 = vunpack.c.h.b16 %v584
        %v691 = vunpack.c.l.b16 %v585
        %v692 = vunpack.c.h.b16 %v585
        %v693 = vunpack.c.l.b16 %v586
        %v694 = vunpack.c.h.b16 %v586
        %v695 = vunpack.c.l.b16 %v587
        %v696 = vunpack.c.h.b16 %v587
        %v697 = vunpack.c.l.b16 %v588
        %v698 = vunpack.c.h.b16 %v588
        %v699 = vunpack.c.l.b16 %v589
        %v700 = vunpack.c.h.b16 %v589
        %v701 = vunpack.c.l.b16 %v590
        %v702 = vunpack.c.h.b16 %v590
        %v703 = vunpack.c.l.b16 %v591
        %v704 = vunpack.c.h.b16 %v591
        %v705 = vunpack.c.l.b16 %v592
        %v706 = vunpack.c.h.b16 %v592
        %v707 = vunpack.c.l.b16 %v593
        %v708 = vunpack.c.h.b16 %v593
        %v709 = vunpack.c.l.b16 %v594
        %v710 = vunpack.c.h.b16 %v594
        %v711 = vpack.c.b16 %v649, %v647
        %v712 = vpack.c.b16 %v650, %v648
        %v713 = vpack.c.b16 %v653, %v651
        %v714 = vpack.c.b16 %v654, %v652
        %v715 = vpack.c.b16 %v657, %v655
        %v716 = vpack.c.b16 %v658, %v656
        %v717 = vpack.c.b16 %v661, %v659
        %v718 = vpack.c.b16 %v662, %v660
        %v719 = vpack.c.b16 %v665, %v663
        %v720 = vpack.c.b16 %v666, %v664
        %v721 = vpack.c.b16 %v669, %v667
        %v722 = vpack.c.b16 %v670, %v668
        %v723 = vpack.c.b16 %v673, %v671
        %v724 = vpack.c.b16 %v674, %v672
        %v725 = vpack.c.b16 %v677, %v675
        %v726 = vpack.c.b16 %v678, %v676
        %v727 = vpack.c.b16 %v681, %v679
        %v728 = vpack.c.b16 %v682, %v680
        %v729 = vpack.c.b16 %v685, %v683
        %v730 = vpack.c.b16 %v686, %v684
        %v731 = vpack.c.b16 %v689, %v687
        %v732 = vpack.c.b16 %v690, %v688
        %v733 = vpack.c.b16 %v693, %v691
        %v734 = vpack.c.b16 %v694, %v692
        %v735 = vpack.c.b16 %v697, %v695
        %v736 = vpack.c.b16 %v698, %v696
        %v737 = vpack.c.b16 %v701, %v699
        %v738 = vpack.c.b16 %v702, %v700
        %v739 = vpack.c.b16 %v705, %v703
        %v740 = vpack.c.b16 %v706, %v704
        %v741 = vpack.c.b16 %v709, %v707
        %v742 = vpack.c.b16 %v710, %v708
        %775 = vmatprep.subr.bf16.mxu0 %v712
        %776 = vmatpush1.bf16.msra.mxu0 %v711
        %777 = vmatprep.subr.bf16.mxu0 %v714
        %778 = vmatpush1.bf16.msra.mxu0 %v713
        %779 = vmatprep.subr.bf16.mxu0 %v716
        %780 = vmatpush1.bf16.msra.mxu0 %v715
        %781 = vmatprep.subr.bf16.mxu0 %v718
        %782 = vmatpush1.bf16.msra.mxu0 %v717
        %783 = vmatprep.subr.bf16.mxu0 %v720
        %784 = vmatpush1.bf16.msra.mxu0 %v719
        %785 = vmatprep.subr.bf16.mxu0 %v722
        %786 = vmatpush1.bf16.msra.mxu0 %v721
        %787 = vmatprep.subr.bf16.mxu0 %v724
        %788 = vmatpush1.bf16.msra.mxu0 %v723
        %789 = vmatprep.subr.bf16.mxu0 %v726
        %790 = vmatpush1.bf16.msra.mxu0 %v725
        %791 = vmatprep.subr.bf16.mxu0 %v728
        %792 = vmatpush1.bf16.msra.mxu0 %v727
        %793 = vmatprep.subr.bf16.mxu0 %v730
        %794 = vmatpush1.bf16.msra.mxu0 %v729
        %795 = vmatprep.subr.bf16.mxu0 %v732
        %796 = vmatpush1.bf16.msra.mxu0 %v731
        %797 = vmatprep.subr.bf16.mxu0 %v734
        %798 = vmatpush1.bf16.msra.mxu0 %v733
        %799 = vmatprep.subr.bf16.mxu0 %v736
        %800 = vmatpush1.bf16.msra.mxu0 %v735
        %801 = vmatprep.subr.bf16.mxu0 %v738
        %802 = vmatpush1.bf16.msra.mxu0 %v737
        %803 = vmatprep.subr.bf16.mxu0 %v740
        %804 = vmatpush1.bf16.msra.mxu0 %v739
        %805 = vmatprep.subr.bf16.mxu0 %v742
        %806 = vmatpush1.bf16.msra.mxu0 %v741
        %807 = vmatprep.mubr.bf16.mxu0 %v608
        %808 = vmatmul.mubr.bf16.gmra.mrb[0].mxu0 %v607
        %v809 = vpop.f32.mrb[0].mxu0
        %v810 = vadd.f32 0.0, %v809
        %v811 = vpop.f32.mrb[0].mxu0
        %v812 = vadd.f32 0.0, %v811
        %v813 = vpop.f32.mrb[0].mxu0
        %v814 = vadd.f32 0.0, %v813
        %v815 = vpop.f32.mrb[0].mxu0
        %v816 = vadd.f32 0.0, %v815
        %817 = vmatprep.mubr.bf16.mxu0 %v610
        %818 = vmatmul.mubr.bf16.gmra.mrb[0].mxu0 %v609
        %v819 = vpop.f32.mrb[0].mxu0
        %v820 = vadd.f32 0.0, %v819
        %v821 = vpop.f32.mrb[0].mxu0
        %v822 = vadd.f32 0.0, %v821
        %v823 = vpop.f32.mrb[0].mxu0
        %v824 = vadd.f32 0.0, %v823
        %v825 = vpop.f32.mrb[0].mxu0
        %v826 = vadd.f32 0.0, %v825
        %827 = vdwg.mxu0
        %v828 = vadd.f32 %v551, %v810
        %v829 = vadd.f32 %v552, %v812
        %v830 = vadd.f32 %v553, %v814
        %v831 = vadd.f32 %v554, %v816
        %v832 = vadd.f32 %v555, %v820
        %v833 = vadd.f32 %v556, %v822
        %v834 = vadd.f32 %v557, %v824
        %v835 = vadd.f32 %v558, %v826
        %v836 = vld [vmem:[#allocation8] sm:$0x3]
        %v838 = vlaneseq
        %v839 = vshrl.u32 %v838, 7
        %v840 = vsub.s32 0, %v839
        %v841 = vrot.slane %v836, %v840
        %v842 = vlaneseq
        %v843 = vshrl.u32 %v842, 7
        %v844 = vsub.s32 1, %v843
        %v845 = vrot.slane %v836, %v844
        %v848 = vadd.f32 %v828, %v841
        %v849 = vadd.f32 %v829, %v845
        %v850 = vadd.f32 %v830, %v841
        %v851 = vadd.f32 %v831, %v845
        %v852 = vadd.f32 %v832, %v841
        %v853 = vadd.f32 %v833, %v845
        %v854 = vadd.f32 %v834, %v841
        %v855 = vadd.f32 %v835, %v845
        %v856 = vld [vmem:[#allocation10] sm:$0x3]
        %v857 = vld [vmem:[#allocation11] sm:$0x3]
        %v858 = vadd.f32 %v848, %v849
        %859 = vadd.xlane.f32.xlu0 %v858
        %v860 = vpop.xlane.xlu0 %859
        %v861 = vadd.f32 %v850, %v851
        %862 = vadd.xlane.f32.xlu0 %v861
        %v863 = vpop.xlane.xlu0 %862
        %v864 = vadd.f32 %v852, %v853
        %865 = vadd.xlane.f32.xlu0 %v864
        %v866 = vpop.xlane.xlu0 %865
        %v867 = vadd.f32 %v854, %v855
        %868 = vadd.xlane.f32.xlu0 %v867
        %v869 = vpop.xlane.xlu0 %868
        %v870 = vrcp.pop 256.0
        %v871 = vmul.f32 %v860, %v870
        %v872 = vmul.f32 %v863, %v870
        %v873 = vmul.f32 %v866, %v870
        %v874 = vmul.f32 %v869, %v870
        %v875 = vsub.f32 %v848, %v871
        %v876 = vsub.f32 %v849, %v871
        %v877 = vsub.f32 %v850, %v872
        %v878 = vsub.f32 %v851, %v872
        %v879 = vsub.f32 %v852, %v873
        %v880 = vsub.f32 %v853, %v873
        %v881 = vsub.f32 %v854, %v874
        %v882 = vsub.f32 %v855, %v874
        %v883 = vmul.f32 %v875, %v875
        %v884 = vmul.f32 %v876, %v876
        %v885 = vmul.f32 %v877, %v877
        %v886 = vmul.f32 %v878, %v878
        %v887 = vmul.f32 %v879, %v879
        %v888 = vmul.f32 %v880, %v880
        %v889 = vmul.f32 %v881, %v881
        %v890 = vmul.f32 %v882, %v882
        %v891 = vadd.f32 %v883, %v884
        %892 = vadd.xlane.f32.xlu0 %v891
        %v893 = vpop.xlane.xlu0 %892
        %v894 = vadd.f32 %v885, %v886
        %895 = vadd.xlane.f32.xlu0 %v894
        %v896 = vpop.xlane.xlu0 %895
        %v897 = vadd.f32 %v887, %v888
        %898 = vadd.xlane.f32.xlu0 %v897
        %v899 = vpop.xlane.xlu0 %898
        %v900 = vadd.f32 %v889, %v890
        %901 = vadd.xlane.f32.xlu0 %v900
        %v902 = vpop.xlane.xlu0 %901
        %v903 = vmul.f32 %v893, %v870
        %v904 = vmul.f32 %v896, %v870
        %v905 = vmul.f32 %v899, %v870
        %v906 = vmul.f32 %v902, %v870
        %v907 = vadd.f32 %v903, 1e-05
        %v908 = vadd.f32 %v904, 1e-05
        %v909 = vadd.f32 %v905, 1e-05
        %v910 = vadd.f32 %v906, 1e-05
        %v911 = vrsqrt.pop %v907
        %v912 = vrsqrt.pop %v908
        %v913 = vrsqrt.pop %v909
        %v914 = vrsqrt.pop %v910
        %v915 = vmul.f32 %v875, %v911
        %v916 = vmul.f32 %v876, %v911
        %v917 = vmul.f32 %v877, %v912
        %v918 = vmul.f32 %v878, %v912
        %v919 = vmul.f32 %v879, %v913
        %v920 = vmul.f32 %v880, %v913
        %v921 = vmul.f32 %v881, %v914
        %v922 = vmul.f32 %v882, %v914
        %v924 = vlaneseq
        %v925 = vshrl.u32 %v924, 7
        %v926 = vsub.s32 0, %v925
        %v927 = vrot.slane %v856, %v926
        %v928 = vlaneseq
        %v929 = vshrl.u32 %v928, 7
        %v930 = vsub.s32 1, %v929
        %v931 = vrot.slane %v856, %v930
        %v934 = vmul.f32 %v915, %v927
        %v935 = vmul.f32 %v916, %v931
        %v936 = vmul.f32 %v917, %v927
        %v937 = vmul.f32 %v918, %v931
        %v938 = vmul.f32 %v919, %v927
        %v939 = vmul.f32 %v920, %v931
        %v940 = vmul.f32 %v921, %v927
        %v941 = vmul.f32 %v922, %v931
        %v943 = vlaneseq
        %v944 = vshrl.u32 %v943, 7
        %v945 = vsub.s32 0, %v944
        %v946 = vrot.slane %v857, %v945
        %v947 = vlaneseq
        %v948 = vshrl.u32 %v947, 7
        %v949 = vsub.s32 1, %v948
        %v950 = vrot.slane %v857, %v949
        %v953 = vadd.f32 %v934, %v946
        %v954 = vadd.f32 %v935, %v950
        %v955 = vadd.f32 %v936, %v946
        %v956 = vadd.f32 %v937, %v950
        %v957 = vadd.f32 %v938, %v946
        %v958 = vadd.f32 %v939, %v950
        %v959 = vadd.f32 %v940, %v946
        %v960 = vadd.f32 %v941, %v950
        %v961 = vpack.c.bf16 %v955, %v953
        %v962 = vpack.c.bf16 %v956, %v954
        %v963 = vpack.c.bf16 %v959, %v957
        %v964 = vpack.c.bf16 %v960, %v958
        %v965 = vld [vmem:[#allocation13] sm:$0xff]
        %v966 = vld [vmem:[#allocation13 + $0x8] sm:$0xff]
        %v967 = vld [vmem:[#allocation13 + $0x10] sm:$0xff]
        %v968 = vld [vmem:[#allocation13 + $0x18] sm:$0xff]
        %v969 = vld [vmem:[#allocation13 + $0x20] sm:$0xff]
        %v970 = vld [vmem:[#allocation13 + $0x28] sm:$0xff]
        %v971 = vld [vmem:[#allocation13 + $0x30] sm:$0xff]
        %v972 = vld [vmem:[#allocation13 + $0x38] sm:$0xff]
        %v973 = vld [vmem:[#allocation13 + $0x40] sm:$0xff]
        %v974 = vld [vmem:[#allocation13 + $0x48] sm:$0xff]
        %v975 = vld [vmem:[#allocation13 + $0x50] sm:$0xff]
        %v976 = vld [vmem:[#allocation13 + $0x58] sm:$0xff]
        %v977 = vld [vmem:[#allocation13 + $0x60] sm:$0xff]
        %v978 = vld [vmem:[#allocation13 + $0x68] sm:$0xff]
        %v979 = vld [vmem:[#allocation13 + $0x70] sm:$0xff]
        %v980 = vld [vmem:[#allocation13 + $0x78] sm:$0xff]
        %v981 = vld [vmem:[#allocation13 + $0x80] sm:$0xff]
        %v982 = vld [vmem:[#allocation13 + $0x88] sm:$0xff]
        %v983 = vld [vmem:[#allocation13 + $0x90] sm:$0xff]
        %v984 = vld [vmem:[#allocation13 + $0x98] sm:$0xff]
        %v985 = vld [vmem:[#allocation13 + $0xa0] sm:$0xff]
        %v986 = vld [vmem:[#allocation13 + $0xa8] sm:$0xff]
        %v987 = vld [vmem:[#allocation13 + $0xb0] sm:$0xff]
        %v988 = vld [vmem:[#allocation13 + $0xb8] sm:$0xff]
        %v989 = vld [vmem:[#allocation13 + $0xc0] sm:$0xff]
        %v990 = vld [vmem:[#allocation13 + $0xc8] sm:$0xff]
        %v991 = vld [vmem:[#allocation13 + $0xd0] sm:$0xff]
        %v992 = vld [vmem:[#allocation13 + $0xd8] sm:$0xff]
        %v993 = vld [vmem:[#allocation13 + $0xe0] sm:$0xff]
        %v994 = vld [vmem:[#allocation13 + $0xe8] sm:$0xff]
        %v995 = vld [vmem:[#allocation13 + $0xf0] sm:$0xff]
        %v996 = vld [vmem:[#allocation13 + $0xf8] sm:$0xff]
        %v997 = vld [vmem:[#allocation13 + $0x100] sm:$0xff]
        %v998 = vld [vmem:[#allocation13 + $0x108] sm:$0xff]
        %v999 = vld [vmem:[#allocation13 + $0x110] sm:$0xff]
        %v1000 = vld [vmem:[#allocation13 + $0x118] sm:$0xff]
        %v1001 = vld [vmem:[#allocation13 + $0x120] sm:$0xff]
        %v1002 = vld [vmem:[#allocation13 + $0x128] sm:$0xff]
        %v1003 = vld [vmem:[#allocation13 + $0x130] sm:$0xff]
        %v1004 = vld [vmem:[#allocation13 + $0x138] sm:$0xff]
        %v1005 = vld [vmem:[#allocation13 + $0x140] sm:$0xff]
        %v1006 = vld [vmem:[#allocation13 + $0x148] sm:$0xff]
        %v1007 = vld [vmem:[#allocation13 + $0x150] sm:$0xff]
        %v1008 = vld [vmem:[#allocation13 + $0x158] sm:$0xff]
        %v1009 = vld [vmem:[#allocation13 + $0x160] sm:$0xff]
        %v1010 = vld [vmem:[#allocation13 + $0x168] sm:$0xff]
        %v1011 = vld [vmem:[#allocation13 + $0x170] sm:$0xff]
        %v1012 = vld [vmem:[#allocation13 + $0x178] sm:$0xff]
        %v1013 = vld [vmem:[#allocation13 + $0x180] sm:$0xff]
        %v1014 = vld [vmem:[#allocation13 + $0x188] sm:$0xff]
        %v1015 = vld [vmem:[#allocation13 + $0x190] sm:$0xff]
        %v1016 = vld [vmem:[#allocation13 + $0x198] sm:$0xff]
        %v1017 = vld [vmem:[#allocation13 + $0x1a0] sm:$0xff]
        %v1018 = vld [vmem:[#allocation13 + $0x1a8] sm:$0xff]
        %v1019 = vld [vmem:[#allocation13 + $0x1b0] sm:$0xff]
        %v1020 = vld [vmem:[#allocation13 + $0x1b8] sm:$0xff]
        %v1021 = vld [vmem:[#allocation13 + $0x1c0] sm:$0xff]
        %v1022 = vld [vmem:[#allocation13 + $0x1c8] sm:$0xff]
        %v1023 = vld [vmem:[#allocation13 + $0x1d0] sm:$0xff]
        %v1024 = vld [vmem:[#allocation13 + $0x1d8] sm:$0xff]
        %v1025 = vld [vmem:[#allocation13 + $0x1e0] sm:$0xff]
        %v1026 = vld [vmem:[#allocation13 + $0x1e8] sm:$0xff]
        %v1027 = vld [vmem:[#allocation13 + $0x1f0] sm:$0xff]
        %v1028 = vld [vmem:[#allocation13 + $0x1f8] sm:$0xff]
        %v1029 = vld [vmem:[#allocation13 + $0x200] sm:$0xff]
        %v1030 = vld [vmem:[#allocation13 + $0x208] sm:$0xff]
        %v1031 = vld [vmem:[#allocation13 + $0x210] sm:$0xff]
        %v1032 = vld [vmem:[#allocation13 + $0x218] sm:$0xff]
        %v1033 = vld [vmem:[#allocation13 + $0x220] sm:$0xff]
        %v1034 = vld [vmem:[#allocation13 + $0x228] sm:$0xff]
        %v1035 = vld [vmem:[#allocation13 + $0x230] sm:$0xff]
        %v1036 = vld [vmem:[#allocation13 + $0x238] sm:$0xff]
        %v1037 = vld [vmem:[#allocation13 + $0x240] sm:$0xff]
        %v1038 = vld [vmem:[#allocation13 + $0x248] sm:$0xff]
        %v1039 = vld [vmem:[#allocation13 + $0x250] sm:$0xff]
        %v1040 = vld [vmem:[#allocation13 + $0x258] sm:$0xff]
        %v1041 = vld [vmem:[#allocation13 + $0x260] sm:$0xff]
        %v1042 = vld [vmem:[#allocation13 + $0x268] sm:$0xff]
        %v1043 = vld [vmem:[#allocation13 + $0x270] sm:$0xff]
        %v1044 = vld [vmem:[#allocation13 + $0x278] sm:$0xff]
        %v1045 = vld [vmem:[#allocation13 + $0x280] sm:$0xff]
        %v1046 = vld [vmem:[#allocation13 + $0x288] sm:$0xff]
        %v1047 = vld [vmem:[#allocation13 + $0x290] sm:$0xff]
        %v1048 = vld [vmem:[#allocation13 + $0x298] sm:$0xff]
        %v1049 = vld [vmem:[#allocation13 + $0x2a0] sm:$0xff]
        %v1050 = vld [vmem:[#allocation13 + $0x2a8] sm:$0xff]
        %v1051 = vld [vmem:[#allocation13 + $0x2b0] sm:$0xff]
        %v1052 = vld [vmem:[#allocation13 + $0x2b8] sm:$0xff]
        %v1053 = vld [vmem:[#allocation13 + $0x2c0] sm:$0xff]
        %v1054 = vld [vmem:[#allocation13 + $0x2c8] sm:$0xff]
        %v1055 = vld [vmem:[#allocation13 + $0x2d0] sm:$0xff]
        %v1056 = vld [vmem:[#allocation13 + $0x2d8] sm:$0xff]
        %v1057 = vld [vmem:[#allocation13 + $0x2e0] sm:$0xff]
        %v1058 = vld [vmem:[#allocation13 + $0x2e8] sm:$0xff]
        %v1059 = vld [vmem:[#allocation13 + $0x2f0] sm:$0xff]
        %v1060 = vld [vmem:[#allocation13 + $0x2f8] sm:$0xff]
        %v1061 = vld [vmem:[#allocation13 + $0x300] sm:$0xff]
        %v1062 = vld [vmem:[#allocation13 + $0x308] sm:$0xff]
        %v1063 = vld [vmem:[#allocation13 + $0x310] sm:$0xff]
        %v1064 = vld [vmem:[#allocation13 + $0x318] sm:$0xff]
        %v1065 = vld [vmem:[#allocation13 + $0x320] sm:$0xff]
        %v1066 = vld [vmem:[#allocation13 + $0x328] sm:$0xff]
        %v1067 = vld [vmem:[#allocation13 + $0x330] sm:$0xff]
        %v1068 = vld [vmem:[#allocation13 + $0x338] sm:$0xff]
        %v1069 = vld [vmem:[#allocation13 + $0x340] sm:$0xff]
        %v1070 = vld [vmem:[#allocation13 + $0x348] sm:$0xff]
        %v1071 = vld [vmem:[#allocation13 + $0x350] sm:$0xff]
        %v1072 = vld [vmem:[#allocation13 + $0x358] sm:$0xff]
        %v1073 = vld [vmem:[#allocation13 + $0x360] sm:$0xff]
        %v1074 = vld [vmem:[#allocation13 + $0x368] sm:$0xff]
        %v1075 = vld [vmem:[#allocation13 + $0x370] sm:$0xff]
        %v1076 = vld [vmem:[#allocation13 + $0x378] sm:$0xff]
        %v1077 = vld [vmem:[#allocation13 + $0x380] sm:$0xff]
        %v1078 = vld [vmem:[#allocation13 + $0x388] sm:$0xff]
        %v1079 = vld [vmem:[#allocation13 + $0x390] sm:$0xff]
        %v1080 = vld [vmem:[#allocation13 + $0x398] sm:$0xff]
        %v1081 = vld [vmem:[#allocation13 + $0x3a0] sm:$0xff]
        %v1082 = vld [vmem:[#allocation13 + $0x3a8] sm:$0xff]
        %v1083 = vld [vmem:[#allocation13 + $0x3b0] sm:$0xff]
        %v1084 = vld [vmem:[#allocation13 + $0x3b8] sm:$0xff]
        %v1085 = vld [vmem:[#allocation13 + $0x3c0] sm:$0xff]
        %v1086 = vld [vmem:[#allocation13 + $0x3c8] sm:$0xff]
        %v1087 = vld [vmem:[#allocation13 + $0x3d0] sm:$0xff]
        %v1088 = vld [vmem:[#allocation13 + $0x3d8] sm:$0xff]
        %v1089 = vld [vmem:[#allocation13 + $0x3e0] sm:$0xff]
        %v1090 = vld [vmem:[#allocation13 + $0x3e8] sm:$0xff]
        %v1091 = vld [vmem:[#allocation13 + $0x3f0] sm:$0xff]
        %v1092 = vld [vmem:[#allocation13 + $0x3f8] sm:$0xff]
        %v1093 = vld [vmem:[#allocation14] sm:$0xff]
        %v1095 = vlaneseq
        %v1096 = vshrl.u32 %v1095, 7
        %v1097 = vsub.s32 0, %v1096
        %v1098 = vrot.slane %v1093, %v1097
        %v1099 = vlaneseq
        %v1100 = vshrl.u32 %v1099, 7
        %v1101 = vsub.s32 1, %v1100
        %v1102 = vrot.slane %v1093, %v1101
        %v1103 = vlaneseq
        %v1104 = vshrl.u32 %v1103, 7
        %v1105 = vsub.s32 2, %v1104
        %v1106 = vrot.slane %v1093, %v1105
        %v1107 = vlaneseq
        %v1108 = vshrl.u32 %v1107, 7
        %v1109 = vsub.s32 3, %v1108
        %v1110 = vrot.slane %v1093, %v1109
        %v1111 = vlaneseq
        %v1112 = vshrl.u32 %v1111, 7
        %v1113 = vsub.s32 4, %v1112
        %v1114 = vrot.slane %v1093, %v1113
        %v1115 = vlaneseq
        %v1116 = vshrl.u32 %v1115, 7
        %v1117 = vsub.s32 5, %v1116
        %v1118 = vrot.slane %v1093, %v1117
        %v1119 = vlaneseq
        %v1120 = vshrl.u32 %v1119, 7
        %v1121 = vsub.s32 6, %v1120
        %v1122 = vrot.slane %v1093, %v1121
        %v1123 = vlaneseq
        %v1124 = vshrl.u32 %v1123, 7
        %v1125 = vsub.s32 7, %v1124
        %v1126 = vrot.slane %v1093, %v1125
        %v1263 = vunpack.c.l.b16 %v965
        %v1264 = vunpack.c.h.b16 %v965
        %v1265 = vunpack.c.l.b16 %v966
        %v1266 = vunpack.c.h.b16 %v966
        %v1267 = vunpack.c.l.b16 %v967
        %v1268 = vunpack.c.h.b16 %v967
        %v1269 = vunpack.c.l.b16 %v968
        %v1270 = vunpack.c.h.b16 %v968
        %v1271 = vunpack.c.l.b16 %v969
        %v1272 = vunpack.c.h.b16 %v969
        %v1273 = vunpack.c.l.b16 %v970
        %v1274 = vunpack.c.h.b16 %v970
        %v1275 = vunpack.c.l.b16 %v971
        %v1276 = vunpack.c.h.b16 %v971
        %v1277 = vunpack.c.l.b16 %v972
        %v1278 = vunpack.c.h.b16 %v972
        %v1279 = vunpack.c.l.b16 %v973
        %v1280 = vunpack.c.h.b16 %v973
        %v1281 = vunpack.c.l.b16 %v974
        %v1282 = vunpack.c.h.b16 %v974
        %v1283 = vunpack.c.l.b16 %v975
        %v1284 = vunpack.c.h.b16 %v975
        %v1285 = vunpack.c.l.b16 %v976
        %v1286 = vunpack.c.h.b16 %v976
        %v1287 = vunpack.c.l.b16 %v977
        %v1288 = vunpack.c.h.b16 %v977
        %v1289 = vunpack.c.l.b16 %v978
        %v1290 = vunpack.c.h.b16 %v978
        %v1291 = vunpack.c.l.b16 %v979
        %v1292 = vunpack.c.h.b16 %v979
        %v1293 = vunpack.c.l.b16 %v980
        %v1294 = vunpack.c.h.b16 %v980
        %v1295 = vunpack.c.l.b16 %v981
        %v1296 = vunpack.c.h.b16 %v981
        %v1297 = vunpack.c.l.b16 %v982
        %v1298 = vunpack.c.h.b16 %v982
        %v1299 = vunpack.c.l.b16 %v983
        %v1300 = vunpack.c.h.b16 %v983
        %v1301 = vunpack.c.l.b16 %v984
        %v1302 = vunpack.c.h.b16 %v984
        %v1303 = vunpack.c.l.b16 %v985
        %v1304 = vunpack.c.h.b16 %v985
        %v1305 = vunpack.c.l.b16 %v986
        %v1306 = vunpack.c.h.b16 %v986
        %v1307 = vunpack.c.l.b16 %v987
        %v1308 = vunpack.c.h.b16 %v987
        %v1309 = vunpack.c.l.b16 %v988
        %v1310 = vunpack.c.h.b16 %v988
        %v1311 = vunpack.c.l.b16 %v989
        %v1312 = vunpack.c.h.b16 %v989
        %v1313 = vunpack.c.l.b16 %v990
        %v1314 = vunpack.c.h.b16 %v990
        %v1315 = vunpack.c.l.b16 %v991
        %v1316 = vunpack.c.h.b16 %v991
        %v1317 = vunpack.c.l.b16 %v992
        %v1318 = vunpack.c.h.b16 %v992
        %v1319 = vunpack.c.l.b16 %v993
        %v1320 = vunpack.c.h.b16 %v993
        %v1321 = vunpack.c.l.b16 %v994
        %v1322 = vunpack.c.h.b16 %v994
        %v1323 = vunpack.c.l.b16 %v995
        %v1324 = vunpack.c.h.b16 %v995
        %v1325 = vunpack.c.l.b16 %v996
        %v1326 = vunpack.c.h.b16 %v996
        %v1327 = vunpack.c.l.b16 %v997
        %v1328 = vunpack.c.h.b16 %v997
        %v1329 = vunpack.c.l.b16 %v998
        %v1330 = vunpack.c.h.b16 %v998
        %v1331 = vunpack.c.l.b16 %v999
        %v1332 = vunpack.c.h.b16 %v999
        %v1333 = vunpack.c.l.b16 %v1000
        %v1334 = vunpack.c.h.b16 %v1000
        %v1335 = vunpack.c.l.b16 %v1001
        %v1336 = vunpack.c.h.b16 %v1001
        %v1337 = vunpack.c.l.b16 %v1002
        %v1338 = vunpack.c.h.b16 %v1002
        %v1339 = vunpack.c.l.b16 %v1003
        %v1340 = vunpack.c.h.b16 %v1003
        %v1341 = vunpack.c.l.b16 %v1004
        %v1342 = vunpack.c.h.b16 %v1004
        %v1343 = vunpack.c.l.b16 %v1005
        %v1344 = vunpack.c.h.b16 %v1005
        %v1345 = vunpack.c.l.b16 %v1006
        %v1346 = vunpack.c.h.b16 %v1006
        %v1347 = vunpack.c.l.b16 %v1007
        %v1348 = vunpack.c.h.b16 %v1007
        %v1349 = vunpack.c.l.b16 %v1008
        %v1350 = vunpack.c.h.b16 %v1008
        %v1351 = vunpack.c.l.b16 %v1009
        %v1352 = vunpack.c.h.b16 %v1009
        %v1353 = vunpack.c.l.b16 %v1010
        %v1354 = vunpack.c.h.b16 %v1010
        %v1355 = vunpack.c.l.b16 %v1011
        %v1356 = vunpack.c.h.b16 %v1011
        %v1357 = vunpack.c.l.b16 %v1012
        %v1358 = vunpack.c.h.b16 %v1012
        %v1359 = vunpack.c.l.b16 %v1013
        %v1360 = vunpack.c.h.b16 %v1013
        %v1361 = vunpack.c.l.b16 %v1014
        %v1362 = vunpack.c.h.b16 %v1014
        %v1363 = vunpack.c.l.b16 %v1015
        %v1364 = vunpack.c.h.b16 %v1015
        %v1365 = vunpack.c.l.b16 %v1016
        %v1366 = vunpack.c.h.b16 %v1016
        %v1367 = vunpack.c.l.b16 %v1017
        %v1368 = vunpack.c.h.b16 %v1017
        %v1369 = vunpack.c.l.b16 %v1018
        %v1370 = vunpack.c.h.b16 %v1018
        %v1371 = vunpack.c.l.b16 %v1019
        %v1372 = vunpack.c.h.b16 %v1019
        %v1373 = vunpack.c.l.b16 %v1020
        %v1374 = vunpack.c.h.b16 %v1020
        %v1375 = vunpack.c.l.b16 %v1021
        %v1376 = vunpack.c.h.b16 %v1021
        %v1377 = vunpack.c.l.b16 %v1022
        %v1378 = vunpack.c.h.b16 %v1022
        %v1379 = vunpack.c.l.b16 %v1023
        %v1380 = vunpack.c.h.b16 %v1023
        %v1381 = vunpack.c.l.b16 %v1024
        %v1382 = vunpack.c.h.b16 %v1024
        %v1383 = vunpack.c.l.b16 %v1025
        %v1384 = vunpack.c.h.b16 %v1025
        %v1385 = vunpack.c.l.b16 %v1026
        %v1386 = vunpack.c.h.b16 %v1026
        %v1387 = vunpack.c.l.b16 %v1027
        %v1388 = vunpack.c.h.b16 %v1027
        %v1389 = vunpack.c.l.b16 %v1028
        %v1390 = vunpack.c.h.b16 %v1028
        %v1391 = vunpack.c.l.b16 %v1029
        %v1392 = vunpack.c.h.b16 %v1029
        %v1393 = vunpack.c.l.b16 %v1030
        %v1394 = vunpack.c.h.b16 %v1030
        %v1395 = vunpack.c.l.b16 %v1031
        %v1396 = vunpack.c.h.b16 %v1031
        %v1397 = vunpack.c.l.b16 %v1032
        %v1398 = vunpack.c.h.b16 %v1032
        %v1399 = vunpack.c.l.b16 %v1033
        %v1400 = vunpack.c.h.b16 %v1033
        %v1401 = vunpack.c.l.b16 %v1034
        %v1402 = vunpack.c.h.b16 %v1034
        %v1403 = vunpack.c.l.b16 %v1035
        %v1404 = vunpack.c.h.b16 %v1035
        %v1405 = vunpack.c.l.b16 %v1036
        %v1406 = vunpack.c.h.b16 %v1036
        %v1407 = vunpack.c.l.b16 %v1037
        %v1408 = vunpack.c.h.b16 %v1037
        %v1409 = vunpack.c.l.b16 %v1038
        %v1410 = vunpack.c.h.b16 %v1038
        %v1411 = vunpack.c.l.b16 %v1039
        %v1412 = vunpack.c.h.b16 %v1039
        %v1413 = vunpack.c.l.b16 %v1040
        %v1414 = vunpack.c.h.b16 %v1040
        %v1415 = vunpack.c.l.b16 %v1041
        %v1416 = vunpack.c.h.b16 %v1041
        %v1417 = vunpack.c.l.b16 %v1042
        %v1418 = vunpack.c.h.b16 %v1042
        %v1419 = vunpack.c.l.b16 %v1043
        %v1420 = vunpack.c.h.b16 %v1043
        %v1421 = vunpack.c.l.b16 %v1044
        %v1422 = vunpack.c.h.b16 %v1044
        %v1423 = vunpack.c.l.b16 %v1045
        %v1424 = vunpack.c.h.b16 %v1045
        %v1425 = vunpack.c.l.b16 %v1046
        %v1426 = vunpack.c.h.b16 %v1046
        %v1427 = vunpack.c.l.b16 %v1047
        %v1428 = vunpack.c.h.b16 %v1047
        %v1429 = vunpack.c.l.b16 %v1048
        %v1430 = vunpack.c.h.b16 %v1048
        %v1431 = vunpack.c.l.b16 %v1049
        %v1432 = vunpack.c.h.b16 %v1049
        %v1433 = vunpack.c.l.b16 %v1050
        %v1434 = vunpack.c.h.b16 %v1050
        %v1435 = vunpack.c.l.b16 %v1051
        %v1436 = vunpack.c.h.b16 %v1051
        %v1437 = vunpack.c.l.b16 %v1052
        %v1438 = vunpack.c.h.b16 %v1052
        %v1439 = vunpack.c.l.b16 %v1053
        %v1440 = vunpack.c.h.b16 %v1053
        %v1441 = vunpack.c.l.b16 %v1054
        %v1442 = vunpack.c.h.b16 %v1054
        %v1443 = vunpack.c.l.b16 %v1055
        %v1444 = vunpack.c.h.b16 %v1055
        %v1445 = vunpack.c.l.b16 %v1056
        %v1446 = vunpack.c.h.b16 %v1056
        %v1447 = vunpack.c.l.b16 %v1057
        %v1448 = vunpack.c.h.b16 %v1057
        %v1449 = vunpack.c.l.b16 %v1058
        %v1450 = vunpack.c.h.b16 %v1058
        %v1451 = vunpack.c.l.b16 %v1059
        %v1452 = vunpack.c.h.b16 %v1059
        %v1453 = vunpack.c.l.b16 %v1060
        %v1454 = vunpack.c.h.b16 %v1060
        %v1455 = vunpack.c.l.b16 %v1061
        %v1456 = vunpack.c.h.b16 %v1061
        %v1457 = vunpack.c.l.b16 %v1062
        %v1458 = vunpack.c.h.b16 %v1062
        %v1459 = vunpack.c.l.b16 %v1063
        %v1460 = vunpack.c.h.b16 %v1063
        %v1461 = vunpack.c.l.b16 %v1064
        %v1462 = vunpack.c.h.b16 %v1064
        %v1463 = vunpack.c.l.b16 %v1065
        %v1464 = vunpack.c.h.b16 %v1065
        %v1465 = vunpack.c.l.b16 %v1066
        %v1466 = vunpack.c.h.b16 %v1066
        %v1467 = vunpack.c.l.b16 %v1067
        %v1468 = vunpack.c.h.b16 %v1067
        %v1469 = vunpack.c.l.b16 %v1068
        %v1470 = vunpack.c.h.b16 %v1068
        %v1471 = vunpack.c.l.b16 %v1069
        %v1472 = vunpack.c.h.b16 %v1069
        %v1473 = vunpack.c.l.b16 %v1070
        %v1474 = vunpack.c.h.b16 %v1070
        %v1475 = vunpack.c.l.b16 %v1071
        %v1476 = vunpack.c.h.b16 %v1071
        %v1477 = vunpack.c.l.b16 %v1072
        %v1478 = vunpack.c.h.b16 %v1072
        %v1479 = vunpack.c.l.b16 %v1073
        %v1480 = vunpack.c.h.b16 %v1073
        %v1481 = vunpack.c.l.b16 %v1074
        %v1482 = vunpack.c.h.b16 %v1074
        %v1483 = vunpack.c.l.b16 %v1075
        %v1484 = vunpack.c.h.b16 %v1075
        %v1485 = vunpack.c.l.b16 %v1076
        %v1486 = vunpack.c.h.b16 %v1076
        %v1487 = vunpack.c.l.b16 %v1077
        %v1488 = vunpack.c.h.b16 %v1077
        %v1489 = vunpack.c.l.b16 %v1078
        %v1490 = vunpack.c.h.b16 %v1078
        %v1491 = vunpack.c.l.b16 %v1079
        %v1492 = vunpack.c.h.b16 %v1079
        %v1493 = vunpack.c.l.b16 %v1080
        %v1494 = vunpack.c.h.b16 %v1080
        %v1495 = vunpack.c.l.b16 %v1081
        %v1496 = vunpack.c.h.b16 %v1081
        %v1497 = vunpack.c.l.b16 %v1082
        %v1498 = vunpack.c.h.b16 %v1082
        %v1499 = vunpack.c.l.b16 %v1083
        %v1500 = vunpack.c.h.b16 %v1083
        %v1501 = vunpack.c.l.b16 %v1084
        %v1502 = vunpack.c.h.b16 %v1084
        %v1503 = vunpack.c.l.b16 %v1085
        %v1504 = vunpack.c.h.b16 %v1085
        %v1505 = vunpack.c.l.b16 %v1086
        %v1506 = vunpack.c.h.b16 %v1086
        %v1507 = vunpack.c.l.b16 %v1087
        %v1508 = vunpack.c.h.b16 %v1087
        %v1509 = vunpack.c.l.b16 %v1088
        %v1510 = vunpack.c.h.b16 %v1088
        %v1511 = vunpack.c.l.b16 %v1089
        %v1512 = vunpack.c.h.b16 %v1089
        %v1513 = vunpack.c.l.b16 %v1090
        %v1514 = vunpack.c.h.b16 %v1090
        %v1515 = vunpack.c.l.b16 %v1091
        %v1516 = vunpack.c.h.b16 %v1091
        %v1517 = vunpack.c.l.b16 %v1092
        %v1518 = vunpack.c.h.b16 %v1092
        %v1519 = vpack.c.b16 %v1271, %v1263
        %v1520 = vpack.c.b16 %v1272, %v1264
        %v1521 = vpack.c.b16 %v1273, %v1265
        %v1522 = vpack.c.b16 %v1274, %v1266
        %v1523 = vpack.c.b16 %v1275, %v1267
        %v1524 = vpack.c.b16 %v1276, %v1268
        %v1525 = vpack.c.b16 %v1277, %v1269
        %v1526 = vpack.c.b16 %v1278, %v1270
        %v1527 = vpack.c.b16 %v1287, %v1279
        %v1528 = vpack.c.b16 %v1288, %v1280
        %v1529 = vpack.c.b16 %v1289, %v1281
        %v1530 = vpack.c.b16 %v1290, %v1282
        %v1531 = vpack.c.b16 %v1291, %v1283
        %v1532 = vpack.c.b16 %v1292, %v1284
        %v1533 = vpack.c.b16 %v1293, %v1285
        %v1534 = vpack.c.b16 %v1294, %v1286
        %v1535 = vpack.c.b16 %v1303, %v1295
        %v1536 = vpack.c.b16 %v1304, %v1296
        %v1537 = vpack.c.b16 %v1305, %v1297
        %v1538 = vpack.c.b16 %v1306, %v1298
        %v1539 = vpack.c.b16 %v1307, %v1299
        %v1540 = vpack.c.b16 %v1308, %v1300
        %v1541 = vpack.c.b16 %v1309, %v1301
        %v1542 = vpack.c.b16 %v1310, %v1302
        %v1543 = vpack.c.b16 %v1319, %v1311
        %v1544 = vpack.c.b16 %v1320, %v1312
        %v1545 = vpack.c.b16 %v1321, %v1313
        %v1546 = vpack.c.b16 %v1322, %v1314
        %v1547 = vpack.c.b16 %v1323, %v1315
        %v1548 = vpack.c.b16 %v1324, %v1316
        %v1549 = vpack.c.b16 %v1325, %v1317
        %v1550 = vpack.c.b16 %v1326, %v1318
        %v1551 = vpack.c.b16 %v1335, %v1327
        %v1552 = vpack.c.b16 %v1336, %v1328
        %v1553 = vpack.c.b16 %v1337, %v1329
        %v1554 = vpack.c.b16 %v1338, %v1330
        %v1555 = vpack.c.b16 %v1339, %v1331
        %v1556 = vpack.c.b16 %v1340, %v1332
        %v1557 = vpack.c.b16 %v1341, %v1333
        %v1558 = vpack.c.b16 %v1342, %v1334
        %v1559 = vpack.c.b16 %v1351, %v1343
        %v1560 = vpack.c.b16 %v1352, %v1344
        %v1561 = vpack.c.b16 %v1353, %v1345
        %v1562 = vpack.c.b16 %v1354, %v1346
        %v1563 = vpack.c.b16 %v1355, %v1347
        %v1564 = vpack.c.b16 %v1356, %v1348
        %v1565 = vpack.c.b16 %v1357, %v1349
        %v1566 = vpack.c.b16 %v1358, %v1350
        %v1567 = vpack.c.b16 %v1367, %v1359
        %v1568 = vpack.c.b16 %v1368, %v1360
        %v1569 = vpack.c.b16 %v1369, %v1361
        %v1570 = vpack.c.b16 %v1370, %v1362
        %v1571 = vpack.c.b16 %v1371, %v1363
        %v1572 = vpack.c.b16 %v1372, %v1364
        %v1573 = vpack.c.b16 %v1373, %v1365
        %v1574 = vpack.c.b16 %v1374, %v1366
        %v1575 = vpack.c.b16 %v1383, %v1375
        %v1576 = vpack.c.b16 %v1384, %v1376
        %v1577 = vpack.c.b16 %v1385, %v1377
        %v1578 = vpack.c.b16 %v1386, %v1378
        %v1579 = vpack.c.b16 %v1387, %v1379
        %v1580 = vpack.c.b16 %v1388, %v1380
        %v1581 = vpack.c.b16 %v1389, %v1381
        %v1582 = vpack.c.b16 %v1390, %v1382
        %v1583 = vpack.c.b16 %v1399, %v1391
        %v1584 = vpack.c.b16 %v1400, %v1392
        %v1585 = vpack.c.b16 %v1401, %v1393
        %v1586 = vpack.c.b16 %v1402, %v1394
        %v1587 = vpack.c.b16 %v1403, %v1395
        %v1588 = vpack.c.b16 %v1404, %v1396
        %v1589 = vpack.c.b16 %v1405, %v1397
        %v1590 = vpack.c.b16 %v1406, %v1398
        %v1591 = vpack.c.b16 %v1415, %v1407
        %v1592 = vpack.c.b16 %v1416, %v1408
        %v1593 = vpack.c.b16 %v1417, %v1409
        %v1594 = vpack.c.b16 %v1418, %v1410
        %v1595 = vpack.c.b16 %v1419, %v1411
        %v1596 = vpack.c.b16 %v1420, %v1412
        %v1597 = vpack.c.b16 %v1421, %v1413
        %v1598 = vpack.c.b16 %v1422, %v1414
        %v1599 = vpack.c.b16 %v1431, %v1423
        %v1600 = vpack.c.b16 %v1432, %v1424
        %v1601 = vpack.c.b16 %v1433, %v1425
        %v1602 = vpack.c.b16 %v1434, %v1426
        %v1603 = vpack.c.b16 %v1435, %v1427
        %v1604 = vpack.c.b16 %v1436, %v1428
        %v1605 = vpack.c.b16 %v1437, %v1429
        %v1606 = vpack.c.b16 %v1438, %v1430
        %v1607 = vpack.c.b16 %v1447, %v1439
        %v1608 = vpack.c.b16 %v1448, %v1440
        %v1609 = vpack.c.b16 %v1449, %v1441
        %v1610 = vpack.c.b16 %v1450, %v1442
        %v1611 = vpack.c.b16 %v1451, %v1443
        %v1612 = vpack.c.b16 %v1452, %v1444
        %v1613 = vpack.c.b16 %v1453, %v1445
        %v1614 = vpack.c.b16 %v1454, %v1446
        %v1615 = vpack.c.b16 %v1463, %v1455
        %v1616 = vpack.c.b16 %v1464, %v1456
        %v1617 = vpack.c.b16 %v1465, %v1457
        %v1618 = vpack.c.b16 %v1466, %v1458
        %v1619 = vpack.c.b16 %v1467, %v1459
        %v1620 = vpack.c.b16 %v1468, %v1460
        %v1621 = vpack.c.b16 %v1469, %v1461
        %v1622 = vpack.c.b16 %v1470, %v1462
        %v1623 = vpack.c.b16 %v1479, %v1471
        %v1624 = vpack.c.b16 %v1480, %v1472
        %v1625 = vpack.c.b16 %v1481, %v1473
        %v1626 = vpack.c.b16 %v1482, %v1474
        %v1627 = vpack.c.b16 %v1483, %v1475
        %v1628 = vpack.c.b16 %v1484, %v1476
        %v1629 = vpack.c.b16 %v1485, %v1477
        %v1630 = vpack.c.b16 %v1486, %v1478
        %v1631 = vpack.c.b16 %v1495, %v1487
        %v1632 = vpack.c.b16 %v1496, %v1488
        %v1633 = vpack.c.b16 %v1497, %v1489
        %v1634 = vpack.c.b16 %v1498, %v1490
        %v1635 = vpack.c.b16 %v1499, %v1491
        %v1636 = vpack.c.b16 %v1500, %v1492
        %v1637 = vpack.c.b16 %v1501, %v1493
        %v1638 = vpack.c.b16 %v1502, %v1494
        %v1639 = vpack.c.b16 %v1511, %v1503
        %v1640 = vpack.c.b16 %v1512, %v1504
        %v1641 = vpack.c.b16 %v1513, %v1505
        %v1642 = vpack.c.b16 %v1514, %v1506
        %v1643 = vpack.c.b16 %v1515, %v1507
        %v1644 = vpack.c.b16 %v1516, %v1508
        %v1645 = vpack.c.b16 %v1517, %v1509
        %v1646 = vpack.c.b16 %v1518, %v1510
        %1775 = vmatprep.subr.bf16.mxu0 %v1520
        %1776 = vmatpush1.bf16.msra.mxu0 %v1519
        %1777 = vmatprep.subr.bf16.mxu0 %v1528
        %1778 = vmatpush1.bf16.msra.mxu0 %v1527
        %1779 = vmatprep.subr.bf16.mxu0 %v1536
        %1780 = vmatpush1.bf16.msra.mxu0 %v1535
        %1781 = vmatprep.subr.bf16.mxu0 %v1544
        %1782 = vmatpush1.bf16.msra.mxu0 %v1543
        %1783 = vmatprep.subr.bf16.mxu0 %v1552
        %1784 = vmatpush1.bf16.msra.mxu0 %v1551
        %1785 = vmatprep.subr.bf16.mxu0 %v1560
        %1786 = vmatpush1.bf16.msra.mxu0 %v1559
        %1787 = vmatprep.subr.bf16.mxu0 %v1568
        %1788 = vmatpush1.bf16.msra.mxu0 %v1567
        %1789 = vmatprep.subr.bf16.mxu0 %v1576
        %1790 = vmatpush1.bf16.msra.mxu0 %v1575
        %1791 = vmatprep.subr.bf16.mxu0 %v1584
        %1792 = vmatpush1.bf16.msra.mxu0 %v1583
        %1793 = vmatprep.subr.bf16.mxu0 %v1592
        %1794 = vmatpush1.bf16.msra.mxu0 %v1591
        %1795 = vmatprep.subr.bf16.mxu0 %v1600
        %1796 = vmatpush1.bf16.msra.mxu0 %v1599
        %1797 = vmatprep.subr.bf16.mxu0 %v1608
        %1798 = vmatpush1.bf16.msra.mxu0 %v1607
        %1799 = vmatprep.subr.bf16.mxu0 %v1616
        %1800 = vmatpush1.bf16.msra.mxu0 %v1615
        %1801 = vmatprep.subr.bf16.mxu0 %v1624
        %1802 = vmatpush1.bf16.msra.mxu0 %v1623
        %1803 = vmatprep.subr.bf16.mxu0 %v1632
        %1804 = vmatpush1.bf16.msra.mxu0 %v1631
        %1805 = vmatprep.subr.bf16.mxu0 %v1640
        %1806 = vmatpush1.bf16.msra.mxu0 %v1639
        %1807 = vmatprep.mubr.bf16.mxu0 %v962
        %1808 = vmatmul.mubr.bf16.gmra.mrb[0].mxu0 %v961
        %v1809 = vpop.f32.mrb[0].mxu0
        %v1810 = vadd.f32 %v1098, %v1809
        %v1811 = vpop.f32.mrb[0].mxu0
        %v1812 = vadd.f32 %v1102, %v1811
        %v1813 = vpop.f32.mrb[0].mxu0
        %v1814 = vadd.f32 %v1098, %v1813
        %v1815 = vpop.f32.mrb[0].mxu0
        %v1816 = vadd.f32 %v1102, %v1815
        %1817 = vmatprep.mubr.bf16.mxu0 %v964
        %1818 = vmatmul.mubr.bf16.gmra.mrb[0].mxu0 %v963
        %v1819 = vpop.f32.mrb[0].mxu0
        %v1820 = vadd.f32 %v1098, %v1819
        %v1821 = vpop.f32.mrb[0].mxu0
        %v1822 = vadd.f32 %v1102, %v1821
        %v1823 = vpop.f32.mrb[0].mxu0
        %v1824 = vadd.f32 %v1098, %v1823
        %v1825 = vpop.f32.mrb[0].mxu0
        %v1826 = vadd.f32 %v1102, %v1825
        %1827 = vdwg.mxu0
        %1828 = vmatprep.subr.bf16.mxu0 %v1522
        %1829 = vmatpush1.bf16.msra.mxu0 %v1521
        %1830 = vmatprep.subr.bf16.mxu0 %v1530
        %1831 = vmatpush1.bf16.msra.mxu0 %v1529
        %1832 = vmatprep.subr.bf16.mxu0 %v1538
        %1833 = vmatpush1.bf16.msra.mxu0 %v1537
        %1834 = vmatprep.subr.bf16.mxu0 %v1546
        %1835 = vmatpush1.bf16.msra.mxu0 %v1545
        %1836 = vmatprep.subr.bf16.mxu0 %v1554
        %1837 = vmatpush1.bf16.msra.mxu0 %v1553
        %1838 = vmatprep.subr.bf16.mxu0 %v1562
        %1839 = vmatpush1.bf16.msra.mxu0 %v1561
        %1840 = vmatprep.subr.bf16.mxu0 %v1570
        %1841 = vmatpush1.bf16.msra.mxu0 %v1569
        %1842 = vmatprep.subr.bf16.mxu0 %v1578
        %1843 = vmatpush1.bf16.msra.mxu0 %v1577
        %1844 = vmatprep.subr.bf16.mxu0 %v1586
        %1845 = vmatpush1.bf16.msra.mxu0 %v1585
        %1846 = vmatprep.subr.bf16.mxu0 %v1594
        %1847 = vmatpush1.bf16.msra.mxu0 %v1593
        %1848 = vmatprep.subr.bf16.mxu0 %v1602
        %1849 = vmatpush1.bf16.msra.mxu0 %v1601
        %1850 = vmatprep.subr.bf16.mxu0 %v1610
        %1851 = vmatpush1.bf16.msra.mxu0 %v1609
        %1852 = vmatprep.subr.bf16.mxu0 %v1618
        %1853 = vmatpush1.bf16.msra.mxu0 %v1617
        %1854 = vmatprep.subr.bf16.mxu0 %v1626
        %1855 = vmatpush1.bf16.msra.mxu0 %v1625
        %1856 = vmatprep.subr.bf16.mxu0 %v1634
        %1857 = vmatpush1.bf16.msra.mxu0 %v1633
        %1858 = vmatprep.subr.bf16.mxu0 %v1642
        %1859 = vmatpush1.bf16.msra.mxu0 %v1641
        %1860 = vmatprep.mubr.bf16.mxu0 %v962
        %1861 = vmatmul.mubr.bf16.gmra.mrb[0].mxu0 %v961
        %v1862 = vpop.f32.mrb[0].mxu0
        %v1863 = vadd.f32 %v1106, %v1862
        %v1864 = vpop.f32.mrb[0].mxu0
        %v1865 = vadd.f32 %v1110, %v1864
        %v1866 = vpop.f32.mrb[0].mxu0
        %v1867 = vadd.f32 %v1106, %v1866
        %v1868 = vpop.f32.mrb[0].mxu0
        %v1869 = vadd.f32 %v1110, %v1868
        %1870 = vmatprep.mubr.bf16.mxu0 %v964
        %1871 = vmatmul.mubr.bf16.gmra.mrb[0].mxu0 %v963
        %v1872 = vpop.f32.mrb[0].mxu0
        %v1873 = vadd.f32 %v1106, %v1872
        %v1874 = vpop.f32.mrb[0].mxu0
        %v1875 = vadd.f32 %v1110, %v1874
        %v1876 = vpop.f32.mrb[0].mxu0
        %v1877 = vadd.f32 %v1106, %v1876
        %v1878 = vpop.f32.mrb[0].mxu0
        %v1879 = vadd.f32 %v1110, %v1878
        %1880 = vdwg.mxu0
        %1881 = vmatprep.subr.bf16.mxu0 %v1524
        %1882 = vmatpush1.bf16.msra.mxu0 %v1523
        %1883 = vmatprep.subr.bf16.mxu0 %v1532
        %1884 = vmatpush1.bf16.msra.mxu0 %v1531
        %1885 = vmatprep.subr.bf16.mxu0 %v1540
        %1886 = vmatpush1.bf16.msra.mxu0 %v1539
        %1887 = vmatprep.subr.bf16.mxu0 %v1548
        %1888 = vmatpush1.bf16.msra.mxu0 %v1547
        %1889 = vmatprep.subr.bf16.mxu0 %v1556
        %1890 = vmatpush1.bf16.msra.mxu0 %v1555
        %1891 = vmatprep.subr.bf16.mxu0 %v1564
        %1892 = vmatpush1.bf16.msra.mxu0 %v1563
        %1893 = vmatprep.subr.bf16.mxu0 %v1572
        %1894 = vmatpush1.bf16.msra.mxu0 %v1571
        %1895 = vmatprep.subr.bf16.mxu0 %v1580
        %1896 = vmatpush1.bf16.msra.mxu0 %v1579
        %1897 = vmatprep.subr.bf16.mxu0 %v1588
        %1898 = vmatpush1.bf16.msra.mxu0 %v1587
        %1899 = vmatprep.subr.bf16.mxu0 %v1596
        %1900 = vmatpush1.bf16.msra.mxu0 %v1595
        %1901 = vmatprep.subr.bf16.mxu0 %v1604
        %1902 = vmatpush1.bf16.msra.mxu0 %v1603
        %1903 = vmatprep.subr.bf16.mxu0 %v1612
        %1904 = vmatpush1.bf16.msra.mxu0 %v1611
        %1905 = vmatprep.subr.bf16.mxu0 %v1620
        %1906 = vmatpush1.bf16.msra.mxu0 %v1619
        %1907 = vmatprep.subr.bf16.mxu0 %v1628
        %1908 = vmatpush1.bf16.msra.mxu0 %v1627
        %1909 = vmatprep.subr.bf16.mxu0 %v1636
        %1910 = vmatpush1.bf16.msra.mxu0 %v1635
        %1911 = vmatprep.subr.bf16.mxu0 %v1644
        %1912 = vmatpush1.bf16.msra.mxu0 %v1643
        %1913 = vmatprep.mubr.bf16.mxu0 %v962
        %1914 = vmatmul.mubr.bf16.gmra.mrb[0].mxu0 %v961
        %v1915 = vpop.f32.mrb[0].mxu0
        %v1916 = vadd.f32 %v1114, %v1915
        %v1917 = vpop.f32.mrb[0].mxu0
        %v1918 = vadd.f32 %v1118, %v1917
        %v1919 = vpop.f32.mrb[0].mxu0
        %v1920 = vadd.f32 %v1114, %v1919
        %v1921 = vpop.f32.mrb[0].mxu0
        %v1922 = vadd.f32 %v1118, %v1921
        %1923 = vmatprep.mubr.bf16.mxu0 %v964
        %1924 = vmatmul.mubr.bf16.gmra.mrb[0].mxu0 %v963
        %v1925 = vpop.f32.mrb[0].mxu0
        %v1926 = vadd.f32 %v1114, %v1925
        %v1927 = vpop.f32.mrb[0].mxu0
        %v1928 = vadd.f32 %v1118, %v1927
        %v1929 = vpop.f32.mrb[0].mxu0
        %v1930 = vadd.f32 %v1114, %v1929
        %v1931 = vpop.f32.mrb[0].mxu0
        %v1932 = vadd.f32 %v1118, %v1931
        %1933 = vdwg.mxu0
        %1934 = vmatprep.subr.bf16.mxu0 %v1526
        %1935 = vmatpush1.bf16.msra.mxu0 %v1525
        %1936 = vmatprep.subr.bf16.mxu0 %v1534
        %1937 = vmatpush1.bf16.msra.mxu0 %v1533
        %1938 = vmatprep.subr.bf16.mxu0 %v1542
        %1939 = vmatpush1.bf16.msra.mxu0 %v1541
        %1940 = vmatprep.subr.bf16.mxu0 %v1550
        %1941 = vmatpush1.bf16.msra.mxu0 %v1549
        %1942 = vmatprep.subr.bf16.mxu0 %v1558
        %1943 = vmatpush1.bf16.msra.mxu0 %v1557
        %1944 = vmatprep.subr.bf16.mxu0 %v1566
        %1945 = vmatpush1.bf16.msra.mxu0 %v1565
        %1946 = vmatprep.subr.bf16.mxu0 %v1574
        %1947 = vmatpush1.bf16.msra.mxu0 %v1573
        %1948 = vmatprep.subr.bf16.mxu0 %v1582
        %1949 = vmatpush1.bf16.msra.mxu0 %v1581
        %1950 = vmatprep.subr.bf16.mxu0 %v1590
        %1951 = vmatpush1.bf16.msra.mxu0 %v1589
        %1952 = vmatprep.subr.bf16.mxu0 %v1598
        %1953 = vmatpush1.bf16.msra.mxu0 %v1597
        %1954 = vmatprep.subr.bf16.mxu0 %v1606
        %1955 = vmatpush1.bf16.msra.mxu0 %v1605
        %1956 = vmatprep.subr.bf16.mxu0 %v1614
        %1957 = vmatpush1.bf16.msra.mxu0 %v1613
        %1958 = vmatprep.subr.bf16.mxu0 %v1622
        %1959 = vmatpush1.bf16.msra.mxu0 %v1621
        %1960 = vmatprep.subr.bf16.mxu0 %v1630
        %1961 = vmatpush1.bf16.msra.mxu0 %v1629
        %1962 = vmatprep.subr.bf16.mxu0 %v1638
        %1963 = vmatpush1.bf16.msra.mxu0 %v1637
        %1964 = vmatprep.subr.bf16.mxu0 %v1646
        %1965 = vmatpush1.bf16.msra.mxu0 %v1645
        %1966 = vmatprep.mubr.bf16.mxu0 %v962
        %1967 = vmatmul.mubr.bf16.gmra.mrb[0].mxu0 %v961
        %v1968 = vpop.f32.mrb[0].mxu0
        %v1969 = vadd.f32 %v1122, %v1968
        %v1970 = vpop.f32.mrb[0].mxu0
        %v1971 = vadd.f32 %v1126, %v1970
        %v1972 = vpop.f32.mrb[0].mxu0
        %v1973 = vadd.f32 %v1122, %v1972
        %v1974 = vpop.f32.mrb[0].mxu0
        %v1975 = vadd.f32 %v1126, %v1974
        %1976 = vmatprep.mubr.bf16.mxu0 %v964
        %1977 = vmatmul.mubr.bf16.gmra.mrb[0].mxu0 %v963
        %v1978 = vpop.f32.mrb[0].mxu0
        %v1979 = vadd.f32 %v1122, %v1978
        %v1980 = vpop.f32.mrb[0].mxu0
        %v1981 = vadd.f32 %v1126, %v1980
        %v1982 = vpop.f32.mrb[0].mxu0
        %v1983 = vadd.f32 %v1122, %v1982
        %v1984 = vpop.f32.mrb[0].mxu0
        %v1985 = vadd.f32 %v1126, %v1984
        %1986 = vdwg.mxu0
        %v1987 = vmul.f32 %v1810, 0.5
        %v1988 = vmul.f32 %v1812, 0.5
        %v1989 = vmul.f32 %v1863, 0.5
        %v1990 = vmul.f32 %v1865, 0.5
        %v1991 = vmul.f32 %v1916, 0.5
        %v1992 = vmul.f32 %v1918, 0.5
        %v1993 = vmul.f32 %v1969, 0.5
        %v1994 = vmul.f32 %v1971, 0.5
        %v1995 = vmul.f32 %v1814, 0.5
        %v1996 = vmul.f32 %v1816, 0.5
        %v1997 = vmul.f32 %v1867, 0.5
        %v1998 = vmul.f32 %v1869, 0.5
        %v1999 = vmul.f32 %v1920, 0.5
        %v2000 = vmul.f32 %v1922, 0.5
        %v2001 = vmul.f32 %v1973, 0.5
        %v2002 = vmul.f32 %v1975, 0.5
        %v2003 = vmul.f32 %v1820, 0.5
        %v2004 = vmul.f32 %v1822, 0.5
        %v2005 = vmul.f32 %v1873, 0.5
        %v2006 = vmul.f32 %v1875, 0.5
        %v2007 = vmul.f32 %v1926, 0.5
        %v2008 = vmul.f32 %v1928, 0.5
        %v2009 = vmul.f32 %v1979, 0.5
        %v2010 = vmul.f32 %v1981, 0.5
        %v2011 = vmul.f32 %v1824, 0.5
        %v2012 = vmul.f32 %v1826, 0.5
        %v2013 = vmul.f32 %v1877, 0.5
        %v2014 = vmul.f32 %v1879, 0.5
        %v2015 = vmul.f32 %v1930, 0.5
        %v2016 = vmul.f32 %v1932, 0.5
        %v2017 = vmul.f32 %v1983, 0.5
        %v2018 = vmul.f32 %v1985, 0.5
        %v2019 = vmul.f32 %v1810, 0.044715
        %v2020 = vmul.f32 %v1812, 0.044715
        %v2021 = vmul.f32 %v1863, 0.044715
        %v2022 = vmul.f32 %v1865, 0.044715
        %v2023 = vmul.f32 %v1916, 0.044715
        %v2024 = vmul.f32 %v1918, 0.044715
        %v2025 = vmul.f32 %v1969, 0.044715
        %v2026 = vmul.f32 %v1971, 0.044715
        %v2027 = vmul.f32 %v1814, 0.044715
        %v2028 = vmul.f32 %v1816, 0.044715
        %v2029 = vmul.f32 %v1867, 0.044715
        %v2030 = vmul.f32 %v1869, 0.044715
        %v2031 = vmul.f32 %v1920, 0.044715
        %v2032 = vmul.f32 %v1922, 0.044715
        %v2033 = vmul.f32 %v1973, 0.044715
        %v2034 = vmul.f32 %v1975, 0.044715
        %v2035 = vmul.f32 %v1820, 0.044715
        %v2036 = vmul.f32 %v1822, 0.044715
        %v2037 = vmul.f32 %v1873, 0.044715
        %v2038 = vmul.f32 %v1875, 0.044715
        %v2039 = vmul.f32 %v1926, 0.044715
        %v2040 = vmul.f32 %v1928, 0.044715
        %v2041 = vmul.f32 %v1979, 0.044715
        %v2042 = vmul.f32 %v1981, 0.044715
        %v2043 = vmul.f32 %v1824, 0.044715
        %v2044 = vmul.f32 %v1826, 0.044715
        %v2045 = vmul.f32 %v1877, 0.044715
        %v2046 = vmul.f32 %v1879, 0.044715
        %v2047 = vmul.f32 %v1930, 0.044715
        %v2048 = vmul.f32 %v1932, 0.044715
        %v2049 = vmul.f32 %v1983, 0.044715
        %v2050 = vmul.f32 %v1985, 0.044715
        %v2051 = vmul.f32 %v2019, %v1810
        %v2052 = vmul.f32 %v2020, %v1812
        %v2053 = vmul.f32 %v2021, %v1863
        %v2054 = vmul.f32 %v2022, %v1865
        %v2055 = vmul.f32 %v2023, %v1916
        %v2056 = vmul.f32 %v2024, %v1918
        %v2057 = vmul.f32 %v2025, %v1969
        %v2058 = vmul.f32 %v2026, %v1971
        %v2059 = vmul.f32 %v2027, %v1814
        %v2060 = vmul.f32 %v2028, %v1816
        %v2061 = vmul.f32 %v2029, %v1867
        %v2062 = vmul.f32 %v2030, %v1869
        %v2063 = vmul.f32 %v2031, %v1920
        %v2064 = vmul.f32 %v2032, %v1922
        %v2065 = vmul.f32 %v2033, %v1973
        %v2066 = vmul.f32 %v2034, %v1975
        %v2067 = vmul.f32 %v2035, %v1820
        %v2068 = vmul.f32 %v2036, %v1822
        %v2069 = vmul.f32 %v2037, %v1873
        %v2070 = vmul.f32 %v2038, %v1875
        %v2071 = vmul.f32 %v2039, %v1926
        %v2072 = vmul.f32 %v2040, %v1928
        %v2073 = vmul.f32 %v2041, %v1979
        %v2074 = vmul.f32 %v2042, %v1981
        %v2075 = vmul.f32 %v2043, %v1824
        %v2076 = vmul.f32 %v2044, %v1826
        %v2077 = vmul.f32 %v2045, %v1877
        %v2078 = vmul.f32 %v2046, %v1879
        %v2079 = vmul.f32 %v2047, %v1930
        %v2080 = vmul.f32 %v2048, %v1932
        %v2081 = vmul.f32 %v2049, %v1983
        %v2082 = vmul.f32 %v2050, %v1985
        %v2083 = vmul.f32 %v2051, %v1810
        %v2084 = vmul.f32 %v2052, %v1812
        %v2085 = vmul.f32 %v2053, %v1863
        %v2086 = vmul.f32 %v2054, %v1865
        %v2087 = vmul.f32 %v2055, %v1916
        %v2088 = vmul.f32 %v2056, %v1918
        %v2089 = vmul.f32 %v2057, %v1969
        %v2090 = vmul.f32 %v2058, %v1971
        %v2091 = vmul.f32 %v2059, %v1814
        %v2092 = vmul.f32 %v2060, %v1816
        %v2093 = vmul.f32 %v2061, %v1867
        %v2094 = vmul.f32 %v2062, %v1869
        %v2095 = vmul.f32 %v2063, %v1920
        %v2096 = vmul.f32 %v2064, %v1922
        %v2097 = vmul.f32 %v2065, %v1973
        %v2098 = vmul.f32 %v2066, %v1975
        %v2099 = vmul.f32 %v2067, %v1820
        %v2100 = vmul.f32 %v2068, %v1822
        %v2101 = vmul.f32 %v2069, %v1873
        %v2102 = vmul.f32 %v2070, %v1875
        %v2103 = vmul.f32 %v2071, %v1926
        %v2104 = vmul.f32 %v2072, %v1928
        %v2105 = vmul.f32 %v2073, %v1979
        %v2106 = vmul.f32 %v2074, %v1981
        %v2107 = vmul.f32 %v2075, %v1824
        %v2108 = vmul.f32 %v2076, %v1826
        %v2109 = vmul.f32 %v2077, %v1877
        %v2110 = vmul.f32 %v2078, %v1879
        %v2111 = vmul.f32 %v2079, %v1930
        %v2112 = vmul.f32 %v2080, %v1932
        %v2113 = vmul.f32 %v2081, %v1983
        %v2114 = vmul.f32 %v2082, %v1985
        %v2115 = vadd.f32 %v1810, %v2083
        %v2116 = vadd.f32 %v1812, %v2084
        %v2117 = vadd.f32 %v1863, %v2085
        %v2118 = vadd.f32 %v1865, %v2086
        %v2119 = vadd.f32 %v1916, %v2087
        %v2120 = vadd.f32 %v1918, %v2088
        %v2121 = vadd.f32 %v1969, %v2089
        %v2122 = vadd.f32 %v1971, %v2090
        %v2123 = vadd.f32 %v1814, %v2091
        %v2124 = vadd.f32 %v1816, %v2092
        %v2125 = vadd.f32 %v1867, %v2093
        %v2126 = vadd.f32 %v1869, %v2094
        %v2127 = vadd.f32 %v1920, %v2095
        %v2128 = vadd.f32 %v1922, %v2096
        %v2129 = vadd.f32 %v1973, %v2097
        %v2130 = vadd.f32 %v1975, %v2098
        %v2131 = vadd.f32 %v1820, %v2099
        %v2132 = vadd.f32 %v1822, %v2100
        %v2133 = vadd.f32 %v1873, %v2101
        %v2134 = vadd.f32 %v1875, %v2102
        %v2135 = vadd.f32 %v1926, %v2103
        %v2136 = vadd.f32 %v1928, %v2104
        %v2137 = vadd.f32 %v1979, %v2105
        %v2138 = vadd.f32 %v1981, %v2106
        %v2139 = vadd.f32 %v1824, %v2107
        %v2140 = vadd.f32 %v1826, %v2108
        %v2141 = vadd.f32 %v1877, %v2109
        %v2142 = vadd.f32 %v1879, %v2110
        %v2143 = vadd.f32 %v1930, %v2111
        %v2144 = vadd.f32 %v1932, %v2112
        %v2145 = vadd.f32 %v1983, %v2113
        %v2146 = vadd.f32 %v1985, %v2114
        %v2147 = vmul.f32 %v2115, 0.7978846
        %v2148 = vmul.f32 %v2116, 0.7978846
        %v2149 = vmul.f32 %v2117, 0.7978846
        %v2150 = vmul.f32 %v2118, 0.7978846
        %v2151 = vmul.f32 %v2119, 0.7978846
        %v2152 = vmul.f32 %v2120, 0.7978846
        %v2153 = vmul.f32 %v2121, 0.7978846
        %v2154 = vmul.f32 %v2122, 0.7978846
        %v2155 = vmul.f32 %v2123, 0.7978846
        %v2156 = vmul.f32 %v2124, 0.7978846
        %v2157 = vmul.f32 %v2125, 0.7978846
        %v2158 = vmul.f32 %v2126, 0.7978846
        %v2159 = vmul.f32 %v2127, 0.7978846
        %v2160 = vmul.f32 %v2128, 0.7978846
        %v2161 = vmul.f32 %v2129, 0.7978846
        %v2162 = vmul.f32 %v2130, 0.7978846
        %v2163 = vmul.f32 %v2131, 0.7978846
        %v2164 = vmul.f32 %v2132, 0.7978846
        %v2165 = vmul.f32 %v2133, 0.7978846
        %v2166 = vmul.f32 %v2134, 0.7978846
        %v2167 = vmul.f32 %v2135, 0.7978846
        %v2168 = vmul.f32 %v2136, 0.7978846
        %v2169 = vmul.f32 %v2137, 0.7978846
        %v2170 = vmul.f32 %v2138, 0.7978846
        %v2171 = vmul.f32 %v2139, 0.7978846
        %v2172 = vmul.f32 %v2140, 0.7978846
        %v2173 = vmul.f32 %v2141, 0.7978846
        %v2174 = vmul.f32 %v2142, 0.7978846
        %v2175 = vmul.f32 %v2143, 0.7978846
        %v2176 = vmul.f32 %v2144, 0.7978846
        %v2177 = vmul.f32 %v2145, 0.7978846
        %v2178 = vmul.f32 %v2146, 0.7978846
        %v2179 = vtanh.pop %v2147
        %v2180 = vtanh.pop %v2148
        %v2181 = vtanh.pop %v2149
        %v2182 = vtanh.pop %v2150
        %v2183 = vtanh.pop %v2151
        %v2184 = vtanh.pop %v2152
        %v2185 = vtanh.pop %v2153
        %v2186 = vtanh.pop %v2154
        %v2187 = vtanh.pop %v2155
        %v2188 = vtanh.pop %v2156
        %v2189 = vtanh.pop %v2157
        %v2190 = vtanh.pop %v2158
        %v2191 = vtanh.pop %v2159
        %v2192 = vtanh.pop %v2160
        %v2193 = vtanh.pop %v2161
        %v2194 = vtanh.pop %v2162
        %v2195 = vtanh.pop %v2163
        %v2196 = vtanh.pop %v2164
        %v2197 = vtanh.pop %v2165
        %v2198 = vtanh.pop %v2166
        %v2199 = vtanh.pop %v2167
        %v2200 = vtanh.pop %v2168
        %v2201 = vtanh.pop %v2169
        %v2202 = vtanh.pop %v2170
        %v2203 = vtanh.pop %v2171
        %v2204 = vtanh.pop %v2172
        %v2205 = vtanh.pop %v2173
        %v2206 = vtanh.pop %v2174
        %v2207 = vtanh.pop %v2175
        %v2208 = vtanh.pop %v2176
        %v2209 = vtanh.pop %v2177
        %v2210 = vtanh.pop %v2178
        %v2211 = vadd.f32 %v2179, 1.0
        %v2212 = vadd.f32 %v2180, 1.0
        %v2213 = vadd.f32 %v2181, 1.0
        %v2214 = vadd.f32 %v2182, 1.0
        %v2215 = vadd.f32 %v2183, 1.0
        %v2216 = vadd.f32 %v2184, 1.0
        %v2217 = vadd.f32 %v2185, 1.0
        %v2218 = vadd.f32 %v2186, 1.0
        %v2219 = vadd.f32 %v2187, 1.0
        %v2220 = vadd.f32 %v2188, 1.0
        %v2221 = vadd.f32 %v2189, 1.0
        %v2222 = vadd.f32 %v2190, 1.0
        %v2223 = vadd.f32 %v2191, 1.0
        %v2224 = vadd.f32 %v2192, 1.0
        %v2225 = vadd.f32 %v2193, 1.0
        %v2226 = vadd.f32 %v2194, 1.0
        %v2227 = vadd.f32 %v2195, 1.0
        %v2228 = vadd.f32 %v2196, 1.0
        %v2229 = vadd.f32 %v2197, 1.0
        %v2230 = vadd.f32 %v2198, 1.0
        %v2231 = vadd.f32 %v2199, 1.0
        %v2232 = vadd.f32 %v2200, 1.0
        %v2233 = vadd.f32 %v2201, 1.0
        %v2234 = vadd.f32 %v2202, 1.0
        %v2235 = vadd.f32 %v2203, 1.0
        %v2236 = vadd.f32 %v2204, 1.0
        %v2237 = vadd.f32 %v2205, 1.0
        %v2238 = vadd.f32 %v2206, 1.0
        %v2239 = vadd.f32 %v2207, 1.0
        %v2240 = vadd.f32 %v2208, 1.0
        %v2241 = vadd.f32 %v2209, 1.0
        %v2242 = vadd.f32 %v2210, 1.0
        %v2243 = vmul.f32 %v1987, %v2211
        %v2244 = vmul.f32 %v1988, %v2212
        %v2245 = vmul.f32 %v1989, %v2213
        %v2246 = vmul.f32 %v1990, %v2214
        %v2247 = vmul.f32 %v1991, %v2215
        %v2248 = vmul.f32 %v1992, %v2216
        %v2249 = vmul.f32 %v1993, %v2217
        %v2250 = vmul.f32 %v1994, %v2218
        %v2251 = vmul.f32 %v1995, %v2219
        %v2252 = vmul.f32 %v1996, %v2220
        %v2253 = vmul.f32 %v1997, %v2221
        %v2254 = vmul.f32 %v1998, %v2222
        %v2255 = vmul.f32 %v1999, %v2223
        %v2256 = vmul.f32 %v2000, %v2224
        %v2257 = vmul.f32 %v2001, %v2225
        %v2258 = vmul.f32 %v2002, %v2226
        %v2259 = vmul.f32 %v2003, %v2227
        %v2260 = vmul.f32 %v2004, %v2228
        %v2261 = vmul.f32 %v2005, %v2229
        %v2262 = vmul.f32 %v2006, %v2230
        %v2263 = vmul.f32 %v2007, %v2231
        %v2264 = vmul.f32 %v2008, %v2232
        %v2265 = vmul.f32 %v2009, %v2233
        %v2266 = vmul.f32 %v2010, %v2234
        %v2267 = vmul.f32 %v2011, %v2235
        %v2268 = vmul.f32 %v2012, %v2236
        %v2269 = vmul.f32 %v2013, %v2237
        %v2270 = vmul.f32 %v2014, %v2238
        %v2271 = vmul.f32 %v2015, %v2239
        %v2272 = vmul.f32 %v2016, %v2240
        %v2273 = vmul.f32 %v2017, %v2241
        %v2274 = vmul.f32 %v2018, %v2242
        %v2275 = vpack.c.bf16 %v2251, %v2243
        %v2276 = vpack.c.bf16 %v2252, %v2244
        %v2277 = vpack.c.bf16 %v2253, %v2245
        %v2278 = vpack.c.bf16 %v2254, %v2246
        %v2279 = vpack.c.bf16 %v2255, %v2247
        %v2280 = vpack.c.bf16 %v2256, %v2248
        %v2281 = vpack.c.bf16 %v2257, %v2249
        %v2282 = vpack.c.bf16 %v2258, %v2250
        %v2283 = vpack.c.bf16 %v2267, %v2259
        %v2284 = vpack.c.bf16 %v2268, %v2260
        %v2285 = vpack.c.bf16 %v2269, %v2261
        %v2286 = vpack.c.bf16 %v2270, %v2262
        %v2287 = vpack.c.bf16 %v2271, %v2263
        %v2288 = vpack.c.bf16 %v2272, %v2264
        %v2289 = vpack.c.bf16 %v2273, %v2265
        %v2290 = vpack.c.bf16 %v2274, %v2266
        %v2291 = vld [vmem:[#allocation16] sm:$0xff]
        %v2292 = vld [vmem:[#allocation16 + $0x8] sm:$0xff]
        %v2293 = vld [vmem:[#allocation16 + $0x10] sm:$0xff]
        %v2294 = vld [vmem:[#allocation16 + $0x18] sm:$0xff]
        %v2295 = vld [vmem:[#allocation16 + $0x20] sm:$0xff]
        %v2296 = vld [vmem:[#allocation16 + $0x28] sm:$0xff]
        %v2297 = vld [vmem:[#allocation16 + $0x30] sm:$0xff]
        %v2298 = vld [vmem:[#allocation16 + $0x38] sm:$0xff]
        %v2299 = vld [vmem:[#allocation16 + $0x40] sm:$0xff]
        %v2300 = vld [vmem:[#allocation16 + $0x48] sm:$0xff]
        %v2301 = vld [vmem:[#allocation16 + $0x50] sm:$0xff]
        %v2302 = vld [vmem:[#allocation16 + $0x58] sm:$0xff]
        %v2303 = vld [vmem:[#allocation16 + $0x60] sm:$0xff]
        %v2304 = vld [vmem:[#allocation16 + $0x68] sm:$0xff]
        %v2305 = vld [vmem:[#allocation16 + $0x70] sm:$0xff]
        %v2306 = vld [vmem:[#allocation16 + $0x78] sm:$0xff]
        %v2307 = vld [vmem:[#allocation16 + $0x80] sm:$0xff]
        %v2308 = vld [vmem:[#allocation16 + $0x88] sm:$0xff]
        %v2309 = vld [vmem:[#allocation16 + $0x90] sm:$0xff]
        %v2310 = vld [vmem:[#allocation16 + $0x98] sm:$0xff]
        %v2311 = vld [vmem:[#allocation16 + $0xa0] sm:$0xff]
        %v2312 = vld [vmem:[#allocation16 + $0xa8] sm:$0xff]
        %v2313 = vld [vmem:[#allocation16 + $0xb0] sm:$0xff]
        %v2314 = vld [vmem:[#allocation16 + $0xb8] sm:$0xff]
        %v2315 = vld [vmem:[#allocation16 + $0xc0] sm:$0xff]
        %v2316 = vld [vmem:[#allocation16 + $0xc8] sm:$0xff]
        %v2317 = vld [vmem:[#allocation16 + $0xd0] sm:$0xff]
        %v2318 = vld [vmem:[#allocation16 + $0xd8] sm:$0xff]
        %v2319 = vld [vmem:[#allocation16 + $0xe0] sm:$0xff]
        %v2320 = vld [vmem:[#allocation16 + $0xe8] sm:$0xff]
        %v2321 = vld [vmem:[#allocation16 + $0xf0] sm:$0xff]
        %v2322 = vld [vmem:[#allocation16 + $0xf8] sm:$0xff]
        %v2323 = vld [vmem:[#allocation16 + $0x100] sm:$0xff]
        %v2324 = vld [vmem:[#allocation16 + $0x108] sm:$0xff]
        %v2325 = vld [vmem:[#allocation16 + $0x110] sm:$0xff]
        %v2326 = vld [vmem:[#allocation16 + $0x118] sm:$0xff]
        %v2327 = vld [vmem:[#allocation16 + $0x120] sm:$0xff]
        %v2328 = vld [vmem:[#allocation16 + $0x128] sm:$0xff]
        %v2329 = vld [vmem:[#allocation16 + $0x130] sm:$0xff]
        %v2330 = vld [vmem:[#allocation16 + $0x138] sm:$0xff]
        %v2331 = vld [vmem:[#allocation16 + $0x140] sm:$0xff]
        %v2332 = vld [vmem:[#allocation16 + $0x148] sm:$0xff]
        %v2333 = vld [vmem:[#allocation16 + $0x150] sm:$0xff]
        %v2334 = vld [vmem:[#allocation16 + $0x158] sm:$0xff]
        %v2335 = vld [vmem:[#allocation16 + $0x160] sm:$0xff]
        %v2336 = vld [vmem:[#allocation16 + $0x168] sm:$0xff]
        %v2337 = vld [vmem:[#allocation16 + $0x170] sm:$0xff]
        %v2338 = vld [vmem:[#allocation16 + $0x178] sm:$0xff]
        %v2339 = vld [vmem:[#allocation16 + $0x180] sm:$0xff]
        %v2340 = vld [vmem:[#allocation16 + $0x188] sm:$0xff]
        %v2341 = vld [vmem:[#allocation16 + $0x190] sm:$0xff]
        %v2342 = vld [vmem:[#allocation16 + $0x198] sm:$0xff]
        %v2343 = vld [vmem:[#allocation16 + $0x1a0] sm:$0xff]
        %v2344 = vld [vmem:[#allocation16 + $0x1a8] sm:$0xff]
        %v2345 = vld [vmem:[#allocation16 + $0x1b0] sm:$0xff]
        %v2346 = vld [vmem:[#allocation16 + $0x1b8] sm:$0xff]
        %v2347 = vld [vmem:[#allocation16 + $0x1c0] sm:$0xff]
        %v2348 = vld [vmem:[#allocation16 + $0x1c8] sm:$0xff]
        %v2349 = vld [vmem:[#allocation16 + $0x1d0] sm:$0xff]
        %v2350 = vld [vmem:[#allocation16 + $0x1d8] sm:$0xff]
        %v2351 = vld [vmem:[#allocation16 + $0x1e0] sm:$0xff]
        %v2352 = vld [vmem:[#allocation16 + $0x1e8] sm:$0xff]
        %v2353 = vld [vmem:[#allocation16 + $0x1f0] sm:$0xff]
        %v2354 = vld [vmem:[#allocation16 + $0x1f8] sm:$0xff]
        %v2355 = vld [vmem:[#allocation16 + $0x200] sm:$0xff]
        %v2356 = vld [vmem:[#allocation16 + $0x208] sm:$0xff]
        %v2357 = vld [vmem:[#allocation16 + $0x210] sm:$0xff]
        %v2358 = vld [vmem:[#allocation16 + $0x218] sm:$0xff]
        %v2359 = vld [vmem:[#allocation16 + $0x220] sm:$0xff]
        %v2360 = vld [vmem:[#allocation16 + $0x228] sm:$0xff]
        %v2361 = vld [vmem:[#allocation16 + $0x230] sm:$0xff]
        %v2362 = vld [vmem:[#allocation16 + $0x238] sm:$0xff]
        %v2363 = vld [vmem:[#allocation16 + $0x240] sm:$0xff]
        %v2364 = vld [vmem:[#allocation16 + $0x248] sm:$0xff]
        %v2365 = vld [vmem:[#allocation16 + $0x250] sm:$0xff]
        %v2366 = vld [vmem:[#allocation16 + $0x258] sm:$0xff]
        %v2367 = vld [vmem:[#allocation16 + $0x260] sm:$0xff]
        %v2368 = vld [vmem:[#allocation16 + $0x268] sm:$0xff]
        %v2369 = vld [vmem:[#allocation16 + $0x270] sm:$0xff]
        %v2370 = vld [vmem:[#allocation16 + $0x278] sm:$0xff]
        %v2371 = vld [vmem:[#allocation16 + $0x280] sm:$0xff]
        %v2372 = vld [vmem:[#allocation16 + $0x288] sm:$0xff]
        %v2373 = vld [vmem:[#allocation16 + $0x290] sm:$0xff]
        %v2374 = vld [vmem:[#allocation16 + $0x298] sm:$0xff]
        %v2375 = vld [vmem:[#allocation16 + $0x2a0] sm:$0xff]
        %v2376 = vld [vmem:[#allocation16 + $0x2a8] sm:$0xff]
        %v2377 = vld [vmem:[#allocation16 + $0x2b0] sm:$0xff]
        %v2378 = vld [vmem:[#allocation16 + $0x2b8] sm:$0xff]
        %v2379 = vld [vmem:[#allocation16 + $0x2c0] sm:$0xff]
        %v2380 = vld [vmem:[#allocation16 + $0x2c8] sm:$0xff]
        %v2381 = vld [vmem:[#allocation16 + $0x2d0] sm:$0xff]
        %v2382 = vld [vmem:[#allocation16 + $0x2d8] sm:$0xff]
        %v2383 = vld [vmem:[#allocation16 + $0x2e0] sm:$0xff]
        %v2384 = vld [vmem:[#allocation16 + $0x2e8] sm:$0xff]
        %v2385 = vld [vmem:[#allocation16 + $0x2f0] sm:$0xff]
        %v2386 = vld [vmem:[#allocation16 + $0x2f8] sm:$0xff]
        %v2387 = vld [vmem:[#allocation16 + $0x300] sm:$0xff]
        %v2388 = vld [vmem:[#allocation16 + $0x308] sm:$0xff]
        %v2389 = vld [vmem:[#allocation16 + $0x310] sm:$0xff]
        %v2390 = vld [vmem:[#allocation16 + $0x318] sm:$0xff]
        %v2391 = vld [vmem:[#allocation16 + $0x320] sm:$0xff]
        %v2392 = vld [vmem:[#allocation16 + $0x328] sm:$0xff]
        %v2393 = vld [vmem:[#allocation16 + $0x330] sm:$0xff]
        %v2394 = vld [vmem:[#allocation16 + $0x338] sm:$0xff]
        %v2395 = vld [vmem:[#allocation16 + $0x340] sm:$0xff]
        %v2396 = vld [vmem:[#allocation16 + $0x348] sm:$0xff]
        %v2397 = vld [vmem:[#allocation16 + $0x350] sm:$0xff]
        %v2398 = vld [vmem:[#allocation16 + $0x358] sm:$0xff]
        %v2399 = vld [vmem:[#allocation16 + $0x360] sm:$0xff]
        %v2400 = vld [vmem:[#allocation16 + $0x368] sm:$0xff]
        %v2401 = vld [vmem:[#allocation16 + $0x370] sm:$0xff]
        %v2402 = vld [vmem:[#allocation16 + $0x378] sm:$0xff]
        %v2403 = vld [vmem:[#allocation16 + $0x380] sm:$0xff]
        %v2404 = vld [vmem:[#allocation16 + $0x388] sm:$0xff]
        %v2405 = vld [vmem:[#allocation16 + $0x390] sm:$0xff]
        %v2406 = vld [vmem:[#allocation16 + $0x398] sm:$0xff]
        %v2407 = vld [vmem:[#allocation16 + $0x3a0] sm:$0xff]
        %v2408 = vld [vmem:[#allocation16 + $0x3a8] sm:$0xff]
        %v2409 = vld [vmem:[#allocation16 + $0x3b0] sm:$0xff]
        %v2410 = vld [vmem:[#allocation16 + $0x3b8] sm:$0xff]
        %v2411 = vld [vmem:[#allocation16 + $0x3c0] sm:$0xff]
        %v2412 = vld [vmem:[#allocation16 + $0x3c8] sm:$0xff]
        %v2413 = vld [vmem:[#allocation16 + $0x3d0] sm:$0xff]
        %v2414 = vld [vmem:[#allocation16 + $0x3d8] sm:$0xff]
        %v2415 = vld [vmem:[#allocation16 + $0x3e0] sm:$0xff]
        %v2416 = vld [vmem:[#allocation16 + $0x3e8] sm:$0xff]
        %v2417 = vld [vmem:[#allocation16 + $0x3f0] sm:$0xff]
        %v2418 = vld [vmem:[#allocation16 + $0x3f8] sm:$0xff]
        %v2547 = vunpack.c.l.b16 %v2291
        %v2548 = vunpack.c.h.b16 %v2291
        %v2549 = vunpack.c.l.b16 %v2292
        %v2550 = vunpack.c.h.b16 %v2292
        %v2551 = vunpack.c.l.b16 %v2293
        %v2552 = vunpack.c.h.b16 %v2293
        %v2553 = vunpack.c.l.b16 %v2294
        %v2554 = vunpack.c.h.b16 %v2294
        %v2555 = vunpack.c.l.b16 %v2295
        %v2556 = vunpack.c.h.b16 %v2295
        %v2557 = vunpack.c.l.b16 %v2296
        %v2558 = vunpack.c.h.b16 %v2296
        %v2559 = vunpack.c.l.b16 %v2297
        %v2560 = vunpack.c.h.b16 %v2297
        %v2561 = vunpack.c.l.b16 %v2298
        %v2562 = vunpack.c.h.b16 %v2298
        %v2563 = vunpack.c.l.b16 %v2299
        %v2564 = vunpack.c.h.b16 %v2299
        %v2565 = vunpack.c.l.b16 %v2300
        %v2566 = vunpack.c.h.b16 %v2300
        %v2567 = vunpack.c.l.b16 %v2301
        %v2568 = vunpack.c.h.b16 %v2301
        %v2569 = vunpack.c.l.b16 %v2302
        %v2570 = vunpack.c.h.b16 %v2302
        %v2571 = vunpack.c.l.b16 %v2303
        %v2572 = vunpack.c.h.b16 %v2303
        %v2573 = vunpack.c.l.b16 %v2304
        %v2574 = vunpack.c.h.b16 %v2304
        %v2575 = vunpack.c.l.b16 %v2305
        %v2576 = vunpack.c.h.b16 %v2305
        %v2577 = vunpack.c.l.b16 %v2306
        %v2578 = vunpack.c.h.b16 %v2306
        %v2579 = vunpack.c.l.b16 %v2307
        %v2580 = vunpack.c.h.b16 %v2307
        %v2581 = vunpack.c.l.b16 %v2308
        %v2582 = vunpack.c.h.b16 %v2308
        %v2583 = vunpack.c.l.b16 %v2309
        %v2584 = vunpack.c.h.b16 %v2309
        %v2585 = vunpack.c.l.b16 %v2310
        %v2586 = vunpack.c.h.b16 %v2310
        %v2587 = vunpack.c.l.b16 %v2311
        %v2588 = vunpack.c.h.b16 %v2311
        %v2589 = vunpack.c.l.b16 %v2312
        %v2590 = vunpack.c.h.b16 %v2312
        %v2591 = vunpack.c.l.b16 %v2313
        %v2592 = vunpack.c.h.b16 %v2313
        %v2593 = vunpack.c.l.b16 %v2314
        %v2594 = vunpack.c.h.b16 %v2314
        %v2595 = vunpack.c.l.b16 %v2315
        %v2596 = vunpack.c.h.b16 %v2315
        %v2597 = vunpack.c.l.b16 %v2316
        %v2598 = vunpack.c.h.b16 %v2316
        %v2599 = vunpack.c.l.b16 %v2317
        %v2600 = vunpack.c.h.b16 %v2317
        %v2601 = vunpack.c.l.b16 %v2318
        %v2602 = vunpack.c.h.b16 %v2318
        %v2603 = vunpack.c.l.b16 %v2319
        %v2604 = vunpack.c.h.b16 %v2319
        %v2605 = vunpack.c.l.b16 %v2320
        %v2606 = vunpack.c.h.b16 %v2320
        %v2607 = vunpack.c.l.b16 %v2321
        %v2608 = vunpack.c.h.b16 %v2321
        %v2609 = vunpack.c.l.b16 %v2322
        %v2610 = vunpack.c.h.b16 %v2322
        %v2611 = vunpack.c.l.b16 %v2323
        %v2612 = vunpack.c.h.b16 %v2323
        %v2613 = vunpack.c.l.b16 %v2324
        %v2614 = vunpack.c.h.b16 %v2324
        %v2615 = vunpack.c.l.b16 %v2325
        %v2616 = vunpack.c.h.b16 %v2325
        %v2617 = vunpack.c.l.b16 %v2326
        %v2618 = vunpack.c.h.b16 %v2326
        %v2619 = vunpack.c.l.b16 %v2327
        %v2620 = vunpack.c.h.b16 %v2327
        %v2621 = vunpack.c.l.b16 %v2328
        %v2622 = vunpack.c.h.b16 %v2328
        %v2623 = vunpack.c.l.b16 %v2329
        %v2624 = vunpack.c.h.b16 %v2329
        %v2625 = vunpack.c.l.b16 %v2330
        %v2626 = vunpack.c.h.b16 %v2330
        %v2627 = vunpack.c.l.b16 %v2331
        %v2628 = vunpack.c.h.b16 %v2331
        %v2629 = vunpack.c.l.b16 %v2332
        %v2630 = vunpack.c.h.b16 %v2332
        %v2631 = vunpack.c.l.b16 %v2333
        %v2632 = vunpack.c.h.b16 %v2333
        %v2633 = vunpack.c.l.b16 %v2334
        %v2634 = vunpack.c.h.b16 %v2334
        %v2635 = vunpack.c.l.b16 %v2335
        %v2636 = vunpack.c.h.b16 %v2335
        %v2637 = vunpack.c.l.b16 %v2336
        %v2638 = vunpack.c.h.b16 %v2336
        %v2639 = vunpack.c.l.b16 %v2337
        %v2640 = vunpack.c.h.b16 %v2337
        %v2641 = vunpack.c.l.b16 %v2338
        %v2642 = vunpack.c.h.b16 %v2338
        %v2643 = vunpack.c.l.b16 %v2339
        %v2644 = vunpack.c.h.b16 %v2339
        %v2645 = vunpack.c.l.b16 %v2340
        %v2646 = vunpack.c.h.b16 %v2340
        %v2647 = vunpack.c.l.b16 %v2341
        %v2648 = vunpack.c.h.b16 %v2341
        %v2649 = vunpack.c.l.b16 %v2342
        %v2650 = vunpack.c.h.b16 %v2342
        %v2651 = vunpack.c.l.b16 %v2343
        %v2652 = vunpack.c.h.b16 %v2343
        %v2653 = vunpack.c.l.b16 %v2344
        %v2654 = vunpack.c.h.b16 %v2344
        %v2655 = vunpack.c.l.b16 %v2345
        %v2656 = vunpack.c.h.b16 %v2345
        %v2657 = vunpack.c.l.b16 %v2346
        %v2658 = vunpack.c.h.b16 %v2346
        %v2659 = vunpack.c.l.b16 %v2347
        %v2660 = vunpack.c.h.b16 %v2347
        %v2661 = vunpack.c.l.b16 %v2348
        %v2662 = vunpack.c.h.b16 %v2348
        %v2663 = vunpack.c.l.b16 %v2349
        %v2664 = vunpack.c.h.b16 %v2349
        %v2665 = vunpack.c.l.b16 %v2350
        %v2666 = vunpack.c.h.b16 %v2350
        %v2667 = vunpack.c.l.b16 %v2351
        %v2668 = vunpack.c.h.b16 %v2351
        %v2669 = vunpack.c.l.b16 %v2352
        %v2670 = vunpack.c.h.b16 %v2352
        %v2671 = vunpack.c.l.b16 %v2353
        %v2672 = vunpack.c.h.b16 %v2353
        %v2673 = vunpack.c.l.b16 %v2354
        %v2674 = vunpack.c.h.b16 %v2354
        %v2675 = vunpack.c.l.b16 %v2355
        %v2676 = vunpack.c.h.b16 %v2355
        %v2677 = vunpack.c.l.b16 %v2356
        %v2678 = vunpack.c.h.b16 %v2356
        %v2679 = vunpack.c.l.b16 %v2357
        %v2680 = vunpack.c.h.b16 %v2357
        %v2681 = vunpack.c.l.b16 %v2358
        %v2682 = vunpack.c.h.b16 %v2358
        %v2683 = vunpack.c.l.b16 %v2359
        %v2684 = vunpack.c.h.b16 %v2359
        %v2685 = vunpack.c.l.b16 %v2360
        %v2686 = vunpack.c.h.b16 %v2360
        %v2687 = vunpack.c.l.b16 %v2361
        %v2688 = vunpack.c.h.b16 %v2361
        %v2689 = vunpack.c.l.b16 %v2362
        %v2690 = vunpack.c.h.b16 %v2362
        %v2691 = vunpack.c.l.b16 %v2363
        %v2692 = vunpack.c.h.b16 %v2363
        %v2693 = vunpack.c.l.b16 %v2364
        %v2694 = vunpack.c.h.b16 %v2364
        %v2695 = vunpack.c.l.b16 %v2365
        %v2696 = vunpack.c.h.b16 %v2365
        %v2697 = vunpack.c.l.b16 %v2366
        %v2698 = vunpack.c.h.b16 %v2366
        %v2699 = vunpack.c.l.b16 %v2367
        %v2700 = vunpack.c.h.b16 %v2367
        %v2701 = vunpack.c.l.b16 %v2368
        %v2702 = vunpack.c.h.b16 %v2368
        %v2703 = vunpack.c.l.b16 %v2369
        %v2704 = vunpack.c.h.b16 %v2369
        %v2705 = vunpack.c.l.b16 %v2370
        %v2706 = vunpack.c.h.b16 %v2370
        %v2707 = vunpack.c.l.b16 %v2371
        %v2708 = vunpack.c.h.b16 %v2371
        %v2709 = vunpack.c.l.b16 %v2372
        %v2710 = vunpack.c.h.b16 %v2372
        %v2711 = vunpack.c.l.b16 %v2373
        %v2712 = vunpack.c.h.b16 %v2373
        %v2713 = vunpack.c.l.b16 %v2374
        %v2714 = vunpack.c.h.b16 %v2374
        %v2715 = vunpack.c.l.b16 %v2375
        %v2716 = vunpack.c.h.b16 %v2375
        %v2717 = vunpack.c.l.b16 %v2376
        %v2718 = vunpack.c.h.b16 %v2376
        %v2719 = vunpack.c.l.b16 %v2377
        %v2720 = vunpack.c.h.b16 %v2377
        %v2721 = vunpack.c.l.b16 %v2378
        %v2722 = vunpack.c.h.b16 %v2378
        %v2723 = vunpack.c.l.b16 %v2379
        %v2724 = vunpack.c.h.b16 %v2379
        %v2725 = vunpack.c.l.b16 %v2380
        %v2726 = vunpack.c.h.b16 %v2380
        %v2727 = vunpack.c.l.b16 %v2381
        %v2728 = vunpack.c.h.b16 %v2381
        %v2729 = vunpack.c.l.b16 %v2382
        %v2730 = vunpack.c.h.b16 %v2382
        %v2731 = vunpack.c.l.b16 %v2383
        %v2732 = vunpack.c.h.b16 %v2383
        %v2733 = vunpack.c.l.b16 %v2384
        %v2734 = vunpack.c.h.b16 %v2384
        %v2735 = vunpack.c.l.b16 %v2385
        %v2736 = vunpack.c.h.b16 %v2385
        %v2737 = vunpack.c.l.b16 %v2386
        %v2738 = vunpack.c.h.b16 %v2386
        %v2739 = vunpack.c.l.b16 %v2387
        %v2740 = vunpack.c.h.b16 %v2387
        %v2741 = vunpack.c.l.b16 %v2388
        %v2742 = vunpack.c.h.b16 %v2388
        %v2743 = vunpack.c.l.b16 %v2389
        %v2744 = vunpack.c.h.b16 %v2389
        %v2745 = vunpack.c.l.b16 %v2390
        %v2746 = vunpack.c.h.b16 %v2390
        %v2747 = vunpack.c.l.b16 %v2391
        %v2748 = vunpack.c.h.b16 %v2391
        %v2749 = vunpack.c.l.b16 %v2392
        %v2750 = vunpack.c.h.b16 %v2392
        %v2751 = vunpack.c.l.b16 %v2393
        %v2752 = vunpack.c.h.b16 %v2393
        %v2753 = vunpack.c.l.b16 %v2394
        %v2754 = vunpack.c.h.b16 %v2394
        %v2755 = vunpack.c.l.b16 %v2395
        %v2756 = vunpack.c.h.b16 %v2395
        %v2757 = vunpack.c.l.b16 %v2396
        %v2758 = vunpack.c.h.b16 %v2396
        %v2759 = vunpack.c.l.b16 %v2397
        %v2760 = vunpack.c.h.b16 %v2397
        %v2761 = vunpack.c.l.b16 %v2398
        %v2762 = vunpack.c.h.b16 %v2398
        %v2763 = vunpack.c.l.b16 %v2399
        %v2764 = vunpack.c.h.b16 %v2399
        %v2765 = vunpack.c.l.b16 %v2400
        %v2766 = vunpack.c.h.b16 %v2400
        %v2767 = vunpack.c.l.b16 %v2401
        %v2768 = vunpack.c.h.b16 %v2401
        %v2769 = vunpack.c.l.b16 %v2402
        %v2770 = vunpack.c.h.b16 %v2402
        %v2771 = vunpack.c.l.b16 %v2403
        %v2772 = vunpack.c.h.b16 %v2403
        %v2773 = vunpack.c.l.b16 %v2404
        %v2774 = vunpack.c.h.b16 %v2404
        %v2775 = vunpack.c.l.b16 %v2405
        %v2776 = vunpack.c.h.b16 %v2405
        %v2777 = vunpack.c.l.b16 %v2406
        %v2778 = vunpack.c.h.b16 %v2406
        %v2779 = vunpack.c.l.b16 %v2407
        %v2780 = vunpack.c.h.b16 %v2407
        %v2781 = vunpack.c.l.b16 %v2408
        %v2782 = vunpack.c.h.b16 %v2408
        %v2783 = vunpack.c.l.b16 %v2409
        %v2784 = vunpack.c.h.b16 %v2409
        %v2785 = vunpack.c.l.b16 %v2410
        %v2786 = vunpack.c.h.b16 %v2410
        %v2787 = vunpack.c.l.b16 %v2411
        %v2788 = vunpack.c.h.b16 %v2411
        %v2789 = vunpack.c.l.b16 %v2412
        %v2790 = vunpack.c.h.b16 %v2412
        %v2791 = vunpack.c.l.b16 %v2413
        %v2792 = vunpack.c.h.b16 %v2413
        %v2793 = vunpack.c.l.b16 %v2414
        %v2794 = vunpack.c.h.b16 %v2414
        %v2795 = vunpack.c.l.b16 %v2415
        %v2796 = vunpack.c.h.b16 %v2415
        %v2797 = vunpack.c.l.b16 %v2416
        %v2798 = vunpack.c.h.b16 %v2416
        %v2799 = vunpack.c.l.b16 %v2417
        %v2800 = vunpack.c.h.b16 %v2417
        %v2801 = vunpack.c.l.b16 %v2418
        %v2802 = vunpack.c.h.b16 %v2418
        %v2803 = vpack.c.b16 %v2549, %v2547
        %v2804 = vpack.c.b16 %v2550, %v2548
        %v2805 = vpack.c.b16 %v2553, %v2551
        %v2806 = vpack.c.b16 %v2554, %v2552
        %v2807 = vpack.c.b16 %v2557, %v2555
        %v2808 = vpack.c.b16 %v2558, %v2556
        %v2809 = vpack.c.b16 %v2561, %v2559
        %v2810 = vpack.c.b16 %v2562, %v2560
        %v2811 = vpack.c.b16 %v2565, %v2563
        %v2812 = vpack.c.b16 %v2566, %v2564
        %v2813 = vpack.c.b16 %v2569, %v2567
        %v2814 = vpack.c.b16 %v2570, %v2568
        %v2815 = vpack.c.b16 %v2573, %v2571
        %v2816 = vpack.c.b16 %v2574, %v2572
        %v2817 = vpack.c.b16 %v2577, %v2575
        %v2818 = vpack.c.b16 %v2578, %v2576
        %v2819 = vpack.c.b16 %v2581, %v2579
        %v2820 = vpack.c.b16 %v2582, %v2580
        %v2821 = vpack.c.b16 %v2585, %v2583
        %v2822 = vpack.c.b16 %v2586, %v2584
        %v2823 = vpack.c.b16 %v2589, %v2587
        %v2824 = vpack.c.b16 %v2590, %v2588
        %v2825 = vpack.c.b16 %v2593, %v2591
        %v2826 = vpack.c.b16 %v2594, %v2592
        %v2827 = vpack.c.b16 %v2597, %v2595
        %v2828 = vpack.c.b16 %v2598, %v2596
        %v2829 = vpack.c.b16 %v2601, %v2599
        %v2830 = vpack.c.b16 %v2602, %v2600
        %v2831 = vpack.c.b16 %v2605, %v2603
        %v2832 = vpack.c.b16 %v2606, %v2604
        %v2833 = vpack.c.b16 %v2609, %v2607
        %v2834 = vpack.c.b16 %v2610, %v2608
        %v2835 = vpack.c.b16 %v2613, %v2611
        %v2836 = vpack.c.b16 %v2614, %v2612
        %v2837 = vpack.c.b16 %v2617, %v2615
        %v2838 = vpack.c.b16 %v2618, %v2616
        %v2839 = vpack.c.b16 %v2621, %v2619
        %v2840 = vpack.c.b16 %v2622, %v2620
        %v2841 = vpack.c.b16 %v2625, %v2623
        %v2842 = vpack.c.b16 %v2626, %v2624
        %v2843 = vpack.c.b16 %v2629, %v2627
        %v2844 = vpack.c.b16 %v2630, %v2628
        %v2845 = vpack.c.b16 %v2633, %v2631
        %v2846 = vpack.c.b16 %v2634, %v2632
        %v2847 = vpack.c.b16 %v2637, %v2635
        %v2848 = vpack.c.b16 %v2638, %v2636
        %v2849 = vpack.c.b16 %v2641, %v2639
        %v2850 = vpack.c.b16 %v2642, %v2640
        %v2851 = vpack.c.b16 %v2645, %v2643
        %v2852 = vpack.c.b16 %v2646, %v2644
        %v2853 = vpack.c.b16 %v2649, %v2647
        %v2854 = vpack.c.b16 %v2650, %v2648
        %v2855 = vpack.c.b16 %v2653, %v2651
        %v2856 = vpack.c.b16 %v2654, %v2652
        %v2857 = vpack.c.b16 %v2657, %v2655
        %v2858 = vpack.c.b16 %v2658, %v2656
        %v2859 = vpack.c.b16 %v2661, %v2659
        %v2860 = vpack.c.b16 %v2662, %v2660
        %v2861 = vpack.c.b16 %v2665, %v2663
        %v2862 = vpack.c.b16 %v2666, %v2664
        %v2863 = vpack.c.b16 %v2669, %v2667
        %v2864 = vpack.c.b16 %v2670, %v2668
        %v2865 = vpack.c.b16 %v2673, %v2671
        %v2866 = vpack.c.b16 %v2674, %v2672
        %v2867 = vpack.c.b16 %v2677, %v2675
        %v2868 = vpack.c.b16 %v2678, %v2676
        %v2869 = vpack.c.b16 %v2681, %v2679
        %v2870 = vpack.c.b16 %v2682, %v2680
        %v2871 = vpack.c.b16 %v2685, %v2683
        %v2872 = vpack.c.b16 %v2686, %v2684
        %v2873 = vpack.c.b16 %v2689, %v2687
        %v2874 = vpack.c.b16 %v2690, %v2688
        %v2875 = vpack.c.b16 %v2693, %v2691
        %v2876 = vpack.c.b16 %v2694, %v2692
        %v2877 = vpack.c.b16 %v2697, %v2695
        %v2878 = vpack.c.b16 %v2698, %v2696
        %v2879 = vpack.c.b16 %v2701, %v2699
        %v2880 = vpack.c.b16 %v2702, %v2700
        %v2881 = vpack.c.b16 %v2705, %v2703
        %v2882 = vpack.c.b16 %v2706, %v2704
        %v2883 = vpack.c.b16 %v2709, %v2707
        %v2884 = vpack.c.b16 %v2710, %v2708
        %v2885 = vpack.c.b16 %v2713, %v2711
        %v2886 = vpack.c.b16 %v2714, %v2712
        %v2887 = vpack.c.b16 %v2717, %v2715
        %v2888 = vpack.c.b16 %v2718, %v2716
        %v2889 = vpack.c.b16 %v2721, %v2719
        %v2890 = vpack.c.b16 %v2722, %v2720
        %v2891 = vpack.c.b16 %v2725, %v2723
        %v2892 = vpack.c.b16 %v2726, %v2724
        %v2893 = vpack.c.b16 %v2729, %v2727
        %v2894 = vpack.c.b16 %v2730, %v2728
        %v2895 = vpack.c.b16 %v2733, %v2731
        %v2896 = vpack.c.b16 %v2734, %v2732
        %v2897 = vpack.c.b16 %v2737, %v2735
        %v2898 = vpack.c.b16 %v2738, %v2736
        %v2899 = vpack.c.b16 %v2741, %v2739
        %v2900 = vpack.c.b16 %v2742, %v2740
        %v2901 = vpack.c.b16 %v2745, %v2743
        %v2902 = vpack.c.b16 %v2746, %v2744
        %v2903 = vpack.c.b16 %v2749, %v2747
        %v2904 = vpack.c.b16 %v2750, %v2748
        %v2905 = vpack.c.b16 %v2753, %v2751
        %v2906 = vpack.c.b16 %v2754, %v2752
        %v2907 = vpack.c.b16 %v2757, %v2755
        %v2908 = vpack.c.b16 %v2758, %v2756
        %v2909 = vpack.c.b16 %v2761, %v2759
        %v2910 = vpack.c.b16 %v2762, %v2760
        %v2911 = vpack.c.b16 %v2765, %v2763
        %v2912 = vpack.c.b16 %v2766, %v2764
        %v2913 = vpack.c.b16 %v2769, %v2767
        %v2914 = vpack.c.b16 %v2770, %v2768
        %v2915 = vpack.c.b16 %v2773, %v2771
        %v2916 = vpack.c.b16 %v2774, %v2772
        %v2917 = vpack.c.b16 %v2777, %v2775
        %v2918 = vpack.c.b16 %v2778, %v2776
        %v2919 = vpack.c.b16 %v2781, %v2779
        %v2920 = vpack.c.b16 %v2782, %v2780
        %v2921 = vpack.c.b16 %v2785, %v2783
        %v2922 = vpack.c.b16 %v2786, %v2784
        %v2923 = vpack.c.b16 %v2789, %v2787
        %v2924 = vpack.c.b16 %v2790, %v2788
        %v2925 = vpack.c.b16 %v2793, %v2791
        %v2926 = vpack.c.b16 %v2794, %v2792
        %v2927 = vpack.c.b16 %v2797, %v2795
        %v2928 = vpack.c.b16 %v2798, %v2796
        %v2929 = vpack.c.b16 %v2801, %v2799
        %v2930 = vpack.c.b16 %v2802, %v2800
        %3059 = vmatprep.subr.bf16.mxu0 %v2804
        %3060 = vmatpush1.bf16.msra.mxu0 %v2803
        %3061 = vmatprep.subr.bf16.mxu0 %v2806
        %3062 = vmatpush1.bf16.msra.mxu0 %v2805
        %3063 = vmatprep.subr.bf16.mxu0 %v2808
        %3064 = vmatpush1.bf16.msra.mxu0 %v2807
        %3065 = vmatprep.subr.bf16.mxu0 %v2810
        %3066 = vmatpush1.bf16.msra.mxu0 %v2809
        %3067 = vmatprep.subr.bf16.mxu0 %v2812
        %3068 = vmatpush1.bf16.msra.mxu0 %v2811
        %3069 = vmatprep.subr.bf16.mxu0 %v2814
        %3070 = vmatpush1.bf16.msra.mxu0 %v2813
        %3071 = vmatprep.subr.bf16.mxu0 %v2816
        %3072 = vmatpush1.bf16.msra.mxu0 %v2815
        %3073 = vmatprep.subr.bf16.mxu0 %v2818
        %3074 = vmatpush1.bf16.msra.mxu0 %v2817
        %3075 = vmatprep.subr.bf16.mxu0 %v2820
        %3076 = vmatpush1.bf16.msra.mxu0 %v2819
        %3077 = vmatprep.subr.bf16.mxu0 %v2822
        %3078 = vmatpush1.bf16.msra.mxu0 %v2821
        %3079 = vmatprep.subr.bf16.mxu0 %v2824
        %3080 = vmatpush1.bf16.msra.mxu0 %v2823
        %3081 = vmatprep.subr.bf16.mxu0 %v2826
        %3082 = vmatpush1.bf16.msra.mxu0 %v2825
        %3083 = vmatprep.subr.bf16.mxu0 %v2828
        %3084 = vmatpush1.bf16.msra.mxu0 %v2827
        %3085 = vmatprep.subr.bf16.mxu0 %v2830
        %3086 = vmatpush1.bf16.msra.mxu0 %v2829
        %3087 = vmatprep.subr.bf16.mxu0 %v2832
        %3088 = vmatpush1.bf16.msra.mxu0 %v2831
        %3089 = vmatprep.subr.bf16.mxu0 %v2834
        %3090 = vmatpush1.bf16.msra.mxu0 %v2833
        %3091 = vmatprep.mubr.bf16.mxu0 %v2276
        %3092 = vmatmul.mubr.bf16.gmra.mrb[0].mxu0 %v2275
        %v3093 = vpop.f32.mrb[0].mxu0
        %v3094 = vadd.f32 0.0, %v3093
        %v3095 = vpop.f32.mrb[0].mxu0
        %v3096 = vadd.f32 0.0, %v3095
        %v3097 = vpop.f32.mrb[0].mxu0
        %v3098 = vadd.f32 0.0, %v3097
        %v3099 = vpop.f32.mrb[0].mxu0
        %v3100 = vadd.f32 0.0, %v3099
        %3101 = vmatprep.mubr.bf16.mxu0 %v2284
        %3102 = vmatmul.mubr.bf16.gmra.mrb[0].mxu0 %v2283
        %v3103 = vpop.f32.mrb[0].mxu0
        %v3104 = vadd.f32 0.0, %v3103
        %v3105 = vpop.f32.mrb[0].mxu0
        %v3106 = vadd.f32 0.0, %v3105
        %v3107 = vpop.f32.mrb[0].mxu0
        %v3108 = vadd.f32 0.0, %v3107
        %v3109 = vpop.f32.mrb[0].mxu0
        %v3110 = vadd.f32 0.0, %v3109
        %3111 = vdwg.mxu0
        %3112 = vmatprep.subr.bf16.mxu0 %v2836
        %3113 = vmatpush1.bf16.msra.mxu0 %v2835
        %3114 = vmatprep.subr.bf16.mxu0 %v2838
        %3115 = vmatpush1.bf16.msra.mxu0 %v2837
        %3116 = vmatprep.subr.bf16.mxu0 %v2840
        %3117 = vmatpush1.bf16.msra.mxu0 %v2839
        %3118 = vmatprep.subr.bf16.mxu0 %v2842
        %3119 = vmatpush1.bf16.msra.mxu0 %v2841
        %3120 = vmatprep.subr.bf16.mxu0 %v2844
        %3121 = vmatpush1.bf16.msra.mxu0 %v2843
        %3122 = vmatprep.subr.bf16.mxu0 %v2846
        %3123 = vmatpush1.bf16.msra.mxu0 %v2845
        %3124 = vmatprep.subr.bf16.mxu0 %v2848
        %3125 = vmatpush1.bf16.msra.mxu0 %v2847
        %3126 = vmatprep.subr.bf16.mxu0 %v2850
        %3127 = vmatpush1.bf16.msra.mxu0 %v2849
        %3128 = vmatprep.subr.bf16.mxu0 %v2852
        %3129 = vmatpush1.bf16.msra.mxu0 %v2851
        %3130 = vmatprep.subr.bf16.mxu0 %v2854
        %3131 = vmatpush1.bf16.msra.mxu0 %v2853
        %3132 = vmatprep.subr.bf16.mxu0 %v2856
        %3133 = vmatpush1.bf16.msra.mxu0 %v2855
        %3134 = vmatprep.subr.bf16.mxu0 %v2858
        %3135 = vmatpush1.bf16.msra.mxu0 %v2857
        %3136 = vmatprep.subr.bf16.mxu0 %v2860
        %3137 = vmatpush1.bf16.msra.mxu0 %v2859
        %3138 = vmatprep.subr.bf16.mxu0 %v2862
        %3139 = vmatpush1.bf16.msra.mxu0 %v2861
        %3140 = vmatprep.subr.bf16.mxu0 %v2864
        %3141 = vmatpush1.bf16.msra.mxu0 %v2863
        %3142 = vmatprep.subr.bf16.mxu0 %v2866
        %3143 = vmatpush1.bf16.msra.mxu0 %v2865
        %3144 = vmatprep.mubr.bf16.mxu0 %v2278
        %3145 = vmatmul.mubr.bf16.gmra.mrb[0].mxu0 %v2277
        %v3146 = vpop.f32.mrb[0].mxu0
        %v3147 = vadd.f32 %v3094, %v3146
        %v3148 = vpop.f32.mrb[0].mxu0
        %v3149 = vadd.f32 %v3096, %v3148
        %v3150 = vpop.f32.mrb[0].mxu0
        %v3151 = vadd.f32 %v3098, %v3150
        %v3152 = vpop.f32.mrb[0].mxu0
        %v3153 = vadd.f32 %v3100, %v3152
        %3154 = vmatprep.mubr.bf16.mxu0 %v2286
        %3155 = vmatmul.mubr.bf16.gmra.mrb[0].mxu0 %v2285
        %v3156 = vpop.f32.mrb[0].mxu0
        %v3157 = vadd.f32 %v3104, %v3156
        %v3158 = vpop.f32.mrb[0].mxu0
        %v3159 = vadd.f32 %v3106, %v3158
        %v3160 = vpop.f32.mrb[0].mxu0
        %v3161 = vadd.f32 %v3108, %v3160
        %v3162 = vpop.f32.mrb[0].mxu0
        %v3163 = vadd.f32 %v3110, %v3162
        %3164 = vdwg.mxu0
        %3165 = vmatprep.subr.bf16.mxu0 %v2868
        %3166 = vmatpush1.bf16.msra.mxu0 %v2867
        %3167 = vmatprep.subr.bf16.mxu0 %v2870
        %3168 = vmatpush1.bf16.msra.mxu0 %v2869
        %3169 = vmatprep.subr.bf16.mxu0 %v2872
        %3170 = vmatpush1.bf16.msra.mxu0 %v2871
        %3171 = vmatprep.subr.bf16.mxu0 %v2874
        %3172 = vmatpush1.bf16.msra.mxu0 %v2873
        %3173 = vmatprep.subr.bf16.mxu0 %v2876
        %3174 = vmatpush1.bf16.msra.mxu0 %v2875
        %3175 = vmatprep.subr.bf16.mxu0 %v2878
        %3176 = vmatpush1.bf16.msra.mxu0 %v2877
        %3177 = vmatprep.subr.bf16.mxu0 %v2880
        %3178 = vmatpush1.bf16.msra.mxu0 %v2879
        %3179 = vmatprep.subr.bf16.mxu0 %v2882
        %3180 = vmatpush1.bf16.msra.mxu0 %v2881
        %3181 = vmatprep.subr.bf16.mxu0 %v2884
        %3182 = vmatpush1.bf16.msra.mxu0 %v2883
        %3183 = vmatprep.subr.bf16.mxu0 %v2886
        %3184 = vmatpush1.bf16.msra.mxu0 %v2885
        %3185 = vmatprep.subr.bf16.mxu0 %v2888
        %3186 = vmatpush1.bf16.msra.mxu0 %v2887
        %3187 = vmatprep.subr.bf16.mxu0 %v2890
        %3188 = vmatpush1.bf16.msra.mxu0 %v2889
        %3189 = vmatprep.subr.bf16.mxu0 %v2892
        %3190 = vmatpush1.bf16.msra.mxu0 %v2891
        %3191 = vmatprep.subr.bf16.mxu0 %v2894
        %3192 = vmatpush1.bf16.msra.mxu0 %v2893
        %3193 = vmatprep.subr.bf16.mxu0 %v2896
        %3194 = vmatpush1.bf16.msra.mxu0 %v2895
        %3195 = vmatprep.subr.bf16.mxu0 %v2898
        %3196 = vmatpush1.bf16.msra.mxu0 %v2897
        %3197 = vmatprep.mubr.bf16.mxu0 %v2280
        %3198 = vmatmul.mubr.bf16.gmra.mrb[0].mxu0 %v2279
        %v3199 = vpop.f32.mrb[0].mxu0
        %v3200 = vadd.f32 %v3147, %v3199
        %v3201 = vpop.f32.mrb[0].mxu0
        %v3202 = vadd.f32 %v3149, %v3201
        %v3203 = vpop.f32.mrb[0].mxu0
        %v3204 = vadd.f32 %v3151, %v3203
        %v3205 = vpop.f32.mrb[0].mxu0
        %v3206 = vadd.f32 %v3153, %v3205
        %3207 = vmatprep.mubr.bf16.mxu0 %v2288
        %3208 = vmatmul.mubr.bf16.gmra.mrb[0].mxu0 %v2287
        %v3209 = vpop.f32.mrb[0].mxu0
        %v3210 = vadd.f32 %v3157, %v3209
        %v3211 = vpop.f32.mrb[0].mxu0
        %v3212 = vadd.f32 %v3159, %v3211
        %v3213 = vpop.f32.mrb[0].mxu0
        %v3214 = vadd.f32 %v3161, %v3213
        %v3215 = vpop.f32.mrb[0].mxu0
        %v3216 = vadd.f32 %v3163, %v3215
        %3217 = vdwg.mxu0
        %3218 = vmatprep.subr.bf16.mxu0 %v2900
        %3219 = vmatpush1.bf16.msra.mxu0 %v2899
        %3220 = vmatprep.subr.bf16.mxu0 %v2902
        %3221 = vmatpush1.bf16.msra.mxu0 %v2901
        %3222 = vmatprep.subr.bf16.mxu0 %v2904
        %3223 = vmatpush1.bf16.msra.mxu0 %v2903
        %3224 = vmatprep.subr.bf16.mxu0 %v2906
        %3225 = vmatpush1.bf16.msra.mxu0 %v2905
        %3226 = vmatprep.subr.bf16.mxu0 %v2908
        %3227 = vmatpush1.bf16.msra.mxu0 %v2907
        %3228 = vmatprep.subr.bf16.mxu0 %v2910
        %3229 = vmatpush1.bf16.msra.mxu0 %v2909
        %3230 = vmatprep.subr.bf16.mxu0 %v2912
        %3231 = vmatpush1.bf16.msra.mxu0 %v2911
        %3232 = vmatprep.subr.bf16.mxu0 %v2914
        %3233 = vmatpush1.bf16.msra.mxu0 %v2913
        %3234 = vmatprep.subr.bf16.mxu0 %v2916
        %3235 = vmatpush1.bf16.msra.mxu0 %v2915
        %3236 = vmatprep.subr.bf16.mxu0 %v2918
        %3237 = vmatpush1.bf16.msra.mxu0 %v2917
        %3238 = vmatprep.subr.bf16.mxu0 %v2920
        %3239 = vmatpush1.bf16.msra.mxu0 %v2919
        %3240 = vmatprep.subr.bf16.mxu0 %v2922
        %3241 = vmatpush1.bf16.msra.mxu0 %v2921
        %3242 = vmatprep.subr.bf16.mxu0 %v2924
        %3243 = vmatpush1.bf16.msra.mxu0 %v2923
        %3244 = vmatprep.subr.bf16.mxu0 %v2926
        %3245 = vmatpush1.bf16.msra.mxu0 %v2925
        %3246 = vmatprep.subr.bf16.mxu0 %v2928
        %3247 = vmatpush1.bf16.msra.mxu0 %v2927
        %3248 = vmatprep.subr.bf16.mxu0 %v2930
        %3249 = vmatpush1.bf16.msra.mxu0 %v2929
        %3250 = vmatprep.mubr.bf16.mxu0 %v2282
        %3251 = vmatmul.mubr.bf16.gmra.mrb[0].mxu0 %v2281
        %v3252 = vpop.f32.mrb[0].mxu0
        %v3253 = vadd.f32 %v3200, %v3252
        %v3254 = vpop.f32.mrb[0].mxu0
        %v3255 = vadd.f32 %v3202, %v3254
        %v3256 = vpop.f32.mrb[0].mxu0
        %v3257 = vadd.f32 %v3204, %v3256
        %v3258 = vpop.f32.mrb[0].mxu0
        %v3259 = vadd.f32 %v3206, %v3258
        %3260 = vmatprep.mubr.bf16.mxu0 %v2290
        %3261 = vmatmul.mubr.bf16.gmra.mrb[0].mxu0 %v2289
        %v3262 = vpop.f32.mrb[0].mxu0
        %v3263 = vadd.f32 %v3210, %v3262
        %v3264 = vpop.f32.mrb[0].mxu0
        %v3265 = vadd.f32 %v3212, %v3264
        %v3266 = vpop.f32.mrb[0].mxu0
        %v3267 = vadd.f32 %v3214, %v3266
        %v3268 = vpop.f32.mrb[0].mxu0
        %v3269 = vadd.f32 %v3216, %v3268
        %3270 = vdwg.mxu0
        %v3271 = vadd.f32 %v848, %v3253
        %v3272 = vadd.f32 %v849, %v3255
        %v3273 = vadd.f32 %v850, %v3257
        %v3274 = vadd.f32 %v851, %v3259
        %v3275 = vadd.f32 %v852, %v3263
        %v3276 = vadd.f32 %v853, %v3265
        %v3277 = vadd.f32 %v854, %v3267
        %v3278 = vadd.f32 %v855, %v3269
        %v3279 = vld [vmem:[#allocation17] sm:$0x3]
        %v3281 = vlaneseq
        %v3282 = vshrl.u32 %v3281, 7
        %v3283 = vsub.s32 0, %v3282
        %v3284 = vrot.slane %v3279, %v3283
        %v3285 = vlaneseq
        %v3286 = vshrl.u32 %v3285, 7
        %v3287 = vsub.s32 1, %v3286
        %v3288 = vrot.slane %v3279, %v3287
        %v3291 = vadd.f32 %v3271, %v3284
        %v3292 = vadd.f32 %v3272, %v3288
        %v3293 = vadd.f32 %v3273, %v3284
        %v3294 = vadd.f32 %v3274, %v3288
        %v3295 = vadd.f32 %v3275, %v3284
        %v3296 = vadd.f32 %v3276, %v3288
        %v3297 = vadd.f32 %v3277, %v3284
        %v3298 = vadd.f32 %v3278, %v3288
        %3299 = vst [vmem:[%s547] sm:$0xff] %v3291
        %3300 = vst [vmem:[%s547 + $0x8] sm:$0xff] %v3292
        %3301 = vst [vmem:[%s547 + $0x10] sm:$0xff] %v3293
        %3302 = vst [vmem:[%s547 + $0x18] sm:$0xff] %v3294
        %3303 = vst [vmem:[%s547 + $0x20] sm:$0xff] %v3295
        %3304 = vst [vmem:[%s547 + $0x28] sm:$0xff] %v3296
        %3305 = vst [vmem:[%s547 + $0x30] sm:$0xff] %v3297
        %3306 = vst [vmem:[%s547 + $0x38] sm:$0xff] %v3298
        %s3307 = sand.u32 %s280, 1
        %s3308 = scalar_lea.sflag [#allocation4], %s3307
        %s3309 = sand.u32 %s280, 1
        %s3310 = smul.addr %s3309, 64
        %s3311 = scalar_lea.vmem [#allocation19], %s3310
        // Predicated region
        $region101: #{gpt_forward.9} parent=59 // pred_check
          %p3312 = pneg %p290
        $region102: #{gpt_forward.9} parent=59 // pred_check_branch
          %3314 = sbr.rel (%p3312) target = $region104
        $region103: #{gpt_forward.9} parent=59 // pred_region
          %s3315 = smul.u32 4, %s39
          %s3317 = ssub.s32 1024, 1024
          %3318 = vsyncadd %s3308, %s3317
          %s3319 = smul.addr %s3315, 2
          %s3320 = smul.addr %s38, 16
          %s3321 = sadd.s32 %s3319, %s3320
          %s3322 = smul.addr %s3321, 128
          %s3323 = scalar_lea.hbm %s10, %s3322
          %s3324 = sshll.u32 %s3311, 4
          %s3325 = int_to_ptr.vmem [resolvable:$true] %s3324
          %3330 = dma.vmem_to_hbm [thread:$0]  %s3325, 1024, %s3323, %s3308, 256, 256, 16
        $region104: #{gpt_forward.9} parent=59 // pred_fallthru
          _
      $region60: #{gpt_forward.9} parent=5 // pred_fallthru
        _
      %p3331 = scmp.le.s32.totalorder 2, %s29
      // Predicated region
      $region105: #{gpt_forward.9} parent=5 // pred_check
        %p3332 = pneg %p3331
      $region106: #{gpt_forward.9} parent=5 // pred_check_branch
        %3334 = sbr.rel (%p3332) target = $region108
      $region107: #{gpt_forward.9} parent=5 // pred_region
        %s3335 = ssub.s32 %s29, 2
        // Predicated region
        $region109: #{gpt_forward.9} parent=107 // pred_check
          %p3336 = pneg %p296
        $region110: #{gpt_forward.9} parent=107 // pred_check_branch
          %3338 = sbr.rel (%p3336) target = $region112
        $region111: #{gpt_forward.9} parent=107 // pred_region
          %s3339 = sand.u32 %s281, 1
          %s3340 = scalar_lea.sflag [#allocation4], %s3339
          %s3341 = sand.u32 %s281, 1
          %s3342 = smul.addr %s3341, 64
          %s3343 = scalar_lea.vmem [#allocation19], %s3342
          %3344 = dma.done %s3340, 1024
        $region112: #{gpt_forward.9} parent=107 // pred_fallthru
          _
      $region108: #{gpt_forward.9} parent=5 // pred_fallthru
        _
    $region6: #{gpt_forward.9} parent=1 // loop_footer
      %s33 = sadd.s32 1, %s29
    $region7: #{gpt_forward.9} parent=1 // loop_footer_branch
      %28 = sbr.rel target = $region3
    $region8: #{gpt_forward.9} parent=1 // loop_exit
      _
    %3345 = vsyncpa [#allocation3], 1
    %s3346 = scalar_lea.sflag [#allocation3], 1
    %3347 = vsyncpa %s3346, 1
    %3348 = vsyncpa [#allocation6], 1
    %s3349 = scalar_lea.sflag [#allocation6], 1
    %3350 = vsyncpa %s3349, 1
    %3351 = vsyncpa [#allocation9], 1
    %3352 = vsyncpa [#allocation12], 1
    %3353 = vsyncpa [#allocation15], 1
    %3354 = vsyncpa [#allocation18], 1
    %3355 = vsyncpa [#allocation4], 1
    %s3356 = scalar_lea.sflag [#allocation4], 1
    %3357 = vsyncpa %s3356, 1

</llo_original>
